<compile_context>
chip_gen: v7x
topology: tpu7x:2x2x1
jax: 0.10.0
libtpu: 0.0.40
codegen_flags: <defaults>
</compile_context>

<pallas_src>
import functools

import jax
import jax.numpy as jnp
from jax import lax
from jax.experimental import pallas as pl
from jax.experimental.pallas import tpu as pltpu


def _round_up(x, m):
    return ((x + m - 1) // m) * m


# ----------------------------------------------------------------------------
# bf16-operand matmul helper: f32 accumulation, bias add in f32.
# ----------------------------------------------------------------------------
def _bdot(x, w_ref, b_ref=None):
    y = jnp.dot(x.astype(jnp.bfloat16), w_ref[...],
                preferred_element_type=jnp.float32)
    if b_ref is not None:
        y = y + b_ref[...]
    return y


# ----------------------------------------------------------------------------
# GRU helpers (PyTorch semantics, gate order r|z|n concatenated on lanes).
#   gi = x @ W_ih + b_ih   (precomputed or via _gru_cell)
#   gh = h @ W_hh + b_hh
#   r,z = sigmoid(gi[:, :2H] + gh[:, :2H]);  n = tanh(gi_n + r * gh_n)
#   h'  = (1-z)*n + z*h
# ----------------------------------------------------------------------------
def _gru_gates(gi, h, whh_ref, bhh_ref, hsz):
    gh = _bdot(h, whh_ref, bhh_ref)
    rz = jax.nn.sigmoid(gi[:, :2 * hsz] + gh[:, :2 * hsz])
    r = rz[:, :hsz]
    z = rz[:, hsz:2 * hsz]
    n = jnp.tanh(gi[:, 2 * hsz:3 * hsz] + r * gh[:, 2 * hsz:3 * hsz])
    return (1.0 - z) * n + z * h


def _gru_cell(x, h, wih_ref, bih_ref, whh_ref, bhh_ref, hsz):
    gi = _bdot(x, wih_ref, bih_ref)
    return _gru_gates(gi, h, whh_ref, bhh_ref, hsz)


# ----------------------------------------------------------------------------
# Per-node MLP ("GCN") kernel, fused with the (folded) GRU layer-1 input
# projection: x (M, d0) -> (M, out_pad), optional ReLU per layer.
# ----------------------------------------------------------------------------
def _make_mlp_kernel(n_layers, relu_flags):
    def kernel(x_ref, *refs):
        w_refs = refs[:n_layers]
        b_refs = refs[n_layers:2 * n_layers]
        o_ref = refs[2 * n_layers]
        h = x_ref[...]
        for i in range(n_layers):
            h = jnp.dot(h.astype(jnp.bfloat16), w_refs[i][...],
                        preferred_element_type=jnp.float32) + b_refs[i][...]
            if relu_flags[i]:
                h = jnp.maximum(h, 0.0)
        o_ref[...] = h.astype(o_ref.dtype)
    return kernel


def mlp_pallas(x, weights, biases, relu_flags, max_rows=1024):
    n = len(weights)
    M, in_dim = x.shape
    out_dim = weights[-1].shape[1]          # lane-padded to a multiple of 128
    bm = min(_round_up(M, 8), max_rows)
    m_pad = _round_up(M, bm)
    if m_pad != M:
        x = jnp.pad(x, ((0, m_pad - M), (0, 0)))
    in_specs = [pl.BlockSpec((bm, in_dim), lambda i: (i, 0))]
    for w in weights:
        in_specs.append(pl.BlockSpec(w.shape, lambda i: (0, 0)))
    for b in biases:
        in_specs.append(pl.BlockSpec(b.shape, lambda i: (0, 0)))
    out = pl.pallas_call(
        _make_mlp_kernel(n, tuple(relu_flags)),
        out_shape=jax.ShapeDtypeStruct((m_pad, out_dim), jnp.float32),
        grid=(m_pad // bm,),
        in_specs=in_specs,
        out_specs=pl.BlockSpec((bm, out_dim), lambda i: (i, 0)),
        compiler_params=pltpu.CompilerParams(dimension_semantics=("parallel",)),
    )(x, *weights, *biases)
    return out[:M] if m_pad != M else out


# ----------------------------------------------------------------------------
# Fused: confounders GRU (2 layers) + encoder + autoregressive rollout +
# decoder GRU, with the decoder linear hoisted out of the serial chain.
# Grid is a "parallel" split over independent rows (nodes).
# ----------------------------------------------------------------------------
def _recurrent_kernel(
        gi_ref, c_ref,
        whh1c_ref, bhh1c_ref,
        wih2c_ref, bih2c_ref, whh2c_ref, bhh2c_ref,
        wenc_ref, benc_ref,
        w1z_ref, w1c_ref, b1_ref, w2_ref, b2_ref,
        wfd_ref, bfd_ref, whh0_ref, bhh0_ref,
        wih1d_ref, bih1d_ref, whh1d_ref, bhh1d_ref,
        wcd_ref,
        wihdec_ref, bihdec_ref, whhdec_ref, bhhdec_ref,
        wdec_ref, bdec_ref,
        y_ref, hd_scratch):
    T = gi_ref.shape[0]
    BN, S = c_ref.shape
    CF = whh1c_ref.shape[0]
    EMB = whh0_ref.shape[0]
    Z = wenc_ref.shape[1]
    Tp = y_ref.shape[0]

    # ---- Confounders GRU (2 layers) over T steps; layer-1 input projection
    #      precomputed (and fused with the GCN) -> gi_ref already includes b_ih.
    def conf_step(t, carry):
        h1, h2 = carry
        gi1 = gi_ref[t]                                   # (BN, >=3*CF), f32
        h1n = _gru_gates(gi1, h1, whh1c_ref, bhh1c_ref, CF)
        h2n = _gru_cell(h1n, h2, wih2c_ref, bih2c_ref, whh2c_ref, bhh2c_ref, CF)
        return h1n, h2n

    hc0 = jnp.zeros((BN, CF), jnp.float32)
    _, cf = lax.fori_loop(0, T, conf_step, (hc0, hc0), unroll=True)

    # ---- Encoder: z0 = c @ W_enc + b_enc (GCN n_layers=0 -> single linear).
    z0 = _bdot(c_ref[...], wenc_ref, benc_ref)            # (BN, Z)
    # Hoisted: cf contribution of the dynamic GCN's first layer (+ b1) is
    # constant over the horizon.
    e_cf = _bdot(cf, w1c_ref, b1_ref)                     # (BN, HID)

    # ---- Decoder GRU consumes z_0 first; store hidden into scratch.
    hd = _gru_cell(z0, jnp.zeros((BN, Z), jnp.float32),
                   wihdec_ref, bihdec_ref, whhdec_ref, bhhdec_ref, Z)
    hd_scratch[0] = hd

    # ---- Autoregressive rollout: horizon dynamic-module steps, each followed
    #      by one decoder-GRU step on the new z.
    def roll_step(t, carry):
        z, h0, h1, hd_c = carry
        e = jnp.maximum(_bdot(z, w1z_ref) + e_cf, 0.0)
        e = jnp.maximum(_bdot(e, w2_ref, b2_ref), 0.0)
        # Folded (w3 @ W_ih^0) input projection of dynamic GRU layer 0.
        gi0 = _bdot(e, wfd_ref, bfd_ref)
        h0n = _gru_gates(gi0, h0, whh0_ref, bhh0_ref, EMB)
        h1n = _gru_cell(h0n, h1, wih1d_ref, bih1d_ref, whh1d_ref, bhh1d_ref, EMB)
        zn = z + _bdot(h1n, wcd_ref)                      # delta (no bias)
        hdn = _gru_cell(zn, hd_c, wihdec_ref, bihdec_ref,
                        whhdec_ref, bhhdec_ref, Z)
        hd_scratch[t + 1] = hdn
        return zn, h0n, h1n, hdn

    he0 = jnp.zeros((BN, EMB), jnp.float32)
    lax.fori_loop(0, Tp - 1, roll_step, (z0, he0, he0, hd), unroll=True)

    # ---- Hoisted decoder linear: one batched matmul + a single store.
    hd_all = hd_scratch[...].reshape(Tp * BN, Z)
    y = _bdot(hd_all, wdec_ref, bdec_ref)                 # (Tp*BN, S)
    y_ref[...] = y.reshape(Tp, BN, S).astype(y_ref.dtype)


def fused_recurrent(gi, c, wts, z_size, horizon):
    T, N, GIP = gi.shape
    S = c.shape[1]
    Tp = horizon + 1
    # Parallel split over independent rows (nodes). At the toy N it is a
    # single block; at larger N it shards across v7x's two TensorCores and
    # bounds per-core VMEM residency.
    bn = min(_round_up(N, 8), 128)
    n_pad = _round_up(N, bn)
    if n_pad != N:
        gi = jnp.pad(gi, ((0, 0), (0, n_pad - N), (0, 0)))
        c = jnp.pad(c, ((0, n_pad - N), (0, 0)))
    in_specs = [
        pl.BlockSpec((T, bn, GIP), lambda i: (0, i, 0)),
        pl.BlockSpec((bn, S), lambda i: (i, 0)),
    ]
    in_specs += [pl.BlockSpec(w.shape, lambda i: (0, 0)) for w in wts]
    y = pl.pallas_call(
        _recurrent_kernel,
        out_shape=jax.ShapeDtypeStruct((Tp, n_pad, S), jnp.float32),
        grid=(n_pad // bn,),
        in_specs=in_specs,
        out_specs=pl.BlockSpec((Tp, bn, S), lambda i: (0, i, 0)),
        scratch_shapes=[pltpu.VMEM((Tp, bn, z_size), jnp.float32)],
        compiler_params=pltpu.CompilerParams(
            dimension_semantics=("parallel",)),
    )(gi, c, *wts)
    return y[:, :N] if n_pad != N else y


# ----------------------------------------------------------------------------
# Parameter construction (deterministic, in-script).
# GRU weights are stored concatenated per gate: W_ih (in, 3H), W_hh (H, 3H),
# biases (1, 3H), gate order [r|z|n] (PyTorch order).
# ----------------------------------------------------------------------------
def init_params(key, S, CF, HID, EMB, Z, n_layers=2):
    keys = iter(jax.random.split(key, 64))

    def lin(in_d, out_d, bias=True):
        w = jax.random.normal(next(keys), (in_d, out_d), jnp.float32) / jnp.sqrt(in_d)
        if not bias:
            return w, None
        b = jax.random.normal(next(keys), (1, out_d), jnp.float32) * 0.01
        return w, b

    def gcn(in_d, out_d, nl, hid):
        dims = ([in_d] + [hid] * nl + [out_d]) if nl > 0 else [in_d, out_d]
        ws, bs = [], []
        for a, b_ in zip(dims[:-1], dims[1:]):
            w, bb = lin(a, b_)
            ws.append(w)
            bs.append(bb)
        return ws, bs

    def gru(in_d, h):
        s = 1.0 / (h ** 0.5)
        wih = jax.random.normal(next(keys), (in_d, 3 * h), jnp.float32) * s
        whh = jax.random.normal(next(keys), (h, 3 * h), jnp.float32) * s
        bih = jax.random.normal(next(keys), (1, 3 * h), jnp.float32) * s
        bhh = jax.random.normal(next(keys), (1, 3 * h), jnp.float32) * s
        return (wih, whh, bih, bhh)

    p = {}
    # ConfoundersModule: GCN(S->EMB, n_layers) + GRU(EMB->CF, 2 layers)
    p["gn_ab"] = gcn(S, EMB, n_layers, HID)
    p["rnn_ab"] = [gru(EMB, CF), gru(CF, CF)]
    # DynamicModule (n_gn=1): GCN(Z+CF->EMB), GRU(EMB->EMB, 2), Linear(EMB->Z)
    p["gn_cd"] = gcn(Z + CF, EMB, n_layers, HID)
    p["rnn_cd"] = [gru(EMB, EMB), gru(EMB, EMB)]
    p["linear_cd"], _ = lin(EMB, Z, bias=False)
    # Encoder / Decoder: GCN n_layers=0 -> single linear; decoder GRU(Z->Z, 1)
    p["enc"] = lin(S, Z)
    p["dec"] = lin(Z, S)
    p["rnn_dec"] = [gru(Z, Z)]
    return p


# ----------------------------------------------------------------------------
# CoDy forward pass.
#   ab: (B, T, K, S)   c: (B, K, S)   -> cd_hat: (B, horizon+1, K, S)
# ----------------------------------------------------------------------------
def cody_forward(params, ab, c, horizon):
    B, T, K, S = ab.shape
    N = B * K
    f32, bf16 = jnp.float32, jnp.bfloat16

    # --- ConfoundersModule GCN (per-node MLP), its last linear folded into
    #     the GRU layer-1 input projection, lane-padded to a multiple of 128.
    w_ab, b_ab = params["gn_ab"]
    wih1, whh1, bih1, bhh1 = params["rnn_ab"][0]
    wih2, whh2, bih2, bhh2 = params["rnn_ab"][1]
    CF = whh1.shape[0]
    gi_pad = _round_up(3 * CF, 128)
    wih1_p = jnp.pad(wih1, ((0, 0), (0, gi_pad - 3 * CF)))
    bih1_p = jnp.pad(bih1, ((0, 0), (0, gi_pad - 3 * CF)))
    w_fold = jnp.dot(w_ab[-1], wih1_p)                        # (HID, gi_pad)
    b_fold = jnp.dot(b_ab[-1], wih1_p) + bih1_p               # (1, gi_pad)
    mlp_ws = [w.astype(bf16) for w in list(w_ab[:-1]) + [w_fold]]
    mlp_bs = [b.astype(f32) for b in list(b_ab[:-1]) + [b_fold]]
    relu_flags = [True] * (len(w_ab) - 1) + [False]

    # Time-major narrow input -> MLP output is already (T, N, .)-ordered
    # (no wide post-MLP transpose round-trip).
    x_tm = jnp.transpose(ab, (1, 0, 2, 3)).reshape(T * N, S)
    gi = mlp_pallas(x_tm, mlp_ws, mlp_bs, relu_flags)         # (T*N, gi_pad)
    gi = gi.reshape(T, N, gi_pad)

    # --- Fused confounders GRU + encoder + rollout + decoder kernel ---
    wenc, benc = params["enc"]
    Z = wenc.shape[1]
    (w1, w2, w3), (b1, b2, b3) = params["gn_cd"]
    w1z, w1c = w1[:Z], w1[Z:]          # dynamic GCN input is cat([z, cf], -1)
    wih0, whh0, bih0, bhh0 = params["rnn_cd"][0]
    wih1d, whh1d, bih1d, bhh1d = params["rnn_cd"][1]
    wcd = params["linear_cd"]
    wihdec, whhdec, bihdec, bhhdec = params["rnn_dec"][0]
    wdec, bdec = params["dec"]
    # Fold the dynamic GCN's last (linear, no ReLU) layer into the dynamic
    # GRU layer-0 input projection: one fewer matmul per serial rollout step.
    wfd = jnp.dot(w3, wih0)
    bfd = jnp.dot(b3, wih0) + bih0

    wts = (
        whh1.astype(bf16), bhh1.astype(f32),
        wih2.astype(bf16), bih2.astype(f32),
        whh2.astype(bf16), bhh2.astype(f32),
        wenc.astype(bf16), benc.astype(f32),
        w1z.astype(bf16), w1c.astype(bf16), b1.astype(f32),
        w2.astype(bf16), b2.astype(f32),
        wfd.astype(bf16), bfd.astype(f32),
        whh0.astype(bf16), bhh0.astype(f32),
        wih1d.astype(bf16), bih1d.astype(f32),
        whh1d.astype(bf16), bhh1d.astype(f32),
        wcd.astype(bf16),
        wihdec.astype(bf16), bihdec.astype(f32),
        whhdec.astype(bf16), bhhdec.astype(f32),
        wdec.astype(bf16), bdec.astype(f32),
    )

    y = fused_recurrent(gi, c.reshape(N, S), wts, Z, horizon)  # (T', N, S)
    Tp = horizon + 1
    return y.reshape(Tp, B, K, S).transpose(1, 0, 2, 3)        # (B, T', K, S)


if __name__ == "__main__":
    # small shapes consistent with the module defaults
    B, T_ab, K = 2, 6, 4
    S, CF, HID, EMB, Z = 14, 32, 32, 32, 64
    horizon = 8

    key = jax.random.PRNGKey(0)
    kp, ka, kc = jax.random.split(key, 3)
    params = init_params(kp, S, CF, HID, EMB, Z, n_layers=2)
    ab = jax.random.normal(ka, (B, T_ab, K, S), jnp.float32)
    c = jax.random.normal(kc, (B, K, S), jnp.float32)

    fwd = jax.jit(functools.partial(cody_forward, horizon=horizon))
    out = fwd(params, ab, c)
    jax.block_until_ready(out)

    assert out.shape == (B, horizon + 1, K, S), out.shape
    assert bool(jnp.all(jnp.isfinite(out)))
    print("KERNEL_OK")
</pallas_src>

<mosaic_0001>
module attributes {stable_mosaic.version = 11 : i64} {
  func.func @kernel(%arg0: i32, %arg1: memref<48x14xf32, #tpu.memory_space<vmem>>, %arg2: memref<14x32xbf16, #tpu.memory_space<vmem>>, %arg3: memref<32x32xbf16, #tpu.memory_space<vmem>>, %arg4: memref<32x128xbf16, #tpu.memory_space<vmem>>, %arg5: memref<1x32xf32, #tpu.memory_space<vmem>>, %arg6: memref<1x32xf32, #tpu.memory_space<vmem>>, %arg7: memref<1x128xf32, #tpu.memory_space<vmem>>, %arg8: memref<48x128xf32, #tpu.memory_space<vmem>>) attributes {dimension_semantics = [#tpu.dimension_semantics<parallel>], iteration_bounds = array<i64: 1>, scalar_prefetch = 0 : i64, scratch_operands = 0 : i64, tpu.core_type = #tpu.core_type<tc>, window_params = [{transform_indices = @transform_0, window_bounds = array<i64: 48, 14>}, {pipeline_mode = #tpu.pipeline_mode<synchronous>, transform_indices = @transform_1, window_bounds = array<i64: 14, 32>}, {pipeline_mode = #tpu.pipeline_mode<synchronous>, transform_indices = @transform_2, window_bounds = array<i64: 32, 32>}, {pipeline_mode = #tpu.pipeline_mode<synchronous>, transform_indices = @transform_3, window_bounds = array<i64: 32, 128>}, {pipeline_mode = #tpu.pipeline_mode<synchronous>, transform_indices = @transform_4, window_bounds = array<i64: 1, 32>}, {pipeline_mode = #tpu.pipeline_mode<synchronous>, transform_indices = @transform_5, window_bounds = array<i64: 1, 32>}, {pipeline_mode = #tpu.pipeline_mode<synchronous>, transform_indices = @transform_6, window_bounds = array<i64: 1, 128>}, {transform_indices = @transform_7, window_bounds = array<i64: 48, 128>}]} {
    %c0 = arith.constant 0 : index
    %c0_0 = arith.constant 0 : index
    %0 = vector.load %arg1[%c0, %c0_0] : memref<48x14xf32, #tpu.memory_space<vmem>>, vector<48x14xf32>
    %1 = arith.truncf %0 : vector<48x14xf32> to vector<48x14xbf16>
    %c0_1 = arith.constant 0 : index
    %c0_2 = arith.constant 0 : index
    %2 = vector.load %arg2[%c0_1, %c0_2] : memref<14x32xbf16, #tpu.memory_space<vmem>>, vector<14x32xbf16>
    %cst = arith.constant dense<0.000000e+00> : vector<48x32xf32>
    %3 = tpu.matmul %1, %2, %cst {dimension_numbers = #tpu.dot_dimension_numbers<[1], [0], [0], [1], [0, 0, 1, 1], [], []>} : vector<48x14xbf16>, vector<14x32xbf16>, vector<48x32xf32> -> vector<48x32xf32>
    %c0_3 = arith.constant 0 : index
    %c0_4 = arith.constant 0 : index
    %4 = vector.load %arg5[%c0_3, %c0_4] : memref<1x32xf32, #tpu.memory_space<vmem>>, vector<1x32xf32>
    %5 = vector.broadcast %4 : vector<1x32xf32> to vector<48x32xf32>
    %6 = arith.addf %3, %5 : vector<48x32xf32>
    %cst_5 = arith.constant 0.000000e+00 : f32
    %7 = vector.broadcast %cst_5 : f32 to vector<48x32xf32>
    %8 = arith.maximumf %6, %7 : vector<48x32xf32>
    %9 = arith.truncf %8 : vector<48x32xf32> to vector<48x32xbf16>
    %c0_6 = arith.constant 0 : index
    %c0_7 = arith.constant 0 : index
    %10 = vector.load %arg3[%c0_6, %c0_7] : memref<32x32xbf16, #tpu.memory_space<vmem>>, vector<32x32xbf16>
    %cst_8 = arith.constant dense<0.000000e+00> : vector<48x32xf32>
    %11 = tpu.matmul %9, %10, %cst_8 {dimension_numbers = #tpu.dot_dimension_numbers<[1], [0], [0], [1], [0, 0, 1, 1], [], []>} : vector<48x32xbf16>, vector<32x32xbf16>, vector<48x32xf32> -> vector<48x32xf32>
    %c0_9 = arith.constant 0 : index
    %c0_10 = arith.constant 0 : index
    %12 = vector.load %arg6[%c0_9, %c0_10] : memref<1x32xf32, #tpu.memory_space<vmem>>, vector<1x32xf32>
    %13 = vector.broadcast %12 : vector<1x32xf32> to vector<48x32xf32>
    %14 = arith.addf %11, %13 : vector<48x32xf32>
    %cst_11 = arith.constant 0.000000e+00 : f32
    %15 = vector.broadcast %cst_11 : f32 to vector<48x32xf32>
    %16 = arith.maximumf %14, %15 : vector<48x32xf32>
    %17 = arith.truncf %16 : vector<48x32xf32> to vector<48x32xbf16>
    %c0_12 = arith.constant 0 : index
    %c0_13 = arith.constant 0 : index
    %18 = vector.load %arg4[%c0_12, %c0_13] : memref<32x128xbf16, #tpu.memory_space<vmem>>, vector<32x128xbf16>
    %cst_14 = arith.constant dense<0.000000e+00> : vector<48x128xf32>
    %19 = tpu.matmul %17, %18, %cst_14 {dimension_numbers = #tpu.dot_dimension_numbers<[1], [0], [0], [1], [0, 0, 1, 1], [], []>} : vector<48x32xbf16>, vector<32x128xbf16>, vector<48x128xf32> -> vector<48x128xf32>
    %c0_15 = arith.constant 0 : index
    %c0_16 = arith.constant 0 : index
    %20 = vector.load %arg7[%c0_15, %c0_16] : memref<1x128xf32, #tpu.memory_space<vmem>>, vector<1x128xf32>
    %21 = vector.broadcast %20 : vector<1x128xf32> to vector<48x128xf32>
    %22 = arith.addf %19, %21 : vector<48x128xf32>
    %c0_17 = arith.constant 0 : index
    %c0_18 = arith.constant 0 : index
    %23 = vector.load %arg8[%c0_17, %c0_18] : memref<48x128xf32, #tpu.memory_space<vmem>>, vector<48x128xf32>
    tpu.vector_store %arg8[%c0_17, %c0_18], %22 {strides = array<i32>} : memref<48x128xf32, #tpu.memory_space<vmem>>, vector<48x128xf32>,
    return
  }
  func.func @transform_0(%arg0: i32) -> (i32, i32) {
    %c0_i32 = arith.constant 0 : i32
    %c0_i32_0 = arith.constant 0 : i32
    return %arg0, %c0_i32 : i32, i32
  }
  func.func @transform_1(%arg0: i32) -> (i32, i32) {
    %c0_i32 = arith.constant 0 : i32
    %c0_i32_0 = arith.constant 0 : i32
    %c0_i32_1 = arith.constant 0 : i32
    return %c0_i32, %c0_i32_0 : i32, i32
  }
  func.func @transform_2(%arg0: i32) -> (i32, i32) {
    %c0_i32 = arith.constant 0 : i32
    %c0_i32_0 = arith.constant 0 : i32
    %c0_i32_1 = arith.constant 0 : i32
    return %c0_i32, %c0_i32_0 : i32, i32
  }
  func.func @transform_3(%arg0: i32) -> (i32, i32) {
    %c0_i32 = arith.constant 0 : i32
    %c0_i32_0 = arith.constant 0 : i32
    %c0_i32_1 = arith.constant 0 : i32
    return %c0_i32, %c0_i32_0 : i32, i32
  }
  func.func @transform_4(%arg0: i32) -> (i32, i32) {
    %c0_i32 = arith.constant 0 : i32
    %c0_i32_0 = arith.constant 0 : i32
    %c0_i32_1 = arith.constant 0 : i32
    return %c0_i32, %c0_i32_0 : i32, i32
  }
  func.func @transform_5(%arg0: i32) -> (i32, i32) {
    %c0_i32 = arith.constant 0 : i32
    %c0_i32_0 = arith.constant 0 : i32
    %c0_i32_1 = arith.constant 0 : i32
    return %c0_i32, %c0_i32_0 : i32, i32
  }
  func.func @transform_6(%arg0: i32) -> (i32, i32) {
    %c0_i32 = arith.constant 0 : i32
    %c0_i32_0 = arith.constant 0 : i32
    %c0_i32_1 = arith.constant 0 : i32
    return %c0_i32, %c0_i32_0 : i32, i32
  }
  func.func @transform_7(%arg0: i32) -> (i32, i32) {
    %c0_i32 = arith.constant 0 : i32
    %c0_i32_0 = arith.constant 0 : i32
    return %arg0, %c0_i32 : i32, i32
  }
}

module attributes {stable_mosaic.version = 11 : i64} {
  func.func @_recurrent_kernel(%arg0: i32, %arg1: memref<6x8x128xf32, #tpu.memory_space<vmem>>, %arg2: memref<8x14xf32, #tpu.memory_space<vmem>>, %arg3: memref<32x96xbf16, #tpu.memory_space<vmem>>, %arg4: memref<1x96xf32, #tpu.memory_space<vmem>>, %arg5: memref<32x96xbf16, #tpu.memory_space<vmem>>, %arg6: memref<1x96xf32, #tpu.memory_space<vmem>>, %arg7: memref<32x96xbf16, #tpu.memory_space<vmem>>, %arg8: memref<1x96xf32, #tpu.memory_space<vmem>>, %arg9: memref<14x64xbf16, #tpu.memory_space<vmem>>, %arg10: memref<1x64xf32, #tpu.memory_space<vmem>>, %arg11: memref<64x32xbf16, #tpu.memory_space<vmem>>, %arg12: memref<32x32xbf16, #tpu.memory_space<vmem>>, %arg13: memref<1x32xf32, #tpu.memory_space<vmem>>, %arg14: memref<32x32xbf16, #tpu.memory_space<vmem>>, %arg15: memref<1x32xf32, #tpu.memory_space<vmem>>, %arg16: memref<32x96xbf16, #tpu.memory_space<vmem>>, %arg17: memref<1x96xf32, #tpu.memory_space<vmem>>, %arg18: memref<32x96xbf16, #tpu.memory_space<vmem>>, %arg19: memref<1x96xf32, #tpu.memory_space<vmem>>, %arg20: memref<32x96xbf16, #tpu.memory_space<vmem>>, %arg21: memref<1x96xf32, #tpu.memory_space<vmem>>, %arg22: memref<32x96xbf16, #tpu.memory_space<vmem>>, %arg23: memref<1x96xf32, #tpu.memory_space<vmem>>, %arg24: memref<32x64xbf16, #tpu.memory_space<vmem>>, %arg25: memref<64x192xbf16, #tpu.memory_space<vmem>>, %arg26: memref<1x192xf32, #tpu.memory_space<vmem>>, %arg27: memref<64x192xbf16, #tpu.memory_space<vmem>>, %arg28: memref<1x192xf32, #tpu.memory_space<vmem>>, %arg29: memref<64x14xbf16, #tpu.memory_space<vmem>>, %arg30: memref<1x14xf32, #tpu.memory_space<vmem>>, %arg31: memref<9x8x14xf32, #tpu.memory_space<vmem>>, %arg32: memref<9x8x64xf32, #tpu.memory_space<vmem>>) attributes {dimension_semantics = [#tpu.dimension_semantics<parallel>], iteration_bounds = array<i64: 1>, scalar_prefetch = 0 : i64, scratch_operands = 1 : i64, tpu.core_type = #tpu.core_type<tc>, window_params = [{transform_indices = @transform_0, window_bounds = array<i64: 6, 8, 128>}, {transform_indices = @transform_1, window_bounds = array<i64: 8, 14>}, {pipeline_mode = #tpu.pipeline_mode<synchronous>, transform_indices = @transform_2, window_bounds = array<i64: 32, 96>}, {pipeline_mode = #tpu.pipeline_mode<synchronous>, transform_indices = @transform_3, window_bounds = array<i64: 1, 96>}, {pipeline_mode = #tpu.pipeline_mode<synchronous>, transform_indices = @transform_4, window_bounds = array<i64: 32, 96>}, {pipeline_mode = #tpu.pipeline_mode<synchronous>, transform_indices = @transform_5, window_bounds = array<i64: 1, 96>}, {pipeline_mode = #tpu.pipeline_mode<synchronous>, transform_indices = @transform_6, window_bounds = array<i64: 32, 96>}, {pipeline_mode = #tpu.pipeline_mode<synchronous>, transform_indices = @transform_7, window_bounds = array<i64: 1, 96>}, {pipeline_mode = #tpu.pipeline_mode<synchronous>, transform_indices = @transform_8, window_bounds = array<i64: 14, 64>}, {pipeline_mode = #tpu.pipeline_mode<synchronous>, transform_indices = @transform_9, window_bounds = array<i64: 1, 64>}, {pipeline_mode = #tpu.pipeline_mode<synchronous>, transform_indices = @transform_10, window_bounds = array<i64: 64, 32>}, {pipeline_mode = #tpu.pipeline_mode<synchronous>, transform_indices = @transform_11, window_bounds = array<i64: 32, 32>}, {pipeline_mode = #tpu.pipeline_mode<synchronous>, transform_indices = @transform_12, window_bounds = array<i64: 1, 32>}, {pipeline_mode = #tpu.pipeline_mode<synchronous>, transform_indices = @transform_13, window_bounds = array<i64: 32, 32>}, {pipeline_mode = #tpu.pipeline_mode<synchronous>, transform_indices = @transform_14, window_bounds = array<i64: 1, 32>}, {pipeline_mode = #tpu.pipeline_mode<synchronous>, transform_indices = @transform_15, window_bounds = array<i64: 32, 96>}, {pipeline_mode = #tpu.pipeline_mode<synchronous>, transform_indices = @transform_16, window_bounds = array<i64: 1, 96>}, {pipeline_mode = #tpu.pipeline_mode<synchronous>, transform_indices = @transform_17, window_bounds = array<i64: 32, 96>}, {pipeline_mode = #tpu.pipeline_mode<synchronous>, transform_indices = @transform_18, window_bounds = array<i64: 1, 96>}, {pipeline_mode = #tpu.pipeline_mode<synchronous>, transform_indices = @transform_19, window_bounds = array<i64: 32, 96>}, {pipeline_mode = #tpu.pipeline_mode<synchronous>, transform_indices = @transform_20, window_bounds = array<i64: 1, 96>}, {pipeline_mode = #tpu.pipeline_mode<synchronous>, transform_indices = @transform_21, window_bounds = array<i64: 32, 96>}, {pipeline_mode = #tpu.pipeline_mode<synchronous>, transform_indices = @transform_22, window_bounds = array<i64: 1, 96>}, {pipeline_mode = #tpu.pipeline_mode<synchronous>, transform_indices = @transform_23, window_bounds = array<i64: 32, 64>}, {pipeline_mode = #tpu.pipeline_mode<synchronous>, transform_indices = @transform_24, window_bounds = array<i64: 64, 192>}, {pipeline_mode = #tpu.pipeline_mode<synchronous>, transform_indices = @transform_25, window_bounds = array<i64: 1, 192>}, {pipeline_mode = #tpu.pipeline_mode<synchronous>, transform_indices = @transform_26, window_bounds = array<i64: 64, 192>}, {pipeline_mode = #tpu.pipeline_mode<synchronous>, transform_indices = @transform_27, window_bounds = array<i64: 1, 192>}, {pipeline_mode = #tpu.pipeline_mode<synchronous>, transform_indices = @transform_28, window_bounds = array<i64: 64, 14>}, {pipeline_mode = #tpu.pipeline_mode<synchronous>, transform_indices = @transform_29, window_bounds = array<i64: 1, 14>}, {transform_indices = @transform_30, window_bounds = array<i64: 9, 8, 14>}]} {
    %cst = arith.constant 0.000000e+00 : f32
    %0 = vector.broadcast %cst : f32 to vector<8x32xf32>
    %c0_i32 = arith.constant 0 : i32
    %1 = arith.index_cast %c0_i32 : i32 to index
    %c0 = arith.constant 0 : index
    %c0_0 = arith.constant 0 : index
    %2 = vector.load %arg1[%1, %c0, %c0_0] : memref<6x8x128xf32, #tpu.memory_space<vmem>>, vector<1x8x128xf32>
    %3 = vector.shape_cast %2 : vector<1x8x128xf32> to vector<8x128xf32>
    %4 = arith.truncf %0 : vector<8x32xf32> to vector<8x32xbf16>
    %c0_1 = arith.constant 0 : index
    %c0_2 = arith.constant 0 : index
    %5 = vector.load %arg3[%c0_1, %c0_2] : memref<32x96xbf16, #tpu.memory_space<vmem>>, vector<32x96xbf16>
    %cst_3 = arith.constant dense<0.000000e+00> : vector<8x96xf32>
    %6 = tpu.matmul %4, %5, %cst_3 {dimension_numbers = #tpu.dot_dimension_numbers<[1], [0], [0], [1], [0, 0, 1, 1], [], []>} : vector<8x32xbf16>, vector<32x96xbf16>, vector<8x96xf32> -> vector<8x96xf32>
    %c0_4 = arith.constant 0 : index
    %c0_5 = arith.constant 0 : index
    %7 = vector.load %arg4[%c0_4, %c0_5] : memref<1x96xf32, #tpu.memory_space<vmem>>, vector<1x96xf32>
    %8 = vector.broadcast %7 : vector<1x96xf32> to vector<8x96xf32>
    %9 = arith.addf %6, %8 : vector<8x96xf32>
    %10 = vector.extract_strided_slice %3 {offsets = [0, 0], sizes = [8, 64], strides = [1, 1]} : vector<8x128xf32> to vector<8x64xf32>
    %11 = vector.extract_strided_slice %9 {offsets = [0, 0], sizes = [8, 64], strides = [1, 1]} : vector<8x96xf32> to vector<8x64xf32>
    %12 = arith.addf %10, %11 : vector<8x64xf32>
    %13 = arith.negf %12 : vector<8x64xf32>
    %14 = math.exp %13 : vector<8x64xf32>
    %cst_6 = arith.constant 1.000000e+00 : f32
    %15 = vector.broadcast %cst_6 : f32 to vector<8x64xf32>
    %16 = arith.addf %15, %14 : vector<8x64xf32>
    %17 = arith.divf %15, %16 : vector<8x64xf32>
    %18 = vector.extract_strided_slice %17 {offsets = [0, 0], sizes = [8, 32], strides = [1, 1]} : vector<8x64xf32> to vector<8x32xf32>
    %19 = vector.extract_strided_slice %17 {offsets = [0, 32], sizes = [8, 32], strides = [1, 1]} : vector<8x64xf32> to vector<8x32xf32>
    %20 = vector.extract_strided_slice %3 {offsets = [0, 64], sizes = [8, 32], strides = [1, 1]} : vector<8x128xf32> to vector<8x32xf32>
    %21 = vector.extract_strided_slice %9 {offsets = [0, 64], sizes = [8, 32], strides = [1, 1]} : vector<8x96xf32> to vector<8x32xf32>
    %22 = arith.mulf %18, %21 : vector<8x32xf32>
    %23 = arith.addf %20, %22 : vector<8x32xf32>
    %24 = math.tanh %23 : vector<8x32xf32>
    %cst_7 = arith.constant 1.000000e+00 : f32
    %25 = vector.broadcast %cst_7 : f32 to vector<8x32xf32>
    %26 = arith.subf %25, %19 : vector<8x32xf32>
    %27 = arith.mulf %26, %24 : vector<8x32xf32>
    %28 = arith.mulf %19, %0 : vector<8x32xf32>
    %29 = arith.addf %27, %28 : vector<8x32xf32>
    %30 = arith.truncf %29 : vector<8x32xf32> to vector<8x32xbf16>
    %c0_8 = arith.constant 0 : index
    %c0_9 = arith.constant 0 : index
    %31 = vector.load %arg5[%c0_8, %c0_9] : memref<32x96xbf16, #tpu.memory_space<vmem>>, vector<32x96xbf16>
    %cst_10 = arith.constant dense<0.000000e+00> : vector<8x96xf32>
    %32 = tpu.matmul %30, %31, %cst_10 {dimension_numbers = #tpu.dot_dimension_numbers<[1], [0], [0], [1], [0, 0, 1, 1], [], []>} : vector<8x32xbf16>, vector<32x96xbf16>, vector<8x96xf32> -> vector<8x96xf32>
    %c0_11 = arith.constant 0 : index
    %c0_12 = arith.constant 0 : index
    %33 = vector.load %arg6[%c0_11, %c0_12] : memref<1x96xf32, #tpu.memory_space<vmem>>, vector<1x96xf32>
    %34 = vector.broadcast %33 : vector<1x96xf32> to vector<8x96xf32>
    %35 = arith.addf %32, %34 : vector<8x96xf32>
    %36 = arith.truncf %0 : vector<8x32xf32> to vector<8x32xbf16>
    %c0_13 = arith.constant 0 : index
    %c0_14 = arith.constant 0 : index
    %37 = vector.load %arg7[%c0_13, %c0_14] : memref<32x96xbf16, #tpu.memory_space<vmem>>, vector<32x96xbf16>
    %cst_15 = arith.constant dense<0.000000e+00> : vector<8x96xf32>
    %38 = tpu.matmul %36, %37, %cst_15 {dimension_numbers = #tpu.dot_dimension_numbers<[1], [0], [0], [1], [0, 0, 1, 1], [], []>} : vector<8x32xbf16>, vector<32x96xbf16>, vector<8x96xf32> -> vector<8x96xf32>
    %c0_16 = arith.constant 0 : index
    %c0_17 = arith.constant 0 : index
    %39 = vector.load %arg8[%c0_16, %c0_17] : memref<1x96xf32, #tpu.memory_space<vmem>>, vector<1x96xf32>
    %40 = vector.broadcast %39 : vector<1x96xf32> to vector<8x96xf32>
    %41 = arith.addf %38, %40 : vector<8x96xf32>
    %42 = vector.extract_strided_slice %35 {offsets = [0, 0], sizes = [8, 64], strides = [1, 1]} : vector<8x96xf32> to vector<8x64xf32>
    %43 = vector.extract_strided_slice %41 {offsets = [0, 0], sizes = [8, 64], strides = [1, 1]} : vector<8x96xf32> to vector<8x64xf32>
    %44 = arith.addf %42, %43 : vector<8x64xf32>
    %45 = arith.negf %44 : vector<8x64xf32>
    %46 = math.exp %45 : vector<8x64xf32>
    %cst_18 = arith.constant 1.000000e+00 : f32
    %47 = vector.broadcast %cst_18 : f32 to vector<8x64xf32>
    %48 = arith.addf %47, %46 : vector<8x64xf32>
    %49 = arith.divf %47, %48 : vector<8x64xf32>
    %50 = vector.extract_strided_slice %49 {offsets = [0, 0], sizes = [8, 32], strides = [1, 1]} : vector<8x64xf32> to vector<8x32xf32>
    %51 = vector.extract_strided_slice %49 {offsets = [0, 32], sizes = [8, 32], strides = [1, 1]} : vector<8x64xf32> to vector<8x32xf32>
    %52 = vector.extract_strided_slice %35 {offsets = [0, 64], sizes = [8, 32], strides = [1, 1]} : vector<8x96xf32> to vector<8x32xf32>
    %53 = vector.extract_strided_slice %41 {offsets = [0, 64], sizes = [8, 32], strides = [1, 1]} : vector<8x96xf32> to vector<8x32xf32>
    %54 = arith.mulf %50, %53 : vector<8x32xf32>
    %55 = arith.addf %52, %54 : vector<8x32xf32>
    %56 = math.tanh %55 : vector<8x32xf32>
    %cst_19 = arith.constant 1.000000e+00 : f32
    %57 = vector.broadcast %cst_19 : f32 to vector<8x32xf32>
    %58 = arith.subf %57, %51 : vector<8x32xf32>
    %59 = arith.mulf %58, %56 : vector<8x32xf32>
    %60 = arith.mulf %51, %0 : vector<8x32xf32>
    %61 = arith.addf %59, %60 : vector<8x32xf32>
    %c1_i32 = arith.constant 1 : i32
    %62 = arith.index_cast %c1_i32 : i32 to index
    %c0_20 = arith.constant 0 : index
    %c0_21 = arith.constant 0 : index
    %63 = vector.load %arg1[%62, %c0_20, %c0_21] : memref<6x8x128xf32, #tpu.memory_space<vmem>>, vector<1x8x128xf32>
    %64 = vector.shape_cast %63 : vector<1x8x128xf32> to vector<8x128xf32>
    %65 = arith.truncf %29 : vector<8x32xf32> to vector<8x32xbf16>
    %c0_22 = arith.constant 0 : index
    %c0_23 = arith.constant 0 : index
    %66 = vector.load %arg3[%c0_22, %c0_23] : memref<32x96xbf16, #tpu.memory_space<vmem>>, vector<32x96xbf16>
    %cst_24 = arith.constant dense<0.000000e+00> : vector<8x96xf32>
    %67 = tpu.matmul %65, %66, %cst_24 {dimension_numbers = #tpu.dot_dimension_numbers<[1], [0], [0], [1], [0, 0, 1, 1], [], []>} : vector<8x32xbf16>, vector<32x96xbf16>, vector<8x96xf32> -> vector<8x96xf32>
    %c0_25 = arith.constant 0 : index
    %c0_26 = arith.constant 0 : index
    %68 = vector.load %arg4[%c0_25, %c0_26] : memref<1x96xf32, #tpu.memory_space<vmem>>, vector<1x96xf32>
    %69 = vector.broadcast %68 : vector<1x96xf32> to vector<8x96xf32>
    %70 = arith.addf %67, %69 : vector<8x96xf32>
    %71 = vector.extract_strided_slice %64 {offsets = [0, 0], sizes = [8, 64], strides = [1, 1]} : vector<8x128xf32> to vector<8x64xf32>
    %72 = vector.extract_strided_slice %70 {offsets = [0, 0], sizes = [8, 64], strides = [1, 1]} : vector<8x96xf32> to vector<8x64xf32>
    %73 = arith.addf %71, %72 : vector<8x64xf32>
    %74 = arith.negf %73 : vector<8x64xf32>
    %75 = math.exp %74 : vector<8x64xf32>
    %cst_27 = arith.constant 1.000000e+00 : f32
    %76 = vector.broadcast %cst_27 : f32 to vector<8x64xf32>
    %77 = arith.addf %76, %75 : vector<8x64xf32>
    %78 = arith.divf %76, %77 : vector<8x64xf32>
    %79 = vector.extract_strided_slice %78 {offsets = [0, 0], sizes = [8, 32], strides = [1, 1]} : vector<8x64xf32> to vector<8x32xf32>
    %80 = vector.extract_strided_slice %78 {offsets = [0, 32], sizes = [8, 32], strides = [1, 1]} : vector<8x64xf32> to vector<8x32xf32>
    %81 = vector.extract_strided_slice %64 {offsets = [0, 64], sizes = [8, 32], strides = [1, 1]} : vector<8x128xf32> to vector<8x32xf32>
    %82 = vector.extract_strided_slice %70 {offsets = [0, 64], sizes = [8, 32], strides = [1, 1]} : vector<8x96xf32> to vector<8x32xf32>
    %83 = arith.mulf %79, %82 : vector<8x32xf32>
    %84 = arith.addf %81, %83 : vector<8x32xf32>
    %85 = math.tanh %84 : vector<8x32xf32>
    %cst_28 = arith.constant 1.000000e+00 : f32
    %86 = vector.broadcast %cst_28 : f32 to vector<8x32xf32>
    %87 = arith.subf %86, %80 : vector<8x32xf32>
    %88 = arith.mulf %87, %85 : vector<8x32xf32>
    %89 = arith.mulf %80, %29 : vector<8x32xf32>
    %90 = arith.addf %88, %89 : vector<8x32xf32>
    %91 = arith.truncf %90 : vector<8x32xf32> to vector<8x32xbf16>
    %c0_29 = arith.constant 0 : index
    %c0_30 = arith.constant 0 : index
    %92 = vector.load %arg5[%c0_29, %c0_30] : memref<32x96xbf16, #tpu.memory_space<vmem>>, vector<32x96xbf16>
    %cst_31 = arith.constant dense<0.000000e+00> : vector<8x96xf32>
    %93 = tpu.matmul %91, %92, %cst_31 {dimension_numbers = #tpu.dot_dimension_numbers<[1], [0], [0], [1], [0, 0, 1, 1], [], []>} : vector<8x32xbf16>, vector<32x96xbf16>, vector<8x96xf32> -> vector<8x96xf32>
    %c0_32 = arith.constant 0 : index
    %c0_33 = arith.constant 0 : index
    %94 = vector.load %arg6[%c0_32, %c0_33] : memref<1x96xf32, #tpu.memory_space<vmem>>, vector<1x96xf32>
    %95 = vector.broadcast %94 : vector<1x96xf32> to vector<8x96xf32>
    %96 = arith.addf %93, %95 : vector<8x96xf32>
    %97 = arith.truncf %61 : vector<8x32xf32> to vector<8x32xbf16>
    %c0_34 = arith.constant 0 : index
    %c0_35 = arith.constant 0 : index
    %98 = vector.load %arg7[%c0_34, %c0_35] : memref<32x96xbf16, #tpu.memory_space<vmem>>, vector<32x96xbf16>
    %cst_36 = arith.constant dense<0.000000e+00> : vector<8x96xf32>
    %99 = tpu.matmul %97, %98, %cst_36 {dimension_numbers = #tpu.dot_dimension_numbers<[1], [0], [0], [1], [0, 0, 1, 1], [], []>} : vector<8x32xbf16>, vector<32x96xbf16>, vector<8x96xf32> -> vector<8x96xf32>
    %c0_37 = arith.constant 0 : index
    %c0_38 = arith.constant 0 : index
    %100 = vector.load %arg8[%c0_37, %c0_38] : memref<1x96xf32, #tpu.memory_space<vmem>>, vector<1x96xf32>
    %101 = vector.broadcast %100 : vector<1x96xf32> to vector<8x96xf32>
    %102 = arith.addf %99, %101 : vector<8x96xf32>
    %103 = vector.extract_strided_slice %96 {offsets = [0, 0], sizes = [8, 64], strides = [1, 1]} : vector<8x96xf32> to vector<8x64xf32>
    %104 = vector.extract_strided_slice %102 {offsets = [0, 0], sizes = [8, 64], strides = [1, 1]} : vector<8x96xf32> to vector<8x64xf32>
    %105 = arith.addf %103, %104 : vector<8x64xf32>
    %106 = arith.negf %105 : vector<8x64xf32>
    %107 = math.exp %106 : vector<8x64xf32>
    %cst_39 = arith.constant 1.000000e+00 : f32
    %108 = vector.broadcast %cst_39 : f32 to vector<8x64xf32>
    %109 = arith.addf %108, %107 : vector<8x64xf32>
    %110 = arith.divf %108, %109 : vector<8x64xf32>
    %111 = vector.extract_strided_slice %110 {offsets = [0, 0], sizes = [8, 32], strides = [1, 1]} : vector<8x64xf32> to vector<8x32xf32>
    %112 = vector.extract_strided_slice %110 {offsets = [0, 32], sizes = [8, 32], strides = [1, 1]} : vector<8x64xf32> to vector<8x32xf32>
    %113 = vector.extract_strided_slice %96 {offsets = [0, 64], sizes = [8, 32], strides = [1, 1]} : vector<8x96xf32> to vector<8x32xf32>
    %114 = vector.extract_strided_slice %102 {offsets = [0, 64], sizes = [8, 32], strides = [1, 1]} : vector<8x96xf32> to vector<8x32xf32>
    %115 = arith.mulf %111, %114 : vector<8x32xf32>
    %116 = arith.addf %113, %115 : vector<8x32xf32>
    %117 = math.tanh %116 : vector<8x32xf32>
    %cst_40 = arith.constant 1.000000e+00 : f32
    %118 = vector.broadcast %cst_40 : f32 to vector<8x32xf32>
    %119 = arith.subf %118, %112 : vector<8x32xf32>
    %120 = arith.mulf %119, %117 : vector<8x32xf32>
    %121 = arith.mulf %112, %61 : vector<8x32xf32>
    %122 = arith.addf %120, %121 : vector<8x32xf32>
    %c2_i32 = arith.constant 2 : i32
    %123 = arith.index_cast %c2_i32 : i32 to index
    %c0_41 = arith.constant 0 : index
    %c0_42 = arith.constant 0 : index
    %124 = vector.load %arg1[%123, %c0_41, %c0_42] : memref<6x8x128xf32, #tpu.memory_space<vmem>>, vector<1x8x128xf32>
    %125 = vector.shape_cast %124 : vector<1x8x128xf32> to vector<8x128xf32>
    %126 = arith.truncf %90 : vector<8x32xf32> to vector<8x32xbf16>
    %c0_43 = arith.constant 0 : index
    %c0_44 = arith.constant 0 : index
    %127 = vector.load %arg3[%c0_43, %c0_44] : memref<32x96xbf16, #tpu.memory_space<vmem>>, vector<32x96xbf16>
    %cst_45 = arith.constant dense<0.000000e+00> : vector<8x96xf32>
    %128 = tpu.matmul %126, %127, %cst_45 {dimension_numbers = #tpu.dot_dimension_numbers<[1], [0], [0], [1], [0, 0, 1, 1], [], []>} : vector<8x32xbf16>, vector<32x96xbf16>, vector<8x96xf32> -> vector<8x96xf32>
    %c0_46 = arith.constant 0 : index
    %c0_47 = arith.constant 0 : index
    %129 = vector.load %arg4[%c0_46, %c0_47] : memref<1x96xf32, #tpu.memory_space<vmem>>, vector<1x96xf32>
    %130 = vector.broadcast %129 : vector<1x96xf32> to vector<8x96xf32>
    %131 = arith.addf %128, %130 : vector<8x96xf32>
    %132 = vector.extract_strided_slice %125 {offsets = [0, 0], sizes = [8, 64], strides = [1, 1]} : vector<8x128xf32> to vector<8x64xf32>
    %133 = vector.extract_strided_slice %131 {offsets = [0, 0], sizes = [8, 64], strides = [1, 1]} : vector<8x96xf32> to vector<8x64xf32>
    %134 = arith.addf %132, %133 : vector<8x64xf32>
    %135 = arith.negf %134 : vector<8x64xf32>
    %136 = math.exp %135 : vector<8x64xf32>
    %cst_48 = arith.constant 1.000000e+00 : f32
    %137 = vector.broadcast %cst_48 : f32 to vector<8x64xf32>
    %138 = arith.addf %137, %136 : vector<8x64xf32>
    %139 = arith.divf %137, %138 : vector<8x64xf32>
    %140 = vector.extract_strided_slice %139 {offsets = [0, 0], sizes = [8, 32], strides = [1, 1]} : vector<8x64xf32> to vector<8x32xf32>
    %141 = vector.extract_strided_slice %139 {offsets = [0, 32], sizes = [8, 32], strides = [1, 1]} : vector<8x64xf32> to vector<8x32xf32>
    %142 = vector.extract_strided_slice %125 {offsets = [0, 64], sizes = [8, 32], strides = [1, 1]} : vector<8x128xf32> to vector<8x32xf32>
    %143 = vector.extract_strided_slice %131 {offsets = [0, 64], sizes = [8, 32], strides = [1, 1]} : vector<8x96xf32> to vector<8x32xf32>
    %144 = arith.mulf %140, %143 : vector<8x32xf32>
    %145 = arith.addf %142, %144 : vector<8x32xf32>
    %146 = math.tanh %145 : vector<8x32xf32>
    %cst_49 = arith.constant 1.000000e+00 : f32
    %147 = vector.broadcast %cst_49 : f32 to vector<8x32xf32>
    %148 = arith.subf %147, %141 : vector<8x32xf32>
    %149 = arith.mulf %148, %146 : vector<8x32xf32>
    %150 = arith.mulf %141, %90 : vector<8x32xf32>
    %151 = arith.addf %149, %150 : vector<8x32xf32>
    %152 = arith.truncf %151 : vector<8x32xf32> to vector<8x32xbf16>
    %c0_50 = arith.constant 0 : index
    %c0_51 = arith.constant 0 : index
    %153 = vector.load %arg5[%c0_50, %c0_51] : memref<32x96xbf16, #tpu.memory_space<vmem>>, vector<32x96xbf16>
    %cst_52 = arith.constant dense<0.000000e+00> : vector<8x96xf32>
    %154 = tpu.matmul %152, %153, %cst_52 {dimension_numbers = #tpu.dot_dimension_numbers<[1], [0], [0], [1], [0, 0, 1, 1], [], []>} : vector<8x32xbf16>, vector<32x96xbf16>, vector<8x96xf32> -> vector<8x96xf32>
    %c0_53 = arith.constant 0 : index
    %c0_54 = arith.constant 0 : index
    %155 = vector.load %arg6[%c0_53, %c0_54] : memref<1x96xf32, #tpu.memory_space<vmem>>, vector<1x96xf32>
    %156 = vector.broadcast %155 : vector<1x96xf32> to vector<8x96xf32>
    %157 = arith.addf %154, %156 : vector<8x96xf32>
    %158 = arith.truncf %122 : vector<8x32xf32> to vector<8x32xbf16>
    %c0_55 = arith.constant 0 : index
    %c0_56 = arith.constant 0 : index
    %159 = vector.load %arg7[%c0_55, %c0_56] : memref<32x96xbf16, #tpu.memory_space<vmem>>, vector<32x96xbf16>
    %cst_57 = arith.constant dense<0.000000e+00> : vector<8x96xf32>
    %160 = tpu.matmul %158, %159, %cst_57 {dimension_numbers = #tpu.dot_dimension_numbers<[1], [0], [0], [1], [0, 0, 1, 1], [], []>} : vector<8x32xbf16>, vector<32x96xbf16>, vector<8x96xf32> -> vector<8x96xf32>
    %c0_58 = arith.constant 0 : index
    %c0_59 = arith.constant 0 : index
    %161 = vector.load %arg8[%c0_58, %c0_59] : memref<1x96xf32, #tpu.memory_space<vmem>>, vector<1x96xf32>
    %162 = vector.broadcast %161 : vector<1x96xf32> to vector<8x96xf32>
    %163 = arith.addf %160, %162 : vector<8x96xf32>
    %164 = vector.extract_strided_slice %157 {offsets = [0, 0], sizes = [8, 64], strides = [1, 1]} : vector<8x96xf32> to vector<8x64xf32>
    %165 = vector.extract_strided_slice %163 {offsets = [0, 0], sizes = [8, 64], strides = [1, 1]} : vector<8x96xf32> to vector<8x64xf32>
    %166 = arith.addf %164, %165 : vector<8x64xf32>
    %167 = arith.negf %166 : vector<8x64xf32>
    %168 = math.exp %167 : vector<8x64xf32>
    %cst_60 = arith.constant 1.000000e+00 : f32
    %169 = vector.broadcast %cst_60 : f32 to vector<8x64xf32>
    %170 = arith.addf %169, %168 : vector<8x64xf32>
    %171 = arith.divf %169, %170 : vector<8x64xf32>
    %172 = vector.extract_strided_slice %171 {offsets = [0, 0], sizes = [8, 32], strides = [1, 1]} : vector<8x64xf32> to vector<8x32xf32>
    %173 = vector.extract_strided_slice %171 {offsets = [0, 32], sizes = [8, 32], strides = [1, 1]} : vector<8x64xf32> to vector<8x32xf32>
    %174 = vector.extract_strided_slice %157 {offsets = [0, 64], sizes = [8, 32], strides = [1, 1]} : vector<8x96xf32> to vector<8x32xf32>
    %175 = vector.extract_strided_slice %163 {offsets = [0, 64], sizes = [8, 32], strides = [1, 1]} : vector<8x96xf32> to vector<8x32xf32>
    %176 = arith.mulf %172, %175 : vector<8x32xf32>
    %177 = arith.addf %174, %176 : vector<8x32xf32>
    %178 = math.tanh %177 : vector<8x32xf32>
    %cst_61 = arith.constant 1.000000e+00 : f32
    %179 = vector.broadcast %cst_61 : f32 to vector<8x32xf32>
    %180 = arith.subf %179, %173 : vector<8x32xf32>
    %181 = arith.mulf %180, %178 : vector<8x32xf32>
    %182 = arith.mulf %173, %122 : vector<8x32xf32>
    %183 = arith.addf %181, %182 : vector<8x32xf32>
    %c3_i32 = arith.constant 3 : i32
    %184 = arith.index_cast %c3_i32 : i32 to index
    %c0_62 = arith.constant 0 : index
    %c0_63 = arith.constant 0 : index
    %185 = vector.load %arg1[%184, %c0_62, %c0_63] : memref<6x8x128xf32, #tpu.memory_space<vmem>>, vector<1x8x128xf32>
    %186 = vector.shape_cast %185 : vector<1x8x128xf32> to vector<8x128xf32>
    %187 = arith.truncf %151 : vector<8x32xf32> to vector<8x32xbf16>
    %c0_64 = arith.constant 0 : index
    %c0_65 = arith.constant 0 : index
    %188 = vector.load %arg3[%c0_64, %c0_65] : memref<32x96xbf16, #tpu.memory_space<vmem>>, vector<32x96xbf16>
    %cst_66 = arith.constant dense<0.000000e+00> : vector<8x96xf32>
    %189 = tpu.matmul %187, %188, %cst_66 {dimension_numbers = #tpu.dot_dimension_numbers<[1], [0], [0], [1], [0, 0, 1, 1], [], []>} : vector<8x32xbf16>, vector<32x96xbf16>, vector<8x96xf32> -> vector<8x96xf32>
    %c0_67 = arith.constant 0 : index
    %c0_68 = arith.constant 0 : index
    %190 = vector.load %arg4[%c0_67, %c0_68] : memref<1x96xf32, #tpu.memory_space<vmem>>, vector<1x96xf32>
    %191 = vector.broadcast %190 : vector<1x96xf32> to vector<8x96xf32>
    %192 = arith.addf %189, %191 : vector<8x96xf32>
    %193 = vector.extract_strided_slice %186 {offsets = [0, 0], sizes = [8, 64], strides = [1, 1]} : vector<8x128xf32> to vector<8x64xf32>
    %194 = vector.extract_strided_slice %192 {offsets = [0, 0], sizes = [8, 64], strides = [1, 1]} : vector<8x96xf32> to vector<8x64xf32>
    %195 = arith.addf %193, %194 : vector<8x64xf32>
    %196 = arith.negf %195 : vector<8x64xf32>
    %197 = math.exp %196 : vector<8x64xf32>
    %cst_69 = arith.constant 1.000000e+00 : f32
    %198 = vector.broadcast %cst_69 : f32 to vector<8x64xf32>
    %199 = arith.addf %198, %197 : vector<8x64xf32>
    %200 = arith.divf %198, %199 : vector<8x64xf32>
    %201 = vector.extract_strided_slice %200 {offsets = [0, 0], sizes = [8, 32], strides = [1, 1]} : vector<8x64xf32> to vector<8x32xf32>
    %202 = vector.extract_strided_slice %200 {offsets = [0, 32], sizes = [8, 32], strides = [1, 1]} : vector<8x64xf32> to vector<8x32xf32>
    %203 = vector.extract_strided_slice %186 {offsets = [0, 64], sizes = [8, 32], strides = [1, 1]} : vector<8x128xf32> to vector<8x32xf32>
    %204 = vector.extract_strided_slice %192 {offsets = [0, 64], sizes = [8, 32], strides = [1, 1]} : vector<8x96xf32> to vector<8x32xf32>
    %205 = arith.mulf %201, %204 : vector<8x32xf32>
    %206 = arith.addf %203, %205 : vector<8x32xf32>
    %207 = math.tanh %206 : vector<8x32xf32>
    %cst_70 = arith.constant 1.000000e+00 : f32
    %208 = vector.broadcast %cst_70 : f32 to vector<8x32xf32>
    %209 = arith.subf %208, %202 : vector<8x32xf32>
    %210 = arith.mulf %209, %207 : vector<8x32xf32>
    %211 = arith.mulf %202, %151 : vector<8x32xf32>
    %212 = arith.addf %210, %211 : vector<8x32xf32>
    %213 = arith.truncf %212 : vector<8x32xf32> to vector<8x32xbf16>
    %c0_71 = arith.constant 0 : index
    %c0_72 = arith.constant 0 : index
    %214 = vector.load %arg5[%c0_71, %c0_72] : memref<32x96xbf16, #tpu.memory_space<vmem>>, vector<32x96xbf16>
    %cst_73 = arith.constant dense<0.000000e+00> : vector<8x96xf32>
    %215 = tpu.matmul %213, %214, %cst_73 {dimension_numbers = #tpu.dot_dimension_numbers<[1], [0], [0], [1], [0, 0, 1, 1], [], []>} : vector<8x32xbf16>, vector<32x96xbf16>, vector<8x96xf32> -> vector<8x96xf32>
    %c0_74 = arith.constant 0 : index
    %c0_75 = arith.constant 0 : index
    %216 = vector.load %arg6[%c0_74, %c0_75] : memref<1x96xf32, #tpu.memory_space<vmem>>, vector<1x96xf32>
    %217 = vector.broadcast %216 : vector<1x96xf32> to vector<8x96xf32>
    %218 = arith.addf %215, %217 : vector<8x96xf32>
    %219 = arith.truncf %183 : vector<8x32xf32> to vector<8x32xbf16>
    %c0_76 = arith.constant 0 : index
    %c0_77 = arith.constant 0 : index
    %220 = vector.load %arg7[%c0_76, %c0_77] : memref<32x96xbf16, #tpu.memory_space<vmem>>, vector<32x96xbf16>
    %cst_78 = arith.constant dense<0.000000e+00> : vector<8x96xf32>
    %221 = tpu.matmul %219, %220, %cst_78 {dimension_numbers = #tpu.dot_dimension_numbers<[1], [0], [0], [1], [0, 0, 1, 1], [], []>} : vector<8x32xbf16>, vector<32x96xbf16>, vector<8x96xf32> -> vector<8x96xf32>
    %c0_79 = arith.constant 0 : index
    %c0_80 = arith.constant 0 : index
    %222 = vector.load %arg8[%c0_79, %c0_80] : memref<1x96xf32, #tpu.memory_space<vmem>>, vector<1x96xf32>
    %223 = vector.broadcast %222 : vector<1x96xf32> to vector<8x96xf32>
    %224 = arith.addf %221, %223 : vector<8x96xf32>
    %225 = vector.extract_strided_slice %218 {offsets = [0, 0], sizes = [8, 64], strides = [1, 1]} : vector<8x96xf32> to vector<8x64xf32>
    %226 = vector.extract_strided_slice %224 {offsets = [0, 0], sizes = [8, 64], strides = [1, 1]} : vector<8x96xf32> to vector<8x64xf32>
    %227 = arith.addf %225, %226 : vector<8x64xf32>
    %228 = arith.negf %227 : vector<8x64xf32>
    %229 = math.exp %228 : vector<8x64xf32>
    %cst_81 = arith.constant 1.000000e+00 : f32
    %230 = vector.broadcast %cst_81 : f32 to vector<8x64xf32>
    %231 = arith.addf %230, %229 : vector<8x64xf32>
    %232 = arith.divf %230, %231 : vector<8x64xf32>
    %233 = vector.extract_strided_slice %232 {offsets = [0, 0], sizes = [8, 32], strides = [1, 1]} : vector<8x64xf32> to vector<8x32xf32>
    %234 = vector.extract_strided_slice %232 {offsets = [0, 32], sizes = [8, 32], strides = [1, 1]} : vector<8x64xf32> to vector<8x32xf32>
    %235 = vector.extract_strided_slice %218 {offsets = [0, 64], sizes = [8, 32], strides = [1, 1]} : vector<8x96xf32> to vector<8x32xf32>
    %236 = vector.extract_strided_slice %224 {offsets = [0, 64], sizes = [8, 32], strides = [1, 1]} : vector<8x96xf32> to vector<8x32xf32>
    %237 = arith.mulf %233, %236 : vector<8x32xf32>
    %238 = arith.addf %235, %237 : vector<8x32xf32>
    %239 = math.tanh %238 : vector<8x32xf32>
    %cst_82 = arith.constant 1.000000e+00 : f32
    %240 = vector.broadcast %cst_82 : f32 to vector<8x32xf32>
    %241 = arith.subf %240, %234 : vector<8x32xf32>
    %242 = arith.mulf %241, %239 : vector<8x32xf32>
    %243 = arith.mulf %234, %183 : vector<8x32xf32>
    %244 = arith.addf %242, %243 : vector<8x32xf32>
    %c4_i32 = arith.constant 4 : i32
    %245 = arith.index_cast %c4_i32 : i32 to index
    %c0_83 = arith.constant 0 : index
    %c0_84 = arith.constant 0 : index
    %246 = vector.load %arg1[%245, %c0_83, %c0_84] : memref<6x8x128xf32, #tpu.memory_space<vmem>>, vector<1x8x128xf32>
    %247 = vector.shape_cast %246 : vector<1x8x128xf32> to vector<8x128xf32>
    %248 = arith.truncf %212 : vector<8x32xf32> to vector<8x32xbf16>
    %c0_85 = arith.constant 0 : index
    %c0_86 = arith.constant 0 : index
    %249 = vector.load %arg3[%c0_85, %c0_86] : memref<32x96xbf16, #tpu.memory_space<vmem>>, vector<32x96xbf16>
    %cst_87 = arith.constant dense<0.000000e+00> : vector<8x96xf32>
    %250 = tpu.matmul %248, %249, %cst_87 {dimension_numbers = #tpu.dot_dimension_numbers<[1], [0], [0], [1], [0, 0, 1, 1], [], []>} : vector<8x32xbf16>, vector<32x96xbf16>, vector<8x96xf32> -> vector<8x96xf32>
    %c0_88 = arith.constant 0 : index
    %c0_89 = arith.constant 0 : index
    %251 = vector.load %arg4[%c0_88, %c0_89] : memref<1x96xf32, #tpu.memory_space<vmem>>, vector<1x96xf32>
    %252 = vector.broadcast %251 : vector<1x96xf32> to vector<8x96xf32>
    %253 = arith.addf %250, %252 : vector<8x96xf32>
    %254 = vector.extract_strided_slice %247 {offsets = [0, 0], sizes = [8, 64], strides = [1, 1]} : vector<8x128xf32> to vector<8x64xf32>
    %255 = vector.extract_strided_slice %253 {offsets = [0, 0], sizes = [8, 64], strides = [1, 1]} : vector<8x96xf32> to vector<8x64xf32>
    %256 = arith.addf %254, %255 : vector<8x64xf32>
    %257 = arith.negf %256 : vector<8x64xf32>
    %258 = math.exp %257 : vector<8x64xf32>
    %cst_90 = arith.constant 1.000000e+00 : f32
    %259 = vector.broadcast %cst_90 : f32 to vector<8x64xf32>
    %260 = arith.addf %259, %258 : vector<8x64xf32>
    %261 = arith.divf %259, %260 : vector<8x64xf32>
    %262 = vector.extract_strided_slice %261 {offsets = [0, 0], sizes = [8, 32], strides = [1, 1]} : vector<8x64xf32> to vector<8x32xf32>
    %263 = vector.extract_strided_slice %261 {offsets = [0, 32], sizes = [8, 32], strides = [1, 1]} : vector<8x64xf32> to vector<8x32xf32>
    %264 = vector.extract_strided_slice %247 {offsets = [0, 64], sizes = [8, 32], strides = [1, 1]} : vector<8x128xf32> to vector<8x32xf32>
    %265 = vector.extract_strided_slice %253 {offsets = [0, 64], sizes = [8, 32], strides = [1, 1]} : vector<8x96xf32> to vector<8x32xf32>
    %266 = arith.mulf %262, %265 : vector<8x32xf32>
    %267 = arith.addf %264, %266 : vector<8x32xf32>
    %268 = math.tanh %267 : vector<8x32xf32>
    %cst_91 = arith.constant 1.000000e+00 : f32
    %269 = vector.broadcast %cst_91 : f32 to vector<8x32xf32>
    %270 = arith.subf %269, %263 : vector<8x32xf32>
    %271 = arith.mulf %270, %268 : vector<8x32xf32>
    %272 = arith.mulf %263, %212 : vector<8x32xf32>
    %273 = arith.addf %271, %272 : vector<8x32xf32>
    %274 = arith.truncf %273 : vector<8x32xf32> to vector<8x32xbf16>
    %c0_92 = arith.constant 0 : index
    %c0_93 = arith.constant 0 : index
    %275 = vector.load %arg5[%c0_92, %c0_93] : memref<32x96xbf16, #tpu.memory_space<vmem>>, vector<32x96xbf16>
    %cst_94 = arith.constant dense<0.000000e+00> : vector<8x96xf32>
    %276 = tpu.matmul %274, %275, %cst_94 {dimension_numbers = #tpu.dot_dimension_numbers<[1], [0], [0], [1], [0, 0, 1, 1], [], []>} : vector<8x32xbf16>, vector<32x96xbf16>, vector<8x96xf32> -> vector<8x96xf32>
    %c0_95 = arith.constant 0 : index
    %c0_96 = arith.constant 0 : index
    %277 = vector.load %arg6[%c0_95, %c0_96] : memref<1x96xf32, #tpu.memory_space<vmem>>, vector<1x96xf32>
    %278 = vector.broadcast %277 : vector<1x96xf32> to vector<8x96xf32>
    %279 = arith.addf %276, %278 : vector<8x96xf32>
    %280 = arith.truncf %244 : vector<8x32xf32> to vector<8x32xbf16>
    %c0_97 = arith.constant 0 : index
    %c0_98 = arith.constant 0 : index
    %281 = vector.load %arg7[%c0_97, %c0_98] : memref<32x96xbf16, #tpu.memory_space<vmem>>, vector<32x96xbf16>
    %cst_99 = arith.constant dense<0.000000e+00> : vector<8x96xf32>
    %282 = tpu.matmul %280, %281, %cst_99 {dimension_numbers = #tpu.dot_dimension_numbers<[1], [0], [0], [1], [0, 0, 1, 1], [], []>} : vector<8x32xbf16>, vector<32x96xbf16>, vector<8x96xf32> -> vector<8x96xf32>
    %c0_100 = arith.constant 0 : index
    %c0_101 = arith.constant 0 : index
    %283 = vector.load %arg8[%c0_100, %c0_101] : memref<1x96xf32, #tpu.memory_space<vmem>>, vector<1x96xf32>
    %284 = vector.broadcast %283 : vector<1x96xf32> to vector<8x96xf32>
    %285 = arith.addf %282, %284 : vector<8x96xf32>
    %286 = vector.extract_strided_slice %279 {offsets = [0, 0], sizes = [8, 64], strides = [1, 1]} : vector<8x96xf32> to vector<8x64xf32>
    %287 = vector.extract_strided_slice %285 {offsets = [0, 0], sizes = [8, 64], strides = [1, 1]} : vector<8x96xf32> to vector<8x64xf32>
    %288 = arith.addf %286, %287 : vector<8x64xf32>
    %289 = arith.negf %288 : vector<8x64xf32>
    %290 = math.exp %289 : vector<8x64xf32>
    %cst_102 = arith.constant 1.000000e+00 : f32
    %291 = vector.broadcast %cst_102 : f32 to vector<8x64xf32>
    %292 = arith.addf %291, %290 : vector<8x64xf32>
    %293 = arith.divf %291, %292 : vector<8x64xf32>
    %294 = vector.extract_strided_slice %293 {offsets = [0, 0], sizes = [8, 32], strides = [1, 1]} : vector<8x64xf32> to vector<8x32xf32>
    %295 = vector.extract_strided_slice %293 {offsets = [0, 32], sizes = [8, 32], strides = [1, 1]} : vector<8x64xf32> to vector<8x32xf32>
    %296 = vector.extract_strided_slice %279 {offsets = [0, 64], sizes = [8, 32], strides = [1, 1]} : vector<8x96xf32> to vector<8x32xf32>
    %297 = vector.extract_strided_slice %285 {offsets = [0, 64], sizes = [8, 32], strides = [1, 1]} : vector<8x96xf32> to vector<8x32xf32>
    %298 = arith.mulf %294, %297 : vector<8x32xf32>
    %299 = arith.addf %296, %298 : vector<8x32xf32>
    %300 = math.tanh %299 : vector<8x32xf32>
    %cst_103 = arith.constant 1.000000e+00 : f32
    %301 = vector.broadcast %cst_103 : f32 to vector<8x32xf32>
    %302 = arith.subf %301, %295 : vector<8x32xf32>
    %303 = arith.mulf %302, %300 : vector<8x32xf32>
    %304 = arith.mulf %295, %244 : vector<8x32xf32>
    %305 = arith.addf %303, %304 : vector<8x32xf32>
    %c5_i32 = arith.constant 5 : i32
    %306 = arith.index_cast %c5_i32 : i32 to index
    %c0_104 = arith.constant 0 : index
    %c0_105 = arith.constant 0 : index
    %307 = vector.load %arg1[%306, %c0_104, %c0_105] : memref<6x8x128xf32, #tpu.memory_space<vmem>>, vector<1x8x128xf32>
    %308 = vector.shape_cast %307 : vector<1x8x128xf32> to vector<8x128xf32>
    %309 = arith.truncf %273 : vector<8x32xf32> to vector<8x32xbf16>
    %c0_106 = arith.constant 0 : index
    %c0_107 = arith.constant 0 : index
    %310 = vector.load %arg3[%c0_106, %c0_107] : memref<32x96xbf16, #tpu.memory_space<vmem>>, vector<32x96xbf16>
    %cst_108 = arith.constant dense<0.000000e+00> : vector<8x96xf32>
    %311 = tpu.matmul %309, %310, %cst_108 {dimension_numbers = #tpu.dot_dimension_numbers<[1], [0], [0], [1], [0, 0, 1, 1], [], []>} : vector<8x32xbf16>, vector<32x96xbf16>, vector<8x96xf32> -> vector<8x96xf32>
    %c0_109 = arith.constant 0 : index
    %c0_110 = arith.constant 0 : index
    %312 = vector.load %arg4[%c0_109, %c0_110] : memref<1x96xf32, #tpu.memory_space<vmem>>, vector<1x96xf32>
    %313 = vector.broadcast %312 : vector<1x96xf32> to vector<8x96xf32>
    %314 = arith.addf %311, %313 : vector<8x96xf32>
    %315 = vector.extract_strided_slice %308 {offsets = [0, 0], sizes = [8, 64], strides = [1, 1]} : vector<8x128xf32> to vector<8x64xf32>
    %316 = vector.extract_strided_slice %314 {offsets = [0, 0], sizes = [8, 64], strides = [1, 1]} : vector<8x96xf32> to vector<8x64xf32>
    %317 = arith.addf %315, %316 : vector<8x64xf32>
    %318 = arith.negf %317 : vector<8x64xf32>
    %319 = math.exp %318 : vector<8x64xf32>
    %cst_111 = arith.constant 1.000000e+00 : f32
    %320 = vector.broadcast %cst_111 : f32 to vector<8x64xf32>
    %321 = arith.addf %320, %319 : vector<8x64xf32>
    %322 = arith.divf %320, %321 : vector<8x64xf32>
    %323 = vector.extract_strided_slice %322 {offsets = [0, 0], sizes = [8, 32], strides = [1, 1]} : vector<8x64xf32> to vector<8x32xf32>
    %324 = vector.extract_strided_slice %322 {offsets = [0, 32], sizes = [8, 32], strides = [1, 1]} : vector<8x64xf32> to vector<8x32xf32>
    %325 = vector.extract_strided_slice %308 {offsets = [0, 64], sizes = [8, 32], strides = [1, 1]} : vector<8x128xf32> to vector<8x32xf32>
    %326 = vector.extract_strided_slice %314 {offsets = [0, 64], sizes = [8, 32], strides = [1, 1]} : vector<8x96xf32> to vector<8x32xf32>
    %327 = arith.mulf %323, %326 : vector<8x32xf32>
    %328 = arith.addf %325, %327 : vector<8x32xf32>
    %329 = math.tanh %328 : vector<8x32xf32>
    %cst_112 = arith.constant 1.000000e+00 : f32
    %330 = vector.broadcast %cst_112 : f32 to vector<8x32xf32>
    %331 = arith.subf %330, %324 : vector<8x32xf32>
    %332 = arith.mulf %331, %329 : vector<8x32xf32>
    %333 = arith.mulf %324, %273 : vector<8x32xf32>
    %334 = arith.addf %332, %333 : vector<8x32xf32>
    %335 = arith.truncf %334 : vector<8x32xf32> to vector<8x32xbf16>
    %c0_113 = arith.constant 0 : index
    %c0_114 = arith.constant 0 : index
    %336 = vector.load %arg5[%c0_113, %c0_114] : memref<32x96xbf16, #tpu.memory_space<vmem>>, vector<32x96xbf16>
    %cst_115 = arith.constant dense<0.000000e+00> : vector<8x96xf32>
    %337 = tpu.matmul %335, %336, %cst_115 {dimension_numbers = #tpu.dot_dimension_numbers<[1], [0], [0], [1], [0, 0, 1, 1], [], []>} : vector<8x32xbf16>, vector<32x96xbf16>, vector<8x96xf32> -> vector<8x96xf32>
    %c0_116 = arith.constant 0 : index
    %c0_117 = arith.constant 0 : index
    %338 = vector.load %arg6[%c0_116, %c0_117] : memref<1x96xf32, #tpu.memory_space<vmem>>, vector<1x96xf32>
    %339 = vector.broadcast %338 : vector<1x96xf32> to vector<8x96xf32>
    %340 = arith.addf %337, %339 : vector<8x96xf32>
    %341 = arith.truncf %305 : vector<8x32xf32> to vector<8x32xbf16>
    %c0_118 = arith.constant 0 : index
    %c0_119 = arith.constant 0 : index
    %342 = vector.load %arg7[%c0_118, %c0_119] : memref<32x96xbf16, #tpu.memory_space<vmem>>, vector<32x96xbf16>
    %cst_120 = arith.constant dense<0.000000e+00> : vector<8x96xf32>
    %343 = tpu.matmul %341, %342, %cst_120 {dimension_numbers = #tpu.dot_dimension_numbers<[1], [0], [0], [1], [0, 0, 1, 1], [], []>} : vector<8x32xbf16>, vector<32x96xbf16>, vector<8x96xf32> -> vector<8x96xf32>
    %c0_121 = arith.constant 0 : index
    %c0_122 = arith.constant 0 : index
    %344 = vector.load %arg8[%c0_121, %c0_122] : memref<1x96xf32, #tpu.memory_space<vmem>>, vector<1x96xf32>
    %345 = vector.broadcast %344 : vector<1x96xf32> to vector<8x96xf32>
    %346 = arith.addf %343, %345 : vector<8x96xf32>
    %347 = vector.extract_strided_slice %340 {offsets = [0, 0], sizes = [8, 64], strides = [1, 1]} : vector<8x96xf32> to vector<8x64xf32>
    %348 = vector.extract_strided_slice %346 {offsets = [0, 0], sizes = [8, 64], strides = [1, 1]} : vector<8x96xf32> to vector<8x64xf32>
    %349 = arith.addf %347, %348 : vector<8x64xf32>
    %350 = arith.negf %349 : vector<8x64xf32>
    %351 = math.exp %350 : vector<8x64xf32>
    %cst_123 = arith.constant 1.000000e+00 : f32
    %352 = vector.broadcast %cst_123 : f32 to vector<8x64xf32>
    %353 = arith.addf %352, %351 : vector<8x64xf32>
    %354 = arith.divf %352, %353 : vector<8x64xf32>
    %355 = vector.extract_strided_slice %354 {offsets = [0, 0], sizes = [8, 32], strides = [1, 1]} : vector<8x64xf32> to vector<8x32xf32>
    %356 = vector.extract_strided_slice %354 {offsets = [0, 32], sizes = [8, 32], strides = [1, 1]} : vector<8x64xf32> to vector<8x32xf32>
    %357 = vector.extract_strided_slice %340 {offsets = [0, 64], sizes = [8, 32], strides = [1, 1]} : vector<8x96xf32> to vector<8x32xf32>
    %358 = vector.extract_strided_slice %346 {offsets = [0, 64], sizes = [8, 32], strides = [1, 1]} : vector<8x96xf32> to vector<8x32xf32>
    %359 = arith.mulf %355, %358 : vector<8x32xf32>
    %360 = arith.addf %357, %359 : vector<8x32xf32>
    %361 = math.tanh %360 : vector<8x32xf32>
    %cst_124 = arith.constant 1.000000e+00 : f32
    %362 = vector.broadcast %cst_124 : f32 to vector<8x32xf32>
    %363 = arith.subf %362, %356 : vector<8x32xf32>
    %364 = arith.mulf %363, %361 : vector<8x32xf32>
    %365 = arith.mulf %356, %305 : vector<8x32xf32>
    %366 = arith.addf %364, %365 : vector<8x32xf32>
    %c6_i32 = arith.constant 6 : i32
    %c0_125 = arith.constant 0 : index
    %c0_126 = arith.constant 0 : index
    %367 = vector.load %arg2[%c0_125, %c0_126] : memref<8x14xf32, #tpu.memory_space<vmem>>, vector<8x14xf32>
    %368 = arith.truncf %367 : vector<8x14xf32> to vector<8x14xbf16>
    %c0_127 = arith.constant 0 : index
    %c0_128 = arith.constant 0 : index
    %369 = vector.load %arg9[%c0_127, %c0_128] : memref<14x64xbf16, #tpu.memory_space<vmem>>, vector<14x64xbf16>
    %cst_129 = arith.constant dense<0.000000e+00> : vector<8x64xf32>
    %370 = tpu.matmul %368, %369, %cst_129 {dimension_numbers = #tpu.dot_dimension_numbers<[1], [0], [0], [1], [0, 0, 1, 1], [], []>} : vector<8x14xbf16>, vector<14x64xbf16>, vector<8x64xf32> -> vector<8x64xf32>
    %c0_130 = arith.constant 0 : index
    %c0_131 = arith.constant 0 : index
    %371 = vector.load %arg10[%c0_130, %c0_131] : memref<1x64xf32, #tpu.memory_space<vmem>>, vector<1x64xf32>
    %372 = vector.broadcast %371 : vector<1x64xf32> to vector<8x64xf32>
    %373 = arith.addf %370, %372 : vector<8x64xf32>
    %374 = arith.truncf %366 : vector<8x32xf32> to vector<8x32xbf16>
    %c0_132 = arith.constant 0 : index
    %c0_133 = arith.constant 0 : index
    %375 = vector.load %arg12[%c0_132, %c0_133] : memref<32x32xbf16, #tpu.memory_space<vmem>>, vector<32x32xbf16>
    %cst_134 = arith.constant dense<0.000000e+00> : vector<8x32xf32>
    %376 = tpu.matmul %374, %375, %cst_134 {dimension_numbers = #tpu.dot_dimension_numbers<[1], [0], [0], [1], [0, 0, 1, 1], [], []>} : vector<8x32xbf16>, vector<32x32xbf16>, vector<8x32xf32> -> vector<8x32xf32>
    %c0_135 = arith.constant 0 : index
    %c0_136 = arith.constant 0 : index
    %377 = vector.load %arg13[%c0_135, %c0_136] : memref<1x32xf32, #tpu.memory_space<vmem>>, vector<1x32xf32>
    %378 = vector.broadcast %377 : vector<1x32xf32> to vector<8x32xf32>
    %379 = arith.addf %376, %378 : vector<8x32xf32>
    %cst_137 = arith.constant 0.000000e+00 : f32
    %380 = vector.broadcast %cst_137 : f32 to vector<8x64xf32>
    %381 = arith.truncf %373 : vector<8x64xf32> to vector<8x64xbf16>
    %c0_138 = arith.constant 0 : index
    %c0_139 = arith.constant 0 : index
    %382 = vector.load %arg25[%c0_138, %c0_139] : memref<64x192xbf16, #tpu.memory_space<vmem>>, vector<64x192xbf16>
    %cst_140 = arith.constant dense<0.000000e+00> : vector<8x192xf32>
    %383 = tpu.matmul %381, %382, %cst_140 {dimension_numbers = #tpu.dot_dimension_numbers<[1], [0], [0], [1], [0, 0, 1, 1], [], []>} : vector<8x64xbf16>, vector<64x192xbf16>, vector<8x192xf32> -> vector<8x192xf32>
    %c0_141 = arith.constant 0 : index
    %c0_142 = arith.constant 0 : index
    %384 = vector.load %arg26[%c0_141, %c0_142] : memref<1x192xf32, #tpu.memory_space<vmem>>, vector<1x192xf32>
    %385 = vector.broadcast %384 : vector<1x192xf32> to vector<8x192xf32>
    %386 = arith.addf %383, %385 : vector<8x192xf32>
    %387 = arith.truncf %380 : vector<8x64xf32> to vector<8x64xbf16>
    %c0_143 = arith.constant 0 : index
    %c0_144 = arith.constant 0 : index
    %388 = vector.load %arg27[%c0_143, %c0_144] : memref<64x192xbf16, #tpu.memory_space<vmem>>, vector<64x192xbf16>
    %cst_145 = arith.constant dense<0.000000e+00> : vector<8x192xf32>
    %389 = tpu.matmul %387, %388, %cst_145 {dimension_numbers = #tpu.dot_dimension_numbers<[1], [0], [0], [1], [0, 0, 1, 1], [], []>} : vector<8x64xbf16>, vector<64x192xbf16>, vector<8x192xf32> -> vector<8x192xf32>
    %c0_146 = arith.constant 0 : index
    %c0_147 = arith.constant 0 : index
    %390 = vector.load %arg28[%c0_146, %c0_147] : memref<1x192xf32, #tpu.memory_space<vmem>>, vector<1x192xf32>
    %391 = vector.broadcast %390 : vector<1x192xf32> to vector<8x192xf32>
    %392 = arith.addf %389, %391 : vector<8x192xf32>
    %393 = vector.extract_strided_slice %386 {offsets = [0, 0], sizes = [8, 128], strides = [1, 1]} : vector<8x192xf32> to vector<8x128xf32>
    %394 = vector.extract_strided_slice %392 {offsets = [0, 0], sizes = [8, 128], strides = [1, 1]} : vector<8x192xf32> to vector<8x128xf32>
    %395 = arith.addf %393, %394 : vector<8x128xf32>
    %396 = arith.negf %395 : vector<8x128xf32>
    %397 = math.exp %396 : vector<8x128xf32>
    %cst_148 = arith.constant 1.000000e+00 : f32
    %398 = vector.broadcast %cst_148 : f32 to vector<8x128xf32>
    %399 = arith.addf %398, %397 : vector<8x128xf32>
    %400 = arith.divf %398, %399 : vector<8x128xf32>
    %401 = vector.extract_strided_slice %400 {offsets = [0, 0], sizes = [8, 64], strides = [1, 1]} : vector<8x128xf32> to vector<8x64xf32>
    %402 = vector.extract_strided_slice %400 {offsets = [0, 64], sizes = [8, 64], strides = [1, 1]} : vector<8x128xf32> to vector<8x64xf32>
    %403 = vector.extract_strided_slice %386 {offsets = [0, 128], sizes = [8, 64], strides = [1, 1]} : vector<8x192xf32> to vector<8x64xf32>
    %404 = vector.extract_strided_slice %392 {offsets = [0, 128], sizes = [8, 64], strides = [1, 1]} : vector<8x192xf32> to vector<8x64xf32>
    %405 = arith.mulf %401, %404 : vector<8x64xf32>
    %406 = arith.addf %403, %405 : vector<8x64xf32>
    %407 = math.tanh %406 : vector<8x64xf32>
    %cst_149 = arith.constant 1.000000e+00 : f32
    %408 = vector.broadcast %cst_149 : f32 to vector<8x64xf32>
    %409 = arith.subf %408, %402 : vector<8x64xf32>
    %410 = arith.mulf %409, %407 : vector<8x64xf32>
    %411 = arith.mulf %402, %380 : vector<8x64xf32>
    %412 = arith.addf %410, %411 : vector<8x64xf32>
    %c0_150 = arith.constant 0 : index
    %c0_151 = arith.constant 0 : index
    %c0_152 = arith.constant 0 : index
    %413 = vector.load %arg32[%c0_150, %c0_151, %c0_152] : memref<9x8x64xf32, #tpu.memory_space<vmem>>, vector<1x8x64xf32>
    %414 = vector.shape_cast %413 : vector<1x8x64xf32> to vector<8x64xf32>
    %415 = vector.shape_cast %412 : vector<8x64xf32> to vector<1x8x64xf32>
    tpu.vector_store %arg32[%c0_150, %c0_151, %c0_152], %415 {strides = array<i32>} : memref<9x8x64xf32, #tpu.memory_space<vmem>>, vector<1x8x64xf32>,
    %cst_153 = arith.constant 0.000000e+00 : f32
    %416 = vector.broadcast %cst_153 : f32 to vector<8x32xf32>
    %c0_i32_154 = arith.constant 0 : i32
    %417 = arith.truncf %373 : vector<8x64xf32> to vector<8x64xbf16>
    %c0_155 = arith.constant 0 : index
    %c0_156 = arith.constant 0 : index
    %418 = vector.load %arg11[%c0_155, %c0_156] : memref<64x32xbf16, #tpu.memory_space<vmem>>, vector<64x32xbf16>
    %cst_157 = arith.constant dense<0.000000e+00> : vector<8x32xf32>
    %419 = tpu.matmul %417, %418, %cst_157 {dimension_numbers = #tpu.dot_dimension_numbers<[1], [0], [0], [1], [0, 0, 1, 1], [], []>} : vector<8x64xbf16>, vector<64x32xbf16>, vector<8x32xf32> -> vector<8x32xf32>
    %420 = arith.addf %419, %379 : vector<8x32xf32>
    %cst_158 = arith.constant 0.000000e+00 : f32
    %421 = vector.broadcast %cst_158 : f32 to vector<8x32xf32>
    %422 = arith.maximumf %420, %421 : vector<8x32xf32>
    %423 = arith.truncf %422 : vector<8x32xf32> to vector<8x32xbf16>
    %c0_159 = arith.constant 0 : index
    %c0_160 = arith.constant 0 : index
    %424 = vector.load %arg14[%c0_159, %c0_160] : memref<32x32xbf16, #tpu.memory_space<vmem>>, vector<32x32xbf16>
    %cst_161 = arith.constant dense<0.000000e+00> : vector<8x32xf32>
    %425 = tpu.matmul %423, %424, %cst_161 {dimension_numbers = #tpu.dot_dimension_numbers<[1], [0], [0], [1], [0, 0, 1, 1], [], []>} : vector<8x32xbf16>, vector<32x32xbf16>, vector<8x32xf32> -> vector<8x32xf32>
    %c0_162 = arith.constant 0 : index
    %c0_163 = arith.constant 0 : index
    %426 = vector.load %arg15[%c0_162, %c0_163] : memref<1x32xf32, #tpu.memory_space<vmem>>, vector<1x32xf32>
    %427 = vector.broadcast %426 : vector<1x32xf32> to vector<8x32xf32>
    %428 = arith.addf %425, %427 : vector<8x32xf32>
    %cst_164 = arith.constant 0.000000e+00 : f32
    %429 = vector.broadcast %cst_164 : f32 to vector<8x32xf32>
    %430 = arith.maximumf %428, %429 : vector<8x32xf32>
    %431 = arith.truncf %430 : vector<8x32xf32> to vector<8x32xbf16>
    %c0_165 = arith.constant 0 : index
    %c0_166 = arith.constant 0 : index
    %432 = vector.load %arg16[%c0_165, %c0_166] : memref<32x96xbf16, #tpu.memory_space<vmem>>, vector<32x96xbf16>
    %cst_167 = arith.constant dense<0.000000e+00> : vector<8x96xf32>
    %433 = tpu.matmul %431, %432, %cst_167 {dimension_numbers = #tpu.dot_dimension_numbers<[1], [0], [0], [1], [0, 0, 1, 1], [], []>} : vector<8x32xbf16>, vector<32x96xbf16>, vector<8x96xf32> -> vector<8x96xf32>
    %c0_168 = arith.constant 0 : index
    %c0_169 = arith.constant 0 : index
    %434 = vector.load %arg17[%c0_168, %c0_169] : memref<1x96xf32, #tpu.memory_space<vmem>>, vector<1x96xf32>
    %435 = vector.broadcast %434 : vector<1x96xf32> to vector<8x96xf32>
    %436 = arith.addf %433, %435 : vector<8x96xf32>
    %437 = arith.truncf %416 : vector<8x32xf32> to vector<8x32xbf16>
    %c0_170 = arith.constant 0 : index
    %c0_171 = arith.constant 0 : index
    %438 = vector.load %arg18[%c0_170, %c0_171] : memref<32x96xbf16, #tpu.memory_space<vmem>>, vector<32x96xbf16>
    %cst_172 = arith.constant dense<0.000000e+00> : vector<8x96xf32>
    %439 = tpu.matmul %437, %438, %cst_172 {dimension_numbers = #tpu.dot_dimension_numbers<[1], [0], [0], [1], [0, 0, 1, 1], [], []>} : vector<8x32xbf16>, vector<32x96xbf16>, vector<8x96xf32> -> vector<8x96xf32>
    %c0_173 = arith.constant 0 : index
    %c0_174 = arith.constant 0 : index
    %440 = vector.load %arg19[%c0_173, %c0_174] : memref<1x96xf32, #tpu.memory_space<vmem>>, vector<1x96xf32>
    %441 = vector.broadcast %440 : vector<1x96xf32> to vector<8x96xf32>
    %442 = arith.addf %439, %441 : vector<8x96xf32>
    %443 = vector.extract_strided_slice %436 {offsets = [0, 0], sizes = [8, 64], strides = [1, 1]} : vector<8x96xf32> to vector<8x64xf32>
    %444 = vector.extract_strided_slice %442 {offsets = [0, 0], sizes = [8, 64], strides = [1, 1]} : vector<8x96xf32> to vector<8x64xf32>
    %445 = arith.addf %443, %444 : vector<8x64xf32>
    %446 = arith.negf %445 : vector<8x64xf32>
    %447 = math.exp %446 : vector<8x64xf32>
    %cst_175 = arith.constant 1.000000e+00 : f32
    %448 = vector.broadcast %cst_175 : f32 to vector<8x64xf32>
    %449 = arith.addf %448, %447 : vector<8x64xf32>
    %450 = arith.divf %448, %449 : vector<8x64xf32>
    %451 = vector.extract_strided_slice %450 {offsets = [0, 0], sizes = [8, 32], strides = [1, 1]} : vector<8x64xf32> to vector<8x32xf32>
    %452 = vector.extract_strided_slice %450 {offsets = [0, 32], sizes = [8, 32], strides = [1, 1]} : vector<8x64xf32> to vector<8x32xf32>
    %453 = vector.extract_strided_slice %436 {offsets = [0, 64], sizes = [8, 32], strides = [1, 1]} : vector<8x96xf32> to vector<8x32xf32>
    %454 = vector.extract_strided_slice %442 {offsets = [0, 64], sizes = [8, 32], strides = [1, 1]} : vector<8x96xf32> to vector<8x32xf32>
    %455 = arith.mulf %451, %454 : vector<8x32xf32>
    %456 = arith.addf %453, %455 : vector<8x32xf32>
    %457 = math.tanh %456 : vector<8x32xf32>
    %cst_176 = arith.constant 1.000000e+00 : f32
    %458 = vector.broadcast %cst_176 : f32 to vector<8x32xf32>
    %459 = arith.subf %458, %452 : vector<8x32xf32>
    %460 = arith.mulf %459, %457 : vector<8x32xf32>
    %461 = arith.mulf %452, %416 : vector<8x32xf32>
    %462 = arith.addf %460, %461 : vector<8x32xf32>
    %463 = arith.truncf %462 : vector<8x32xf32> to vector<8x32xbf16>
    %c0_177 = arith.constant 0 : index
    %c0_178 = arith.constant 0 : index
    %464 = vector.load %arg20[%c0_177, %c0_178] : memref<32x96xbf16, #tpu.memory_space<vmem>>, vector<32x96xbf16>
    %cst_179 = arith.constant dense<0.000000e+00> : vector<8x96xf32>
    %465 = tpu.matmul %463, %464, %cst_179 {dimension_numbers = #tpu.dot_dimension_numbers<[1], [0], [0], [1], [0, 0, 1, 1], [], []>} : vector<8x32xbf16>, vector<32x96xbf16>, vector<8x96xf32> -> vector<8x96xf32>
    %c0_180 = arith.constant 0 : index
    %c0_181 = arith.constant 0 : index
    %466 = vector.load %arg21[%c0_180, %c0_181] : memref<1x96xf32, #tpu.memory_space<vmem>>, vector<1x96xf32>
    %467 = vector.broadcast %466 : vector<1x96xf32> to vector<8x96xf32>
    %468 = arith.addf %465, %467 : vector<8x96xf32>
    %469 = arith.truncf %416 : vector<8x32xf32> to vector<8x32xbf16>
    %c0_182 = arith.constant 0 : index
    %c0_183 = arith.constant 0 : index
    %470 = vector.load %arg22[%c0_182, %c0_183] : memref<32x96xbf16, #tpu.memory_space<vmem>>, vector<32x96xbf16>
    %cst_184 = arith.constant dense<0.000000e+00> : vector<8x96xf32>
    %471 = tpu.matmul %469, %470, %cst_184 {dimension_numbers = #tpu.dot_dimension_numbers<[1], [0], [0], [1], [0, 0, 1, 1], [], []>} : vector<8x32xbf16>, vector<32x96xbf16>, vector<8x96xf32> -> vector<8x96xf32>
    %c0_185 = arith.constant 0 : index
    %c0_186 = arith.constant 0 : index
    %472 = vector.load %arg23[%c0_185, %c0_186] : memref<1x96xf32, #tpu.memory_space<vmem>>, vector<1x96xf32>
    %473 = vector.broadcast %472 : vector<1x96xf32> to vector<8x96xf32>
    %474 = arith.addf %471, %473 : vector<8x96xf32>
    %475 = vector.extract_strided_slice %468 {offsets = [0, 0], sizes = [8, 64], strides = [1, 1]} : vector<8x96xf32> to vector<8x64xf32>
    %476 = vector.extract_strided_slice %474 {offsets = [0, 0], sizes = [8, 64], strides = [1, 1]} : vector<8x96xf32> to vector<8x64xf32>
    %477 = arith.addf %475, %476 : vector<8x64xf32>
    %478 = arith.negf %477 : vector<8x64xf32>
    %479 = math.exp %478 : vector<8x64xf32>
    %cst_187 = arith.constant 1.000000e+00 : f32
    %480 = vector.broadcast %cst_187 : f32 to vector<8x64xf32>
    %481 = arith.addf %480, %479 : vector<8x64xf32>
    %482 = arith.divf %480, %481 : vector<8x64xf32>
    %483 = vector.extract_strided_slice %482 {offsets = [0, 0], sizes = [8, 32], strides = [1, 1]} : vector<8x64xf32> to vector<8x32xf32>
    %484 = vector.extract_strided_slice %482 {offsets = [0, 32], sizes = [8, 32], strides = [1, 1]} : vector<8x64xf32> to vector<8x32xf32>
    %485 = vector.extract_strided_slice %468 {offsets = [0, 64], sizes = [8, 32], strides = [1, 1]} : vector<8x96xf32> to vector<8x32xf32>
    %486 = vector.extract_strided_slice %474 {offsets = [0, 64], sizes = [8, 32], strides = [1, 1]} : vector<8x96xf32> to vector<8x32xf32>
    %487 = arith.mulf %483, %486 : vector<8x32xf32>
    %488 = arith.addf %485, %487 : vector<8x32xf32>
    %489 = math.tanh %488 : vector<8x32xf32>
    %cst_188 = arith.constant 1.000000e+00 : f32
    %490 = vector.broadcast %cst_188 : f32 to vector<8x32xf32>
    %491 = arith.subf %490, %484 : vector<8x32xf32>
    %492 = arith.mulf %491, %489 : vector<8x32xf32>
    %493 = arith.mulf %484, %416 : vector<8x32xf32>
    %494 = arith.addf %492, %493 : vector<8x32xf32>
    %495 = arith.truncf %494 : vector<8x32xf32> to vector<8x32xbf16>
    %c0_189 = arith.constant 0 : index
    %c0_190 = arith.constant 0 : index
    %496 = vector.load %arg24[%c0_189, %c0_190] : memref<32x64xbf16, #tpu.memory_space<vmem>>, vector<32x64xbf16>
    %cst_191 = arith.constant dense<0.000000e+00> : vector<8x64xf32>
    %497 = tpu.matmul %495, %496, %cst_191 {dimension_numbers = #tpu.dot_dimension_numbers<[1], [0], [0], [1], [0, 0, 1, 1], [], []>} : vector<8x32xbf16>, vector<32x64xbf16>, vector<8x64xf32> -> vector<8x64xf32>
    %498 = arith.addf %373, %497 : vector<8x64xf32>
    %499 = arith.truncf %498 : vector<8x64xf32> to vector<8x64xbf16>
    %c0_192 = arith.constant 0 : index
    %c0_193 = arith.constant 0 : index
    %500 = vector.load %arg25[%c0_192, %c0_193] : memref<64x192xbf16, #tpu.memory_space<vmem>>, vector<64x192xbf16>
    %cst_194 = arith.constant dense<0.000000e+00> : vector<8x192xf32>
    %501 = tpu.matmul %499, %500, %cst_194 {dimension_numbers = #tpu.dot_dimension_numbers<[1], [0], [0], [1], [0, 0, 1, 1], [], []>} : vector<8x64xbf16>, vector<64x192xbf16>, vector<8x192xf32> -> vector<8x192xf32>
    %c0_195 = arith.constant 0 : index
    %c0_196 = arith.constant 0 : index
    %502 = vector.load %arg26[%c0_195, %c0_196] : memref<1x192xf32, #tpu.memory_space<vmem>>, vector<1x192xf32>
    %503 = vector.broadcast %502 : vector<1x192xf32> to vector<8x192xf32>
    %504 = arith.addf %501, %503 : vector<8x192xf32>
    %505 = arith.truncf %412 : vector<8x64xf32> to vector<8x64xbf16>
    %c0_197 = arith.constant 0 : index
    %c0_198 = arith.constant 0 : index
    %506 = vector.load %arg27[%c0_197, %c0_198] : memref<64x192xbf16, #tpu.memory_space<vmem>>, vector<64x192xbf16>
    %cst_199 = arith.constant dense<0.000000e+00> : vector<8x192xf32>
    %507 = tpu.matmul %505, %506, %cst_199 {dimension_numbers = #tpu.dot_dimension_numbers<[1], [0], [0], [1], [0, 0, 1, 1], [], []>} : vector<8x64xbf16>, vector<64x192xbf16>, vector<8x192xf32> -> vector<8x192xf32>
    %c0_200 = arith.constant 0 : index
    %c0_201 = arith.constant 0 : index
    %508 = vector.load %arg28[%c0_200, %c0_201] : memref<1x192xf32, #tpu.memory_space<vmem>>, vector<1x192xf32>
    %509 = vector.broadcast %508 : vector<1x192xf32> to vector<8x192xf32>
    %510 = arith.addf %507, %509 : vector<8x192xf32>
    %511 = vector.extract_strided_slice %504 {offsets = [0, 0], sizes = [8, 128], strides = [1, 1]} : vector<8x192xf32> to vector<8x128xf32>
    %512 = vector.extract_strided_slice %510 {offsets = [0, 0], sizes = [8, 128], strides = [1, 1]} : vector<8x192xf32> to vector<8x128xf32>
    %513 = arith.addf %511, %512 : vector<8x128xf32>
    %514 = arith.negf %513 : vector<8x128xf32>
    %515 = math.exp %514 : vector<8x128xf32>
    %cst_202 = arith.constant 1.000000e+00 : f32
    %516 = vector.broadcast %cst_202 : f32 to vector<8x128xf32>
    %517 = arith.addf %516, %515 : vector<8x128xf32>
    %518 = arith.divf %516, %517 : vector<8x128xf32>
    %519 = vector.extract_strided_slice %518 {offsets = [0, 0], sizes = [8, 64], strides = [1, 1]} : vector<8x128xf32> to vector<8x64xf32>
    %520 = vector.extract_strided_slice %518 {offsets = [0, 64], sizes = [8, 64], strides = [1, 1]} : vector<8x128xf32> to vector<8x64xf32>
    %521 = vector.extract_strided_slice %504 {offsets = [0, 128], sizes = [8, 64], strides = [1, 1]} : vector<8x192xf32> to vector<8x64xf32>
    %522 = vector.extract_strided_slice %510 {offsets = [0, 128], sizes = [8, 64], strides = [1, 1]} : vector<8x192xf32> to vector<8x64xf32>
    %523 = arith.mulf %519, %522 : vector<8x64xf32>
    %524 = arith.addf %521, %523 : vector<8x64xf32>
    %525 = math.tanh %524 : vector<8x64xf32>
    %cst_203 = arith.constant 1.000000e+00 : f32
    %526 = vector.broadcast %cst_203 : f32 to vector<8x64xf32>
    %527 = arith.subf %526, %520 : vector<8x64xf32>
    %528 = arith.mulf %527, %525 : vector<8x64xf32>
    %529 = arith.mulf %520, %412 : vector<8x64xf32>
    %530 = arith.addf %528, %529 : vector<8x64xf32>
    %c1_i32_204 = arith.constant 1 : i32
    %531 = arith.addi %c0_i32_154, %c1_i32_204 : i32
    %532 = arith.index_cast %531 : i32 to index
    %c0_205 = arith.constant 0 : index
    %c0_206 = arith.constant 0 : index
    %533 = vector.load %arg32[%532, %c0_205, %c0_206] : memref<9x8x64xf32, #tpu.memory_space<vmem>>, vector<1x8x64xf32>
    %534 = vector.shape_cast %533 : vector<1x8x64xf32> to vector<8x64xf32>
    %535 = vector.shape_cast %530 : vector<8x64xf32> to vector<1x8x64xf32>
    tpu.vector_store %arg32[%532, %c0_205, %c0_206], %535 {strides = array<i32>} : memref<9x8x64xf32, #tpu.memory_space<vmem>>, vector<1x8x64xf32>,
    %c1_i32_207 = arith.constant 1 : i32
    %536 = arith.truncf %498 : vector<8x64xf32> to vector<8x64xbf16>
    %c0_208 = arith.constant 0 : index
    %c0_209 = arith.constant 0 : index
    %537 = vector.load %arg11[%c0_208, %c0_209] : memref<64x32xbf16, #tpu.memory_space<vmem>>, vector<64x32xbf16>
    %cst_210 = arith.constant dense<0.000000e+00> : vector<8x32xf32>
    %538 = tpu.matmul %536, %537, %cst_210 {dimension_numbers = #tpu.dot_dimension_numbers<[1], [0], [0], [1], [0, 0, 1, 1], [], []>} : vector<8x64xbf16>, vector<64x32xbf16>, vector<8x32xf32> -> vector<8x32xf32>
    %539 = arith.addf %538, %379 : vector<8x32xf32>
    %cst_211 = arith.constant 0.000000e+00 : f32
    %540 = vector.broadcast %cst_211 : f32 to vector<8x32xf32>
    %541 = arith.maximumf %539, %540 : vector<8x32xf32>
    %542 = arith.truncf %541 : vector<8x32xf32> to vector<8x32xbf16>
    %c0_212 = arith.constant 0 : index
    %c0_213 = arith.constant 0 : index
    %543 = vector.load %arg14[%c0_212, %c0_213] : memref<32x32xbf16, #tpu.memory_space<vmem>>, vector<32x32xbf16>
    %cst_214 = arith.constant dense<0.000000e+00> : vector<8x32xf32>
    %544 = tpu.matmul %542, %543, %cst_214 {dimension_numbers = #tpu.dot_dimension_numbers<[1], [0], [0], [1], [0, 0, 1, 1], [], []>} : vector<8x32xbf16>, vector<32x32xbf16>, vector<8x32xf32> -> vector<8x32xf32>
    %c0_215 = arith.constant 0 : index
    %c0_216 = arith.constant 0 : index
    %545 = vector.load %arg15[%c0_215, %c0_216] : memref<1x32xf32, #tpu.memory_space<vmem>>, vector<1x32xf32>
    %546 = vector.broadcast %545 : vector<1x32xf32> to vector<8x32xf32>
    %547 = arith.addf %544, %546 : vector<8x32xf32>
    %cst_217 = arith.constant 0.000000e+00 : f32
    %548 = vector.broadcast %cst_217 : f32 to vector<8x32xf32>
    %549 = arith.maximumf %547, %548 : vector<8x32xf32>
    %550 = arith.truncf %549 : vector<8x32xf32> to vector<8x32xbf16>
    %c0_218 = arith.constant 0 : index
    %c0_219 = arith.constant 0 : index
    %551 = vector.load %arg16[%c0_218, %c0_219] : memref<32x96xbf16, #tpu.memory_space<vmem>>, vector<32x96xbf16>
    %cst_220 = arith.constant dense<0.000000e+00> : vector<8x96xf32>
    %552 = tpu.matmul %550, %551, %cst_220 {dimension_numbers = #tpu.dot_dimension_numbers<[1], [0], [0], [1], [0, 0, 1, 1], [], []>} : vector<8x32xbf16>, vector<32x96xbf16>, vector<8x96xf32> -> vector<8x96xf32>
    %c0_221 = arith.constant 0 : index
    %c0_222 = arith.constant 0 : index
    %553 = vector.load %arg17[%c0_221, %c0_222] : memref<1x96xf32, #tpu.memory_space<vmem>>, vector<1x96xf32>
    %554 = vector.broadcast %553 : vector<1x96xf32> to vector<8x96xf32>
    %555 = arith.addf %552, %554 : vector<8x96xf32>
    %556 = arith.truncf %462 : vector<8x32xf32> to vector<8x32xbf16>
    %c0_223 = arith.constant 0 : index
    %c0_224 = arith.constant 0 : index
    %557 = vector.load %arg18[%c0_223, %c0_224] : memref<32x96xbf16, #tpu.memory_space<vmem>>, vector<32x96xbf16>
    %cst_225 = arith.constant dense<0.000000e+00> : vector<8x96xf32>
    %558 = tpu.matmul %556, %557, %cst_225 {dimension_numbers = #tpu.dot_dimension_numbers<[1], [0], [0], [1], [0, 0, 1, 1], [], []>} : vector<8x32xbf16>, vector<32x96xbf16>, vector<8x96xf32> -> vector<8x96xf32>
    %c0_226 = arith.constant 0 : index
    %c0_227 = arith.constant 0 : index
    %559 = vector.load %arg19[%c0_226, %c0_227] : memref<1x96xf32, #tpu.memory_space<vmem>>, vector<1x96xf32>
    %560 = vector.broadcast %559 : vector<1x96xf32> to vector<8x96xf32>
    %561 = arith.addf %558, %560 : vector<8x96xf32>
    %562 = vector.extract_strided_slice %555 {offsets = [0, 0], sizes = [8, 64], strides = [1, 1]} : vector<8x96xf32> to vector<8x64xf32>
    %563 = vector.extract_strided_slice %561 {offsets = [0, 0], sizes = [8, 64], strides = [1, 1]} : vector<8x96xf32> to vector<8x64xf32>
    %564 = arith.addf %562, %563 : vector<8x64xf32>
    %565 = arith.negf %564 : vector<8x64xf32>
    %566 = math.exp %565 : vector<8x64xf32>
    %cst_228 = arith.constant 1.000000e+00 : f32
    %567 = vector.broadcast %cst_228 : f32 to vector<8x64xf32>
    %568 = arith.addf %567, %566 : vector<8x64xf32>
    %569 = arith.divf %567, %568 : vector<8x64xf32>
    %570 = vector.extract_strided_slice %569 {offsets = [0, 0], sizes = [8, 32], strides = [1, 1]} : vector<8x64xf32> to vector<8x32xf32>
    %571 = vector.extract_strided_slice %569 {offsets = [0, 32], sizes = [8, 32], strides = [1, 1]} : vector<8x64xf32> to vector<8x32xf32>
    %572 = vector.extract_strided_slice %555 {offsets = [0, 64], sizes = [8, 32], strides = [1, 1]} : vector<8x96xf32> to vector<8x32xf32>
    %573 = vector.extract_strided_slice %561 {offsets = [0, 64], sizes = [8, 32], strides = [1, 1]} : vector<8x96xf32> to vector<8x32xf32>
    %574 = arith.mulf %570, %573 : vector<8x32xf32>
    %575 = arith.addf %572, %574 : vector<8x32xf32>
    %576 = math.tanh %575 : vector<8x32xf32>
    %cst_229 = arith.constant 1.000000e+00 : f32
    %577 = vector.broadcast %cst_229 : f32 to vector<8x32xf32>
    %578 = arith.subf %577, %571 : vector<8x32xf32>
    %579 = arith.mulf %578, %576 : vector<8x32xf32>
    %580 = arith.mulf %571, %462 : vector<8x32xf32>
    %581 = arith.addf %579, %580 : vector<8x32xf32>
    %582 = arith.truncf %581 : vector<8x32xf32> to vector<8x32xbf16>
    %c0_230 = arith.constant 0 : index
    %c0_231 = arith.constant 0 : index
    %583 = vector.load %arg20[%c0_230, %c0_231] : memref<32x96xbf16, #tpu.memory_space<vmem>>, vector<32x96xbf16>
    %cst_232 = arith.constant dense<0.000000e+00> : vector<8x96xf32>
    %584 = tpu.matmul %582, %583, %cst_232 {dimension_numbers = #tpu.dot_dimension_numbers<[1], [0], [0], [1], [0, 0, 1, 1], [], []>} : vector<8x32xbf16>, vector<32x96xbf16>, vector<8x96xf32> -> vector<8x96xf32>
    %c0_233 = arith.constant 0 : index
    %c0_234 = arith.constant 0 : index
    %585 = vector.load %arg21[%c0_233, %c0_234] : memref<1x96xf32, #tpu.memory_space<vmem>>, vector<1x96xf32>
    %586 = vector.broadcast %585 : vector<1x96xf32> to vector<8x96xf32>
    %587 = arith.addf %584, %586 : vector<8x96xf32>
    %588 = arith.truncf %494 : vector<8x32xf32> to vector<8x32xbf16>
    %c0_235 = arith.constant 0 : index
    %c0_236 = arith.constant 0 : index
    %589 = vector.load %arg22[%c0_235, %c0_236] : memref<32x96xbf16, #tpu.memory_space<vmem>>, vector<32x96xbf16>
    %cst_237 = arith.constant dense<0.000000e+00> : vector<8x96xf32>
    %590 = tpu.matmul %588, %589, %cst_237 {dimension_numbers = #tpu.dot_dimension_numbers<[1], [0], [0], [1], [0, 0, 1, 1], [], []>} : vector<8x32xbf16>, vector<32x96xbf16>, vector<8x96xf32> -> vector<8x96xf32>
    %c0_238 = arith.constant 0 : index
    %c0_239 = arith.constant 0 : index
    %591 = vector.load %arg23[%c0_238, %c0_239] : memref<1x96xf32, #tpu.memory_space<vmem>>, vector<1x96xf32>
    %592 = vector.broadcast %591 : vector<1x96xf32> to vector<8x96xf32>
    %593 = arith.addf %590, %592 : vector<8x96xf32>
    %594 = vector.extract_strided_slice %587 {offsets = [0, 0], sizes = [8, 64], strides = [1, 1]} : vector<8x96xf32> to vector<8x64xf32>
    %595 = vector.extract_strided_slice %593 {offsets = [0, 0], sizes = [8, 64], strides = [1, 1]} : vector<8x96xf32> to vector<8x64xf32>
    %596 = arith.addf %594, %595 : vector<8x64xf32>
    %597 = arith.negf %596 : vector<8x64xf32>
    %598 = math.exp %597 : vector<8x64xf32>
    %cst_240 = arith.constant 1.000000e+00 : f32
    %599 = vector.broadcast %cst_240 : f32 to vector<8x64xf32>
    %600 = arith.addf %599, %598 : vector<8x64xf32>
    %601 = arith.divf %599, %600 : vector<8x64xf32>
    %602 = vector.extract_strided_slice %601 {offsets = [0, 0], sizes = [8, 32], strides = [1, 1]} : vector<8x64xf32> to vector<8x32xf32>
    %603 = vector.extract_strided_slice %601 {offsets = [0, 32], sizes = [8, 32], strides = [1, 1]} : vector<8x64xf32> to vector<8x32xf32>
    %604 = vector.extract_strided_slice %587 {offsets = [0, 64], sizes = [8, 32], strides = [1, 1]} : vector<8x96xf32> to vector<8x32xf32>
    %605 = vector.extract_strided_slice %593 {offsets = [0, 64], sizes = [8, 32], strides = [1, 1]} : vector<8x96xf32> to vector<8x32xf32>
    %606 = arith.mulf %602, %605 : vector<8x32xf32>
    %607 = arith.addf %604, %606 : vector<8x32xf32>
    %608 = math.tanh %607 : vector<8x32xf32>
    %cst_241 = arith.constant 1.000000e+00 : f32
    %609 = vector.broadcast %cst_241 : f32 to vector<8x32xf32>
    %610 = arith.subf %609, %603 : vector<8x32xf32>
    %611 = arith.mulf %610, %608 : vector<8x32xf32>
    %612 = arith.mulf %603, %494 : vector<8x32xf32>
    %613 = arith.addf %611, %612 : vector<8x32xf32>
    %614 = arith.truncf %613 : vector<8x32xf32> to vector<8x32xbf16>
    %c0_242 = arith.constant 0 : index
    %c0_243 = arith.constant 0 : index
    %615 = vector.load %arg24[%c0_242, %c0_243] : memref<32x64xbf16, #tpu.memory_space<vmem>>, vector<32x64xbf16>
    %cst_244 = arith.constant dense<0.000000e+00> : vector<8x64xf32>
    %616 = tpu.matmul %614, %615, %cst_244 {dimension_numbers = #tpu.dot_dimension_numbers<[1], [0], [0], [1], [0, 0, 1, 1], [], []>} : vector<8x32xbf16>, vector<32x64xbf16>, vector<8x64xf32> -> vector<8x64xf32>
    %617 = arith.addf %498, %616 : vector<8x64xf32>
    %618 = arith.truncf %617 : vector<8x64xf32> to vector<8x64xbf16>
    %c0_245 = arith.constant 0 : index
    %c0_246 = arith.constant 0 : index
    %619 = vector.load %arg25[%c0_245, %c0_246] : memref<64x192xbf16, #tpu.memory_space<vmem>>, vector<64x192xbf16>
    %cst_247 = arith.constant dense<0.000000e+00> : vector<8x192xf32>
    %620 = tpu.matmul %618, %619, %cst_247 {dimension_numbers = #tpu.dot_dimension_numbers<[1], [0], [0], [1], [0, 0, 1, 1], [], []>} : vector<8x64xbf16>, vector<64x192xbf16>, vector<8x192xf32> -> vector<8x192xf32>
    %c0_248 = arith.constant 0 : index
    %c0_249 = arith.constant 0 : index
    %621 = vector.load %arg26[%c0_248, %c0_249] : memref<1x192xf32, #tpu.memory_space<vmem>>, vector<1x192xf32>
    %622 = vector.broadcast %621 : vector<1x192xf32> to vector<8x192xf32>
    %623 = arith.addf %620, %622 : vector<8x192xf32>
    %624 = arith.truncf %530 : vector<8x64xf32> to vector<8x64xbf16>
    %c0_250 = arith.constant 0 : index
    %c0_251 = arith.constant 0 : index
    %625 = vector.load %arg27[%c0_250, %c0_251] : memref<64x192xbf16, #tpu.memory_space<vmem>>, vector<64x192xbf16>
    %cst_252 = arith.constant dense<0.000000e+00> : vector<8x192xf32>
    %626 = tpu.matmul %624, %625, %cst_252 {dimension_numbers = #tpu.dot_dimension_numbers<[1], [0], [0], [1], [0, 0, 1, 1], [], []>} : vector<8x64xbf16>, vector<64x192xbf16>, vector<8x192xf32> -> vector<8x192xf32>
    %c0_253 = arith.constant 0 : index
    %c0_254 = arith.constant 0 : index
    %627 = vector.load %arg28[%c0_253, %c0_254] : memref<1x192xf32, #tpu.memory_space<vmem>>, vector<1x192xf32>
    %628 = vector.broadcast %627 : vector<1x192xf32> to vector<8x192xf32>
    %629 = arith.addf %626, %628 : vector<8x192xf32>
    %630 = vector.extract_strided_slice %623 {offsets = [0, 0], sizes = [8, 128], strides = [1, 1]} : vector<8x192xf32> to vector<8x128xf32>
    %631 = vector.extract_strided_slice %629 {offsets = [0, 0], sizes = [8, 128], strides = [1, 1]} : vector<8x192xf32> to vector<8x128xf32>
    %632 = arith.addf %630, %631 : vector<8x128xf32>
    %633 = arith.negf %632 : vector<8x128xf32>
    %634 = math.exp %633 : vector<8x128xf32>
    %cst_255 = arith.constant 1.000000e+00 : f32
    %635 = vector.broadcast %cst_255 : f32 to vector<8x128xf32>
    %636 = arith.addf %635, %634 : vector<8x128xf32>
    %637 = arith.divf %635, %636 : vector<8x128xf32>
    %638 = vector.extract_strided_slice %637 {offsets = [0, 0], sizes = [8, 64], strides = [1, 1]} : vector<8x128xf32> to vector<8x64xf32>
    %639 = vector.extract_strided_slice %637 {offsets = [0, 64], sizes = [8, 64], strides = [1, 1]} : vector<8x128xf32> to vector<8x64xf32>
    %640 = vector.extract_strided_slice %623 {offsets = [0, 128], sizes = [8, 64], strides = [1, 1]} : vector<8x192xf32> to vector<8x64xf32>
    %641 = vector.extract_strided_slice %629 {offsets = [0, 128], sizes = [8, 64], strides = [1, 1]} : vector<8x192xf32> to vector<8x64xf32>
    %642 = arith.mulf %638, %641 : vector<8x64xf32>
    %643 = arith.addf %640, %642 : vector<8x64xf32>
    %644 = math.tanh %643 : vector<8x64xf32>
    %cst_256 = arith.constant 1.000000e+00 : f32
    %645 = vector.broadcast %cst_256 : f32 to vector<8x64xf32>
    %646 = arith.subf %645, %639 : vector<8x64xf32>
    %647 = arith.mulf %646, %644 : vector<8x64xf32>
    %648 = arith.mulf %639, %530 : vector<8x64xf32>
    %649 = arith.addf %647, %648 : vector<8x64xf32>
    %c1_i32_257 = arith.constant 1 : i32
    %650 = arith.addi %c1_i32_207, %c1_i32_257 : i32
    %651 = arith.index_cast %650 : i32 to index
    %c0_258 = arith.constant 0 : index
    %c0_259 = arith.constant 0 : index
    %652 = vector.load %arg32[%651, %c0_258, %c0_259] : memref<9x8x64xf32, #tpu.memory_space<vmem>>, vector<1x8x64xf32>
    %653 = vector.shape_cast %652 : vector<1x8x64xf32> to vector<8x64xf32>
    %654 = vector.shape_cast %649 : vector<8x64xf32> to vector<1x8x64xf32>
    tpu.vector_store %arg32[%651, %c0_258, %c0_259], %654 {strides = array<i32>} : memref<9x8x64xf32, #tpu.memory_space<vmem>>, vector<1x8x64xf32>,
    %c2_i32_260 = arith.constant 2 : i32
    %655 = arith.truncf %617 : vector<8x64xf32> to vector<8x64xbf16>
    %c0_261 = arith.constant 0 : index
    %c0_262 = arith.constant 0 : index
    %656 = vector.load %arg11[%c0_261, %c0_262] : memref<64x32xbf16, #tpu.memory_space<vmem>>, vector<64x32xbf16>
    %cst_263 = arith.constant dense<0.000000e+00> : vector<8x32xf32>
    %657 = tpu.matmul %655, %656, %cst_263 {dimension_numbers = #tpu.dot_dimension_numbers<[1], [0], [0], [1], [0, 0, 1, 1], [], []>} : vector<8x64xbf16>, vector<64x32xbf16>, vector<8x32xf32> -> vector<8x32xf32>
    %658 = arith.addf %657, %379 : vector<8x32xf32>
    %cst_264 = arith.constant 0.000000e+00 : f32
    %659 = vector.broadcast %cst_264 : f32 to vector<8x32xf32>
    %660 = arith.maximumf %658, %659 : vector<8x32xf32>
    %661 = arith.truncf %660 : vector<8x32xf32> to vector<8x32xbf16>
    %c0_265 = arith.constant 0 : index
    %c0_266 = arith.constant 0 : index
    %662 = vector.load %arg14[%c0_265, %c0_266] : memref<32x32xbf16, #tpu.memory_space<vmem>>, vector<32x32xbf16>
    %cst_267 = arith.constant dense<0.000000e+00> : vector<8x32xf32>
    %663 = tpu.matmul %661, %662, %cst_267 {dimension_numbers = #tpu.dot_dimension_numbers<[1], [0], [0], [1], [0, 0, 1, 1], [], []>} : vector<8x32xbf16>, vector<32x32xbf16>, vector<8x32xf32> -> vector<8x32xf32>
    %c0_268 = arith.constant 0 : index
    %c0_269 = arith.constant 0 : index
    %664 = vector.load %arg15[%c0_268, %c0_269] : memref<1x32xf32, #tpu.memory_space<vmem>>, vector<1x32xf32>
    %665 = vector.broadcast %664 : vector<1x32xf32> to vector<8x32xf32>
    %666 = arith.addf %663, %665 : vector<8x32xf32>
    %cst_270 = arith.constant 0.000000e+00 : f32
    %667 = vector.broadcast %cst_270 : f32 to vector<8x32xf32>
    %668 = arith.maximumf %666, %667 : vector<8x32xf32>
    %669 = arith.truncf %668 : vector<8x32xf32> to vector<8x32xbf16>
    %c0_271 = arith.constant 0 : index
    %c0_272 = arith.constant 0 : index
    %670 = vector.load %arg16[%c0_271, %c0_272] : memref<32x96xbf16, #tpu.memory_space<vmem>>, vector<32x96xbf16>
    %cst_273 = arith.constant dense<0.000000e+00> : vector<8x96xf32>
    %671 = tpu.matmul %669, %670, %cst_273 {dimension_numbers = #tpu.dot_dimension_numbers<[1], [0], [0], [1], [0, 0, 1, 1], [], []>} : vector<8x32xbf16>, vector<32x96xbf16>, vector<8x96xf32> -> vector<8x96xf32>
    %c0_274 = arith.constant 0 : index
    %c0_275 = arith.constant 0 : index
    %672 = vector.load %arg17[%c0_274, %c0_275] : memref<1x96xf32, #tpu.memory_space<vmem>>, vector<1x96xf32>
    %673 = vector.broadcast %672 : vector<1x96xf32> to vector<8x96xf32>
    %674 = arith.addf %671, %673 : vector<8x96xf32>
    %675 = arith.truncf %581 : vector<8x32xf32> to vector<8x32xbf16>
    %c0_276 = arith.constant 0 : index
    %c0_277 = arith.constant 0 : index
    %676 = vector.load %arg18[%c0_276, %c0_277] : memref<32x96xbf16, #tpu.memory_space<vmem>>, vector<32x96xbf16>
    %cst_278 = arith.constant dense<0.000000e+00> : vector<8x96xf32>
    %677 = tpu.matmul %675, %676, %cst_278 {dimension_numbers = #tpu.dot_dimension_numbers<[1], [0], [0], [1], [0, 0, 1, 1], [], []>} : vector<8x32xbf16>, vector<32x96xbf16>, vector<8x96xf32> -> vector<8x96xf32>
    %c0_279 = arith.constant 0 : index
    %c0_280 = arith.constant 0 : index
    %678 = vector.load %arg19[%c0_279, %c0_280] : memref<1x96xf32, #tpu.memory_space<vmem>>, vector<1x96xf32>
    %679 = vector.broadcast %678 : vector<1x96xf32> to vector<8x96xf32>
    %680 = arith.addf %677, %679 : vector<8x96xf32>
    %681 = vector.extract_strided_slice %674 {offsets = [0, 0], sizes = [8, 64], strides = [1, 1]} : vector<8x96xf32> to vector<8x64xf32>
    %682 = vector.extract_strided_slice %680 {offsets = [0, 0], sizes = [8, 64], strides = [1, 1]} : vector<8x96xf32> to vector<8x64xf32>
    %683 = arith.addf %681, %682 : vector<8x64xf32>
    %684 = arith.negf %683 : vector<8x64xf32>
    %685 = math.exp %684 : vector<8x64xf32>
    %cst_281 = arith.constant 1.000000e+00 : f32
    %686 = vector.broadcast %cst_281 : f32 to vector<8x64xf32>
    %687 = arith.addf %686, %685 : vector<8x64xf32>
    %688 = arith.divf %686, %687 : vector<8x64xf32>
    %689 = vector.extract_strided_slice %688 {offsets = [0, 0], sizes = [8, 32], strides = [1, 1]} : vector<8x64xf32> to vector<8x32xf32>
    %690 = vector.extract_strided_slice %688 {offsets = [0, 32], sizes = [8, 32], strides = [1, 1]} : vector<8x64xf32> to vector<8x32xf32>
    %691 = vector.extract_strided_slice %674 {offsets = [0, 64], sizes = [8, 32], strides = [1, 1]} : vector<8x96xf32> to vector<8x32xf32>
    %692 = vector.extract_strided_slice %680 {offsets = [0, 64], sizes = [8, 32], strides = [1, 1]} : vector<8x96xf32> to vector<8x32xf32>
    %693 = arith.mulf %689, %692 : vector<8x32xf32>
    %694 = arith.addf %691, %693 : vector<8x32xf32>
    %695 = math.tanh %694 : vector<8x32xf32>
    %cst_282 = arith.constant 1.000000e+00 : f32
    %696 = vector.broadcast %cst_282 : f32 to vector<8x32xf32>
    %697 = arith.subf %696, %690 : vector<8x32xf32>
    %698 = arith.mulf %697, %695 : vector<8x32xf32>
    %699 = arith.mulf %690, %581 : vector<8x32xf32>
    %700 = arith.addf %698, %699 : vector<8x32xf32>
    %701 = arith.truncf %700 : vector<8x32xf32> to vector<8x32xbf16>
    %c0_283 = arith.constant 0 : index
    %c0_284 = arith.constant 0 : index
    %702 = vector.load %arg20[%c0_283, %c0_284] : memref<32x96xbf16, #tpu.memory_space<vmem>>, vector<32x96xbf16>
    %cst_285 = arith.constant dense<0.000000e+00> : vector<8x96xf32>
    %703 = tpu.matmul %701, %702, %cst_285 {dimension_numbers = #tpu.dot_dimension_numbers<[1], [0], [0], [1], [0, 0, 1, 1], [], []>} : vector<8x32xbf16>, vector<32x96xbf16>, vector<8x96xf32> -> vector<8x96xf32>
    %c0_286 = arith.constant 0 : index
    %c0_287 = arith.constant 0 : index
    %704 = vector.load %arg21[%c0_286, %c0_287] : memref<1x96xf32, #tpu.memory_space<vmem>>, vector<1x96xf32>
    %705 = vector.broadcast %704 : vector<1x96xf32> to vector<8x96xf32>
    %706 = arith.addf %703, %705 : vector<8x96xf32>
    %707 = arith.truncf %613 : vector<8x32xf32> to vector<8x32xbf16>
    %c0_288 = arith.constant 0 : index
    %c0_289 = arith.constant 0 : index
    %708 = vector.load %arg22[%c0_288, %c0_289] : memref<32x96xbf16, #tpu.memory_space<vmem>>, vector<32x96xbf16>
    %cst_290 = arith.constant dense<0.000000e+00> : vector<8x96xf32>
    %709 = tpu.matmul %707, %708, %cst_290 {dimension_numbers = #tpu.dot_dimension_numbers<[1], [0], [0], [1], [0, 0, 1, 1], [], []>} : vector<8x32xbf16>, vector<32x96xbf16>, vector<8x96xf32> -> vector<8x96xf32>
    %c0_291 = arith.constant 0 : index
    %c0_292 = arith.constant 0 : index
    %710 = vector.load %arg23[%c0_291, %c0_292] : memref<1x96xf32, #tpu.memory_space<vmem>>, vector<1x96xf32>
    %711 = vector.broadcast %710 : vector<1x96xf32> to vector<8x96xf32>
    %712 = arith.addf %709, %711 : vector<8x96xf32>
    %713 = vector.extract_strided_slice %706 {offsets = [0, 0], sizes = [8, 64], strides = [1, 1]} : vector<8x96xf32> to vector<8x64xf32>
    %714 = vector.extract_strided_slice %712 {offsets = [0, 0], sizes = [8, 64], strides = [1, 1]} : vector<8x96xf32> to vector<8x64xf32>
    %715 = arith.addf %713, %714 : vector<8x64xf32>
    %716 = arith.negf %715 : vector<8x64xf32>
    %717 = math.exp %716 : vector<8x64xf32>
    %cst_293 = arith.constant 1.000000e+00 : f32
    %718 = vector.broadcast %cst_293 : f32 to vector<8x64xf32>
    %719 = arith.addf %718, %717 : vector<8x64xf32>
    %720 = arith.divf %718, %719 : vector<8x64xf32>
    %721 = vector.extract_strided_slice %720 {offsets = [0, 0], sizes = [8, 32], strides = [1, 1]} : vector<8x64xf32> to vector<8x32xf32>
    %722 = vector.extract_strided_slice %720 {offsets = [0, 32], sizes = [8, 32], strides = [1, 1]} : vector<8x64xf32> to vector<8x32xf32>
    %723 = vector.extract_strided_slice %706 {offsets = [0, 64], sizes = [8, 32], strides = [1, 1]} : vector<8x96xf32> to vector<8x32xf32>
    %724 = vector.extract_strided_slice %712 {offsets = [0, 64], sizes = [8, 32], strides = [1, 1]} : vector<8x96xf32> to vector<8x32xf32>
    %725 = arith.mulf %721, %724 : vector<8x32xf32>
    %726 = arith.addf %723, %725 : vector<8x32xf32>
    %727 = math.tanh %726 : vector<8x32xf32>
    %cst_294 = arith.constant 1.000000e+00 : f32
    %728 = vector.broadcast %cst_294 : f32 to vector<8x32xf32>
    %729 = arith.subf %728, %722 : vector<8x32xf32>
    %730 = arith.mulf %729, %727 : vector<8x32xf32>
    %731 = arith.mulf %722, %613 : vector<8x32xf32>
    %732 = arith.addf %730, %731 : vector<8x32xf32>
    %733 = arith.truncf %732 : vector<8x32xf32> to vector<8x32xbf16>
    %c0_295 = arith.constant 0 : index
    %c0_296 = arith.constant 0 : index
    %734 = vector.load %arg24[%c0_295, %c0_296] : memref<32x64xbf16, #tpu.memory_space<vmem>>, vector<32x64xbf16>
    %cst_297 = arith.constant dense<0.000000e+00> : vector<8x64xf32>
    %735 = tpu.matmul %733, %734, %cst_297 {dimension_numbers = #tpu.dot_dimension_numbers<[1], [0], [0], [1], [0, 0, 1, 1], [], []>} : vector<8x32xbf16>, vector<32x64xbf16>, vector<8x64xf32> -> vector<8x64xf32>
    %736 = arith.addf %617, %735 : vector<8x64xf32>
    %737 = arith.truncf %736 : vector<8x64xf32> to vector<8x64xbf16>
    %c0_298 = arith.constant 0 : index
    %c0_299 = arith.constant 0 : index
    %738 = vector.load %arg25[%c0_298, %c0_299] : memref<64x192xbf16, #tpu.memory_space<vmem>>, vector<64x192xbf16>
    %cst_300 = arith.constant dense<0.000000e+00> : vector<8x192xf32>
    %739 = tpu.matmul %737, %738, %cst_300 {dimension_numbers = #tpu.dot_dimension_numbers<[1], [0], [0], [1], [0, 0, 1, 1], [], []>} : vector<8x64xbf16>, vector<64x192xbf16>, vector<8x192xf32> -> vector<8x192xf32>
    %c0_301 = arith.constant 0 : index
    %c0_302 = arith.constant 0 : index
    %740 = vector.load %arg26[%c0_301, %c0_302] : memref<1x192xf32, #tpu.memory_space<vmem>>, vector<1x192xf32>
    %741 = vector.broadcast %740 : vector<1x192xf32> to vector<8x192xf32>
    %742 = arith.addf %739, %741 : vector<8x192xf32>
    %743 = arith.truncf %649 : vector<8x64xf32> to vector<8x64xbf16>
    %c0_303 = arith.constant 0 : index
    %c0_304 = arith.constant 0 : index
    %744 = vector.load %arg27[%c0_303, %c0_304] : memref<64x192xbf16, #tpu.memory_space<vmem>>, vector<64x192xbf16>
    %cst_305 = arith.constant dense<0.000000e+00> : vector<8x192xf32>
    %745 = tpu.matmul %743, %744, %cst_305 {dimension_numbers = #tpu.dot_dimension_numbers<[1], [0], [0], [1], [0, 0, 1, 1], [], []>} : vector<8x64xbf16>, vector<64x192xbf16>, vector<8x192xf32> -> vector<8x192xf32>
    %c0_306 = arith.constant 0 : index
    %c0_307 = arith.constant 0 : index
    %746 = vector.load %arg28[%c0_306, %c0_307] : memref<1x192xf32, #tpu.memory_space<vmem>>, vector<1x192xf32>
    %747 = vector.broadcast %746 : vector<1x192xf32> to vector<8x192xf32>
    %748 = arith.addf %745, %747 : vector<8x192xf32>
    %749 = vector.extract_strided_slice %742 {offsets = [0, 0], sizes = [8, 128], strides = [1, 1]} : vector<8x192xf32> to vector<8x128xf32>
    %750 = vector.extract_strided_slice %748 {offsets = [0, 0], sizes = [8, 128], strides = [1, 1]} : vector<8x192xf32> to vector<8x128xf32>
    %751 = arith.addf %749, %750 : vector<8x128xf32>
    %752 = arith.negf %751 : vector<8x128xf32>
    %753 = math.exp %752 : vector<8x128xf32>
    %cst_308 = arith.constant 1.000000e+00 : f32
    %754 = vector.broadcast %cst_308 : f32 to vector<8x128xf32>
    %755 = arith.addf %754, %753 : vector<8x128xf32>
    %756 = arith.divf %754, %755 : vector<8x128xf32>
    %757 = vector.extract_strided_slice %756 {offsets = [0, 0], sizes = [8, 64], strides = [1, 1]} : vector<8x128xf32> to vector<8x64xf32>
    %758 = vector.extract_strided_slice %756 {offsets = [0, 64], sizes = [8, 64], strides = [1, 1]} : vector<8x128xf32> to vector<8x64xf32>
    %759 = vector.extract_strided_slice %742 {offsets = [0, 128], sizes = [8, 64], strides = [1, 1]} : vector<8x192xf32> to vector<8x64xf32>
    %760 = vector.extract_strided_slice %748 {offsets = [0, 128], sizes = [8, 64], strides = [1, 1]} : vector<8x192xf32> to vector<8x64xf32>
    %761 = arith.mulf %757, %760 : vector<8x64xf32>
    %762 = arith.addf %759, %761 : vector<8x64xf32>
    %763 = math.tanh %762 : vector<8x64xf32>
    %cst_309 = arith.constant 1.000000e+00 : f32
    %764 = vector.broadcast %cst_309 : f32 to vector<8x64xf32>
    %765 = arith.subf %764, %758 : vector<8x64xf32>
    %766 = arith.mulf %765, %763 : vector<8x64xf32>
    %767 = arith.mulf %758, %649 : vector<8x64xf32>
    %768 = arith.addf %766, %767 : vector<8x64xf32>
    %c1_i32_310 = arith.constant 1 : i32
    %769 = arith.addi %c2_i32_260, %c1_i32_310 : i32
    %770 = arith.index_cast %769 : i32 to index
    %c0_311 = arith.constant 0 : index
    %c0_312 = arith.constant 0 : index
    %771 = vector.load %arg32[%770, %c0_311, %c0_312] : memref<9x8x64xf32, #tpu.memory_space<vmem>>, vector<1x8x64xf32>
    %772 = vector.shape_cast %771 : vector<1x8x64xf32> to vector<8x64xf32>
    %773 = vector.shape_cast %768 : vector<8x64xf32> to vector<1x8x64xf32>
    tpu.vector_store %arg32[%770, %c0_311, %c0_312], %773 {strides = array<i32>} : memref<9x8x64xf32, #tpu.memory_space<vmem>>, vector<1x8x64xf32>,
    %c3_i32_313 = arith.constant 3 : i32
    %774 = arith.truncf %736 : vector<8x64xf32> to vector<8x64xbf16>
    %c0_314 = arith.constant 0 : index
    %c0_315 = arith.constant 0 : index
    %775 = vector.load %arg11[%c0_314, %c0_315] : memref<64x32xbf16, #tpu.memory_space<vmem>>, vector<64x32xbf16>
    %cst_316 = arith.constant dense<0.000000e+00> : vector<8x32xf32>
    %776 = tpu.matmul %774, %775, %cst_316 {dimension_numbers = #tpu.dot_dimension_numbers<[1], [0], [0], [1], [0, 0, 1, 1], [], []>} : vector<8x64xbf16>, vector<64x32xbf16>, vector<8x32xf32> -> vector<8x32xf32>
    %777 = arith.addf %776, %379 : vector<8x32xf32>
    %cst_317 = arith.constant 0.000000e+00 : f32
    %778 = vector.broadcast %cst_317 : f32 to vector<8x32xf32>
    %779 = arith.maximumf %777, %778 : vector<8x32xf32>
    %780 = arith.truncf %779 : vector<8x32xf32> to vector<8x32xbf16>
    %c0_318 = arith.constant 0 : index
    %c0_319 = arith.constant 0 : index
    %781 = vector.load %arg14[%c0_318, %c0_319] : memref<32x32xbf16, #tpu.memory_space<vmem>>, vector<32x32xbf16>
    %cst_320 = arith.constant dense<0.000000e+00> : vector<8x32xf32>
    %782 = tpu.matmul %780, %781, %cst_320 {dimension_numbers = #tpu.dot_dimension_numbers<[1], [0], [0], [1], [0, 0, 1, 1], [], []>} : vector<8x32xbf16>, vector<32x32xbf16>, vector<8x32xf32> -> vector<8x32xf32>
    %c0_321 = arith.constant 0 : index
    %c0_322 = arith.constant 0 : index
    %783 = vector.load %arg15[%c0_321, %c0_322] : memref<1x32xf32, #tpu.memory_space<vmem>>, vector<1x32xf32>
    %784 = vector.broadcast %783 : vector<1x32xf32> to vector<8x32xf32>
    %785 = arith.addf %782, %784 : vector<8x32xf32>
    %cst_323 = arith.constant 0.000000e+00 : f32
    %786 = vector.broadcast %cst_323 : f32 to vector<8x32xf32>
    %787 = arith.maximumf %785, %786 : vector<8x32xf32>
    %788 = arith.truncf %787 : vector<8x32xf32> to vector<8x32xbf16>
    %c0_324 = arith.constant 0 : index
    %c0_325 = arith.constant 0 : index
    %789 = vector.load %arg16[%c0_324, %c0_325] : memref<32x96xbf16, #tpu.memory_space<vmem>>, vector<32x96xbf16>
    %cst_326 = arith.constant dense<0.000000e+00> : vector<8x96xf32>
    %790 = tpu.matmul %788, %789, %cst_326 {dimension_numbers = #tpu.dot_dimension_numbers<[1], [0], [0], [1], [0, 0, 1, 1], [], []>} : vector<8x32xbf16>, vector<32x96xbf16>, vector<8x96xf32> -> vector<8x96xf32>
    %c0_327 = arith.constant 0 : index
    %c0_328 = arith.constant 0 : index
    %791 = vector.load %arg17[%c0_327, %c0_328] : memref<1x96xf32, #tpu.memory_space<vmem>>, vector<1x96xf32>
    %792 = vector.broadcast %791 : vector<1x96xf32> to vector<8x96xf32>
    %793 = arith.addf %790, %792 : vector<8x96xf32>
    %794 = arith.truncf %700 : vector<8x32xf32> to vector<8x32xbf16>
    %c0_329 = arith.constant 0 : index
    %c0_330 = arith.constant 0 : index
    %795 = vector.load %arg18[%c0_329, %c0_330] : memref<32x96xbf16, #tpu.memory_space<vmem>>, vector<32x96xbf16>
    %cst_331 = arith.constant dense<0.000000e+00> : vector<8x96xf32>
    %796 = tpu.matmul %794, %795, %cst_331 {dimension_numbers = #tpu.dot_dimension_numbers<[1], [0], [0], [1], [0, 0, 1, 1], [], []>} : vector<8x32xbf16>, vector<32x96xbf16>, vector<8x96xf32> -> vector<8x96xf32>
    %c0_332 = arith.constant 0 : index
    %c0_333 = arith.constant 0 : index
    %797 = vector.load %arg19[%c0_332, %c0_333] : memref<1x96xf32, #tpu.memory_space<vmem>>, vector<1x96xf32>
    %798 = vector.broadcast %797 : vector<1x96xf32> to vector<8x96xf32>
    %799 = arith.addf %796, %798 : vector<8x96xf32>
    %800 = vector.extract_strided_slice %793 {offsets = [0, 0], sizes = [8, 64], strides = [1, 1]} : vector<8x96xf32> to vector<8x64xf32>
    %801 = vector.extract_strided_slice %799 {offsets = [0, 0], sizes = [8, 64], strides = [1, 1]} : vector<8x96xf32> to vector<8x64xf32>
    %802 = arith.addf %800, %801 : vector<8x64xf32>
    %803 = arith.negf %802 : vector<8x64xf32>
    %804 = math.exp %803 : vector<8x64xf32>
    %cst_334 = arith.constant 1.000000e+00 : f32
    %805 = vector.broadcast %cst_334 : f32 to vector<8x64xf32>
    %806 = arith.addf %805, %804 : vector<8x64xf32>
    %807 = arith.divf %805, %806 : vector<8x64xf32>
    %808 = vector.extract_strided_slice %807 {offsets = [0, 0], sizes = [8, 32], strides = [1, 1]} : vector<8x64xf32> to vector<8x32xf32>
    %809 = vector.extract_strided_slice %807 {offsets = [0, 32], sizes = [8, 32], strides = [1, 1]} : vector<8x64xf32> to vector<8x32xf32>
    %810 = vector.extract_strided_slice %793 {offsets = [0, 64], sizes = [8, 32], strides = [1, 1]} : vector<8x96xf32> to vector<8x32xf32>
    %811 = vector.extract_strided_slice %799 {offsets = [0, 64], sizes = [8, 32], strides = [1, 1]} : vector<8x96xf32> to vector<8x32xf32>
    %812 = arith.mulf %808, %811 : vector<8x32xf32>
    %813 = arith.addf %810, %812 : vector<8x32xf32>
    %814 = math.tanh %813 : vector<8x32xf32>
    %cst_335 = arith.constant 1.000000e+00 : f32
    %815 = vector.broadcast %cst_335 : f32 to vector<8x32xf32>
    %816 = arith.subf %815, %809 : vector<8x32xf32>
    %817 = arith.mulf %816, %814 : vector<8x32xf32>
    %818 = arith.mulf %809, %700 : vector<8x32xf32>
    %819 = arith.addf %817, %818 : vector<8x32xf32>
    %820 = arith.truncf %819 : vector<8x32xf32> to vector<8x32xbf16>
    %c0_336 = arith.constant 0 : index
    %c0_337 = arith.constant 0 : index
    %821 = vector.load %arg20[%c0_336, %c0_337] : memref<32x96xbf16, #tpu.memory_space<vmem>>, vector<32x96xbf16>
    %cst_338 = arith.constant dense<0.000000e+00> : vector<8x96xf32>
    %822 = tpu.matmul %820, %821, %cst_338 {dimension_numbers = #tpu.dot_dimension_numbers<[1], [0], [0], [1], [0, 0, 1, 1], [], []>} : vector<8x32xbf16>, vector<32x96xbf16>, vector<8x96xf32> -> vector<8x96xf32>
    %c0_339 = arith.constant 0 : index
    %c0_340 = arith.constant 0 : index
    %823 = vector.load %arg21[%c0_339, %c0_340] : memref<1x96xf32, #tpu.memory_space<vmem>>, vector<1x96xf32>
    %824 = vector.broadcast %823 : vector<1x96xf32> to vector<8x96xf32>
    %825 = arith.addf %822, %824 : vector<8x96xf32>
    %826 = arith.truncf %732 : vector<8x32xf32> to vector<8x32xbf16>
    %c0_341 = arith.constant 0 : index
    %c0_342 = arith.constant 0 : index
    %827 = vector.load %arg22[%c0_341, %c0_342] : memref<32x96xbf16, #tpu.memory_space<vmem>>, vector<32x96xbf16>
    %cst_343 = arith.constant dense<0.000000e+00> : vector<8x96xf32>
    %828 = tpu.matmul %826, %827, %cst_343 {dimension_numbers = #tpu.dot_dimension_numbers<[1], [0], [0], [1], [0, 0, 1, 1], [], []>} : vector<8x32xbf16>, vector<32x96xbf16>, vector<8x96xf32> -> vector<8x96xf32>
    %c0_344 = arith.constant 0 : index
    %c0_345 = arith.constant 0 : index
    %829 = vector.load %arg23[%c0_344, %c0_345] : memref<1x96xf32, #tpu.memory_space<vmem>>, vector<1x96xf32>
    %830 = vector.broadcast %829 : vector<1x96xf32> to vector<8x96xf32>
    %831 = arith.addf %828, %830 : vector<8x96xf32>
    %832 = vector.extract_strided_slice %825 {offsets = [0, 0], sizes = [8, 64], strides = [1, 1]} : vector<8x96xf32> to vector<8x64xf32>
    %833 = vector.extract_strided_slice %831 {offsets = [0, 0], sizes = [8, 64], strides = [1, 1]} : vector<8x96xf32> to vector<8x64xf32>
    %834 = arith.addf %832, %833 : vector<8x64xf32>
    %835 = arith.negf %834 : vector<8x64xf32>
    %836 = math.exp %835 : vector<8x64xf32>
    %cst_346 = arith.constant 1.000000e+00 : f32
    %837 = vector.broadcast %cst_346 : f32 to vector<8x64xf32>
    %838 = arith.addf %837, %836 : vector<8x64xf32>
    %839 = arith.divf %837, %838 : vector<8x64xf32>
    %840 = vector.extract_strided_slice %839 {offsets = [0, 0], sizes = [8, 32], strides = [1, 1]} : vector<8x64xf32> to vector<8x32xf32>
    %841 = vector.extract_strided_slice %839 {offsets = [0, 32], sizes = [8, 32], strides = [1, 1]} : vector<8x64xf32> to vector<8x32xf32>
    %842 = vector.extract_strided_slice %825 {offsets = [0, 64], sizes = [8, 32], strides = [1, 1]} : vector<8x96xf32> to vector<8x32xf32>
    %843 = vector.extract_strided_slice %831 {offsets = [0, 64], sizes = [8, 32], strides = [1, 1]} : vector<8x96xf32> to vector<8x32xf32>
    %844 = arith.mulf %840, %843 : vector<8x32xf32>
    %845 = arith.addf %842, %844 : vector<8x32xf32>
    %846 = math.tanh %845 : vector<8x32xf32>
    %cst_347 = arith.constant 1.000000e+00 : f32
    %847 = vector.broadcast %cst_347 : f32 to vector<8x32xf32>
    %848 = arith.subf %847, %841 : vector<8x32xf32>
    %849 = arith.mulf %848, %846 : vector<8x32xf32>
    %850 = arith.mulf %841, %732 : vector<8x32xf32>
    %851 = arith.addf %849, %850 : vector<8x32xf32>
    %852 = arith.truncf %851 : vector<8x32xf32> to vector<8x32xbf16>
    %c0_348 = arith.constant 0 : index
    %c0_349 = arith.constant 0 : index
    %853 = vector.load %arg24[%c0_348, %c0_349] : memref<32x64xbf16, #tpu.memory_space<vmem>>, vector<32x64xbf16>
    %cst_350 = arith.constant dense<0.000000e+00> : vector<8x64xf32>
    %854 = tpu.matmul %852, %853, %cst_350 {dimension_numbers = #tpu.dot_dimension_numbers<[1], [0], [0], [1], [0, 0, 1, 1], [], []>} : vector<8x32xbf16>, vector<32x64xbf16>, vector<8x64xf32> -> vector<8x64xf32>
    %855 = arith.addf %736, %854 : vector<8x64xf32>
    %856 = arith.truncf %855 : vector<8x64xf32> to vector<8x64xbf16>
    %c0_351 = arith.constant 0 : index
    %c0_352 = arith.constant 0 : index
    %857 = vector.load %arg25[%c0_351, %c0_352] : memref<64x192xbf16, #tpu.memory_space<vmem>>, vector<64x192xbf16>
    %cst_353 = arith.constant dense<0.000000e+00> : vector<8x192xf32>
    %858 = tpu.matmul %856, %857, %cst_353 {dimension_numbers = #tpu.dot_dimension_numbers<[1], [0], [0], [1], [0, 0, 1, 1], [], []>} : vector<8x64xbf16>, vector<64x192xbf16>, vector<8x192xf32> -> vector<8x192xf32>
    %c0_354 = arith.constant 0 : index
    %c0_355 = arith.constant 0 : index
    %859 = vector.load %arg26[%c0_354, %c0_355] : memref<1x192xf32, #tpu.memory_space<vmem>>, vector<1x192xf32>
    %860 = vector.broadcast %859 : vector<1x192xf32> to vector<8x192xf32>
    %861 = arith.addf %858, %860 : vector<8x192xf32>
    %862 = arith.truncf %768 : vector<8x64xf32> to vector<8x64xbf16>
    %c0_356 = arith.constant 0 : index
    %c0_357 = arith.constant 0 : index
    %863 = vector.load %arg27[%c0_356, %c0_357] : memref<64x192xbf16, #tpu.memory_space<vmem>>, vector<64x192xbf16>
    %cst_358 = arith.constant dense<0.000000e+00> : vector<8x192xf32>
    %864 = tpu.matmul %862, %863, %cst_358 {dimension_numbers = #tpu.dot_dimension_numbers<[1], [0], [0], [1], [0, 0, 1, 1], [], []>} : vector<8x64xbf16>, vector<64x192xbf16>, vector<8x192xf32> -> vector<8x192xf32>
    %c0_359 = arith.constant 0 : index
    %c0_360 = arith.constant 0 : index
    %865 = vector.load %arg28[%c0_359, %c0_360] : memref<1x192xf32, #tpu.memory_space<vmem>>, vector<1x192xf32>
    %866 = vector.broadcast %865 : vector<1x192xf32> to vector<8x192xf32>
    %867 = arith.addf %864, %866 : vector<8x192xf32>
    %868 = vector.extract_strided_slice %861 {offsets = [0, 0], sizes = [8, 128], strides = [1, 1]} : vector<8x192xf32> to vector<8x128xf32>
    %869 = vector.extract_strided_slice %867 {offsets = [0, 0], sizes = [8, 128], strides = [1, 1]} : vector<8x192xf32> to vector<8x128xf32>
    %870 = arith.addf %868, %869 : vector<8x128xf32>
    %871 = arith.negf %870 : vector<8x128xf32>
    %872 = math.exp %871 : vector<8x128xf32>
    %cst_361 = arith.constant 1.000000e+00 : f32
    %873 = vector.broadcast %cst_361 : f32 to vector<8x128xf32>
    %874 = arith.addf %873, %872 : vector<8x128xf32>
    %875 = arith.divf %873, %874 : vector<8x128xf32>
    %876 = vector.extract_strided_slice %875 {offsets = [0, 0], sizes = [8, 64], strides = [1, 1]} : vector<8x128xf32> to vector<8x64xf32>
    %877 = vector.extract_strided_slice %875 {offsets = [0, 64], sizes = [8, 64], strides = [1, 1]} : vector<8x128xf32> to vector<8x64xf32>
    %878 = vector.extract_strided_slice %861 {offsets = [0, 128], sizes = [8, 64], strides = [1, 1]} : vector<8x192xf32> to vector<8x64xf32>
    %879 = vector.extract_strided_slice %867 {offsets = [0, 128], sizes = [8, 64], strides = [1, 1]} : vector<8x192xf32> to vector<8x64xf32>
    %880 = arith.mulf %876, %879 : vector<8x64xf32>
    %881 = arith.addf %878, %880 : vector<8x64xf32>
    %882 = math.tanh %881 : vector<8x64xf32>
    %cst_362 = arith.constant 1.000000e+00 : f32
    %883 = vector.broadcast %cst_362 : f32 to vector<8x64xf32>
    %884 = arith.subf %883, %877 : vector<8x64xf32>
    %885 = arith.mulf %884, %882 : vector<8x64xf32>
    %886 = arith.mulf %877, %768 : vector<8x64xf32>
    %887 = arith.addf %885, %886 : vector<8x64xf32>
    %c1_i32_363 = arith.constant 1 : i32
    %888 = arith.addi %c3_i32_313, %c1_i32_363 : i32
    %889 = arith.index_cast %888 : i32 to index
    %c0_364 = arith.constant 0 : index
    %c0_365 = arith.constant 0 : index
    %890 = vector.load %arg32[%889, %c0_364, %c0_365] : memref<9x8x64xf32, #tpu.memory_space<vmem>>, vector<1x8x64xf32>
    %891 = vector.shape_cast %890 : vector<1x8x64xf32> to vector<8x64xf32>
    %892 = vector.shape_cast %887 : vector<8x64xf32> to vector<1x8x64xf32>
    tpu.vector_store %arg32[%889, %c0_364, %c0_365], %892 {strides = array<i32>} : memref<9x8x64xf32, #tpu.memory_space<vmem>>, vector<1x8x64xf32>,
    %c4_i32_366 = arith.constant 4 : i32
    %893 = arith.truncf %855 : vector<8x64xf32> to vector<8x64xbf16>
    %c0_367 = arith.constant 0 : index
    %c0_368 = arith.constant 0 : index
    %894 = vector.load %arg11[%c0_367, %c0_368] : memref<64x32xbf16, #tpu.memory_space<vmem>>, vector<64x32xbf16>
    %cst_369 = arith.constant dense<0.000000e+00> : vector<8x32xf32>
    %895 = tpu.matmul %893, %894, %cst_369 {dimension_numbers = #tpu.dot_dimension_numbers<[1], [0], [0], [1], [0, 0, 1, 1], [], []>} : vector<8x64xbf16>, vector<64x32xbf16>, vector<8x32xf32> -> vector<8x32xf32>
    %896 = arith.addf %895, %379 : vector<8x32xf32>
    %cst_370 = arith.constant 0.000000e+00 : f32
    %897 = vector.broadcast %cst_370 : f32 to vector<8x32xf32>
    %898 = arith.maximumf %896, %897 : vector<8x32xf32>
    %899 = arith.truncf %898 : vector<8x32xf32> to vector<8x32xbf16>
    %c0_371 = arith.constant 0 : index
    %c0_372 = arith.constant 0 : index
    %900 = vector.load %arg14[%c0_371, %c0_372] : memref<32x32xbf16, #tpu.memory_space<vmem>>, vector<32x32xbf16>
    %cst_373 = arith.constant dense<0.000000e+00> : vector<8x32xf32>
    %901 = tpu.matmul %899, %900, %cst_373 {dimension_numbers = #tpu.dot_dimension_numbers<[1], [0], [0], [1], [0, 0, 1, 1], [], []>} : vector<8x32xbf16>, vector<32x32xbf16>, vector<8x32xf32> -> vector<8x32xf32>
    %c0_374 = arith.constant 0 : index
    %c0_375 = arith.constant 0 : index
    %902 = vector.load %arg15[%c0_374, %c0_375] : memref<1x32xf32, #tpu.memory_space<vmem>>, vector<1x32xf32>
    %903 = vector.broadcast %902 : vector<1x32xf32> to vector<8x32xf32>
    %904 = arith.addf %901, %903 : vector<8x32xf32>
    %cst_376 = arith.constant 0.000000e+00 : f32
    %905 = vector.broadcast %cst_376 : f32 to vector<8x32xf32>
    %906 = arith.maximumf %904, %905 : vector<8x32xf32>
    %907 = arith.truncf %906 : vector<8x32xf32> to vector<8x32xbf16>
    %c0_377 = arith.constant 0 : index
    %c0_378 = arith.constant 0 : index
    %908 = vector.load %arg16[%c0_377, %c0_378] : memref<32x96xbf16, #tpu.memory_space<vmem>>, vector<32x96xbf16>
    %cst_379 = arith.constant dense<0.000000e+00> : vector<8x96xf32>
    %909 = tpu.matmul %907, %908, %cst_379 {dimension_numbers = #tpu.dot_dimension_numbers<[1], [0], [0], [1], [0, 0, 1, 1], [], []>} : vector<8x32xbf16>, vector<32x96xbf16>, vector<8x96xf32> -> vector<8x96xf32>
    %c0_380 = arith.constant 0 : index
    %c0_381 = arith.constant 0 : index
    %910 = vector.load %arg17[%c0_380, %c0_381] : memref<1x96xf32, #tpu.memory_space<vmem>>, vector<1x96xf32>
    %911 = vector.broadcast %910 : vector<1x96xf32> to vector<8x96xf32>
    %912 = arith.addf %909, %911 : vector<8x96xf32>
    %913 = arith.truncf %819 : vector<8x32xf32> to vector<8x32xbf16>
    %c0_382 = arith.constant 0 : index
    %c0_383 = arith.constant 0 : index
    %914 = vector.load %arg18[%c0_382, %c0_383] : memref<32x96xbf16, #tpu.memory_space<vmem>>, vector<32x96xbf16>
    %cst_384 = arith.constant dense<0.000000e+00> : vector<8x96xf32>
    %915 = tpu.matmul %913, %914, %cst_384 {dimension_numbers = #tpu.dot_dimension_numbers<[1], [0], [0], [1], [0, 0, 1, 1], [], []>} : vector<8x32xbf16>, vector<32x96xbf16>, vector<8x96xf32> -> vector<8x96xf32>
    %c0_385 = arith.constant 0 : index
    %c0_386 = arith.constant 0 : index
    %916 = vector.load %arg19[%c0_385, %c0_386] : memref<1x96xf32, #tpu.memory_space<vmem>>, vector<1x96xf32>
    %917 = vector.broadcast %916 : vector<1x96xf32> to vector<8x96xf32>
    %918 = arith.addf %915, %917 : vector<8x96xf32>
    %919 = vector.extract_strided_slice %912 {offsets = [0, 0], sizes = [8, 64], strides = [1, 1]} : vector<8x96xf32> to vector<8x64xf32>
    %920 = vector.extract_strided_slice %918 {offsets = [0, 0], sizes = [8, 64], strides = [1, 1]} : vector<8x96xf32> to vector<8x64xf32>
    %921 = arith.addf %919, %920 : vector<8x64xf32>
    %922 = arith.negf %921 : vector<8x64xf32>
    %923 = math.exp %922 : vector<8x64xf32>
    %cst_387 = arith.constant 1.000000e+00 : f32
    %924 = vector.broadcast %cst_387 : f32 to vector<8x64xf32>
    %925 = arith.addf %924, %923 : vector<8x64xf32>
    %926 = arith.divf %924, %925 : vector<8x64xf32>
    %927 = vector.extract_strided_slice %926 {offsets = [0, 0], sizes = [8, 32], strides = [1, 1]} : vector<8x64xf32> to vector<8x32xf32>
    %928 = vector.extract_strided_slice %926 {offsets = [0, 32], sizes = [8, 32], strides = [1, 1]} : vector<8x64xf32> to vector<8x32xf32>
    %929 = vector.extract_strided_slice %912 {offsets = [0, 64], sizes = [8, 32], strides = [1, 1]} : vector<8x96xf32> to vector<8x32xf32>
    %930 = vector.extract_strided_slice %918 {offsets = [0, 64], sizes = [8, 32], strides = [1, 1]} : vector<8x96xf32> to vector<8x32xf32>
    %931 = arith.mulf %927, %930 : vector<8x32xf32>
    %932 = arith.addf %929, %931 : vector<8x32xf32>
    %933 = math.tanh %932 : vector<8x32xf32>
    %cst_388 = arith.constant 1.000000e+00 : f32
    %934 = vector.broadcast %cst_388 : f32 to vector<8x32xf32>
    %935 = arith.subf %934, %928 : vector<8x32xf32>
    %936 = arith.mulf %935, %933 : vector<8x32xf32>
    %937 = arith.mulf %928, %819 : vector<8x32xf32>
    %938 = arith.addf %936, %937 : vector<8x32xf32>
    %939 = arith.truncf %938 : vector<8x32xf32> to vector<8x32xbf16>
    %c0_389 = arith.constant 0 : index
    %c0_390 = arith.constant 0 : index
    %940 = vector.load %arg20[%c0_389, %c0_390] : memref<32x96xbf16, #tpu.memory_space<vmem>>, vector<32x96xbf16>
    %cst_391 = arith.constant dense<0.000000e+00> : vector<8x96xf32>
    %941 = tpu.matmul %939, %940, %cst_391 {dimension_numbers = #tpu.dot_dimension_numbers<[1], [0], [0], [1], [0, 0, 1, 1], [], []>} : vector<8x32xbf16>, vector<32x96xbf16>, vector<8x96xf32> -> vector<8x96xf32>
    %c0_392 = arith.constant 0 : index
    %c0_393 = arith.constant 0 : index
    %942 = vector.load %arg21[%c0_392, %c0_393] : memref<1x96xf32, #tpu.memory_space<vmem>>, vector<1x96xf32>
    %943 = vector.broadcast %942 : vector<1x96xf32> to vector<8x96xf32>
    %944 = arith.addf %941, %943 : vector<8x96xf32>
    %945 = arith.truncf %851 : vector<8x32xf32> to vector<8x32xbf16>
    %c0_394 = arith.constant 0 : index
    %c0_395 = arith.constant 0 : index
    %946 = vector.load %arg22[%c0_394, %c0_395] : memref<32x96xbf16, #tpu.memory_space<vmem>>, vector<32x96xbf16>
    %cst_396 = arith.constant dense<0.000000e+00> : vector<8x96xf32>
    %947 = tpu.matmul %945, %946, %cst_396 {dimension_numbers = #tpu.dot_dimension_numbers<[1], [0], [0], [1], [0, 0, 1, 1], [], []>} : vector<8x32xbf16>, vector<32x96xbf16>, vector<8x96xf32> -> vector<8x96xf32>
    %c0_397 = arith.constant 0 : index
    %c0_398 = arith.constant 0 : index
    %948 = vector.load %arg23[%c0_397, %c0_398] : memref<1x96xf32, #tpu.memory_space<vmem>>, vector<1x96xf32>
    %949 = vector.broadcast %948 : vector<1x96xf32> to vector<8x96xf32>
    %950 = arith.addf %947, %949 : vector<8x96xf32>
    %951 = vector.extract_strided_slice %944 {offsets = [0, 0], sizes = [8, 64], strides = [1, 1]} : vector<8x96xf32> to vector<8x64xf32>
    %952 = vector.extract_strided_slice %950 {offsets = [0, 0], sizes = [8, 64], strides = [1, 1]} : vector<8x96xf32> to vector<8x64xf32>
    %953 = arith.addf %951, %952 : vector<8x64xf32>
    %954 = arith.negf %953 : vector<8x64xf32>
    %955 = math.exp %954 : vector<8x64xf32>
    %cst_399 = arith.constant 1.000000e+00 : f32
    %956 = vector.broadcast %cst_399 : f32 to vector<8x64xf32>
    %957 = arith.addf %956, %955 : vector<8x64xf32>
    %958 = arith.divf %956, %957 : vector<8x64xf32>
    %959 = vector.extract_strided_slice %958 {offsets = [0, 0], sizes = [8, 32], strides = [1, 1]} : vector<8x64xf32> to vector<8x32xf32>
    %960 = vector.extract_strided_slice %958 {offsets = [0, 32], sizes = [8, 32], strides = [1, 1]} : vector<8x64xf32> to vector<8x32xf32>
    %961 = vector.extract_strided_slice %944 {offsets = [0, 64], sizes = [8, 32], strides = [1, 1]} : vector<8x96xf32> to vector<8x32xf32>
    %962 = vector.extract_strided_slice %950 {offsets = [0, 64], sizes = [8, 32], strides = [1, 1]} : vector<8x96xf32> to vector<8x32xf32>
    %963 = arith.mulf %959, %962 : vector<8x32xf32>
    %964 = arith.addf %961, %963 : vector<8x32xf32>
    %965 = math.tanh %964 : vector<8x32xf32>
    %cst_400 = arith.constant 1.000000e+00 : f32
    %966 = vector.broadcast %cst_400 : f32 to vector<8x32xf32>
    %967 = arith.subf %966, %960 : vector<8x32xf32>
    %968 = arith.mulf %967, %965 : vector<8x32xf32>
    %969 = arith.mulf %960, %851 : vector<8x32xf32>
    %970 = arith.addf %968, %969 : vector<8x32xf32>
    %971 = arith.truncf %970 : vector<8x32xf32> to vector<8x32xbf16>
    %c0_401 = arith.constant 0 : index
    %c0_402 = arith.constant 0 : index
    %972 = vector.load %arg24[%c0_401, %c0_402] : memref<32x64xbf16, #tpu.memory_space<vmem>>, vector<32x64xbf16>
    %cst_403 = arith.constant dense<0.000000e+00> : vector<8x64xf32>
    %973 = tpu.matmul %971, %972, %cst_403 {dimension_numbers = #tpu.dot_dimension_numbers<[1], [0], [0], [1], [0, 0, 1, 1], [], []>} : vector<8x32xbf16>, vector<32x64xbf16>, vector<8x64xf32> -> vector<8x64xf32>
    %974 = arith.addf %855, %973 : vector<8x64xf32>
    %975 = arith.truncf %974 : vector<8x64xf32> to vector<8x64xbf16>
    %c0_404 = arith.constant 0 : index
    %c0_405 = arith.constant 0 : index
    %976 = vector.load %arg25[%c0_404, %c0_405] : memref<64x192xbf16, #tpu.memory_space<vmem>>, vector<64x192xbf16>
    %cst_406 = arith.constant dense<0.000000e+00> : vector<8x192xf32>
    %977 = tpu.matmul %975, %976, %cst_406 {dimension_numbers = #tpu.dot_dimension_numbers<[1], [0], [0], [1], [0, 0, 1, 1], [], []>} : vector<8x64xbf16>, vector<64x192xbf16>, vector<8x192xf32> -> vector<8x192xf32>
    %c0_407 = arith.constant 0 : index
    %c0_408 = arith.constant 0 : index
    %978 = vector.load %arg26[%c0_407, %c0_408] : memref<1x192xf32, #tpu.memory_space<vmem>>, vector<1x192xf32>
    %979 = vector.broadcast %978 : vector<1x192xf32> to vector<8x192xf32>
    %980 = arith.addf %977, %979 : vector<8x192xf32>
    %981 = arith.truncf %887 : vector<8x64xf32> to vector<8x64xbf16>
    %c0_409 = arith.constant 0 : index
    %c0_410 = arith.constant 0 : index
    %982 = vector.load %arg27[%c0_409, %c0_410] : memref<64x192xbf16, #tpu.memory_space<vmem>>, vector<64x192xbf16>
    %cst_411 = arith.constant dense<0.000000e+00> : vector<8x192xf32>
    %983 = tpu.matmul %981, %982, %cst_411 {dimension_numbers = #tpu.dot_dimension_numbers<[1], [0], [0], [1], [0, 0, 1, 1], [], []>} : vector<8x64xbf16>, vector<64x192xbf16>, vector<8x192xf32> -> vector<8x192xf32>
    %c0_412 = arith.constant 0 : index
    %c0_413 = arith.constant 0 : index
    %984 = vector.load %arg28[%c0_412, %c0_413] : memref<1x192xf32, #tpu.memory_space<vmem>>, vector<1x192xf32>
    %985 = vector.broadcast %984 : vector<1x192xf32> to vector<8x192xf32>
    %986 = arith.addf %983, %985 : vector<8x192xf32>
    %987 = vector.extract_strided_slice %980 {offsets = [0, 0], sizes = [8, 128], strides = [1, 1]} : vector<8x192xf32> to vector<8x128xf32>
    %988 = vector.extract_strided_slice %986 {offsets = [0, 0], sizes = [8, 128], strides = [1, 1]} : vector<8x192xf32> to vector<8x128xf32>
    %989 = arith.addf %987, %988 : vector<8x128xf32>
    %990 = arith.negf %989 : vector<8x128xf32>
    %991 = math.exp %990 : vector<8x128xf32>
    %cst_414 = arith.constant 1.000000e+00 : f32
    %992 = vector.broadcast %cst_414 : f32 to vector<8x128xf32>
    %993 = arith.addf %992, %991 : vector<8x128xf32>
    %994 = arith.divf %992, %993 : vector<8x128xf32>
    %995 = vector.extract_strided_slice %994 {offsets = [0, 0], sizes = [8, 64], strides = [1, 1]} : vector<8x128xf32> to vector<8x64xf32>
    %996 = vector.extract_strided_slice %994 {offsets = [0, 64], sizes = [8, 64], strides = [1, 1]} : vector<8x128xf32> to vector<8x64xf32>
    %997 = vector.extract_strided_slice %980 {offsets = [0, 128], sizes = [8, 64], strides = [1, 1]} : vector<8x192xf32> to vector<8x64xf32>
    %998 = vector.extract_strided_slice %986 {offsets = [0, 128], sizes = [8, 64], strides = [1, 1]} : vector<8x192xf32> to vector<8x64xf32>
    %999 = arith.mulf %995, %998 : vector<8x64xf32>
    %1000 = arith.addf %997, %999 : vector<8x64xf32>
    %1001 = math.tanh %1000 : vector<8x64xf32>
    %cst_415 = arith.constant 1.000000e+00 : f32
    %1002 = vector.broadcast %cst_415 : f32 to vector<8x64xf32>
    %1003 = arith.subf %1002, %996 : vector<8x64xf32>
    %1004 = arith.mulf %1003, %1001 : vector<8x64xf32>
    %1005 = arith.mulf %996, %887 : vector<8x64xf32>
    %1006 = arith.addf %1004, %1005 : vector<8x64xf32>
    %c1_i32_416 = arith.constant 1 : i32
    %1007 = arith.addi %c4_i32_366, %c1_i32_416 : i32
    %1008 = arith.index_cast %1007 : i32 to index
    %c0_417 = arith.constant 0 : index
    %c0_418 = arith.constant 0 : index
    %1009 = vector.load %arg32[%1008, %c0_417, %c0_418] : memref<9x8x64xf32, #tpu.memory_space<vmem>>, vector<1x8x64xf32>
    %1010 = vector.shape_cast %1009 : vector<1x8x64xf32> to vector<8x64xf32>
    %1011 = vector.shape_cast %1006 : vector<8x64xf32> to vector<1x8x64xf32>
    tpu.vector_store %arg32[%1008, %c0_417, %c0_418], %1011 {strides = array<i32>} : memref<9x8x64xf32, #tpu.memory_space<vmem>>, vector<1x8x64xf32>,
    %c5_i32_419 = arith.constant 5 : i32
    %1012 = arith.truncf %974 : vector<8x64xf32> to vector<8x64xbf16>
    %c0_420 = arith.constant 0 : index
    %c0_421 = arith.constant 0 : index
    %1013 = vector.load %arg11[%c0_420, %c0_421] : memref<64x32xbf16, #tpu.memory_space<vmem>>, vector<64x32xbf16>
    %cst_422 = arith.constant dense<0.000000e+00> : vector<8x32xf32>
    %1014 = tpu.matmul %1012, %1013, %cst_422 {dimension_numbers = #tpu.dot_dimension_numbers<[1], [0], [0], [1], [0, 0, 1, 1], [], []>} : vector<8x64xbf16>, vector<64x32xbf16>, vector<8x32xf32> -> vector<8x32xf32>
    %1015 = arith.addf %1014, %379 : vector<8x32xf32>
    %cst_423 = arith.constant 0.000000e+00 : f32
    %1016 = vector.broadcast %cst_423 : f32 to vector<8x32xf32>
    %1017 = arith.maximumf %1015, %1016 : vector<8x32xf32>
    %1018 = arith.truncf %1017 : vector<8x32xf32> to vector<8x32xbf16>
    %c0_424 = arith.constant 0 : index
    %c0_425 = arith.constant 0 : index
    %1019 = vector.load %arg14[%c0_424, %c0_425] : memref<32x32xbf16, #tpu.memory_space<vmem>>, vector<32x32xbf16>
    %cst_426 = arith.constant dense<0.000000e+00> : vector<8x32xf32>
    %1020 = tpu.matmul %1018, %1019, %cst_426 {dimension_numbers = #tpu.dot_dimension_numbers<[1], [0], [0], [1], [0, 0, 1, 1], [], []>} : vector<8x32xbf16>, vector<32x32xbf16>, vector<8x32xf32> -> vector<8x32xf32>
    %c0_427 = arith.constant 0 : index
    %c0_428 = arith.constant 0 : index
    %1021 = vector.load %arg15[%c0_427, %c0_428] : memref<1x32xf32, #tpu.memory_space<vmem>>, vector<1x32xf32>
    %1022 = vector.broadcast %1021 : vector<1x32xf32> to vector<8x32xf32>
    %1023 = arith.addf %1020, %1022 : vector<8x32xf32>
    %cst_429 = arith.constant 0.000000e+00 : f32
    %1024 = vector.broadcast %cst_429 : f32 to vector<8x32xf32>
    %1025 = arith.maximumf %1023, %1024 : vector<8x32xf32>
    %1026 = arith.truncf %1025 : vector<8x32xf32> to vector<8x32xbf16>
    %c0_430 = arith.constant 0 : index
    %c0_431 = arith.constant 0 : index
    %1027 = vector.load %arg16[%c0_430, %c0_431] : memref<32x96xbf16, #tpu.memory_space<vmem>>, vector<32x96xbf16>
    %cst_432 = arith.constant dense<0.000000e+00> : vector<8x96xf32>
    %1028 = tpu.matmul %1026, %1027, %cst_432 {dimension_numbers = #tpu.dot_dimension_numbers<[1], [0], [0], [1], [0, 0, 1, 1], [], []>} : vector<8x32xbf16>, vector<32x96xbf16>, vector<8x96xf32> -> vector<8x96xf32>
    %c0_433 = arith.constant 0 : index
    %c0_434 = arith.constant 0 : index
    %1029 = vector.load %arg17[%c0_433, %c0_434] : memref<1x96xf32, #tpu.memory_space<vmem>>, vector<1x96xf32>
    %1030 = vector.broadcast %1029 : vector<1x96xf32> to vector<8x96xf32>
    %1031 = arith.addf %1028, %1030 : vector<8x96xf32>
    %1032 = arith.truncf %938 : vector<8x32xf32> to vector<8x32xbf16>
    %c0_435 = arith.constant 0 : index
    %c0_436 = arith.constant 0 : index
    %1033 = vector.load %arg18[%c0_435, %c0_436] : memref<32x96xbf16, #tpu.memory_space<vmem>>, vector<32x96xbf16>
    %cst_437 = arith.constant dense<0.000000e+00> : vector<8x96xf32>
    %1034 = tpu.matmul %1032, %1033, %cst_437 {dimension_numbers = #tpu.dot_dimension_numbers<[1], [0], [0], [1], [0, 0, 1, 1], [], []>} : vector<8x32xbf16>, vector<32x96xbf16>, vector<8x96xf32> -> vector<8x96xf32>
    %c0_438 = arith.constant 0 : index
    %c0_439 = arith.constant 0 : index
    %1035 = vector.load %arg19[%c0_438, %c0_439] : memref<1x96xf32, #tpu.memory_space<vmem>>, vector<1x96xf32>
    %1036 = vector.broadcast %1035 : vector<1x96xf32> to vector<8x96xf32>
    %1037 = arith.addf %1034, %1036 : vector<8x96xf32>
    %1038 = vector.extract_strided_slice %1031 {offsets = [0, 0], sizes = [8, 64], strides = [1, 1]} : vector<8x96xf32> to vector<8x64xf32>
    %1039 = vector.extract_strided_slice %1037 {offsets = [0, 0], sizes = [8, 64], strides = [1, 1]} : vector<8x96xf32> to vector<8x64xf32>
    %1040 = arith.addf %1038, %1039 : vector<8x64xf32>
    %1041 = arith.negf %1040 : vector<8x64xf32>
    %1042 = math.exp %1041 : vector<8x64xf32>
    %cst_440 = arith.constant 1.000000e+00 : f32
    %1043 = vector.broadcast %cst_440 : f32 to vector<8x64xf32>
    %1044 = arith.addf %1043, %1042 : vector<8x64xf32>
    %1045 = arith.divf %1043, %1044 : vector<8x64xf32>
    %1046 = vector.extract_strided_slice %1045 {offsets = [0, 0], sizes = [8, 32], strides = [1, 1]} : vector<8x64xf32> to vector<8x32xf32>
    %1047 = vector.extract_strided_slice %1045 {offsets = [0, 32], sizes = [8, 32], strides = [1, 1]} : vector<8x64xf32> to vector<8x32xf32>
    %1048 = vector.extract_strided_slice %1031 {offsets = [0, 64], sizes = [8, 32], strides = [1, 1]} : vector<8x96xf32> to vector<8x32xf32>
    %1049 = vector.extract_strided_slice %1037 {offsets = [0, 64], sizes = [8, 32], strides = [1, 1]} : vector<8x96xf32> to vector<8x32xf32>
    %1050 = arith.mulf %1046, %1049 : vector<8x32xf32>
    %1051 = arith.addf %1048, %1050 : vector<8x32xf32>
    %1052 = math.tanh %1051 : vector<8x32xf32>
    %cst_441 = arith.constant 1.000000e+00 : f32
    %1053 = vector.broadcast %cst_441 : f32 to vector<8x32xf32>
    %1054 = arith.subf %1053, %1047 : vector<8x32xf32>
    %1055 = arith.mulf %1054, %1052 : vector<8x32xf32>
    %1056 = arith.mulf %1047, %938 : vector<8x32xf32>
    %1057 = arith.addf %1055, %1056 : vector<8x32xf32>
    %1058 = arith.truncf %1057 : vector<8x32xf32> to vector<8x32xbf16>
    %c0_442 = arith.constant 0 : index
    %c0_443 = arith.constant 0 : index
    %1059 = vector.load %arg20[%c0_442, %c0_443] : memref<32x96xbf16, #tpu.memory_space<vmem>>, vector<32x96xbf16>
    %cst_444 = arith.constant dense<0.000000e+00> : vector<8x96xf32>
    %1060 = tpu.matmul %1058, %1059, %cst_444 {dimension_numbers = #tpu.dot_dimension_numbers<[1], [0], [0], [1], [0, 0, 1, 1], [], []>} : vector<8x32xbf16>, vector<32x96xbf16>, vector<8x96xf32> -> vector<8x96xf32>
    %c0_445 = arith.constant 0 : index
    %c0_446 = arith.constant 0 : index
    %1061 = vector.load %arg21[%c0_445, %c0_446] : memref<1x96xf32, #tpu.memory_space<vmem>>, vector<1x96xf32>
    %1062 = vector.broadcast %1061 : vector<1x96xf32> to vector<8x96xf32>
    %1063 = arith.addf %1060, %1062 : vector<8x96xf32>
    %1064 = arith.truncf %970 : vector<8x32xf32> to vector<8x32xbf16>
    %c0_447 = arith.constant 0 : index
    %c0_448 = arith.constant 0 : index
    %1065 = vector.load %arg22[%c0_447, %c0_448] : memref<32x96xbf16, #tpu.memory_space<vmem>>, vector<32x96xbf16>
    %cst_449 = arith.constant dense<0.000000e+00> : vector<8x96xf32>
    %1066 = tpu.matmul %1064, %1065, %cst_449 {dimension_numbers = #tpu.dot_dimension_numbers<[1], [0], [0], [1], [0, 0, 1, 1], [], []>} : vector<8x32xbf16>, vector<32x96xbf16>, vector<8x96xf32> -> vector<8x96xf32>
    %c0_450 = arith.constant 0 : index
    %c0_451 = arith.constant 0 : index
    %1067 = vector.load %arg23[%c0_450, %c0_451] : memref<1x96xf32, #tpu.memory_space<vmem>>, vector<1x96xf32>
    %1068 = vector.broadcast %1067 : vector<1x96xf32> to vector<8x96xf32>
    %1069 = arith.addf %1066, %1068 : vector<8x96xf32>
    %1070 = vector.extract_strided_slice %1063 {offsets = [0, 0], sizes = [8, 64], strides = [1, 1]} : vector<8x96xf32> to vector<8x64xf32>
    %1071 = vector.extract_strided_slice %1069 {offsets = [0, 0], sizes = [8, 64], strides = [1, 1]} : vector<8x96xf32> to vector<8x64xf32>
    %1072 = arith.addf %1070, %1071 : vector<8x64xf32>
    %1073 = arith.negf %1072 : vector<8x64xf32>
    %1074 = math.exp %1073 : vector<8x64xf32>
    %cst_452 = arith.constant 1.000000e+00 : f32
    %1075 = vector.broadcast %cst_452 : f32 to vector<8x64xf32>
    %1076 = arith.addf %1075, %1074 : vector<8x64xf32>
    %1077 = arith.divf %1075, %1076 : vector<8x64xf32>
    %1078 = vector.extract_strided_slice %1077 {offsets = [0, 0], sizes = [8, 32], strides = [1, 1]} : vector<8x64xf32> to vector<8x32xf32>
    %1079 = vector.extract_strided_slice %1077 {offsets = [0, 32], sizes = [8, 32], strides = [1, 1]} : vector<8x64xf32> to vector<8x32xf32>
    %1080 = vector.extract_strided_slice %1063 {offsets = [0, 64], sizes = [8, 32], strides = [1, 1]} : vector<8x96xf32> to vector<8x32xf32>
    %1081 = vector.extract_strided_slice %1069 {offsets = [0, 64], sizes = [8, 32], strides = [1, 1]} : vector<8x96xf32> to vector<8x32xf32>
    %1082 = arith.mulf %1078, %1081 : vector<8x32xf32>
    %1083 = arith.addf %1080, %1082 : vector<8x32xf32>
    %1084 = math.tanh %1083 : vector<8x32xf32>
    %cst_453 = arith.constant 1.000000e+00 : f32
    %1085 = vector.broadcast %cst_453 : f32 to vector<8x32xf32>
    %1086 = arith.subf %1085, %1079 : vector<8x32xf32>
    %1087 = arith.mulf %1086, %1084 : vector<8x32xf32>
    %1088 = arith.mulf %1079, %970 : vector<8x32xf32>
    %1089 = arith.addf %1087, %1088 : vector<8x32xf32>
    %1090 = arith.truncf %1089 : vector<8x32xf32> to vector<8x32xbf16>
    %c0_454 = arith.constant 0 : index
    %c0_455 = arith.constant 0 : index
    %1091 = vector.load %arg24[%c0_454, %c0_455] : memref<32x64xbf16, #tpu.memory_space<vmem>>, vector<32x64xbf16>
    %cst_456 = arith.constant dense<0.000000e+00> : vector<8x64xf32>
    %1092 = tpu.matmul %1090, %1091, %cst_456 {dimension_numbers = #tpu.dot_dimension_numbers<[1], [0], [0], [1], [0, 0, 1, 1], [], []>} : vector<8x32xbf16>, vector<32x64xbf16>, vector<8x64xf32> -> vector<8x64xf32>
    %1093 = arith.addf %974, %1092 : vector<8x64xf32>
    %1094 = arith.truncf %1093 : vector<8x64xf32> to vector<8x64xbf16>
    %c0_457 = arith.constant 0 : index
    %c0_458 = arith.constant 0 : index
    %1095 = vector.load %arg25[%c0_457, %c0_458] : memref<64x192xbf16, #tpu.memory_space<vmem>>, vector<64x192xbf16>
    %cst_459 = arith.constant dense<0.000000e+00> : vector<8x192xf32>
    %1096 = tpu.matmul %1094, %1095, %cst_459 {dimension_numbers = #tpu.dot_dimension_numbers<[1], [0], [0], [1], [0, 0, 1, 1], [], []>} : vector<8x64xbf16>, vector<64x192xbf16>, vector<8x192xf32> -> vector<8x192xf32>
    %c0_460 = arith.constant 0 : index
    %c0_461 = arith.constant 0 : index
    %1097 = vector.load %arg26[%c0_460, %c0_461] : memref<1x192xf32, #tpu.memory_space<vmem>>, vector<1x192xf32>
    %1098 = vector.broadcast %1097 : vector<1x192xf32> to vector<8x192xf32>
    %1099 = arith.addf %1096, %1098 : vector<8x192xf32>
    %1100 = arith.truncf %1006 : vector<8x64xf32> to vector<8x64xbf16>
    %c0_462 = arith.constant 0 : index
    %c0_463 = arith.constant 0 : index
    %1101 = vector.load %arg27[%c0_462, %c0_463] : memref<64x192xbf16, #tpu.memory_space<vmem>>, vector<64x192xbf16>
    %cst_464 = arith.constant dense<0.000000e+00> : vector<8x192xf32>
    %1102 = tpu.matmul %1100, %1101, %cst_464 {dimension_numbers = #tpu.dot_dimension_numbers<[1], [0], [0], [1], [0, 0, 1, 1], [], []>} : vector<8x64xbf16>, vector<64x192xbf16>, vector<8x192xf32> -> vector<8x192xf32>
    %c0_465 = arith.constant 0 : index
    %c0_466 = arith.constant 0 : index
    %1103 = vector.load %arg28[%c0_465, %c0_466] : memref<1x192xf32, #tpu.memory_space<vmem>>, vector<1x192xf32>
    %1104 = vector.broadcast %1103 : vector<1x192xf32> to vector<8x192xf32>
    %1105 = arith.addf %1102, %1104 : vector<8x192xf32>
    %1106 = vector.extract_strided_slice %1099 {offsets = [0, 0], sizes = [8, 128], strides = [1, 1]} : vector<8x192xf32> to vector<8x128xf32>
    %1107 = vector.extract_strided_slice %1105 {offsets = [0, 0], sizes = [8, 128], strides = [1, 1]} : vector<8x192xf32> to vector<8x128xf32>
    %1108 = arith.addf %1106, %1107 : vector<8x128xf32>
    %1109 = arith.negf %1108 : vector<8x128xf32>
    %1110 = math.exp %1109 : vector<8x128xf32>
    %cst_467 = arith.constant 1.000000e+00 : f32
    %1111 = vector.broadcast %cst_467 : f32 to vector<8x128xf32>
    %1112 = arith.addf %1111, %1110 : vector<8x128xf32>
    %1113 = arith.divf %1111, %1112 : vector<8x128xf32>
    %1114 = vector.extract_strided_slice %1113 {offsets = [0, 0], sizes = [8, 64], strides = [1, 1]} : vector<8x128xf32> to vector<8x64xf32>
    %1115 = vector.extract_strided_slice %1113 {offsets = [0, 64], sizes = [8, 64], strides = [1, 1]} : vector<8x128xf32> to vector<8x64xf32>
    %1116 = vector.extract_strided_slice %1099 {offsets = [0, 128], sizes = [8, 64], strides = [1, 1]} : vector<8x192xf32> to vector<8x64xf32>
    %1117 = vector.extract_strided_slice %1105 {offsets = [0, 128], sizes = [8, 64], strides = [1, 1]} : vector<8x192xf32> to vector<8x64xf32>
    %1118 = arith.mulf %1114, %1117 : vector<8x64xf32>
    %1119 = arith.addf %1116, %1118 : vector<8x64xf32>
    %1120 = math.tanh %1119 : vector<8x64xf32>
    %cst_468 = arith.constant 1.000000e+00 : f32
    %1121 = vector.broadcast %cst_468 : f32 to vector<8x64xf32>
    %1122 = arith.subf %1121, %1115 : vector<8x64xf32>
    %1123 = arith.mulf %1122, %1120 : vector<8x64xf32>
    %1124 = arith.mulf %1115, %1006 : vector<8x64xf32>
    %1125 = arith.addf %1123, %1124 : vector<8x64xf32>
    %c1_i32_469 = arith.constant 1 : i32
    %1126 = arith.addi %c5_i32_419, %c1_i32_469 : i32
    %1127 = arith.index_cast %1126 : i32 to index
    %c0_470 = arith.constant 0 : index
    %c0_471 = arith.constant 0 : index
    %1128 = vector.load %arg32[%1127, %c0_470, %c0_471] : memref<9x8x64xf32, #tpu.memory_space<vmem>>, vector<1x8x64xf32>
    %1129 = vector.shape_cast %1128 : vector<1x8x64xf32> to vector<8x64xf32>
    %1130 = vector.shape_cast %1125 : vector<8x64xf32> to vector<1x8x64xf32>
    tpu.vector_store %arg32[%1127, %c0_470, %c0_471], %1130 {strides = array<i32>} : memref<9x8x64xf32, #tpu.memory_space<vmem>>, vector<1x8x64xf32>,
    %c6_i32_472 = arith.constant 6 : i32
    %1131 = arith.truncf %1093 : vector<8x64xf32> to vector<8x64xbf16>
    %c0_473 = arith.constant 0 : index
    %c0_474 = arith.constant 0 : index
    %1132 = vector.load %arg11[%c0_473, %c0_474] : memref<64x32xbf16, #tpu.memory_space<vmem>>, vector<64x32xbf16>
    %cst_475 = arith.constant dense<0.000000e+00> : vector<8x32xf32>
    %1133 = tpu.matmul %1131, %1132, %cst_475 {dimension_numbers = #tpu.dot_dimension_numbers<[1], [0], [0], [1], [0, 0, 1, 1], [], []>} : vector<8x64xbf16>, vector<64x32xbf16>, vector<8x32xf32> -> vector<8x32xf32>
    %1134 = arith.addf %1133, %379 : vector<8x32xf32>
    %cst_476 = arith.constant 0.000000e+00 : f32
    %1135 = vector.broadcast %cst_476 : f32 to vector<8x32xf32>
    %1136 = arith.maximumf %1134, %1135 : vector<8x32xf32>
    %1137 = arith.truncf %1136 : vector<8x32xf32> to vector<8x32xbf16>
    %c0_477 = arith.constant 0 : index
    %c0_478 = arith.constant 0 : index
    %1138 = vector.load %arg14[%c0_477, %c0_478] : memref<32x32xbf16, #tpu.memory_space<vmem>>, vector<32x32xbf16>
    %cst_479 = arith.constant dense<0.000000e+00> : vector<8x32xf32>
    %1139 = tpu.matmul %1137, %1138, %cst_479 {dimension_numbers = #tpu.dot_dimension_numbers<[1], [0], [0], [1], [0, 0, 1, 1], [], []>} : vector<8x32xbf16>, vector<32x32xbf16>, vector<8x32xf32> -> vector<8x32xf32>
    %c0_480 = arith.constant 0 : index
    %c0_481 = arith.constant 0 : index
    %1140 = vector.load %arg15[%c0_480, %c0_481] : memref<1x32xf32, #tpu.memory_space<vmem>>, vector<1x32xf32>
    %1141 = vector.broadcast %1140 : vector<1x32xf32> to vector<8x32xf32>
    %1142 = arith.addf %1139, %1141 : vector<8x32xf32>
    %cst_482 = arith.constant 0.000000e+00 : f32
    %1143 = vector.broadcast %cst_482 : f32 to vector<8x32xf32>
    %1144 = arith.maximumf %1142, %1143 : vector<8x32xf32>
    %1145 = arith.truncf %1144 : vector<8x32xf32> to vector<8x32xbf16>
    %c0_483 = arith.constant 0 : index
    %c0_484 = arith.constant 0 : index
    %1146 = vector.load %arg16[%c0_483, %c0_484] : memref<32x96xbf16, #tpu.memory_space<vmem>>, vector<32x96xbf16>
    %cst_485 = arith.constant dense<0.000000e+00> : vector<8x96xf32>
    %1147 = tpu.matmul %1145, %1146, %cst_485 {dimension_numbers = #tpu.dot_dimension_numbers<[1], [0], [0], [1], [0, 0, 1, 1], [], []>} : vector<8x32xbf16>, vector<32x96xbf16>, vector<8x96xf32> -> vector<8x96xf32>
    %c0_486 = arith.constant 0 : index
    %c0_487 = arith.constant 0 : index
    %1148 = vector.load %arg17[%c0_486, %c0_487] : memref<1x96xf32, #tpu.memory_space<vmem>>, vector<1x96xf32>
    %1149 = vector.broadcast %1148 : vector<1x96xf32> to vector<8x96xf32>
    %1150 = arith.addf %1147, %1149 : vector<8x96xf32>
    %1151 = arith.truncf %1057 : vector<8x32xf32> to vector<8x32xbf16>
    %c0_488 = arith.constant 0 : index
    %c0_489 = arith.constant 0 : index
    %1152 = vector.load %arg18[%c0_488, %c0_489] : memref<32x96xbf16, #tpu.memory_space<vmem>>, vector<32x96xbf16>
    %cst_490 = arith.constant dense<0.000000e+00> : vector<8x96xf32>
    %1153 = tpu.matmul %1151, %1152, %cst_490 {dimension_numbers = #tpu.dot_dimension_numbers<[1], [0], [0], [1], [0, 0, 1, 1], [], []>} : vector<8x32xbf16>, vector<32x96xbf16>, vector<8x96xf32> -> vector<8x96xf32>
    %c0_491 = arith.constant 0 : index
    %c0_492 = arith.constant 0 : index
    %1154 = vector.load %arg19[%c0_491, %c0_492] : memref<1x96xf32, #tpu.memory_space<vmem>>, vector<1x96xf32>
    %1155 = vector.broadcast %1154 : vector<1x96xf32> to vector<8x96xf32>
    %1156 = arith.addf %1153, %1155 : vector<8x96xf32>
    %1157 = vector.extract_strided_slice %1150 {offsets = [0, 0], sizes = [8, 64], strides = [1, 1]} : vector<8x96xf32> to vector<8x64xf32>
    %1158 = vector.extract_strided_slice %1156 {offsets = [0, 0], sizes = [8, 64], strides = [1, 1]} : vector<8x96xf32> to vector<8x64xf32>
    %1159 = arith.addf %1157, %1158 : vector<8x64xf32>
    %1160 = arith.negf %1159 : vector<8x64xf32>
    %1161 = math.exp %1160 : vector<8x64xf32>
    %cst_493 = arith.constant 1.000000e+00 : f32
    %1162 = vector.broadcast %cst_493 : f32 to vector<8x64xf32>
    %1163 = arith.addf %1162, %1161 : vector<8x64xf32>
    %1164 = arith.divf %1162, %1163 : vector<8x64xf32>
    %1165 = vector.extract_strided_slice %1164 {offsets = [0, 0], sizes = [8, 32], strides = [1, 1]} : vector<8x64xf32> to vector<8x32xf32>
    %1166 = vector.extract_strided_slice %1164 {offsets = [0, 32], sizes = [8, 32], strides = [1, 1]} : vector<8x64xf32> to vector<8x32xf32>
    %1167 = vector.extract_strided_slice %1150 {offsets = [0, 64], sizes = [8, 32], strides = [1, 1]} : vector<8x96xf32> to vector<8x32xf32>
    %1168 = vector.extract_strided_slice %1156 {offsets = [0, 64], sizes = [8, 32], strides = [1, 1]} : vector<8x96xf32> to vector<8x32xf32>
    %1169 = arith.mulf %1165, %1168 : vector<8x32xf32>
    %1170 = arith.addf %1167, %1169 : vector<8x32xf32>
    %1171 = math.tanh %1170 : vector<8x32xf32>
    %cst_494 = arith.constant 1.000000e+00 : f32
    %1172 = vector.broadcast %cst_494 : f32 to vector<8x32xf32>
    %1173 = arith.subf %1172, %1166 : vector<8x32xf32>
    %1174 = arith.mulf %1173, %1171 : vector<8x32xf32>
    %1175 = arith.mulf %1166, %1057 : vector<8x32xf32>
    %1176 = arith.addf %1174, %1175 : vector<8x32xf32>
    %1177 = arith.truncf %1176 : vector<8x32xf32> to vector<8x32xbf16>
    %c0_495 = arith.constant 0 : index
    %c0_496 = arith.constant 0 : index
    %1178 = vector.load %arg20[%c0_495, %c0_496] : memref<32x96xbf16, #tpu.memory_space<vmem>>, vector<32x96xbf16>
    %cst_497 = arith.constant dense<0.000000e+00> : vector<8x96xf32>
    %1179 = tpu.matmul %1177, %1178, %cst_497 {dimension_numbers = #tpu.dot_dimension_numbers<[1], [0], [0], [1], [0, 0, 1, 1], [], []>} : vector<8x32xbf16>, vector<32x96xbf16>, vector<8x96xf32> -> vector<8x96xf32>
    %c0_498 = arith.constant 0 : index
    %c0_499 = arith.constant 0 : index
    %1180 = vector.load %arg21[%c0_498, %c0_499] : memref<1x96xf32, #tpu.memory_space<vmem>>, vector<1x96xf32>
    %1181 = vector.broadcast %1180 : vector<1x96xf32> to vector<8x96xf32>
    %1182 = arith.addf %1179, %1181 : vector<8x96xf32>
    %1183 = arith.truncf %1089 : vector<8x32xf32> to vector<8x32xbf16>
    %c0_500 = arith.constant 0 : index
    %c0_501 = arith.constant 0 : index
    %1184 = vector.load %arg22[%c0_500, %c0_501] : memref<32x96xbf16, #tpu.memory_space<vmem>>, vector<32x96xbf16>
    %cst_502 = arith.constant dense<0.000000e+00> : vector<8x96xf32>
    %1185 = tpu.matmul %1183, %1184, %cst_502 {dimension_numbers = #tpu.dot_dimension_numbers<[1], [0], [0], [1], [0, 0, 1, 1], [], []>} : vector<8x32xbf16>, vector<32x96xbf16>, vector<8x96xf32> -> vector<8x96xf32>
    %c0_503 = arith.constant 0 : index
    %c0_504 = arith.constant 0 : index
    %1186 = vector.load %arg23[%c0_503, %c0_504] : memref<1x96xf32, #tpu.memory_space<vmem>>, vector<1x96xf32>
    %1187 = vector.broadcast %1186 : vector<1x96xf32> to vector<8x96xf32>
    %1188 = arith.addf %1185, %1187 : vector<8x96xf32>
    %1189 = vector.extract_strided_slice %1182 {offsets = [0, 0], sizes = [8, 64], strides = [1, 1]} : vector<8x96xf32> to vector<8x64xf32>
    %1190 = vector.extract_strided_slice %1188 {offsets = [0, 0], sizes = [8, 64], strides = [1, 1]} : vector<8x96xf32> to vector<8x64xf32>
    %1191 = arith.addf %1189, %1190 : vector<8x64xf32>
    %1192 = arith.negf %1191 : vector<8x64xf32>
    %1193 = math.exp %1192 : vector<8x64xf32>
    %cst_505 = arith.constant 1.000000e+00 : f32
    %1194 = vector.broadcast %cst_505 : f32 to vector<8x64xf32>
    %1195 = arith.addf %1194, %1193 : vector<8x64xf32>
    %1196 = arith.divf %1194, %1195 : vector<8x64xf32>
    %1197 = vector.extract_strided_slice %1196 {offsets = [0, 0], sizes = [8, 32], strides = [1, 1]} : vector<8x64xf32> to vector<8x32xf32>
    %1198 = vector.extract_strided_slice %1196 {offsets = [0, 32], sizes = [8, 32], strides = [1, 1]} : vector<8x64xf32> to vector<8x32xf32>
    %1199 = vector.extract_strided_slice %1182 {offsets = [0, 64], sizes = [8, 32], strides = [1, 1]} : vector<8x96xf32> to vector<8x32xf32>
    %1200 = vector.extract_strided_slice %1188 {offsets = [0, 64], sizes = [8, 32], strides = [1, 1]} : vector<8x96xf32> to vector<8x32xf32>
    %1201 = arith.mulf %1197, %1200 : vector<8x32xf32>
    %1202 = arith.addf %1199, %1201 : vector<8x32xf32>
    %1203 = math.tanh %1202 : vector<8x32xf32>
    %cst_506 = arith.constant 1.000000e+00 : f32
    %1204 = vector.broadcast %cst_506 : f32 to vector<8x32xf32>
    %1205 = arith.subf %1204, %1198 : vector<8x32xf32>
    %1206 = arith.mulf %1205, %1203 : vector<8x32xf32>
    %1207 = arith.mulf %1198, %1089 : vector<8x32xf32>
    %1208 = arith.addf %1206, %1207 : vector<8x32xf32>
    %1209 = arith.truncf %1208 : vector<8x32xf32> to vector<8x32xbf16>
    %c0_507 = arith.constant 0 : index
    %c0_508 = arith.constant 0 : index
    %1210 = vector.load %arg24[%c0_507, %c0_508] : memref<32x64xbf16, #tpu.memory_space<vmem>>, vector<32x64xbf16>
    %cst_509 = arith.constant dense<0.000000e+00> : vector<8x64xf32>
    %1211 = tpu.matmul %1209, %1210, %cst_509 {dimension_numbers = #tpu.dot_dimension_numbers<[1], [0], [0], [1], [0, 0, 1, 1], [], []>} : vector<8x32xbf16>, vector<32x64xbf16>, vector<8x64xf32> -> vector<8x64xf32>
    %1212 = arith.addf %1093, %1211 : vector<8x64xf32>
    %1213 = arith.truncf %1212 : vector<8x64xf32> to vector<8x64xbf16>
    %c0_510 = arith.constant 0 : index
    %c0_511 = arith.constant 0 : index
    %1214 = vector.load %arg25[%c0_510, %c0_511] : memref<64x192xbf16, #tpu.memory_space<vmem>>, vector<64x192xbf16>
    %cst_512 = arith.constant dense<0.000000e+00> : vector<8x192xf32>
    %1215 = tpu.matmul %1213, %1214, %cst_512 {dimension_numbers = #tpu.dot_dimension_numbers<[1], [0], [0], [1], [0, 0, 1, 1], [], []>} : vector<8x64xbf16>, vector<64x192xbf16>, vector<8x192xf32> -> vector<8x192xf32>
    %c0_513 = arith.constant 0 : index
    %c0_514 = arith.constant 0 : index
    %1216 = vector.load %arg26[%c0_513, %c0_514] : memref<1x192xf32, #tpu.memory_space<vmem>>, vector<1x192xf32>
    %1217 = vector.broadcast %1216 : vector<1x192xf32> to vector<8x192xf32>
    %1218 = arith.addf %1215, %1217 : vector<8x192xf32>
    %1219 = arith.truncf %1125 : vector<8x64xf32> to vector<8x64xbf16>
    %c0_515 = arith.constant 0 : index
    %c0_516 = arith.constant 0 : index
    %1220 = vector.load %arg27[%c0_515, %c0_516] : memref<64x192xbf16, #tpu.memory_space<vmem>>, vector<64x192xbf16>
    %cst_517 = arith.constant dense<0.000000e+00> : vector<8x192xf32>
    %1221 = tpu.matmul %1219, %1220, %cst_517 {dimension_numbers = #tpu.dot_dimension_numbers<[1], [0], [0], [1], [0, 0, 1, 1], [], []>} : vector<8x64xbf16>, vector<64x192xbf16>, vector<8x192xf32> -> vector<8x192xf32>
    %c0_518 = arith.constant 0 : index
    %c0_519 = arith.constant 0 : index
    %1222 = vector.load %arg28[%c0_518, %c0_519] : memref<1x192xf32, #tpu.memory_space<vmem>>, vector<1x192xf32>
    %1223 = vector.broadcast %1222 : vector<1x192xf32> to vector<8x192xf32>
    %1224 = arith.addf %1221, %1223 : vector<8x192xf32>
    %1225 = vector.extract_strided_slice %1218 {offsets = [0, 0], sizes = [8, 128], strides = [1, 1]} : vector<8x192xf32> to vector<8x128xf32>
    %1226 = vector.extract_strided_slice %1224 {offsets = [0, 0], sizes = [8, 128], strides = [1, 1]} : vector<8x192xf32> to vector<8x128xf32>
    %1227 = arith.addf %1225, %1226 : vector<8x128xf32>
    %1228 = arith.negf %1227 : vector<8x128xf32>
    %1229 = math.exp %1228 : vector<8x128xf32>
    %cst_520 = arith.constant 1.000000e+00 : f32
    %1230 = vector.broadcast %cst_520 : f32 to vector<8x128xf32>
    %1231 = arith.addf %1230, %1229 : vector<8x128xf32>
    %1232 = arith.divf %1230, %1231 : vector<8x128xf32>
    %1233 = vector.extract_strided_slice %1232 {offsets = [0, 0], sizes = [8, 64], strides = [1, 1]} : vector<8x128xf32> to vector<8x64xf32>
    %1234 = vector.extract_strided_slice %1232 {offsets = [0, 64], sizes = [8, 64], strides = [1, 1]} : vector<8x128xf32> to vector<8x64xf32>
    %1235 = vector.extract_strided_slice %1218 {offsets = [0, 128], sizes = [8, 64], strides = [1, 1]} : vector<8x192xf32> to vector<8x64xf32>
    %1236 = vector.extract_strided_slice %1224 {offsets = [0, 128], sizes = [8, 64], strides = [1, 1]} : vector<8x192xf32> to vector<8x64xf32>
    %1237 = arith.mulf %1233, %1236 : vector<8x64xf32>
    %1238 = arith.addf %1235, %1237 : vector<8x64xf32>
    %1239 = math.tanh %1238 : vector<8x64xf32>
    %cst_521 = arith.constant 1.000000e+00 : f32
    %1240 = vector.broadcast %cst_521 : f32 to vector<8x64xf32>
    %1241 = arith.subf %1240, %1234 : vector<8x64xf32>
    %1242 = arith.mulf %1241, %1239 : vector<8x64xf32>
    %1243 = arith.mulf %1234, %1125 : vector<8x64xf32>
    %1244 = arith.addf %1242, %1243 : vector<8x64xf32>
    %c1_i32_522 = arith.constant 1 : i32
    %1245 = arith.addi %c6_i32_472, %c1_i32_522 : i32
    %1246 = arith.index_cast %1245 : i32 to index
    %c0_523 = arith.constant 0 : index
    %c0_524 = arith.constant 0 : index
    %1247 = vector.load %arg32[%1246, %c0_523, %c0_524] : memref<9x8x64xf32, #tpu.memory_space<vmem>>, vector<1x8x64xf32>
    %1248 = vector.shape_cast %1247 : vector<1x8x64xf32> to vector<8x64xf32>
    %1249 = vector.shape_cast %1244 : vector<8x64xf32> to vector<1x8x64xf32>
    tpu.vector_store %arg32[%1246, %c0_523, %c0_524], %1249 {strides = array<i32>} : memref<9x8x64xf32, #tpu.memory_space<vmem>>, vector<1x8x64xf32>,
    %c7_i32 = arith.constant 7 : i32
    %1250 = arith.truncf %1212 : vector<8x64xf32> to vector<8x64xbf16>
    %c0_525 = arith.constant 0 : index
    %c0_526 = arith.constant 0 : index
    %1251 = vector.load %arg11[%c0_525, %c0_526] : memref<64x32xbf16, #tpu.memory_space<vmem>>, vector<64x32xbf16>
    %cst_527 = arith.constant dense<0.000000e+00> : vector<8x32xf32>
    %1252 = tpu.matmul %1250, %1251, %cst_527 {dimension_numbers = #tpu.dot_dimension_numbers<[1], [0], [0], [1], [0, 0, 1, 1], [], []>} : vector<8x64xbf16>, vector<64x32xbf16>, vector<8x32xf32> -> vector<8x32xf32>
    %1253 = arith.addf %1252, %379 : vector<8x32xf32>
    %cst_528 = arith.constant 0.000000e+00 : f32
    %1254 = vector.broadcast %cst_528 : f32 to vector<8x32xf32>
    %1255 = arith.maximumf %1253, %1254 : vector<8x32xf32>
    %1256 = arith.truncf %1255 : vector<8x32xf32> to vector<8x32xbf16>
    %c0_529 = arith.constant 0 : index
    %c0_530 = arith.constant 0 : index
    %1257 = vector.load %arg14[%c0_529, %c0_530] : memref<32x32xbf16, #tpu.memory_space<vmem>>, vector<32x32xbf16>
    %cst_531 = arith.constant dense<0.000000e+00> : vector<8x32xf32>
    %1258 = tpu.matmul %1256, %1257, %cst_531 {dimension_numbers = #tpu.dot_dimension_numbers<[1], [0], [0], [1], [0, 0, 1, 1], [], []>} : vector<8x32xbf16>, vector<32x32xbf16>, vector<8x32xf32> -> vector<8x32xf32>
    %c0_532 = arith.constant 0 : index
    %c0_533 = arith.constant 0 : index
    %1259 = vector.load %arg15[%c0_532, %c0_533] : memref<1x32xf32, #tpu.memory_space<vmem>>, vector<1x32xf32>
    %1260 = vector.broadcast %1259 : vector<1x32xf32> to vector<8x32xf32>
    %1261 = arith.addf %1258, %1260 : vector<8x32xf32>
    %cst_534 = arith.constant 0.000000e+00 : f32
    %1262 = vector.broadcast %cst_534 : f32 to vector<8x32xf32>
    %1263 = arith.maximumf %1261, %1262 : vector<8x32xf32>
    %1264 = arith.truncf %1263 : vector<8x32xf32> to vector<8x32xbf16>
    %c0_535 = arith.constant 0 : index
    %c0_536 = arith.constant 0 : index
    %1265 = vector.load %arg16[%c0_535, %c0_536] : memref<32x96xbf16, #tpu.memory_space<vmem>>, vector<32x96xbf16>
    %cst_537 = arith.constant dense<0.000000e+00> : vector<8x96xf32>
    %1266 = tpu.matmul %1264, %1265, %cst_537 {dimension_numbers = #tpu.dot_dimension_numbers<[1], [0], [0], [1], [0, 0, 1, 1], [], []>} : vector<8x32xbf16>, vector<32x96xbf16>, vector<8x96xf32> -> vector<8x96xf32>
    %c0_538 = arith.constant 0 : index
    %c0_539 = arith.constant 0 : index
    %1267 = vector.load %arg17[%c0_538, %c0_539] : memref<1x96xf32, #tpu.memory_space<vmem>>, vector<1x96xf32>
    %1268 = vector.broadcast %1267 : vector<1x96xf32> to vector<8x96xf32>
    %1269 = arith.addf %1266, %1268 : vector<8x96xf32>
    %1270 = arith.truncf %1176 : vector<8x32xf32> to vector<8x32xbf16>
    %c0_540 = arith.constant 0 : index
    %c0_541 = arith.constant 0 : index
    %1271 = vector.load %arg18[%c0_540, %c0_541] : memref<32x96xbf16, #tpu.memory_space<vmem>>, vector<32x96xbf16>
    %cst_542 = arith.constant dense<0.000000e+00> : vector<8x96xf32>
    %1272 = tpu.matmul %1270, %1271, %cst_542 {dimension_numbers = #tpu.dot_dimension_numbers<[1], [0], [0], [1], [0, 0, 1, 1], [], []>} : vector<8x32xbf16>, vector<32x96xbf16>, vector<8x96xf32> -> vector<8x96xf32>
    %c0_543 = arith.constant 0 : index
    %c0_544 = arith.constant 0 : index
    %1273 = vector.load %arg19[%c0_543, %c0_544] : memref<1x96xf32, #tpu.memory_space<vmem>>, vector<1x96xf32>
    %1274 = vector.broadcast %1273 : vector<1x96xf32> to vector<8x96xf32>
    %1275 = arith.addf %1272, %1274 : vector<8x96xf32>
    %1276 = vector.extract_strided_slice %1269 {offsets = [0, 0], sizes = [8, 64], strides = [1, 1]} : vector<8x96xf32> to vector<8x64xf32>
    %1277 = vector.extract_strided_slice %1275 {offsets = [0, 0], sizes = [8, 64], strides = [1, 1]} : vector<8x96xf32> to vector<8x64xf32>
    %1278 = arith.addf %1276, %1277 : vector<8x64xf32>
    %1279 = arith.negf %1278 : vector<8x64xf32>
    %1280 = math.exp %1279 : vector<8x64xf32>
    %cst_545 = arith.constant 1.000000e+00 : f32
    %1281 = vector.broadcast %cst_545 : f32 to vector<8x64xf32>
    %1282 = arith.addf %1281, %1280 : vector<8x64xf32>
    %1283 = arith.divf %1281, %1282 : vector<8x64xf32>
    %1284 = vector.extract_strided_slice %1283 {offsets = [0, 0], sizes = [8, 32], strides = [1, 1]} : vector<8x64xf32> to vector<8x32xf32>
    %1285 = vector.extract_strided_slice %1283 {offsets = [0, 32], sizes = [8, 32], strides = [1, 1]} : vector<8x64xf32> to vector<8x32xf32>
    %1286 = vector.extract_strided_slice %1269 {offsets = [0, 64], sizes = [8, 32], strides = [1, 1]} : vector<8x96xf32> to vector<8x32xf32>
    %1287 = vector.extract_strided_slice %1275 {offsets = [0, 64], sizes = [8, 32], strides = [1, 1]} : vector<8x96xf32> to vector<8x32xf32>
    %1288 = arith.mulf %1284, %1287 : vector<8x32xf32>
    %1289 = arith.addf %1286, %1288 : vector<8x32xf32>
    %1290 = math.tanh %1289 : vector<8x32xf32>
    %cst_546 = arith.constant 1.000000e+00 : f32
    %1291 = vector.broadcast %cst_546 : f32 to vector<8x32xf32>
    %1292 = arith.subf %1291, %1285 : vector<8x32xf32>
    %1293 = arith.mulf %1292, %1290 : vector<8x32xf32>
    %1294 = arith.mulf %1285, %1176 : vector<8x32xf32>
    %1295 = arith.addf %1293, %1294 : vector<8x32xf32>
    %1296 = arith.truncf %1295 : vector<8x32xf32> to vector<8x32xbf16>
    %c0_547 = arith.constant 0 : index
    %c0_548 = arith.constant 0 : index
    %1297 = vector.load %arg20[%c0_547, %c0_548] : memref<32x96xbf16, #tpu.memory_space<vmem>>, vector<32x96xbf16>
    %cst_549 = arith.constant dense<0.000000e+00> : vector<8x96xf32>
    %1298 = tpu.matmul %1296, %1297, %cst_549 {dimension_numbers = #tpu.dot_dimension_numbers<[1], [0], [0], [1], [0, 0, 1, 1], [], []>} : vector<8x32xbf16>, vector<32x96xbf16>, vector<8x96xf32> -> vector<8x96xf32>
    %c0_550 = arith.constant 0 : index
    %c0_551 = arith.constant 0 : index
    %1299 = vector.load %arg21[%c0_550, %c0_551] : memref<1x96xf32, #tpu.memory_space<vmem>>, vector<1x96xf32>
    %1300 = vector.broadcast %1299 : vector<1x96xf32> to vector<8x96xf32>
    %1301 = arith.addf %1298, %1300 : vector<8x96xf32>
    %1302 = arith.truncf %1208 : vector<8x32xf32> to vector<8x32xbf16>
    %c0_552 = arith.constant 0 : index
    %c0_553 = arith.constant 0 : index
    %1303 = vector.load %arg22[%c0_552, %c0_553] : memref<32x96xbf16, #tpu.memory_space<vmem>>, vector<32x96xbf16>
    %cst_554 = arith.constant dense<0.000000e+00> : vector<8x96xf32>
    %1304 = tpu.matmul %1302, %1303, %cst_554 {dimension_numbers = #tpu.dot_dimension_numbers<[1], [0], [0], [1], [0, 0, 1, 1], [], []>} : vector<8x32xbf16>, vector<32x96xbf16>, vector<8x96xf32> -> vector<8x96xf32>
    %c0_555 = arith.constant 0 : index
    %c0_556 = arith.constant 0 : index
    %1305 = vector.load %arg23[%c0_555, %c0_556] : memref<1x96xf32, #tpu.memory_space<vmem>>, vector<1x96xf32>
    %1306 = vector.broadcast %1305 : vector<1x96xf32> to vector<8x96xf32>
    %1307 = arith.addf %1304, %1306 : vector<8x96xf32>
    %1308 = vector.extract_strided_slice %1301 {offsets = [0, 0], sizes = [8, 64], strides = [1, 1]} : vector<8x96xf32> to vector<8x64xf32>
    %1309 = vector.extract_strided_slice %1307 {offsets = [0, 0], sizes = [8, 64], strides = [1, 1]} : vector<8x96xf32> to vector<8x64xf32>
    %1310 = arith.addf %1308, %1309 : vector<8x64xf32>
    %1311 = arith.negf %1310 : vector<8x64xf32>
    %1312 = math.exp %1311 : vector<8x64xf32>
    %cst_557 = arith.constant 1.000000e+00 : f32
    %1313 = vector.broadcast %cst_557 : f32 to vector<8x64xf32>
    %1314 = arith.addf %1313, %1312 : vector<8x64xf32>
    %1315 = arith.divf %1313, %1314 : vector<8x64xf32>
    %1316 = vector.extract_strided_slice %1315 {offsets = [0, 0], sizes = [8, 32], strides = [1, 1]} : vector<8x64xf32> to vector<8x32xf32>
    %1317 = vector.extract_strided_slice %1315 {offsets = [0, 32], sizes = [8, 32], strides = [1, 1]} : vector<8x64xf32> to vector<8x32xf32>
    %1318 = vector.extract_strided_slice %1301 {offsets = [0, 64], sizes = [8, 32], strides = [1, 1]} : vector<8x96xf32> to vector<8x32xf32>
    %1319 = vector.extract_strided_slice %1307 {offsets = [0, 64], sizes = [8, 32], strides = [1, 1]} : vector<8x96xf32> to vector<8x32xf32>
    %1320 = arith.mulf %1316, %1319 : vector<8x32xf32>
    %1321 = arith.addf %1318, %1320 : vector<8x32xf32>
    %1322 = math.tanh %1321 : vector<8x32xf32>
    %cst_558 = arith.constant 1.000000e+00 : f32
    %1323 = vector.broadcast %cst_558 : f32 to vector<8x32xf32>
    %1324 = arith.subf %1323, %1317 : vector<8x32xf32>
    %1325 = arith.mulf %1324, %1322 : vector<8x32xf32>
    %1326 = arith.mulf %1317, %1208 : vector<8x32xf32>
    %1327 = arith.addf %1325, %1326 : vector<8x32xf32>
    %1328 = arith.truncf %1327 : vector<8x32xf32> to vector<8x32xbf16>
    %c0_559 = arith.constant 0 : index
    %c0_560 = arith.constant 0 : index
    %1329 = vector.load %arg24[%c0_559, %c0_560] : memref<32x64xbf16, #tpu.memory_space<vmem>>, vector<32x64xbf16>
    %cst_561 = arith.constant dense<0.000000e+00> : vector<8x64xf32>
    %1330 = tpu.matmul %1328, %1329, %cst_561 {dimension_numbers = #tpu.dot_dimension_numbers<[1], [0], [0], [1], [0, 0, 1, 1], [], []>} : vector<8x32xbf16>, vector<32x64xbf16>, vector<8x64xf32> -> vector<8x64xf32>
    %1331 = arith.addf %1212, %1330 : vector<8x64xf32>
    %1332 = arith.truncf %1331 : vector<8x64xf32> to vector<8x64xbf16>
    %c0_562 = arith.constant 0 : index
    %c0_563 = arith.constant 0 : index
    %1333 = vector.load %arg25[%c0_562, %c0_563] : memref<64x192xbf16, #tpu.memory_space<vmem>>, vector<64x192xbf16>
    %cst_564 = arith.constant dense<0.000000e+00> : vector<8x192xf32>
    %1334 = tpu.matmul %1332, %1333, %cst_564 {dimension_numbers = #tpu.dot_dimension_numbers<[1], [0], [0], [1], [0, 0, 1, 1], [], []>} : vector<8x64xbf16>, vector<64x192xbf16>, vector<8x192xf32> -> vector<8x192xf32>
    %c0_565 = arith.constant 0 : index
    %c0_566 = arith.constant 0 : index
    %1335 = vector.load %arg26[%c0_565, %c0_566] : memref<1x192xf32, #tpu.memory_space<vmem>>, vector<1x192xf32>
    %1336 = vector.broadcast %1335 : vector<1x192xf32> to vector<8x192xf32>
    %1337 = arith.addf %1334, %1336 : vector<8x192xf32>
    %1338 = arith.truncf %1244 : vector<8x64xf32> to vector<8x64xbf16>
    %c0_567 = arith.constant 0 : index
    %c0_568 = arith.constant 0 : index
    %1339 = vector.load %arg27[%c0_567, %c0_568] : memref<64x192xbf16, #tpu.memory_space<vmem>>, vector<64x192xbf16>
    %cst_569 = arith.constant dense<0.000000e+00> : vector<8x192xf32>
    %1340 = tpu.matmul %1338, %1339, %cst_569 {dimension_numbers = #tpu.dot_dimension_numbers<[1], [0], [0], [1], [0, 0, 1, 1], [], []>} : vector<8x64xbf16>, vector<64x192xbf16>, vector<8x192xf32> -> vector<8x192xf32>
    %c0_570 = arith.constant 0 : index
    %c0_571 = arith.constant 0 : index
    %1341 = vector.load %arg28[%c0_570, %c0_571] : memref<1x192xf32, #tpu.memory_space<vmem>>, vector<1x192xf32>
    %1342 = vector.broadcast %1341 : vector<1x192xf32> to vector<8x192xf32>
    %1343 = arith.addf %1340, %1342 : vector<8x192xf32>
    %1344 = vector.extract_strided_slice %1337 {offsets = [0, 0], sizes = [8, 128], strides = [1, 1]} : vector<8x192xf32> to vector<8x128xf32>
    %1345 = vector.extract_strided_slice %1343 {offsets = [0, 0], sizes = [8, 128], strides = [1, 1]} : vector<8x192xf32> to vector<8x128xf32>
    %1346 = arith.addf %1344, %1345 : vector<8x128xf32>
    %1347 = arith.negf %1346 : vector<8x128xf32>
    %1348 = math.exp %1347 : vector<8x128xf32>
    %cst_572 = arith.constant 1.000000e+00 : f32
    %1349 = vector.broadcast %cst_572 : f32 to vector<8x128xf32>
    %1350 = arith.addf %1349, %1348 : vector<8x128xf32>
    %1351 = arith.divf %1349, %1350 : vector<8x128xf32>
    %1352 = vector.extract_strided_slice %1351 {offsets = [0, 0], sizes = [8, 64], strides = [1, 1]} : vector<8x128xf32> to vector<8x64xf32>
    %1353 = vector.extract_strided_slice %1351 {offsets = [0, 64], sizes = [8, 64], strides = [1, 1]} : vector<8x128xf32> to vector<8x64xf32>
    %1354 = vector.extract_strided_slice %1337 {offsets = [0, 128], sizes = [8, 64], strides = [1, 1]} : vector<8x192xf32> to vector<8x64xf32>
    %1355 = vector.extract_strided_slice %1343 {offsets = [0, 128], sizes = [8, 64], strides = [1, 1]} : vector<8x192xf32> to vector<8x64xf32>
    %1356 = arith.mulf %1352, %1355 : vector<8x64xf32>
    %1357 = arith.addf %1354, %1356 : vector<8x64xf32>
    %1358 = math.tanh %1357 : vector<8x64xf32>
    %cst_573 = arith.constant 1.000000e+00 : f32
    %1359 = vector.broadcast %cst_573 : f32 to vector<8x64xf32>
    %1360 = arith.subf %1359, %1353 : vector<8x64xf32>
    %1361 = arith.mulf %1360, %1358 : vector<8x64xf32>
    %1362 = arith.mulf %1353, %1244 : vector<8x64xf32>
    %1363 = arith.addf %1361, %1362 : vector<8x64xf32>
    %c1_i32_574 = arith.constant 1 : i32
    %1364 = arith.addi %c7_i32, %c1_i32_574 : i32
    %1365 = arith.index_cast %1364 : i32 to index
    %c0_575 = arith.constant 0 : index
    %c0_576 = arith.constant 0 : index
    %1366 = vector.load %arg32[%1365, %c0_575, %c0_576] : memref<9x8x64xf32, #tpu.memory_space<vmem>>, vector<1x8x64xf32>
    %1367 = vector.shape_cast %1366 : vector<1x8x64xf32> to vector<8x64xf32>
    %1368 = vector.shape_cast %1363 : vector<8x64xf32> to vector<1x8x64xf32>
    tpu.vector_store %arg32[%1365, %c0_575, %c0_576], %1368 {strides = array<i32>} : memref<9x8x64xf32, #tpu.memory_space<vmem>>, vector<1x8x64xf32>,
    %c8_i32 = arith.constant 8 : i32
    %c0_577 = arith.constant 0 : index
    %c0_578 = arith.constant 0 : index
    %c0_579 = arith.constant 0 : index
    %1369 = vector.load %arg32[%c0_577, %c0_578, %c0_579] : memref<9x8x64xf32, #tpu.memory_space<vmem>>, vector<9x8x64xf32>
    %1370 = vector.shape_cast %1369 : vector<9x8x64xf32> to vector<72x64xf32>
    %1371 = arith.truncf %1370 : vector<72x64xf32> to vector<72x64xbf16>
    %c0_580 = arith.constant 0 : index
    %c0_581 = arith.constant 0 : index
    %1372 = vector.load %arg29[%c0_580, %c0_581] : memref<64x14xbf16, #tpu.memory_space<vmem>>, vector<64x14xbf16>
    %cst_582 = arith.constant dense<0.000000e+00> : vector<72x14xf32>
    %1373 = tpu.matmul %1371, %1372, %cst_582 {dimension_numbers = #tpu.dot_dimension_numbers<[1], [0], [0], [1], [0, 0, 1, 1], [], []>} : vector<72x64xbf16>, vector<64x14xbf16>, vector<72x14xf32> -> vector<72x14xf32>
    %c0_583 = arith.constant 0 : index
    %c0_584 = arith.constant 0 : index
    %1374 = vector.load %arg30[%c0_583, %c0_584] : memref<1x14xf32, #tpu.memory_space<vmem>>, vector<1x14xf32>
    %1375 = vector.broadcast %1374 : vector<1x14xf32> to vector<72x14xf32>
    %1376 = arith.addf %1373, %1375 : vector<72x14xf32>
    %1377 = vector.shape_cast %1376 : vector<72x14xf32> to vector<9x8x14xf32>
    %c0_585 = arith.constant 0 : index
    %c0_586 = arith.constant 0 : index
    %c0_587 = arith.constant 0 : index
    %1378 = vector.load %arg31[%c0_585, %c0_586, %c0_587] : memref<9x8x14xf32, #tpu.memory_space<vmem>>, vector<9x8x14xf32>
    tpu.vector_store %arg31[%c0_585, %c0_586, %c0_587], %1377 {strides = array<i32>} : memref<9x8x14xf32, #tpu.memory_space<vmem>>, vector<9x8x14xf32>,
    return
  }
  func.func @transform_0(%arg0: i32) -> (i32, i32, i32) {
    %c0_i32 = arith.constant 0 : i32
    %c0_i32_0 = arith.constant 0 : i32
    %c0_i32_1 = arith.constant 0 : i32
    return %c0_i32, %arg0, %c0_i32_0 : i32, i32, i32
  }
  func.func @transform_1(%arg0: i32) -> (i32, i32) {
    %c0_i32 = arith.constant 0 : i32
    %c0_i32_0 = arith.constant 0 : i32
    return %arg0, %c0_i32 : i32, i32
  }
  func.func @transform_2(%arg0: i32) -> (i32, i32) {
    %c0_i32 = arith.constant 0 : i32
    %c0_i32_0 = arith.constant 0 : i32
    %c0_i32_1 = arith.constant 0 : i32
    return %c0_i32, %c0_i32_0 : i32, i32
  }
  func.func @transform_3(%arg0: i32) -> (i32, i32) {
    %c0_i32 = arith.constant 0 : i32
    %c0_i32_0 = arith.constant 0 : i32
    %c0_i32_1 = arith.constant 0 : i32
    return %c0_i32, %c0_i32_0 : i32, i32
  }
  func.func @transform_4(%arg0: i32) -> (i32, i32) {
    %c0_i32 = arith.constant 0 : i32
    %c0_i32_0 = arith.constant 0 : i32
    %c0_i32_1 = arith.constant 0 : i32
    return %c0_i32, %c0_i32_0 : i32, i32
  }
  func.func @transform_5(%arg0: i32) -> (i32, i32) {
    %c0_i32 = arith.constant 0 : i32
    %c0_i32_0 = arith.constant 0 : i32
    %c0_i32_1 = arith.constant 0 : i32
    return %c0_i32, %c0_i32_0 : i32, i32
  }
  func.func @transform_6(%arg0: i32) -> (i32, i32) {
    %c0_i32 = arith.constant 0 : i32
    %c0_i32_0 = arith.constant 0 : i32
    %c0_i32_1 = arith.constant 0 : i32
    return %c0_i32, %c0_i32_0 : i32, i32
  }
  func.func @transform_7(%arg0: i32) -> (i32, i32) {
    %c0_i32 = arith.constant 0 : i32
    %c0_i32_0 = arith.constant 0 : i32
    %c0_i32_1 = arith.constant 0 : i32
    return %c0_i32, %c0_i32_0 : i32, i32
  }
  func.func @transform_8(%arg0: i32) -> (i32, i32) {
    %c0_i32 = arith.constant 0 : i32
    %c0_i32_0 = arith.constant 0 : i32
    %c0_i32_1 = arith.constant 0 : i32
    return %c0_i32, %c0_i32_0 : i32, i32
  }
  func.func @transform_9(%arg0: i32) -> (i32, i32) {
    %c0_i32 = arith.constant 0 : i32
    %c0_i32_0 = arith.constant 0 : i32
    %c0_i32_1 = arith.constant 0 : i32
    return %c0_i32, %c0_i32_0 : i32, i32
  }
  func.func @transform_10(%arg0: i32) -> (i32, i32) {
    %c0_i32 = arith.constant 0 : i32
    %c0_i32_0 = arith.constant 0 : i32
    %c0_i32_1 = arith.constant 0 : i32
    return %c0_i32, %c0_i32_0 : i32, i32
  }
  func.func @transform_11(%arg0: i32) -> (i32, i32) {
    %c0_i32 = arith.constant 0 : i32
    %c0_i32_0 = arith.constant 0 : i32
    %c0_i32_1 = arith.constant 0 : i32
    return %c0_i32, %c0_i32_0 : i32, i32
  }
  func.func @transform_12(%arg0: i32) -> (i32, i32) {
    %c0_i32 = arith.constant 0 : i32
    %c0_i32_0 = arith.constant 0 : i32
    %c0_i32_1 = arith.constant 0 : i32
    return %c0_i32, %c0_i32_0 : i32, i32
  }
  func.func @transform_13(%arg0: i32) -> (i32, i32) {
    %c0_i32 = arith.constant 0 : i32
    %c0_i32_0 = arith.constant 0 : i32
    %c0_i32_1 = arith.constant 0 : i32
    return %c0_i32, %c0_i32_0 : i32, i32
  }
  func.func @transform_14(%arg0: i32) -> (i32, i32) {
    %c0_i32 = arith.constant 0 : i32
    %c0_i32_0 = arith.constant 0 : i32
    %c0_i32_1 = arith.constant 0 : i32
    return %c0_i32, %c0_i32_0 : i32, i32
  }
  func.func @transform_15(%arg0: i32) -> (i32, i32) {
    %c0_i32 = arith.constant 0 : i32
    %c0_i32_0 = arith.constant 0 : i32
    %c0_i32_1 = arith.constant 0 : i32
    return %c0_i32, %c0_i32_0 : i32, i32
  }
  func.func @transform_16(%arg0: i32) -> (i32, i32) {
    %c0_i32 = arith.constant 0 : i32
    %c0_i32_0 = arith.constant 0 : i32
    %c0_i32_1 = arith.constant 0 : i32
    return %c0_i32, %c0_i32_0 : i32, i32
  }
  func.func @transform_17(%arg0: i32) -> (i32, i32) {
    %c0_i32 = arith.constant 0 : i32
    %c0_i32_0 = arith.constant 0 : i32
    %c0_i32_1 = arith.constant 0 : i32
    return %c0_i32, %c0_i32_0 : i32, i32
  }
  func.func @transform_18(%arg0: i32) -> (i32, i32) {
    %c0_i32 = arith.constant 0 : i32
    %c0_i32_0 = arith.constant 0 : i32
    %c0_i32_1 = arith.constant 0 : i32
    return %c0_i32, %c0_i32_0 : i32, i32
  }
  func.func @transform_19(%arg0: i32) -> (i32, i32) {
    %c0_i32 = arith.constant 0 : i32
    %c0_i32_0 = arith.constant 0 : i32
    %c0_i32_1 = arith.constant 0 : i32
    return %c0_i32, %c0_i32_0 : i32, i32
  }
  func.func @transform_20(%arg0: i32) -> (i32, i32) {
    %c0_i32 = arith.constant 0 : i32
    %c0_i32_0 = arith.constant 0 : i32
    %c0_i32_1 = arith.constant 0 : i32
    return %c0_i32, %c0_i32_0 : i32, i32
  }
  func.func @transform_21(%arg0: i32) -> (i32, i32) {
    %c0_i32 = arith.constant 0 : i32
    %c0_i32_0 = arith.constant 0 : i32
    %c0_i32_1 = arith.constant 0 : i32
    return %c0_i32, %c0_i32_0 : i32, i32
  }
  func.func @transform_22(%arg0: i32) -> (i32, i32) {
    %c0_i32 = arith.constant 0 : i32
    %c0_i32_0 = arith.constant 0 : i32
    %c0_i32_1 = arith.constant 0 : i32
    return %c0_i32, %c0_i32_0 : i32, i32
  }
  func.func @transform_23(%arg0: i32) -> (i32, i32) {
    %c0_i32 = arith.constant 0 : i32
    %c0_i32_0 = arith.constant 0 : i32
    %c0_i32_1 = arith.constant 0 : i32
    return %c0_i32, %c0_i32_0 : i32, i32
  }
  func.func @transform_24(%arg0: i32) -> (i32, i32) {
    %c0_i32 = arith.constant 0 : i32
    %c0_i32_0 = arith.constant 0 : i32
    %c0_i32_1 = arith.constant 0 : i32
    return %c0_i32, %c0_i32_0 : i32, i32
  }
  func.func @transform_25(%arg0: i32) -> (i32, i32) {
    %c0_i32 = arith.constant 0 : i32
    %c0_i32_0 = arith.constant 0 : i32
    %c0_i32_1 = arith.constant 0 : i32
    return %c0_i32, %c0_i32_0 : i32, i32
  }
  func.func @transform_26(%arg0: i32) -> (i32, i32) {
    %c0_i32 = arith.constant 0 : i32
    %c0_i32_0 = arith.constant 0 : i32
    %c0_i32_1 = arith.constant 0 : i32
    return %c0_i32, %c0_i32_0 : i32, i32
  }
  func.func @transform_27(%arg0: i32) -> (i32, i32) {
    %c0_i32 = arith.constant 0 : i32
    %c0_i32_0 = arith.constant 0 : i32
    %c0_i32_1 = arith.constant 0 : i32
    return %c0_i32, %c0_i32_0 : i32, i32
  }
  func.func @transform_28(%arg0: i32) -> (i32, i32) {
    %c0_i32 = arith.constant 0 : i32
    %c0_i32_0 = arith.constant 0 : i32
    %c0_i32_1 = arith.constant 0 : i32
    return %c0_i32, %c0_i32_0 : i32, i32
  }
  func.func @transform_29(%arg0: i32) -> (i32, i32) {
    %c0_i32 = arith.constant 0 : i32
    %c0_i32_0 = arith.constant 0 : i32
    %c0_i32_1 = arith.constant 0 : i32
    return %c0_i32, %c0_i32_0 : i32, i32
  }
  func.func @transform_30(%arg0: i32) -> (i32, i32, i32) {
    %c0_i32 = arith.constant 0 : i32
    %c0_i32_0 = arith.constant 0 : i32
    %c0_i32_1 = arith.constant 0 : i32
    return %c0_i32, %arg0, %c0_i32_0 : i32, i32, i32
  }
}

</mosaic_0001>

<llo_original>
// kernel: cody_forward.2
$region0: #{cody_forward.2}
  #allocation0 [shape = 'u32[]', space=smem, size = 0x4, offset = 0x4, fixed_abs, tag = 'smem constant byte address 0x4 - core index']
  #allocation1 [shape = 'u32[144,128]{1,0:T(1,128)}', space=vmem, size = 0x12000, scoped, tag = 'internal scratch']
  %s0 = inlined_call_operand.vmem [shape: f32[48,14], index: 0, kind: input, shape index: {}]
  %s1 = inlined_call_operand.vmem [shape: bf16[14,32], index: 1, kind: input, shape index: {}]
  %s2 = inlined_call_operand.vmem [shape: bf16[32,32], index: 2, kind: input, shape index: {}]
  %s3 = inlined_call_operand.vmem [shape: bf16[32,128], index: 3, kind: input, shape index: {}]
  %s4 = inlined_call_operand.vmem [shape: f32[1,32], index: 4, kind: input, shape index: {}]
  %s5 = inlined_call_operand.vmem [shape: f32[1,32], index: 5, kind: input, shape index: {}]
  %s6 = inlined_call_operand.vmem [shape: f32[1,128], index: 6, kind: input, shape index: {}]
  %s7 = inlined_call_operand.vmem [shape: f32[48,128], index: 7, kind: output, shape index: {}]
  %s8 = sld [smem:[#allocation0]]
  $region38: #{cody_forward.2} parent=0
    _
  %s10 = ssub.s32 1, %s8
  %s11 = scalar_select 0, %s10, %s8
  // Predicated region
  $region2: #{cody_forward.2} parent=0 // pred_check
    _
  $region3: #{cody_forward.2} parent=0 // pred_check_branch
    %13 = sbr.rel (0) target = $region5
  $region4: #{cody_forward.2} parent=0 // pred_region
    _
  $region5: #{cody_forward.2} parent=0 // pred_fallthru
    _
  // Predicated region
  $region6: #{cody_forward.2} parent=0 // pred_check
    _
  $region7: #{cody_forward.2} parent=0 // pred_check_branch
    %15 = sbr.rel (0) target = $region9
  $region8: #{cody_forward.2} parent=0 // pred_region
    _
  $region9: #{cody_forward.2} parent=0 // pred_fallthru
    _
  // Predicated region
  $region10: #{cody_forward.2} parent=0 // pred_check
    _
  $region11: #{cody_forward.2} parent=0 // pred_check_branch
    %17 = sbr.rel (0) target = $region13
  $region12: #{cody_forward.2} parent=0 // pred_region
    _
  $region13: #{cody_forward.2} parent=0 // pred_fallthru
    _
  // Predicated region
  $region14: #{cody_forward.2} parent=0 // pred_check
    _
  $region15: #{cody_forward.2} parent=0 // pred_check_branch
    %19 = sbr.rel (0) target = $region17
  $region16: #{cody_forward.2} parent=0 // pred_region
    _
  $region17: #{cody_forward.2} parent=0 // pred_fallthru
    _
  // Predicated region
  $region18: #{cody_forward.2} parent=0 // pred_check
    _
  $region19: #{cody_forward.2} parent=0 // pred_check_branch
    %21 = sbr.rel (0) target = $region21
  $region20: #{cody_forward.2} parent=0 // pred_region
    _
  $region21: #{cody_forward.2} parent=0 // pred_fallthru
    _
  // Predicated region
  $region22: #{cody_forward.2} parent=0 // pred_check
    _
  $region23: #{cody_forward.2} parent=0 // pred_check_branch
    %23 = sbr.rel (0) target = $region25
  $region24: #{cody_forward.2} parent=0 // pred_region
    _
  $region25: #{cody_forward.2} parent=0 // pred_fallthru
    _
  // Predicated region
  $region26: #{cody_forward.2} parent=0 // pred_check
    _
  $region27: #{cody_forward.2} parent=0 // pred_check_branch
    %25 = sbr.rel (0) target = $region29
  $region28: #{cody_forward.2} parent=0 // pred_region
    _
  $region29: #{cody_forward.2} parent=0 // pred_fallthru
    _
  %v27 = vld [vmem:[%s0] sm:$0xff]
  %v28 = vld [vmem:[%s0 + $0x8] sm:$0xff]
  %v29 = vld [vmem:[%s0 + $0x10] sm:$0xff]
  %v30 = vld [vmem:[%s0 + $0x18] sm:$0xff]
  %v31 = vld [vmem:[%s0 + $0x20] sm:$0xff]
  %v32 = vld [vmem:[%s0 + $0x28] sm:$0xff]
  %v33 = vpack.c.bf16 %v28, %v27
  %v34 = vpack.c.bf16 %v30, %v29
  %v35 = vpack.c.bf16 %v32, %v31
  %v36 = vld [vmem:[%s1] sm:$0xf]
  %v37 = vld [vmem:[%s1 + $0x4] sm:$0x7]
  %v38 = vld [vmem:[%s4] sm:$0x1]
  %v40 = vlaneseq
  %v41 = vshrl.u32 %v40, 7
  %v42 = vsub.s32 0, %v41
  %v43 = vrot.slane %v38, %v42
  %v47 = vunpack.c.l.b16 %v36
  %v48 = vunpack.c.l.b16 %v37
  %v49 = vpack.c.b16 %v48, %v47
  %vm50 = vcmask 113664
  %v52 = vsel %vm50, %v33, 0
  %v55 = vsel %vm50, %v34, 0
  %v58 = vsel %vm50, %v35, 0
  %vm60 = vcmask 1046528
  %v62 = vsel %vm60, %v49, 0
  %64 = vmatprep.subr.bf16.mxu0 0
  %65 = vmatpush1.bf16.msra.mxu0 %v62
  %66 = vmatprep.subr.bf16.mxu0 0
  %67 = vmatpush1.bf16.msra.mxu0 0
  %68 = vmatprep.subr.bf16.mxu0 0
  %69 = vmatpush1.bf16.msra.mxu0 0
  %70 = vmatprep.subr.bf16.mxu0 0
  %71 = vmatpush1.bf16.msra.mxu0 0
  %72 = vmatprep.subr.bf16.mxu0 0
  %73 = vmatpush1.bf16.msra.mxu0 0
  %74 = vmatprep.subr.bf16.mxu0 0
  %75 = vmatpush1.bf16.msra.mxu0 0
  %76 = vmatprep.subr.bf16.mxu0 0
  %77 = vmatpush1.bf16.msra.mxu0 0
  %78 = vmatprep.subr.bf16.mxu0 0
  %79 = vmatpush1.bf16.msra.mxu0 0
  %80 = vmatprep.subr.bf16.mxu0 0
  %81 = vmatpush1.bf16.msra.mxu0 0
  %82 = vmatprep.subr.bf16.mxu0 0
  %83 = vmatpush1.bf16.msra.mxu0 0
  %84 = vmatprep.subr.bf16.mxu0 0
  %85 = vmatpush1.bf16.msra.mxu0 0
  %86 = vmatprep.subr.bf16.mxu0 0
  %87 = vmatpush1.bf16.msra.mxu0 0
  %88 = vmatprep.subr.bf16.mxu0 0
  %89 = vmatpush1.bf16.msra.mxu0 0
  %90 = vmatprep.subr.bf16.mxu0 0
  %91 = vmatpush1.bf16.msra.mxu0 0
  %92 = vmatprep.subr.bf16.mxu0 0
  %93 = vmatpush1.bf16.msra.mxu0 0
  %94 = vmatprep.subr.bf16.mxu0 0
  %95 = vmatpush1.bf16.msra.mxu0 0
  %96 = vmatprep.mubr.bf16.mxu0 0
  %97 = vmatmul.mubr.bf16.gmra.mrb[0].mxu0 %v52
  %v98 = vpop.f32.mrb[0].mxu0
  %v99 = vadd.f32 %v43, %v98
  %v100 = vpop.f32.mrb[0].mxu0
  %v101 = vpop.f32.mrb[0].mxu0
  %v102 = vadd.f32 %v43, %v101
  %v103 = vpop.f32.mrb[0].mxu0
  %104 = vmatprep.mubr.bf16.mxu0 0
  %105 = vmatmul.mubr.bf16.gmra.mrb[0].mxu0 %v55
  %v106 = vpop.f32.mrb[0].mxu0
  %v107 = vadd.f32 %v43, %v106
  %v108 = vpop.f32.mrb[0].mxu0
  %v109 = vpop.f32.mrb[0].mxu0
  %v110 = vadd.f32 %v43, %v109
  %v111 = vpop.f32.mrb[0].mxu0
  %112 = vmatprep.mubr.bf16.mxu0 0
  %113 = vmatmul.mubr.bf16.gmra.mrb[0].mxu0 %v58
  %v114 = vpop.f32.mrb[0].mxu0
  %v115 = vadd.f32 %v43, %v114
  %v116 = vpop.f32.mrb[0].mxu0
  %v117 = vpop.f32.mrb[0].mxu0
  %v118 = vadd.f32 %v43, %v117
  %v119 = vpop.f32.mrb[0].mxu0
  %120 = vdwg.mxu0
  %v121 = vmax.f32 %v99, 0.0
  %v122 = vmax.f32 %v102, 0.0
  %v123 = vmax.f32 %v107, 0.0
  %v124 = vmax.f32 %v110, 0.0
  %v125 = vmax.f32 %v115, 0.0
  %v126 = vmax.f32 %v118, 0.0
  %v127 = vpack.c.bf16 %v122, %v121
  %v128 = vpack.c.bf16 %v124, %v123
  %v129 = vpack.c.bf16 %v126, %v125
  %v130 = vld [vmem:[%s2] sm:$0xf]
  %v131 = vld [vmem:[%s2 + $0x4] sm:$0xf]
  %v132 = vld [vmem:[%s2 + $0x8] sm:$0xf]
  %v133 = vld [vmem:[%s2 + $0xc] sm:$0xf]
  %v134 = vld [vmem:[%s5] sm:$0x1]
  %v136 = vlaneseq
  %v137 = vshrl.u32 %v136, 7
  %v138 = vsub.s32 0, %v137
  %v139 = vrot.slane %v134, %v138
  %v145 = vunpack.c.l.b16 %v130
  %v146 = vunpack.c.l.b16 %v131
  %v147 = vunpack.c.l.b16 %v132
  %v148 = vunpack.c.l.b16 %v133
  %v149 = vpack.c.b16 %v146, %v145
  %v150 = vpack.c.b16 %v148, %v147
  %vm153 = vcmask 261120
  %v155 = vsel %vm153, %v127, 0
  %v158 = vsel %vm153, %v128, 0
  %v161 = vsel %vm153, %v129, 0
  %163 = vmatprep.subr.bf16.mxu0 0
  %164 = vmatpush1.bf16.msra.mxu0 %v149
  %165 = vmatprep.subr.bf16.mxu0 0
  %166 = vmatpush1.bf16.msra.mxu0 %v150
  %167 = vmatprep.subr.bf16.mxu0 0
  %168 = vmatpush1.bf16.msra.mxu0 0
  %169 = vmatprep.subr.bf16.mxu0 0
  %170 = vmatpush1.bf16.msra.mxu0 0
  %171 = vmatprep.subr.bf16.mxu0 0
  %172 = vmatpush1.bf16.msra.mxu0 0
  %173 = vmatprep.subr.bf16.mxu0 0
  %174 = vmatpush1.bf16.msra.mxu0 0
  %175 = vmatprep.subr.bf16.mxu0 0
  %176 = vmatpush1.bf16.msra.mxu0 0
  %177 = vmatprep.subr.bf16.mxu0 0
  %178 = vmatpush1.bf16.msra.mxu0 0
  %179 = vmatprep.subr.bf16.mxu0 0
  %180 = vmatpush1.bf16.msra.mxu0 0
  %181 = vmatprep.subr.bf16.mxu0 0
  %182 = vmatpush1.bf16.msra.mxu0 0
  %183 = vmatprep.subr.bf16.mxu0 0
  %184 = vmatpush1.bf16.msra.mxu0 0
  %185 = vmatprep.subr.bf16.mxu0 0
  %186 = vmatpush1.bf16.msra.mxu0 0
  %187 = vmatprep.subr.bf16.mxu0 0
  %188 = vmatpush1.bf16.msra.mxu0 0
  %189 = vmatprep.subr.bf16.mxu0 0
  %190 = vmatpush1.bf16.msra.mxu0 0
  %191 = vmatprep.subr.bf16.mxu0 0
  %192 = vmatpush1.bf16.msra.mxu0 0
  %193 = vmatprep.subr.bf16.mxu0 0
  %194 = vmatpush1.bf16.msra.mxu0 0
  %195 = vmatprep.mubr.bf16.mxu0 0
  %196 = vmatmul.mubr.bf16.gmra.mrb[0].mxu0 %v155
  %v197 = vpop.f32.mrb[0].mxu0
  %v198 = vadd.f32 %v139, %v197
  %v199 = vpop.f32.mrb[0].mxu0
  %v200 = vpop.f32.mrb[0].mxu0
  %v201 = vadd.f32 %v139, %v200
  %v202 = vpop.f32.mrb[0].mxu0
  %203 = vmatprep.mubr.bf16.mxu0 0
  %204 = vmatmul.mubr.bf16.gmra.mrb[0].mxu0 %v158
  %v205 = vpop.f32.mrb[0].mxu0
  %v206 = vadd.f32 %v139, %v205
  %v207 = vpop.f32.mrb[0].mxu0
  %v208 = vpop.f32.mrb[0].mxu0
  %v209 = vadd.f32 %v139, %v208
  %v210 = vpop.f32.mrb[0].mxu0
  %211 = vmatprep.mubr.bf16.mxu0 0
  %212 = vmatmul.mubr.bf16.gmra.mrb[0].mxu0 %v161
  %v213 = vpop.f32.mrb[0].mxu0
  %v214 = vadd.f32 %v139, %v213
  %v215 = vpop.f32.mrb[0].mxu0
  %v216 = vpop.f32.mrb[0].mxu0
  %v217 = vadd.f32 %v139, %v216
  %v218 = vpop.f32.mrb[0].mxu0
  %219 = vdwg.mxu0
  %v220 = vmax.f32 %v198, 0.0
  %v221 = vmax.f32 %v201, 0.0
  %v222 = vmax.f32 %v206, 0.0
  %v223 = vmax.f32 %v209, 0.0
  %v224 = vmax.f32 %v214, 0.0
  %v225 = vmax.f32 %v217, 0.0
  %v226 = vpack.c.bf16 %v221, %v220
  %v227 = vpack.c.bf16 %v223, %v222
  %v228 = vpack.c.bf16 %v225, %v224
  %v229 = vld [vmem:[%s3] sm:$0xf]
  %v230 = vld [vmem:[%s3 + $0x4] sm:$0xf]
  %v231 = vld [vmem:[%s3 + $0x8] sm:$0xf]
  %v232 = vld [vmem:[%s3 + $0xc] sm:$0xf]
  %v233 = vld [vmem:[%s6] sm:$0x1]
  %v235 = vlaneseq
  %v236 = vshrl.u32 %v235, 7
  %v237 = vsub.s32 0, %v236
  %v238 = vrot.slane %v233, %v237
  %v244 = vunpack.c.l.b16 %v229
  %v245 = vunpack.c.l.b16 %v230
  %v246 = vunpack.c.l.b16 %v231
  %v247 = vunpack.c.l.b16 %v232
  %v248 = vpack.c.b16 %v245, %v244
  %v249 = vpack.c.b16 %v247, %v246
  %v253 = vsel %vm153, %v226, 0
  %v256 = vsel %vm153, %v227, 0
  %v259 = vsel %vm153, %v228, 0
  %261 = vmatprep.subr.bf16.mxu0 0
  %262 = vmatpush1.bf16.msra.mxu0 %v248
  %263 = vmatprep.subr.bf16.mxu0 0
  %264 = vmatpush1.bf16.msra.mxu0 %v249
  %265 = vmatprep.subr.bf16.mxu0 0
  %266 = vmatpush1.bf16.msra.mxu0 0
  %267 = vmatprep.subr.bf16.mxu0 0
  %268 = vmatpush1.bf16.msra.mxu0 0
  %269 = vmatprep.subr.bf16.mxu0 0
  %270 = vmatpush1.bf16.msra.mxu0 0
  %271 = vmatprep.subr.bf16.mxu0 0
  %272 = vmatpush1.bf16.msra.mxu0 0
  %273 = vmatprep.subr.bf16.mxu0 0
  %274 = vmatpush1.bf16.msra.mxu0 0
  %275 = vmatprep.subr.bf16.mxu0 0
  %276 = vmatpush1.bf16.msra.mxu0 0
  %277 = vmatprep.subr.bf16.mxu0 0
  %278 = vmatpush1.bf16.msra.mxu0 0
  %279 = vmatprep.subr.bf16.mxu0 0
  %280 = vmatpush1.bf16.msra.mxu0 0
  %281 = vmatprep.subr.bf16.mxu0 0
  %282 = vmatpush1.bf16.msra.mxu0 0
  %283 = vmatprep.subr.bf16.mxu0 0
  %284 = vmatpush1.bf16.msra.mxu0 0
  %285 = vmatprep.subr.bf16.mxu0 0
  %286 = vmatpush1.bf16.msra.mxu0 0
  %287 = vmatprep.subr.bf16.mxu0 0
  %288 = vmatpush1.bf16.msra.mxu0 0
  %289 = vmatprep.subr.bf16.mxu0 0
  %290 = vmatpush1.bf16.msra.mxu0 0
  %291 = vmatprep.subr.bf16.mxu0 0
  %292 = vmatpush1.bf16.msra.mxu0 0
  %293 = vmatprep.mubr.bf16.mxu0 0
  %294 = vmatmul.mubr.bf16.gmra.mrb[0].mxu0 %v253
  %v295 = vpop.f32.mrb[0].mxu0
  %v296 = vadd.f32 %v238, %v295
  %v297 = vpop.f32.mrb[0].mxu0
  %v298 = vpop.f32.mrb[0].mxu0
  %v299 = vadd.f32 %v238, %v298
  %v300 = vpop.f32.mrb[0].mxu0
  %301 = vmatprep.mubr.bf16.mxu0 0
  %302 = vmatmul.mubr.bf16.gmra.mrb[0].mxu0 %v256
  %v303 = vpop.f32.mrb[0].mxu0
  %v304 = vadd.f32 %v238, %v303
  %v305 = vpop.f32.mrb[0].mxu0
  %v306 = vpop.f32.mrb[0].mxu0
  %v307 = vadd.f32 %v238, %v306
  %v308 = vpop.f32.mrb[0].mxu0
  %309 = vmatprep.mubr.bf16.mxu0 0
  %310 = vmatmul.mubr.bf16.gmra.mrb[0].mxu0 %v259
  %v311 = vpop.f32.mrb[0].mxu0
  %v312 = vadd.f32 %v238, %v311
  %v313 = vpop.f32.mrb[0].mxu0
  %v314 = vpop.f32.mrb[0].mxu0
  %v315 = vadd.f32 %v238, %v314
  %v316 = vpop.f32.mrb[0].mxu0
  %317 = vdwg.mxu0
  %318 = vst [vmem:[%s7] sm:$0xff] %v296
  %319 = vst [vmem:[%s7 + $0x8] sm:$0xff] %v299
  %320 = vst [vmem:[%s7 + $0x10] sm:$0xff] %v304
  %321 = vst [vmem:[%s7 + $0x18] sm:$0xff] %v307
  %322 = vst [vmem:[%s7 + $0x20] sm:$0xff] %v312
  %323 = vst [vmem:[%s7 + $0x28] sm:$0xff] %v315
  // Predicated region
  $region30: #{cody_forward.2} parent=0 // pred_check
    _
  $region31: #{cody_forward.2} parent=0 // pred_check_branch
    %325 = sbr.rel (0) target = $region33
  $region32: #{cody_forward.2} parent=0 // pred_region
    _
  $region33: #{cody_forward.2} parent=0 // pred_fallthru
    _
  // Predicated region
  $region34: #{cody_forward.2} parent=0 // pred_check
    _
  $region35: #{cody_forward.2} parent=0 // pred_check_branch
    %327 = sbr.rel (0) target = $region37
  $region36: #{cody_forward.2} parent=0 // pred_region
    _
  $region37: #{cody_forward.2} parent=0 // pred_fallthru
    _

// kernel: cody_forward.3
$region0: #{cody_forward.3}
  #allocation0 [shape = 'u32[]', space=smem, size = 0x4, offset = 0x4, fixed_abs, tag = 'smem constant byte address 0x4 - core index']
  #allocation1 [shape = 'u32[144,128]{1,0:T(1,128)}', space=vmem, size = 0x12000, scoped, tag = 'internal scratch']
  #allocation2 [shape = 'f32[9,8,64]{2,1,0:T(8,128)}', space=vmem, size = 0x9000, scoped, tag = 'scratch operand']
  %s0 = inlined_call_operand.smem [shape: u32[31], index: -1, kind: input, shape index: {}]
  %s1 = sld [smem:[%s0]]
  %s2 = scalar_lea.smem %s0, 1
  %s3 = sld [smem:[%s2]]
  %s4 = scalar_lea.smem %s0, 2
  %s5 = sld [smem:[%s4]]
  %s6 = scalar_lea.smem %s0, 3
  %s7 = sld [smem:[%s6]]
  %s8 = scalar_lea.smem %s0, 4
  %s9 = sld [smem:[%s8]]
  %s10 = scalar_lea.smem %s0, 5
  %s11 = sld [smem:[%s10]]
  %s12 = scalar_lea.smem %s0, 6
  %s13 = sld [smem:[%s12]]
  %s14 = scalar_lea.smem %s0, 7
  %s15 = sld [smem:[%s14]]
  %s16 = scalar_lea.smem %s0, 8
  %s17 = sld [smem:[%s16]]
  %s18 = scalar_lea.smem %s0, 9
  %s19 = sld [smem:[%s18]]
  %s20 = scalar_lea.smem %s0, 10
  %s21 = sld [smem:[%s20]]
  %s22 = scalar_lea.smem %s0, 11
  %s23 = sld [smem:[%s22]]
  %s24 = scalar_lea.smem %s0, 12
  %s25 = sld [smem:[%s24]]
  %s26 = scalar_lea.smem %s0, 13
  %s27 = sld [smem:[%s26]]
  %s28 = scalar_lea.smem %s0, 14
  %s29 = sld [smem:[%s28]]
  %s30 = scalar_lea.smem %s0, 15
  %s31 = sld [smem:[%s30]]
  %s32 = scalar_lea.smem %s0, 16
  %s33 = sld [smem:[%s32]]
  %s34 = scalar_lea.smem %s0, 17
  %s35 = sld [smem:[%s34]]
  %s36 = scalar_lea.smem %s0, 18
  %s37 = sld [smem:[%s36]]
  %s38 = scalar_lea.smem %s0, 19
  %s39 = sld [smem:[%s38]]
  %s40 = scalar_lea.smem %s0, 20
  %s41 = sld [smem:[%s40]]
  %s42 = scalar_lea.smem %s0, 21
  %s43 = sld [smem:[%s42]]
  %s44 = scalar_lea.smem %s0, 22
  %s45 = sld [smem:[%s44]]
  %s46 = scalar_lea.smem %s0, 23
  %s47 = sld [smem:[%s46]]
  %s48 = scalar_lea.smem %s0, 24
  %s49 = sld [smem:[%s48]]
  %s50 = scalar_lea.smem %s0, 25
  %s51 = sld [smem:[%s50]]
  %s52 = scalar_lea.smem %s0, 26
  %s53 = sld [smem:[%s52]]
  %s54 = scalar_lea.smem %s0, 27
  %s55 = sld [smem:[%s54]]
  %s56 = scalar_lea.smem %s0, 28
  %s57 = sld [smem:[%s56]]
  %s58 = scalar_lea.smem %s0, 29
  %s59 = sld [smem:[%s58]]
  %s60 = scalar_lea.smem %s0, 30
  %s61 = sld [smem:[%s60]]
  %s62 = sld [smem:[#allocation0]]
  $region130: #{cody_forward.3} parent=0
    _
  %s64 = ssub.s32 1, %s62
  %s65 = scalar_select 0, %s64, %s62
  // Predicated region
  $region2: #{cody_forward.3} parent=0 // pred_check
    _
  $region3: #{cody_forward.3} parent=0 // pred_check_branch
    %67 = sbr.rel (0) target = $region5
  $region4: #{cody_forward.3} parent=0 // pred_region
    _
  $region5: #{cody_forward.3} parent=0 // pred_fallthru
    _
  // Predicated region
  $region6: #{cody_forward.3} parent=0 // pred_check
    _
  $region7: #{cody_forward.3} parent=0 // pred_check_branch
    %69 = sbr.rel (0) target = $region9
  $region8: #{cody_forward.3} parent=0 // pred_region
    _
  $region9: #{cody_forward.3} parent=0 // pred_fallthru
    _
  // Predicated region
  $region10: #{cody_forward.3} parent=0 // pred_check
    _
  $region11: #{cody_forward.3} parent=0 // pred_check_branch
    %71 = sbr.rel (0) target = $region13
  $region12: #{cody_forward.3} parent=0 // pred_region
    _
  $region13: #{cody_forward.3} parent=0 // pred_fallthru
    _
  // Predicated region
  $region14: #{cody_forward.3} parent=0 // pred_check
    _
  $region15: #{cody_forward.3} parent=0 // pred_check_branch
    %73 = sbr.rel (0) target = $region17
  $region16: #{cody_forward.3} parent=0 // pred_region
    _
  $region17: #{cody_forward.3} parent=0 // pred_fallthru
    _
  // Predicated region
  $region18: #{cody_forward.3} parent=0 // pred_check
    _
  $region19: #{cody_forward.3} parent=0 // pred_check_branch
    %75 = sbr.rel (0) target = $region21
  $region20: #{cody_forward.3} parent=0 // pred_region
    _
  $region21: #{cody_forward.3} parent=0 // pred_fallthru
    _
  // Predicated region
  $region22: #{cody_forward.3} parent=0 // pred_check
    _
  $region23: #{cody_forward.3} parent=0 // pred_check_branch
    %77 = sbr.rel (0) target = $region25
  $region24: #{cody_forward.3} parent=0 // pred_region
    _
  $region25: #{cody_forward.3} parent=0 // pred_fallthru
    _
  // Predicated region
  $region26: #{cody_forward.3} parent=0 // pred_check
    _
  $region27: #{cody_forward.3} parent=0 // pred_check_branch
    %79 = sbr.rel (0) target = $region29
  $region28: #{cody_forward.3} parent=0 // pred_region
    _
  $region29: #{cody_forward.3} parent=0 // pred_fallthru
    _
  // Predicated region
  $region30: #{cody_forward.3} parent=0 // pred_check
    _
  $region31: #{cody_forward.3} parent=0 // pred_check_branch
    %81 = sbr.rel (0) target = $region33
  $region32: #{cody_forward.3} parent=0 // pred_region
    _
  $region33: #{cody_forward.3} parent=0 // pred_fallthru
    _
  // Predicated region
  $region34: #{cody_forward.3} parent=0 // pred_check
    _
  $region35: #{cody_forward.3} parent=0 // pred_check_branch
    %83 = sbr.rel (0) target = $region37
  $region36: #{cody_forward.3} parent=0 // pred_region
    _
  $region37: #{cody_forward.3} parent=0 // pred_fallthru
    _
  // Predicated region
  $region38: #{cody_forward.3} parent=0 // pred_check
    _
  $region39: #{cody_forward.3} parent=0 // pred_check_branch
    %85 = sbr.rel (0) target = $region41
  $region40: #{cody_forward.3} parent=0 // pred_region
    _
  $region41: #{cody_forward.3} parent=0 // pred_fallthru
    _
  // Predicated region
  $region42: #{cody_forward.3} parent=0 // pred_check
    _
  $region43: #{cody_forward.3} parent=0 // pred_check_branch
    %87 = sbr.rel (0) target = $region45
  $region44: #{cody_forward.3} parent=0 // pred_region
    _
  $region45: #{cody_forward.3} parent=0 // pred_fallthru
    _
  // Predicated region
  $region46: #{cody_forward.3} parent=0 // pred_check
    _
  $region47: #{cody_forward.3} parent=0 // pred_check_branch
    %89 = sbr.rel (0) target = $region49
  $region48: #{cody_forward.3} parent=0 // pred_region
    _
  $region49: #{cody_forward.3} parent=0 // pred_fallthru
    _
  // Predicated region
  $region50: #{cody_forward.3} parent=0 // pred_check
    _
  $region51: #{cody_forward.3} parent=0 // pred_check_branch
    %91 = sbr.rel (0) target = $region53
  $region52: #{cody_forward.3} parent=0 // pred_region
    _
  $region53: #{cody_forward.3} parent=0 // pred_fallthru
    _
  // Predicated region
  $region54: #{cody_forward.3} parent=0 // pred_check
    _
  $region55: #{cody_forward.3} parent=0 // pred_check_branch
    %93 = sbr.rel (0) target = $region57
  $region56: #{cody_forward.3} parent=0 // pred_region
    _
  $region57: #{cody_forward.3} parent=0 // pred_fallthru
    _
  // Predicated region
  $region58: #{cody_forward.3} parent=0 // pred_check
    _
  $region59: #{cody_forward.3} parent=0 // pred_check_branch
    %95 = sbr.rel (0) target = $region61
  $region60: #{cody_forward.3} parent=0 // pred_region
    _
  $region61: #{cody_forward.3} parent=0 // pred_fallthru
    _
  // Predicated region
  $region62: #{cody_forward.3} parent=0 // pred_check
    _
  $region63: #{cody_forward.3} parent=0 // pred_check_branch
    %97 = sbr.rel (0) target = $region65
  $region64: #{cody_forward.3} parent=0 // pred_region
    _
  $region65: #{cody_forward.3} parent=0 // pred_fallthru
    _
  // Predicated region
  $region66: #{cody_forward.3} parent=0 // pred_check
    _
  $region67: #{cody_forward.3} parent=0 // pred_check_branch
    %99 = sbr.rel (0) target = $region69
  $region68: #{cody_forward.3} parent=0 // pred_region
    _
  $region69: #{cody_forward.3} parent=0 // pred_fallthru
    _
  // Predicated region
  $region70: #{cody_forward.3} parent=0 // pred_check
    _
  $region71: #{cody_forward.3} parent=0 // pred_check_branch
    %101 = sbr.rel (0) target = $region73
  $region72: #{cody_forward.3} parent=0 // pred_region
    _
  $region73: #{cody_forward.3} parent=0 // pred_fallthru
    _
  // Predicated region
  $region74: #{cody_forward.3} parent=0 // pred_check
    _
  $region75: #{cody_forward.3} parent=0 // pred_check_branch
    %103 = sbr.rel (0) target = $region77
  $region76: #{cody_forward.3} parent=0 // pred_region
    _
  $region77: #{cody_forward.3} parent=0 // pred_fallthru
    _
  // Predicated region
  $region78: #{cody_forward.3} parent=0 // pred_check
    _
  $region79: #{cody_forward.3} parent=0 // pred_check_branch
    %105 = sbr.rel (0) target = $region81
  $region80: #{cody_forward.3} parent=0 // pred_region
    _
  $region81: #{cody_forward.3} parent=0 // pred_fallthru
    _
  // Predicated region
  $region82: #{cody_forward.3} parent=0 // pred_check
    _
  $region83: #{cody_forward.3} parent=0 // pred_check_branch
    %107 = sbr.rel (0) target = $region85
  $region84: #{cody_forward.3} parent=0 // pred_region
    _
  $region85: #{cody_forward.3} parent=0 // pred_fallthru
    _
  // Predicated region
  $region86: #{cody_forward.3} parent=0 // pred_check
    _
  $region87: #{cody_forward.3} parent=0 // pred_check_branch
    %109 = sbr.rel (0) target = $region89
  $region88: #{cody_forward.3} parent=0 // pred_region
    _
  $region89: #{cody_forward.3} parent=0 // pred_fallthru
    _
  // Predicated region
  $region90: #{cody_forward.3} parent=0 // pred_check
    _
  $region91: #{cody_forward.3} parent=0 // pred_check_branch
    %111 = sbr.rel (0) target = $region93
  $region92: #{cody_forward.3} parent=0 // pred_region
    _
  $region93: #{cody_forward.3} parent=0 // pred_fallthru
    _
  // Predicated region
  $region94: #{cody_forward.3} parent=0 // pred_check
    _
  $region95: #{cody_forward.3} parent=0 // pred_check_branch
    %113 = sbr.rel (0) target = $region97
  $region96: #{cody_forward.3} parent=0 // pred_region
    _
  $region97: #{cody_forward.3} parent=0 // pred_fallthru
    _
  // Predicated region
  $region98: #{cody_forward.3} parent=0 // pred_check
    _
  $region99: #{cody_forward.3} parent=0 // pred_check_branch
    %115 = sbr.rel (0) target = $region101
  $region100: #{cody_forward.3} parent=0 // pred_region
    _
  $region101: #{cody_forward.3} parent=0 // pred_fallthru
    _
  // Predicated region
  $region102: #{cody_forward.3} parent=0 // pred_check
    _
  $region103: #{cody_forward.3} parent=0 // pred_check_branch
    %117 = sbr.rel (0) target = $region105
  $region104: #{cody_forward.3} parent=0 // pred_region
    _
  $region105: #{cody_forward.3} parent=0 // pred_fallthru
    _
  // Predicated region
  $region106: #{cody_forward.3} parent=0 // pred_check
    _
  $region107: #{cody_forward.3} parent=0 // pred_check_branch
    %119 = sbr.rel (0) target = $region109
  $region108: #{cody_forward.3} parent=0 // pred_region
    _
  $region109: #{cody_forward.3} parent=0 // pred_fallthru
    _
  // Predicated region
  $region110: #{cody_forward.3} parent=0 // pred_check
    _
  $region111: #{cody_forward.3} parent=0 // pred_check_branch
    %121 = sbr.rel (0) target = $region113
  $region112: #{cody_forward.3} parent=0 // pred_region
    _
  $region113: #{cody_forward.3} parent=0 // pred_fallthru
    _
  // Predicated region
  $region114: #{cody_forward.3} parent=0 // pred_check
    _
  $region115: #{cody_forward.3} parent=0 // pred_check_branch
    %123 = sbr.rel (0) target = $region117
  $region116: #{cody_forward.3} parent=0 // pred_region
    _
  $region117: #{cody_forward.3} parent=0 // pred_fallthru
    _
  // Predicated region
  $region118: #{cody_forward.3} parent=0 // pred_check
    _
  $region119: #{cody_forward.3} parent=0 // pred_check_branch
    %125 = sbr.rel (0) target = $region121
  $region120: #{cody_forward.3} parent=0 // pred_region
    _
  $region121: #{cody_forward.3} parent=0 // pred_fallthru
    _
  %v127 = vld [vmem:[%s1] sm:$0xff]
  %v128 = vld [vmem:[%s5] sm:$0xf]
  %v129 = vld [vmem:[%s5 + $0x4] sm:$0xf]
  %v130 = vld [vmem:[%s5 + $0x8] sm:$0xf]
  %v131 = vld [vmem:[%s5 + $0xc] sm:$0xf]
  %v132 = vld [vmem:[%s7] sm:$0x1]
  %v134 = vlaneseq
  %v135 = vshrl.u32 %v134, 7
  %v136 = vsub.s32 0, %v135
  %v137 = vrot.slane %v132, %v136
  %v143 = vunpack.c.l.b16 %v128
  %v144 = vunpack.c.l.b16 %v129
  %v145 = vunpack.c.l.b16 %v130
  %v146 = vunpack.c.l.b16 %v131
  %v147 = vpack.c.b16 %v144, %v143
  %v148 = vpack.c.b16 %v146, %v145
  %vm151 = vcmask 261120
  %v153 = vsel %vm151, 0, 0
  %155 = vmatprep.subr.bf16.mxu0 0
  %156 = vmatpush1.bf16.msra.mxu0 %v147
  %157 = vmatprep.subr.bf16.mxu0 0
  %158 = vmatpush1.bf16.msra.mxu0 %v148
  %159 = vmatprep.subr.bf16.mxu0 0
  %160 = vmatpush1.bf16.msra.mxu0 0
  %161 = vmatprep.subr.bf16.mxu0 0
  %162 = vmatpush1.bf16.msra.mxu0 0
  %163 = vmatprep.subr.bf16.mxu0 0
  %164 = vmatpush1.bf16.msra.mxu0 0
  %165 = vmatprep.subr.bf16.mxu0 0
  %166 = vmatpush1.bf16.msra.mxu0 0
  %167 = vmatprep.subr.bf16.mxu0 0
  %168 = vmatpush1.bf16.msra.mxu0 0
  %169 = vmatprep.subr.bf16.mxu0 0
  %170 = vmatpush1.bf16.msra.mxu0 0
  %171 = vmatprep.subr.bf16.mxu0 0
  %172 = vmatpush1.bf16.msra.mxu0 0
  %173 = vmatprep.subr.bf16.mxu0 0
  %174 = vmatpush1.bf16.msra.mxu0 0
  %175 = vmatprep.subr.bf16.mxu0 0
  %176 = vmatpush1.bf16.msra.mxu0 0
  %177 = vmatprep.subr.bf16.mxu0 0
  %178 = vmatpush1.bf16.msra.mxu0 0
  %179 = vmatprep.subr.bf16.mxu0 0
  %180 = vmatpush1.bf16.msra.mxu0 0
  %181 = vmatprep.subr.bf16.mxu0 0
  %182 = vmatpush1.bf16.msra.mxu0 0
  %183 = vmatprep.subr.bf16.mxu0 0
  %184 = vmatpush1.bf16.msra.mxu0 0
  %185 = vmatprep.subr.bf16.mxu0 0
  %186 = vmatpush1.bf16.msra.mxu0 0
  %187 = vmatprep.mubr.bf16.mxu0 0
  %188 = vmatmul.mubr.bf16.gmra.mrb[0].mxu0 %v153
  %v189 = vpop.f32.mrb[0].mxu0
  %v190 = vadd.f32 %v137, %v189
  %v191 = vpop.f32.mrb[0].mxu0
  %v192 = vpop.f32.mrb[0].mxu0
  %v193 = vpop.f32.mrb[0].mxu0
  %194 = vdwg.mxu0
  %v195 = vadd.f32 %v127, %v190
  %v196 = vxor.u32 %v195, 2147483648
  %v197 = vmul.f32 %v196, 1.442695
  %v198 = vpow.pop %v197
  %v199 = vadd.f32 %v198, 1.0
  %v200 = vrcp.pop %v199
  %v201 = vmul.f32 1.0, %v200
  %203 = vrot.lane.b32.xlu0 %v190, 64
  %v204 = vpop.permute.xlu0 %203
  %v206 = vmul.f32 %v201, %v204
  %208 = vrot.lane.b32.xlu0 %v206, 64
  %v209 = vpop.permute.xlu0 %208
  %v211 = vadd.f32 %v127, %v209
  %v212 = vtanh.pop %v211
  %v213 = vsub.f32 1.0, %v201
  %215 = vrot.lane.b32.xlu0 %v212, 96
  %v216 = vpop.permute.xlu0 %215
  %v218 = vmul.f32 %v213, %v216
  %v219 = vmul.f32 %v201, 0.0
  %v220 = vadd.f32 %v218, %v219
  %v221 = vpack.c.bf16 %v220, %v220
  %v222 = vld [vmem:[%s9] sm:$0xf]
  %v223 = vld [vmem:[%s9 + $0x4] sm:$0xf]
  %v224 = vld [vmem:[%s9 + $0x8] sm:$0xf]
  %v225 = vld [vmem:[%s9 + $0xc] sm:$0xf]
  %v226 = vld [vmem:[%s11] sm:$0x1]
  %v228 = vlaneseq
  %v229 = vshrl.u32 %v228, 7
  %v230 = vsub.s32 0, %v229
  %v231 = vrot.slane %v226, %v230
  %234 = vrot.lane.b32.xlu0 %v221, 96
  %v235 = vpop.permute.xlu0 %234
  %v240 = vunpack.c.l.b16 %v222
  %v241 = vunpack.c.l.b16 %v223
  %v242 = vunpack.c.l.b16 %v224
  %v243 = vunpack.c.l.b16 %v225
  %v244 = vpack.c.b16 %v241, %v240
  %v245 = vpack.c.b16 %v243, %v242
  %v249 = vsel %vm151, %v235, 0
  %251 = vmatprep.subr.bf16.mxu0 0
  %252 = vmatpush1.bf16.msra.mxu0 %v244
  %253 = vmatprep.subr.bf16.mxu0 0
  %254 = vmatpush1.bf16.msra.mxu0 %v245
  %255 = vmatprep.subr.bf16.mxu0 0
  %256 = vmatpush1.bf16.msra.mxu0 0
  %257 = vmatprep.subr.bf16.mxu0 0
  %258 = vmatpush1.bf16.msra.mxu0 0
  %259 = vmatprep.subr.bf16.mxu0 0
  %260 = vmatpush1.bf16.msra.mxu0 0
  %261 = vmatprep.subr.bf16.mxu0 0
  %262 = vmatpush1.bf16.msra.mxu0 0
  %263 = vmatprep.subr.bf16.mxu0 0
  %264 = vmatpush1.bf16.msra.mxu0 0
  %265 = vmatprep.subr.bf16.mxu0 0
  %266 = vmatpush1.bf16.msra.mxu0 0
  %267 = vmatprep.subr.bf16.mxu0 0
  %268 = vmatpush1.bf16.msra.mxu0 0
  %269 = vmatprep.subr.bf16.mxu0 0
  %270 = vmatpush1.bf16.msra.mxu0 0
  %271 = vmatprep.subr.bf16.mxu0 0
  %272 = vmatpush1.bf16.msra.mxu0 0
  %273 = vmatprep.subr.bf16.mxu0 0
  %274 = vmatpush1.bf16.msra.mxu0 0
  %275 = vmatprep.subr.bf16.mxu0 0
  %276 = vmatpush1.bf16.msra.mxu0 0
  %277 = vmatprep.subr.bf16.mxu0 0
  %278 = vmatpush1.bf16.msra.mxu0 0
  %279 = vmatprep.subr.bf16.mxu0 0
  %280 = vmatpush1.bf16.msra.mxu0 0
  %281 = vmatprep.subr.bf16.mxu0 0
  %282 = vmatpush1.bf16.msra.mxu0 0
  %283 = vmatprep.mubr.bf16.mxu0 0
  %284 = vmatmul.mubr.bf16.gmra.mrb[0].mxu0 %v249
  %v285 = vpop.f32.mrb[0].mxu0
  %v286 = vadd.f32 %v231, %v285
  %v287 = vpop.f32.mrb[0].mxu0
  %v288 = vpop.f32.mrb[0].mxu0
  %v289 = vpop.f32.mrb[0].mxu0
  %290 = vdwg.mxu0
  %v291 = vld [vmem:[%s13] sm:$0xf]
  %v292 = vld [vmem:[%s13 + $0x4] sm:$0xf]
  %v293 = vld [vmem:[%s13 + $0x8] sm:$0xf]
  %v294 = vld [vmem:[%s13 + $0xc] sm:$0xf]
  %v295 = vld [vmem:[%s15] sm:$0x1]
  %v297 = vlaneseq
  %v298 = vshrl.u32 %v297, 7
  %v299 = vsub.s32 0, %v298
  %v300 = vrot.slane %v295, %v299
  %v306 = vunpack.c.l.b16 %v291
  %v307 = vunpack.c.l.b16 %v292
  %v308 = vunpack.c.l.b16 %v293
  %v309 = vunpack.c.l.b16 %v294
  %v310 = vpack.c.b16 %v307, %v306
  %v311 = vpack.c.b16 %v309, %v308
  %314 = vmatprep.subr.bf16.mxu0 0
  %315 = vmatpush1.bf16.msra.mxu0 %v310
  %316 = vmatprep.subr.bf16.mxu0 0
  %317 = vmatpush1.bf16.msra.mxu0 %v311
  %318 = vmatprep.subr.bf16.mxu0 0
  %319 = vmatpush1.bf16.msra.mxu0 0
  %320 = vmatprep.subr.bf16.mxu0 0
  %321 = vmatpush1.bf16.msra.mxu0 0
  %322 = vmatprep.subr.bf16.mxu0 0
  %323 = vmatpush1.bf16.msra.mxu0 0
  %324 = vmatprep.subr.bf16.mxu0 0
  %325 = vmatpush1.bf16.msra.mxu0 0
  %326 = vmatprep.subr.bf16.mxu0 0
  %327 = vmatpush1.bf16.msra.mxu0 0
  %328 = vmatprep.subr.bf16.mxu0 0
  %329 = vmatpush1.bf16.msra.mxu0 0
  %330 = vmatprep.subr.bf16.mxu0 0
  %331 = vmatpush1.bf16.msra.mxu0 0
  %332 = vmatprep.subr.bf16.mxu0 0
  %333 = vmatpush1.bf16.msra.mxu0 0
  %334 = vmatprep.subr.bf16.mxu0 0
  %335 = vmatpush1.bf16.msra.mxu0 0
  %336 = vmatprep.subr.bf16.mxu0 0
  %337 = vmatpush1.bf16.msra.mxu0 0
  %338 = vmatprep.subr.bf16.mxu0 0
  %339 = vmatpush1.bf16.msra.mxu0 0
  %340 = vmatprep.subr.bf16.mxu0 0
  %341 = vmatpush1.bf16.msra.mxu0 0
  %342 = vmatprep.subr.bf16.mxu0 0
  %343 = vmatpush1.bf16.msra.mxu0 0
  %344 = vmatprep.subr.bf16.mxu0 0
  %345 = vmatpush1.bf16.msra.mxu0 0
  %346 = vmatprep.mubr.bf16.mxu0 0
  %347 = vmatmul.mubr.bf16.gmra.mrb[0].mxu0 %v153
  %v348 = vpop.f32.mrb[0].mxu0
  %v349 = vadd.f32 %v300, %v348
  %v350 = vpop.f32.mrb[0].mxu0
  %v351 = vpop.f32.mrb[0].mxu0
  %v352 = vpop.f32.mrb[0].mxu0
  %353 = vdwg.mxu0
  %v354 = vadd.f32 %v286, %v349
  %v355 = vxor.u32 %v354, 2147483648
  %v356 = vmul.f32 %v355, 1.442695
  %v357 = vpow.pop %v356
  %v358 = vadd.f32 %v357, 1.0
  %v359 = vrcp.pop %v358
  %v360 = vmul.f32 1.0, %v359
  %362 = vrot.lane.b32.xlu0 %v349, 64
  %v363 = vpop.permute.xlu0 %362
  %v365 = vmul.f32 %v360, %v363
  %367 = vrot.lane.b32.xlu0 %v365, 64
  %v368 = vpop.permute.xlu0 %367
  %v370 = vadd.f32 %v286, %v368
  %v371 = vtanh.pop %v370
  %v372 = vsub.f32 1.0, %v360
  %374 = vrot.lane.b32.xlu0 %v371, 96
  %v375 = vpop.permute.xlu0 %374
  %v377 = vmul.f32 %v372, %v375
  %v378 = vmul.f32 %v360, 0.0
  %v379 = vadd.f32 %v377, %v378
  %s380 = scalar_lea.vmem %s1, 8
  %v381 = vld [vmem:[%s380] sm:$0xff]
  %382 = vmatprep.subr.bf16.mxu0 0
  %383 = vmatpush1.bf16.msra.mxu0 %v147
  %384 = vmatprep.subr.bf16.mxu0 0
  %385 = vmatpush1.bf16.msra.mxu0 %v148
  %386 = vmatprep.subr.bf16.mxu0 0
  %387 = vmatpush1.bf16.msra.mxu0 0
  %388 = vmatprep.subr.bf16.mxu0 0
  %389 = vmatpush1.bf16.msra.mxu0 0
  %390 = vmatprep.subr.bf16.mxu0 0
  %391 = vmatpush1.bf16.msra.mxu0 0
  %392 = vmatprep.subr.bf16.mxu0 0
  %393 = vmatpush1.bf16.msra.mxu0 0
  %394 = vmatprep.subr.bf16.mxu0 0
  %395 = vmatpush1.bf16.msra.mxu0 0
  %396 = vmatprep.subr.bf16.mxu0 0
  %397 = vmatpush1.bf16.msra.mxu0 0
  %398 = vmatprep.subr.bf16.mxu0 0
  %399 = vmatpush1.bf16.msra.mxu0 0
  %400 = vmatprep.subr.bf16.mxu0 0
  %401 = vmatpush1.bf16.msra.mxu0 0
  %402 = vmatprep.subr.bf16.mxu0 0
  %403 = vmatpush1.bf16.msra.mxu0 0
  %404 = vmatprep.subr.bf16.mxu0 0
  %405 = vmatpush1.bf16.msra.mxu0 0
  %406 = vmatprep.subr.bf16.mxu0 0
  %407 = vmatpush1.bf16.msra.mxu0 0
  %408 = vmatprep.subr.bf16.mxu0 0
  %409 = vmatpush1.bf16.msra.mxu0 0
  %410 = vmatprep.subr.bf16.mxu0 0
  %411 = vmatpush1.bf16.msra.mxu0 0
  %412 = vmatprep.subr.bf16.mxu0 0
  %413 = vmatpush1.bf16.msra.mxu0 0
  %414 = vmatprep.mubr.bf16.mxu0 0
  %415 = vmatmul.mubr.bf16.gmra.mrb[0].mxu0 %v249
  %v416 = vpop.f32.mrb[0].mxu0
  %v417 = vadd.f32 %v137, %v416
  %v418 = vpop.f32.mrb[0].mxu0
  %v419 = vpop.f32.mrb[0].mxu0
  %v420 = vpop.f32.mrb[0].mxu0
  %421 = vdwg.mxu0
  %v422 = vadd.f32 %v381, %v417
  %v423 = vxor.u32 %v422, 2147483648
  %v424 = vmul.f32 %v423, 1.442695
  %v425 = vpow.pop %v424
  %v426 = vadd.f32 %v425, 1.0
  %v427 = vrcp.pop %v426
  %v428 = vmul.f32 1.0, %v427
  %430 = vrot.lane.b32.xlu0 %v417, 64
  %v431 = vpop.permute.xlu0 %430
  %v433 = vmul.f32 %v428, %v431
  %435 = vrot.lane.b32.xlu0 %v433, 64
  %v436 = vpop.permute.xlu0 %435
  %v438 = vadd.f32 %v381, %v436
  %v439 = vtanh.pop %v438
  %v440 = vsub.f32 1.0, %v428
  %442 = vrot.lane.b32.xlu0 %v439, 96
  %v443 = vpop.permute.xlu0 %442
  %v445 = vmul.f32 %v440, %v443
  %v446 = vmul.f32 %v428, %v220
  %v447 = vadd.f32 %v445, %v446
  %v448 = vpack.c.bf16 %v447, %v447
  %450 = vrot.lane.b32.xlu0 %v448, 96
  %v451 = vpop.permute.xlu0 %450
  %v453 = vsel %vm151, %v451, 0
  %455 = vmatprep.subr.bf16.mxu0 0
  %456 = vmatpush1.bf16.msra.mxu0 %v244
  %457 = vmatprep.subr.bf16.mxu0 0
  %458 = vmatpush1.bf16.msra.mxu0 %v245
  %459 = vmatprep.subr.bf16.mxu0 0
  %460 = vmatpush1.bf16.msra.mxu0 0
  %461 = vmatprep.subr.bf16.mxu0 0
  %462 = vmatpush1.bf16.msra.mxu0 0
  %463 = vmatprep.subr.bf16.mxu0 0
  %464 = vmatpush1.bf16.msra.mxu0 0
  %465 = vmatprep.subr.bf16.mxu0 0
  %466 = vmatpush1.bf16.msra.mxu0 0
  %467 = vmatprep.subr.bf16.mxu0 0
  %468 = vmatpush1.bf16.msra.mxu0 0
  %469 = vmatprep.subr.bf16.mxu0 0
  %470 = vmatpush1.bf16.msra.mxu0 0
  %471 = vmatprep.subr.bf16.mxu0 0
  %472 = vmatpush1.bf16.msra.mxu0 0
  %473 = vmatprep.subr.bf16.mxu0 0
  %474 = vmatpush1.bf16.msra.mxu0 0
  %475 = vmatprep.subr.bf16.mxu0 0
  %476 = vmatpush1.bf16.msra.mxu0 0
  %477 = vmatprep.subr.bf16.mxu0 0
  %478 = vmatpush1.bf16.msra.mxu0 0
  %479 = vmatprep.subr.bf16.mxu0 0
  %480 = vmatpush1.bf16.msra.mxu0 0
  %481 = vmatprep.subr.bf16.mxu0 0
  %482 = vmatpush1.bf16.msra.mxu0 0
  %483 = vmatprep.subr.bf16.mxu0 0
  %484 = vmatpush1.bf16.msra.mxu0 0
  %485 = vmatprep.subr.bf16.mxu0 0
  %486 = vmatpush1.bf16.msra.mxu0 0
  %487 = vmatprep.mubr.bf16.mxu0 0
  %488 = vmatmul.mubr.bf16.gmra.mrb[0].mxu0 %v453
  %v489 = vpop.f32.mrb[0].mxu0
  %v490 = vadd.f32 %v231, %v489
  %v491 = vpop.f32.mrb[0].mxu0
  %v492 = vpop.f32.mrb[0].mxu0
  %v493 = vpop.f32.mrb[0].mxu0
  %494 = vdwg.mxu0
  %v495 = vpack.c.bf16 %v379, %v379
  %497 = vrot.lane.b32.xlu0 %v495, 96
  %v498 = vpop.permute.xlu0 %497
  %v500 = vsel %vm151, %v498, 0
  %502 = vmatprep.subr.bf16.mxu0 0
  %503 = vmatpush1.bf16.msra.mxu0 %v310
  %504 = vmatprep.subr.bf16.mxu0 0
  %505 = vmatpush1.bf16.msra.mxu0 %v311
  %506 = vmatprep.subr.bf16.mxu0 0
  %507 = vmatpush1.bf16.msra.mxu0 0
  %508 = vmatprep.subr.bf16.mxu0 0
  %509 = vmatpush1.bf16.msra.mxu0 0
  %510 = vmatprep.subr.bf16.mxu0 0
  %511 = vmatpush1.bf16.msra.mxu0 0
  %512 = vmatprep.subr.bf16.mxu0 0
  %513 = vmatpush1.bf16.msra.mxu0 0
  %514 = vmatprep.subr.bf16.mxu0 0
  %515 = vmatpush1.bf16.msra.mxu0 0
  %516 = vmatprep.subr.bf16.mxu0 0
  %517 = vmatpush1.bf16.msra.mxu0 0
  %518 = vmatprep.subr.bf16.mxu0 0
  %519 = vmatpush1.bf16.msra.mxu0 0
  %520 = vmatprep.subr.bf16.mxu0 0
  %521 = vmatpush1.bf16.msra.mxu0 0
  %522 = vmatprep.subr.bf16.mxu0 0
  %523 = vmatpush1.bf16.msra.mxu0 0
  %524 = vmatprep.subr.bf16.mxu0 0
  %525 = vmatpush1.bf16.msra.mxu0 0
  %526 = vmatprep.subr.bf16.mxu0 0
  %527 = vmatpush1.bf16.msra.mxu0 0
  %528 = vmatprep.subr.bf16.mxu0 0
  %529 = vmatpush1.bf16.msra.mxu0 0
  %530 = vmatprep.subr.bf16.mxu0 0
  %531 = vmatpush1.bf16.msra.mxu0 0
  %532 = vmatprep.subr.bf16.mxu0 0
  %533 = vmatpush1.bf16.msra.mxu0 0
  %534 = vmatprep.mubr.bf16.mxu0 0
  %535 = vmatmul.mubr.bf16.gmra.mrb[0].mxu0 %v500
  %v536 = vpop.f32.mrb[0].mxu0
  %v537 = vadd.f32 %v300, %v536
  %v538 = vpop.f32.mrb[0].mxu0
  %v539 = vpop.f32.mrb[0].mxu0
  %v540 = vpop.f32.mrb[0].mxu0
  %541 = vdwg.mxu0
  %v542 = vadd.f32 %v490, %v537
  %v543 = vxor.u32 %v542, 2147483648
  %v544 = vmul.f32 %v543, 1.442695
  %v545 = vpow.pop %v544
  %v546 = vadd.f32 %v545, 1.0
  %v547 = vrcp.pop %v546
  %v548 = vmul.f32 1.0, %v547
  %550 = vrot.lane.b32.xlu0 %v537, 64
  %v551 = vpop.permute.xlu0 %550
  %v553 = vmul.f32 %v548, %v551
  %555 = vrot.lane.b32.xlu0 %v553, 64
  %v556 = vpop.permute.xlu0 %555
  %v558 = vadd.f32 %v490, %v556
  %v559 = vtanh.pop %v558
  %v560 = vsub.f32 1.0, %v548
  %562 = vrot.lane.b32.xlu0 %v559, 96
  %v563 = vpop.permute.xlu0 %562
  %v565 = vmul.f32 %v560, %v563
  %v566 = vmul.f32 %v548, %v379
  %v567 = vadd.f32 %v565, %v566
  %s568 = scalar_lea.vmem %s1, 16
  %v569 = vld [vmem:[%s568] sm:$0xff]
  %570 = vmatprep.subr.bf16.mxu0 0
  %571 = vmatpush1.bf16.msra.mxu0 %v147
  %572 = vmatprep.subr.bf16.mxu0 0
  %573 = vmatpush1.bf16.msra.mxu0 %v148
  %574 = vmatprep.subr.bf16.mxu0 0
  %575 = vmatpush1.bf16.msra.mxu0 0
  %576 = vmatprep.subr.bf16.mxu0 0
  %577 = vmatpush1.bf16.msra.mxu0 0
  %578 = vmatprep.subr.bf16.mxu0 0
  %579 = vmatpush1.bf16.msra.mxu0 0
  %580 = vmatprep.subr.bf16.mxu0 0
  %581 = vmatpush1.bf16.msra.mxu0 0
  %582 = vmatprep.subr.bf16.mxu0 0
  %583 = vmatpush1.bf16.msra.mxu0 0
  %584 = vmatprep.subr.bf16.mxu0 0
  %585 = vmatpush1.bf16.msra.mxu0 0
  %586 = vmatprep.subr.bf16.mxu0 0
  %587 = vmatpush1.bf16.msra.mxu0 0
  %588 = vmatprep.subr.bf16.mxu0 0
  %589 = vmatpush1.bf16.msra.mxu0 0
  %590 = vmatprep.subr.bf16.mxu0 0
  %591 = vmatpush1.bf16.msra.mxu0 0
  %592 = vmatprep.subr.bf16.mxu0 0
  %593 = vmatpush1.bf16.msra.mxu0 0
  %594 = vmatprep.subr.bf16.mxu0 0
  %595 = vmatpush1.bf16.msra.mxu0 0
  %596 = vmatprep.subr.bf16.mxu0 0
  %597 = vmatpush1.bf16.msra.mxu0 0
  %598 = vmatprep.subr.bf16.mxu0 0
  %599 = vmatpush1.bf16.msra.mxu0 0
  %600 = vmatprep.subr.bf16.mxu0 0
  %601 = vmatpush1.bf16.msra.mxu0 0
  %602 = vmatprep.mubr.bf16.mxu0 0
  %603 = vmatmul.mubr.bf16.gmra.mrb[0].mxu0 %v453
  %v604 = vpop.f32.mrb[0].mxu0
  %v605 = vadd.f32 %v137, %v604
  %v606 = vpop.f32.mrb[0].mxu0
  %v607 = vpop.f32.mrb[0].mxu0
  %v608 = vpop.f32.mrb[0].mxu0
  %609 = vdwg.mxu0
  %v610 = vadd.f32 %v569, %v605
  %v611 = vxor.u32 %v610, 2147483648
  %v612 = vmul.f32 %v611, 1.442695
  %v613 = vpow.pop %v612
  %v614 = vadd.f32 %v613, 1.0
  %v615 = vrcp.pop %v614
  %v616 = vmul.f32 1.0, %v615
  %618 = vrot.lane.b32.xlu0 %v605, 64
  %v619 = vpop.permute.xlu0 %618
  %v621 = vmul.f32 %v616, %v619
  %623 = vrot.lane.b32.xlu0 %v621, 64
  %v624 = vpop.permute.xlu0 %623
  %v626 = vadd.f32 %v569, %v624
  %v627 = vtanh.pop %v626
  %v628 = vsub.f32 1.0, %v616
  %630 = vrot.lane.b32.xlu0 %v627, 96
  %v631 = vpop.permute.xlu0 %630
  %v633 = vmul.f32 %v628, %v631
  %v634 = vmul.f32 %v616, %v447
  %v635 = vadd.f32 %v633, %v634
  %v636 = vpack.c.bf16 %v635, %v635
  %638 = vrot.lane.b32.xlu0 %v636, 96
  %v639 = vpop.permute.xlu0 %638
  %v641 = vsel %vm151, %v639, 0
  %643 = vmatprep.subr.bf16.mxu0 0
  %644 = vmatpush1.bf16.msra.mxu0 %v244
  %645 = vmatprep.subr.bf16.mxu0 0
  %646 = vmatpush1.bf16.msra.mxu0 %v245
  %647 = vmatprep.subr.bf16.mxu0 0
  %648 = vmatpush1.bf16.msra.mxu0 0
  %649 = vmatprep.subr.bf16.mxu0 0
  %650 = vmatpush1.bf16.msra.mxu0 0
  %651 = vmatprep.subr.bf16.mxu0 0
  %652 = vmatpush1.bf16.msra.mxu0 0
  %653 = vmatprep.subr.bf16.mxu0 0
  %654 = vmatpush1.bf16.msra.mxu0 0
  %655 = vmatprep.subr.bf16.mxu0 0
  %656 = vmatpush1.bf16.msra.mxu0 0
  %657 = vmatprep.subr.bf16.mxu0 0
  %658 = vmatpush1.bf16.msra.mxu0 0
  %659 = vmatprep.subr.bf16.mxu0 0
  %660 = vmatpush1.bf16.msra.mxu0 0
  %661 = vmatprep.subr.bf16.mxu0 0
  %662 = vmatpush1.bf16.msra.mxu0 0
  %663 = vmatprep.subr.bf16.mxu0 0
  %664 = vmatpush1.bf16.msra.mxu0 0
  %665 = vmatprep.subr.bf16.mxu0 0
  %666 = vmatpush1.bf16.msra.mxu0 0
  %667 = vmatprep.subr.bf16.mxu0 0
  %668 = vmatpush1.bf16.msra.mxu0 0
  %669 = vmatprep.subr.bf16.mxu0 0
  %670 = vmatpush1.bf16.msra.mxu0 0
  %671 = vmatprep.subr.bf16.mxu0 0
  %672 = vmatpush1.bf16.msra.mxu0 0
  %673 = vmatprep.subr.bf16.mxu0 0
  %674 = vmatpush1.bf16.msra.mxu0 0
  %675 = vmatprep.mubr.bf16.mxu0 0
  %676 = vmatmul.mubr.bf16.gmra.mrb[0].mxu0 %v641
  %v677 = vpop.f32.mrb[0].mxu0
  %v678 = vadd.f32 %v231, %v677
  %v679 = vpop.f32.mrb[0].mxu0
  %v680 = vpop.f32.mrb[0].mxu0
  %v681 = vpop.f32.mrb[0].mxu0
  %682 = vdwg.mxu0
  %v683 = vpack.c.bf16 %v567, %v567
  %685 = vrot.lane.b32.xlu0 %v683, 96
  %v686 = vpop.permute.xlu0 %685
  %v688 = vsel %vm151, %v686, 0
  %690 = vmatprep.subr.bf16.mxu0 0
  %691 = vmatpush1.bf16.msra.mxu0 %v310
  %692 = vmatprep.subr.bf16.mxu0 0
  %693 = vmatpush1.bf16.msra.mxu0 %v311
  %694 = vmatprep.subr.bf16.mxu0 0
  %695 = vmatpush1.bf16.msra.mxu0 0
  %696 = vmatprep.subr.bf16.mxu0 0
  %697 = vmatpush1.bf16.msra.mxu0 0
  %698 = vmatprep.subr.bf16.mxu0 0
  %699 = vmatpush1.bf16.msra.mxu0 0
  %700 = vmatprep.subr.bf16.mxu0 0
  %701 = vmatpush1.bf16.msra.mxu0 0
  %702 = vmatprep.subr.bf16.mxu0 0
  %703 = vmatpush1.bf16.msra.mxu0 0
  %704 = vmatprep.subr.bf16.mxu0 0
  %705 = vmatpush1.bf16.msra.mxu0 0
  %706 = vmatprep.subr.bf16.mxu0 0
  %707 = vmatpush1.bf16.msra.mxu0 0
  %708 = vmatprep.subr.bf16.mxu0 0
  %709 = vmatpush1.bf16.msra.mxu0 0
  %710 = vmatprep.subr.bf16.mxu0 0
  %711 = vmatpush1.bf16.msra.mxu0 0
  %712 = vmatprep.subr.bf16.mxu0 0
  %713 = vmatpush1.bf16.msra.mxu0 0
  %714 = vmatprep.subr.bf16.mxu0 0
  %715 = vmatpush1.bf16.msra.mxu0 0
  %716 = vmatprep.subr.bf16.mxu0 0
  %717 = vmatpush1.bf16.msra.mxu0 0
  %718 = vmatprep.subr.bf16.mxu0 0
  %719 = vmatpush1.bf16.msra.mxu0 0
  %720 = vmatprep.subr.bf16.mxu0 0
  %721 = vmatpush1.bf16.msra.mxu0 0
  %722 = vmatprep.mubr.bf16.mxu0 0
  %723 = vmatmul.mubr.bf16.gmra.mrb[0].mxu0 %v688
  %v724 = vpop.f32.mrb[0].mxu0
  %v725 = vadd.f32 %v300, %v724
  %v726 = vpop.f32.mrb[0].mxu0
  %v727 = vpop.f32.mrb[0].mxu0
  %v728 = vpop.f32.mrb[0].mxu0
  %729 = vdwg.mxu0
  %v730 = vadd.f32 %v678, %v725
  %v731 = vxor.u32 %v730, 2147483648
  %v732 = vmul.f32 %v731, 1.442695
  %v733 = vpow.pop %v732
  %v734 = vadd.f32 %v733, 1.0
  %v735 = vrcp.pop %v734
  %v736 = vmul.f32 1.0, %v735
  %738 = vrot.lane.b32.xlu0 %v725, 64
  %v739 = vpop.permute.xlu0 %738
  %v741 = vmul.f32 %v736, %v739
  %743 = vrot.lane.b32.xlu0 %v741, 64
  %v744 = vpop.permute.xlu0 %743
  %v746 = vadd.f32 %v678, %v744
  %v747 = vtanh.pop %v746
  %v748 = vsub.f32 1.0, %v736
  %750 = vrot.lane.b32.xlu0 %v747, 96
  %v751 = vpop.permute.xlu0 %750
  %v753 = vmul.f32 %v748, %v751
  %v754 = vmul.f32 %v736, %v567
  %v755 = vadd.f32 %v753, %v754
  %s756 = scalar_lea.vmem %s1, 24
  %v757 = vld [vmem:[%s756] sm:$0xff]
  %758 = vmatprep.subr.bf16.mxu0 0
  %759 = vmatpush1.bf16.msra.mxu0 %v147
  %760 = vmatprep.subr.bf16.mxu0 0
  %761 = vmatpush1.bf16.msra.mxu0 %v148
  %762 = vmatprep.subr.bf16.mxu0 0
  %763 = vmatpush1.bf16.msra.mxu0 0
  %764 = vmatprep.subr.bf16.mxu0 0
  %765 = vmatpush1.bf16.msra.mxu0 0
  %766 = vmatprep.subr.bf16.mxu0 0
  %767 = vmatpush1.bf16.msra.mxu0 0
  %768 = vmatprep.subr.bf16.mxu0 0
  %769 = vmatpush1.bf16.msra.mxu0 0
  %770 = vmatprep.subr.bf16.mxu0 0
  %771 = vmatpush1.bf16.msra.mxu0 0
  %772 = vmatprep.subr.bf16.mxu0 0
  %773 = vmatpush1.bf16.msra.mxu0 0
  %774 = vmatprep.subr.bf16.mxu0 0
  %775 = vmatpush1.bf16.msra.mxu0 0
  %776 = vmatprep.subr.bf16.mxu0 0
  %777 = vmatpush1.bf16.msra.mxu0 0
  %778 = vmatprep.subr.bf16.mxu0 0
  %779 = vmatpush1.bf16.msra.mxu0 0
  %780 = vmatprep.subr.bf16.mxu0 0
  %781 = vmatpush1.bf16.msra.mxu0 0
  %782 = vmatprep.subr.bf16.mxu0 0
  %783 = vmatpush1.bf16.msra.mxu0 0
  %784 = vmatprep.subr.bf16.mxu0 0
  %785 = vmatpush1.bf16.msra.mxu0 0
  %786 = vmatprep.subr.bf16.mxu0 0
  %787 = vmatpush1.bf16.msra.mxu0 0
  %788 = vmatprep.subr.bf16.mxu0 0
  %789 = vmatpush1.bf16.msra.mxu0 0
  %790 = vmatprep.mubr.bf16.mxu0 0
  %791 = vmatmul.mubr.bf16.gmra.mrb[0].mxu0 %v641
  %v792 = vpop.f32.mrb[0].mxu0
  %v793 = vadd.f32 %v137, %v792
  %v794 = vpop.f32.mrb[0].mxu0
  %v795 = vpop.f32.mrb[0].mxu0
  %v796 = vpop.f32.mrb[0].mxu0
  %797 = vdwg.mxu0
  %v798 = vadd.f32 %v757, %v793
  %v799 = vxor.u32 %v798, 2147483648
  %v800 = vmul.f32 %v799, 1.442695
  %v801 = vpow.pop %v800
  %v802 = vadd.f32 %v801, 1.0
  %v803 = vrcp.pop %v802
  %v804 = vmul.f32 1.0, %v803
  %806 = vrot.lane.b32.xlu0 %v793, 64
  %v807 = vpop.permute.xlu0 %806
  %v809 = vmul.f32 %v804, %v807
  %811 = vrot.lane.b32.xlu0 %v809, 64
  %v812 = vpop.permute.xlu0 %811
  %v814 = vadd.f32 %v757, %v812
  %v815 = vtanh.pop %v814
  %v816 = vsub.f32 1.0, %v804
  %818 = vrot.lane.b32.xlu0 %v815, 96
  %v819 = vpop.permute.xlu0 %818
  %v821 = vmul.f32 %v816, %v819
  %v822 = vmul.f32 %v804, %v635
  %v823 = vadd.f32 %v821, %v822
  %v824 = vpack.c.bf16 %v823, %v823
  %826 = vrot.lane.b32.xlu0 %v824, 96
  %v827 = vpop.permute.xlu0 %826
  %v829 = vsel %vm151, %v827, 0
  %831 = vmatprep.subr.bf16.mxu0 0
  %832 = vmatpush1.bf16.msra.mxu0 %v244
  %833 = vmatprep.subr.bf16.mxu0 0
  %834 = vmatpush1.bf16.msra.mxu0 %v245
  %835 = vmatprep.subr.bf16.mxu0 0
  %836 = vmatpush1.bf16.msra.mxu0 0
  %837 = vmatprep.subr.bf16.mxu0 0
  %838 = vmatpush1.bf16.msra.mxu0 0
  %839 = vmatprep.subr.bf16.mxu0 0
  %840 = vmatpush1.bf16.msra.mxu0 0
  %841 = vmatprep.subr.bf16.mxu0 0
  %842 = vmatpush1.bf16.msra.mxu0 0
  %843 = vmatprep.subr.bf16.mxu0 0
  %844 = vmatpush1.bf16.msra.mxu0 0
  %845 = vmatprep.subr.bf16.mxu0 0
  %846 = vmatpush1.bf16.msra.mxu0 0
  %847 = vmatprep.subr.bf16.mxu0 0
  %848 = vmatpush1.bf16.msra.mxu0 0
  %849 = vmatprep.subr.bf16.mxu0 0
  %850 = vmatpush1.bf16.msra.mxu0 0
  %851 = vmatprep.subr.bf16.mxu0 0
  %852 = vmatpush1.bf16.msra.mxu0 0
  %853 = vmatprep.subr.bf16.mxu0 0
  %854 = vmatpush1.bf16.msra.mxu0 0
  %855 = vmatprep.subr.bf16.mxu0 0
  %856 = vmatpush1.bf16.msra.mxu0 0
  %857 = vmatprep.subr.bf16.mxu0 0
  %858 = vmatpush1.bf16.msra.mxu0 0
  %859 = vmatprep.subr.bf16.mxu0 0
  %860 = vmatpush1.bf16.msra.mxu0 0
  %861 = vmatprep.subr.bf16.mxu0 0
  %862 = vmatpush1.bf16.msra.mxu0 0
  %863 = vmatprep.mubr.bf16.mxu0 0
  %864 = vmatmul.mubr.bf16.gmra.mrb[0].mxu0 %v829
  %v865 = vpop.f32.mrb[0].mxu0
  %v866 = vadd.f32 %v231, %v865
  %v867 = vpop.f32.mrb[0].mxu0
  %v868 = vpop.f32.mrb[0].mxu0
  %v869 = vpop.f32.mrb[0].mxu0
  %870 = vdwg.mxu0
  %v871 = vpack.c.bf16 %v755, %v755
  %873 = vrot.lane.b32.xlu0 %v871, 96
  %v874 = vpop.permute.xlu0 %873
  %v876 = vsel %vm151, %v874, 0
  %878 = vmatprep.subr.bf16.mxu0 0
  %879 = vmatpush1.bf16.msra.mxu0 %v310
  %880 = vmatprep.subr.bf16.mxu0 0
  %881 = vmatpush1.bf16.msra.mxu0 %v311
  %882 = vmatprep.subr.bf16.mxu0 0
  %883 = vmatpush1.bf16.msra.mxu0 0
  %884 = vmatprep.subr.bf16.mxu0 0
  %885 = vmatpush1.bf16.msra.mxu0 0
  %886 = vmatprep.subr.bf16.mxu0 0
  %887 = vmatpush1.bf16.msra.mxu0 0
  %888 = vmatprep.subr.bf16.mxu0 0
  %889 = vmatpush1.bf16.msra.mxu0 0
  %890 = vmatprep.subr.bf16.mxu0 0
  %891 = vmatpush1.bf16.msra.mxu0 0
  %892 = vmatprep.subr.bf16.mxu0 0
  %893 = vmatpush1.bf16.msra.mxu0 0
  %894 = vmatprep.subr.bf16.mxu0 0
  %895 = vmatpush1.bf16.msra.mxu0 0
  %896 = vmatprep.subr.bf16.mxu0 0
  %897 = vmatpush1.bf16.msra.mxu0 0
  %898 = vmatprep.subr.bf16.mxu0 0
  %899 = vmatpush1.bf16.msra.mxu0 0
  %900 = vmatprep.subr.bf16.mxu0 0
  %901 = vmatpush1.bf16.msra.mxu0 0
  %902 = vmatprep.subr.bf16.mxu0 0
  %903 = vmatpush1.bf16.msra.mxu0 0
  %904 = vmatprep.subr.bf16.mxu0 0
  %905 = vmatpush1.bf16.msra.mxu0 0
  %906 = vmatprep.subr.bf16.mxu0 0
  %907 = vmatpush1.bf16.msra.mxu0 0
  %908 = vmatprep.subr.bf16.mxu0 0
  %909 = vmatpush1.bf16.msra.mxu0 0
  %910 = vmatprep.mubr.bf16.mxu0 0
  %911 = vmatmul.mubr.bf16.gmra.mrb[0].mxu0 %v876
  %v912 = vpop.f32.mrb[0].mxu0
  %v913 = vadd.f32 %v300, %v912
  %v914 = vpop.f32.mrb[0].mxu0
  %v915 = vpop.f32.mrb[0].mxu0
  %v916 = vpop.f32.mrb[0].mxu0
  %917 = vdwg.mxu0
  %v918 = vadd.f32 %v866, %v913
  %v919 = vxor.u32 %v918, 2147483648
  %v920 = vmul.f32 %v919, 1.442695
  %v921 = vpow.pop %v920
  %v922 = vadd.f32 %v921, 1.0
  %v923 = vrcp.pop %v922
  %v924 = vmul.f32 1.0, %v923
  %926 = vrot.lane.b32.xlu0 %v913, 64
  %v927 = vpop.permute.xlu0 %926
  %v929 = vmul.f32 %v924, %v927
  %931 = vrot.lane.b32.xlu0 %v929, 64
  %v932 = vpop.permute.xlu0 %931
  %v934 = vadd.f32 %v866, %v932
  %v935 = vtanh.pop %v934
  %v936 = vsub.f32 1.0, %v924
  %938 = vrot.lane.b32.xlu0 %v935, 96
  %v939 = vpop.permute.xlu0 %938
  %v941 = vmul.f32 %v936, %v939
  %v942 = vmul.f32 %v924, %v755
  %v943 = vadd.f32 %v941, %v942
  %s944 = scalar_lea.vmem %s1, 32
  %v945 = vld [vmem:[%s944] sm:$0xff]
  %946 = vmatprep.subr.bf16.mxu0 0
  %947 = vmatpush1.bf16.msra.mxu0 %v147
  %948 = vmatprep.subr.bf16.mxu0 0
  %949 = vmatpush1.bf16.msra.mxu0 %v148
  %950 = vmatprep.subr.bf16.mxu0 0
  %951 = vmatpush1.bf16.msra.mxu0 0
  %952 = vmatprep.subr.bf16.mxu0 0
  %953 = vmatpush1.bf16.msra.mxu0 0
  %954 = vmatprep.subr.bf16.mxu0 0
  %955 = vmatpush1.bf16.msra.mxu0 0
  %956 = vmatprep.subr.bf16.mxu0 0
  %957 = vmatpush1.bf16.msra.mxu0 0
  %958 = vmatprep.subr.bf16.mxu0 0
  %959 = vmatpush1.bf16.msra.mxu0 0
  %960 = vmatprep.subr.bf16.mxu0 0
  %961 = vmatpush1.bf16.msra.mxu0 0
  %962 = vmatprep.subr.bf16.mxu0 0
  %963 = vmatpush1.bf16.msra.mxu0 0
  %964 = vmatprep.subr.bf16.mxu0 0
  %965 = vmatpush1.bf16.msra.mxu0 0
  %966 = vmatprep.subr.bf16.mxu0 0
  %967 = vmatpush1.bf16.msra.mxu0 0
  %968 = vmatprep.subr.bf16.mxu0 0
  %969 = vmatpush1.bf16.msra.mxu0 0
  %970 = vmatprep.subr.bf16.mxu0 0
  %971 = vmatpush1.bf16.msra.mxu0 0
  %972 = vmatprep.subr.bf16.mxu0 0
  %973 = vmatpush1.bf16.msra.mxu0 0
  %974 = vmatprep.subr.bf16.mxu0 0
  %975 = vmatpush1.bf16.msra.mxu0 0
  %976 = vmatprep.subr.bf16.mxu0 0
  %977 = vmatpush1.bf16.msra.mxu0 0
  %978 = vmatprep.mubr.bf16.mxu0 0
  %979 = vmatmul.mubr.bf16.gmra.mrb[0].mxu0 %v829
  %v980 = vpop.f32.mrb[0].mxu0
  %v981 = vadd.f32 %v137, %v980
  %v982 = vpop.f32.mrb[0].mxu0
  %v983 = vpop.f32.mrb[0].mxu0
  %v984 = vpop.f32.mrb[0].mxu0
  %985 = vdwg.mxu0
  %v986 = vadd.f32 %v945, %v981
  %v987 = vxor.u32 %v986, 2147483648
  %v988 = vmul.f32 %v987, 1.442695
  %v989 = vpow.pop %v988
  %v990 = vadd.f32 %v989, 1.0
  %v991 = vrcp.pop %v990
  %v992 = vmul.f32 1.0, %v991
  %994 = vrot.lane.b32.xlu0 %v981, 64
  %v995 = vpop.permute.xlu0 %994
  %v997 = vmul.f32 %v992, %v995
  %999 = vrot.lane.b32.xlu0 %v997, 64
  %v1000 = vpop.permute.xlu0 %999
  %v1002 = vadd.f32 %v945, %v1000
  %v1003 = vtanh.pop %v1002
  %v1004 = vsub.f32 1.0, %v992
  %1006 = vrot.lane.b32.xlu0 %v1003, 96
  %v1007 = vpop.permute.xlu0 %1006
  %v1009 = vmul.f32 %v1004, %v1007
  %v1010 = vmul.f32 %v992, %v823
  %v1011 = vadd.f32 %v1009, %v1010
  %v1012 = vpack.c.bf16 %v1011, %v1011
  %1014 = vrot.lane.b32.xlu0 %v1012, 96
  %v1015 = vpop.permute.xlu0 %1014
  %v1017 = vsel %vm151, %v1015, 0
  %1019 = vmatprep.subr.bf16.mxu0 0
  %1020 = vmatpush1.bf16.msra.mxu0 %v244
  %1021 = vmatprep.subr.bf16.mxu0 0
  %1022 = vmatpush1.bf16.msra.mxu0 %v245
  %1023 = vmatprep.subr.bf16.mxu0 0
  %1024 = vmatpush1.bf16.msra.mxu0 0
  %1025 = vmatprep.subr.bf16.mxu0 0
  %1026 = vmatpush1.bf16.msra.mxu0 0
  %1027 = vmatprep.subr.bf16.mxu0 0
  %1028 = vmatpush1.bf16.msra.mxu0 0
  %1029 = vmatprep.subr.bf16.mxu0 0
  %1030 = vmatpush1.bf16.msra.mxu0 0
  %1031 = vmatprep.subr.bf16.mxu0 0
  %1032 = vmatpush1.bf16.msra.mxu0 0
  %1033 = vmatprep.subr.bf16.mxu0 0
  %1034 = vmatpush1.bf16.msra.mxu0 0
  %1035 = vmatprep.subr.bf16.mxu0 0
  %1036 = vmatpush1.bf16.msra.mxu0 0
  %1037 = vmatprep.subr.bf16.mxu0 0
  %1038 = vmatpush1.bf16.msra.mxu0 0
  %1039 = vmatprep.subr.bf16.mxu0 0
  %1040 = vmatpush1.bf16.msra.mxu0 0
  %1041 = vmatprep.subr.bf16.mxu0 0
  %1042 = vmatpush1.bf16.msra.mxu0 0
  %1043 = vmatprep.subr.bf16.mxu0 0
  %1044 = vmatpush1.bf16.msra.mxu0 0
  %1045 = vmatprep.subr.bf16.mxu0 0
  %1046 = vmatpush1.bf16.msra.mxu0 0
  %1047 = vmatprep.subr.bf16.mxu0 0
  %1048 = vmatpush1.bf16.msra.mxu0 0
  %1049 = vmatprep.subr.bf16.mxu0 0
  %1050 = vmatpush1.bf16.msra.mxu0 0
  %1051 = vmatprep.mubr.bf16.mxu0 0
  %1052 = vmatmul.mubr.bf16.gmra.mrb[0].mxu0 %v1017
  %v1053 = vpop.f32.mrb[0].mxu0
  %v1054 = vadd.f32 %v231, %v1053
  %v1055 = vpop.f32.mrb[0].mxu0
  %v1056 = vpop.f32.mrb[0].mxu0
  %v1057 = vpop.f32.mrb[0].mxu0
  %1058 = vdwg.mxu0
  %v1059 = vpack.c.bf16 %v943, %v943
  %1061 = vrot.lane.b32.xlu0 %v1059, 96
  %v1062 = vpop.permute.xlu0 %1061
  %v1064 = vsel %vm151, %v1062, 0
  %1066 = vmatprep.subr.bf16.mxu0 0
  %1067 = vmatpush1.bf16.msra.mxu0 %v310
  %1068 = vmatprep.subr.bf16.mxu0 0
  %1069 = vmatpush1.bf16.msra.mxu0 %v311
  %1070 = vmatprep.subr.bf16.mxu0 0
  %1071 = vmatpush1.bf16.msra.mxu0 0
  %1072 = vmatprep.subr.bf16.mxu0 0
  %1073 = vmatpush1.bf16.msra.mxu0 0
  %1074 = vmatprep.subr.bf16.mxu0 0
  %1075 = vmatpush1.bf16.msra.mxu0 0
  %1076 = vmatprep.subr.bf16.mxu0 0
  %1077 = vmatpush1.bf16.msra.mxu0 0
  %1078 = vmatprep.subr.bf16.mxu0 0
  %1079 = vmatpush1.bf16.msra.mxu0 0
  %1080 = vmatprep.subr.bf16.mxu0 0
  %1081 = vmatpush1.bf16.msra.mxu0 0
  %1082 = vmatprep.subr.bf16.mxu0 0
  %1083 = vmatpush1.bf16.msra.mxu0 0
  %1084 = vmatprep.subr.bf16.mxu0 0
  %1085 = vmatpush1.bf16.msra.mxu0 0
  %1086 = vmatprep.subr.bf16.mxu0 0
  %1087 = vmatpush1.bf16.msra.mxu0 0
  %1088 = vmatprep.subr.bf16.mxu0 0
  %1089 = vmatpush1.bf16.msra.mxu0 0
  %1090 = vmatprep.subr.bf16.mxu0 0
  %1091 = vmatpush1.bf16.msra.mxu0 0
  %1092 = vmatprep.subr.bf16.mxu0 0
  %1093 = vmatpush1.bf16.msra.mxu0 0
  %1094 = vmatprep.subr.bf16.mxu0 0
  %1095 = vmatpush1.bf16.msra.mxu0 0
  %1096 = vmatprep.subr.bf16.mxu0 0
  %1097 = vmatpush1.bf16.msra.mxu0 0
  %1098 = vmatprep.mubr.bf16.mxu0 0
  %1099 = vmatmul.mubr.bf16.gmra.mrb[0].mxu0 %v1064
  %v1100 = vpop.f32.mrb[0].mxu0
  %v1101 = vadd.f32 %v300, %v1100
  %v1102 = vpop.f32.mrb[0].mxu0
  %v1103 = vpop.f32.mrb[0].mxu0
  %v1104 = vpop.f32.mrb[0].mxu0
  %1105 = vdwg.mxu0
  %v1106 = vadd.f32 %v1054, %v1101
  %v1107 = vxor.u32 %v1106, 2147483648
  %v1108 = vmul.f32 %v1107, 1.442695
  %v1109 = vpow.pop %v1108
  %v1110 = vadd.f32 %v1109, 1.0
  %v1111 = vrcp.pop %v1110
  %v1112 = vmul.f32 1.0, %v1111
  %1114 = vrot.lane.b32.xlu0 %v1101, 64
  %v1115 = vpop.permute.xlu0 %1114
  %v1117 = vmul.f32 %v1112, %v1115
  %1119 = vrot.lane.b32.xlu0 %v1117, 64
  %v1120 = vpop.permute.xlu0 %1119
  %v1122 = vadd.f32 %v1054, %v1120
  %v1123 = vtanh.pop %v1122
  %v1124 = vsub.f32 1.0, %v1112
  %1126 = vrot.lane.b32.xlu0 %v1123, 96
  %v1127 = vpop.permute.xlu0 %1126
  %v1129 = vmul.f32 %v1124, %v1127
  %v1130 = vmul.f32 %v1112, %v943
  %v1131 = vadd.f32 %v1129, %v1130
  %s1132 = scalar_lea.vmem %s1, 40
  %v1133 = vld [vmem:[%s1132] sm:$0xff]
  %1134 = vmatprep.subr.bf16.mxu0 0
  %1135 = vmatpush1.bf16.msra.mxu0 %v147
  %1136 = vmatprep.subr.bf16.mxu0 0
  %1137 = vmatpush1.bf16.msra.mxu0 %v148
  %1138 = vmatprep.subr.bf16.mxu0 0
  %1139 = vmatpush1.bf16.msra.mxu0 0
  %1140 = vmatprep.subr.bf16.mxu0 0
  %1141 = vmatpush1.bf16.msra.mxu0 0
  %1142 = vmatprep.subr.bf16.mxu0 0
  %1143 = vmatpush1.bf16.msra.mxu0 0
  %1144 = vmatprep.subr.bf16.mxu0 0
  %1145 = vmatpush1.bf16.msra.mxu0 0
  %1146 = vmatprep.subr.bf16.mxu0 0
  %1147 = vmatpush1.bf16.msra.mxu0 0
  %1148 = vmatprep.subr.bf16.mxu0 0
  %1149 = vmatpush1.bf16.msra.mxu0 0
  %1150 = vmatprep.subr.bf16.mxu0 0
  %1151 = vmatpush1.bf16.msra.mxu0 0
  %1152 = vmatprep.subr.bf16.mxu0 0
  %1153 = vmatpush1.bf16.msra.mxu0 0
  %1154 = vmatprep.subr.bf16.mxu0 0
  %1155 = vmatpush1.bf16.msra.mxu0 0
  %1156 = vmatprep.subr.bf16.mxu0 0
  %1157 = vmatpush1.bf16.msra.mxu0 0
  %1158 = vmatprep.subr.bf16.mxu0 0
  %1159 = vmatpush1.bf16.msra.mxu0 0
  %1160 = vmatprep.subr.bf16.mxu0 0
  %1161 = vmatpush1.bf16.msra.mxu0 0
  %1162 = vmatprep.subr.bf16.mxu0 0
  %1163 = vmatpush1.bf16.msra.mxu0 0
  %1164 = vmatprep.subr.bf16.mxu0 0
  %1165 = vmatpush1.bf16.msra.mxu0 0
  %1166 = vmatprep.mubr.bf16.mxu0 0
  %1167 = vmatmul.mubr.bf16.gmra.mrb[0].mxu0 %v1017
  %v1168 = vpop.f32.mrb[0].mxu0
  %v1169 = vadd.f32 %v137, %v1168
  %v1170 = vpop.f32.mrb[0].mxu0
  %v1171 = vpop.f32.mrb[0].mxu0
  %v1172 = vpop.f32.mrb[0].mxu0
  %1173 = vdwg.mxu0
  %v1174 = vadd.f32 %v1133, %v1169
  %v1175 = vxor.u32 %v1174, 2147483648
  %v1176 = vmul.f32 %v1175, 1.442695
  %v1177 = vpow.pop %v1176
  %v1178 = vadd.f32 %v1177, 1.0
  %v1179 = vrcp.pop %v1178
  %v1180 = vmul.f32 1.0, %v1179
  %1182 = vrot.lane.b32.xlu0 %v1169, 64
  %v1183 = vpop.permute.xlu0 %1182
  %v1185 = vmul.f32 %v1180, %v1183
  %1187 = vrot.lane.b32.xlu0 %v1185, 64
  %v1188 = vpop.permute.xlu0 %1187
  %v1190 = vadd.f32 %v1133, %v1188
  %v1191 = vtanh.pop %v1190
  %v1192 = vsub.f32 1.0, %v1180
  %1194 = vrot.lane.b32.xlu0 %v1191, 96
  %v1195 = vpop.permute.xlu0 %1194
  %v1197 = vmul.f32 %v1192, %v1195
  %v1198 = vmul.f32 %v1180, %v1011
  %v1199 = vadd.f32 %v1197, %v1198
  %v1200 = vpack.c.bf16 %v1199, %v1199
  %1202 = vrot.lane.b32.xlu0 %v1200, 96
  %v1203 = vpop.permute.xlu0 %1202
  %v1205 = vsel %vm151, %v1203, 0
  %1207 = vmatprep.subr.bf16.mxu0 0
  %1208 = vmatpush1.bf16.msra.mxu0 %v244
  %1209 = vmatprep.subr.bf16.mxu0 0
  %1210 = vmatpush1.bf16.msra.mxu0 %v245
  %1211 = vmatprep.subr.bf16.mxu0 0
  %1212 = vmatpush1.bf16.msra.mxu0 0
  %1213 = vmatprep.subr.bf16.mxu0 0
  %1214 = vmatpush1.bf16.msra.mxu0 0
  %1215 = vmatprep.subr.bf16.mxu0 0
  %1216 = vmatpush1.bf16.msra.mxu0 0
  %1217 = vmatprep.subr.bf16.mxu0 0
  %1218 = vmatpush1.bf16.msra.mxu0 0
  %1219 = vmatprep.subr.bf16.mxu0 0
  %1220 = vmatpush1.bf16.msra.mxu0 0
  %1221 = vmatprep.subr.bf16.mxu0 0
  %1222 = vmatpush1.bf16.msra.mxu0 0
  %1223 = vmatprep.subr.bf16.mxu0 0
  %1224 = vmatpush1.bf16.msra.mxu0 0
  %1225 = vmatprep.subr.bf16.mxu0 0
  %1226 = vmatpush1.bf16.msra.mxu0 0
  %1227 = vmatprep.subr.bf16.mxu0 0
  %1228 = vmatpush1.bf16.msra.mxu0 0
  %1229 = vmatprep.subr.bf16.mxu0 0
  %1230 = vmatpush1.bf16.msra.mxu0 0
  %1231 = vmatprep.subr.bf16.mxu0 0
  %1232 = vmatpush1.bf16.msra.mxu0 0
  %1233 = vmatprep.subr.bf16.mxu0 0
  %1234 = vmatpush1.bf16.msra.mxu0 0
  %1235 = vmatprep.subr.bf16.mxu0 0
  %1236 = vmatpush1.bf16.msra.mxu0 0
  %1237 = vmatprep.subr.bf16.mxu0 0
  %1238 = vmatpush1.bf16.msra.mxu0 0
  %1239 = vmatprep.mubr.bf16.mxu0 0
  %1240 = vmatmul.mubr.bf16.gmra.mrb[0].mxu0 %v1205
  %v1241 = vpop.f32.mrb[0].mxu0
  %v1242 = vadd.f32 %v231, %v1241
  %v1243 = vpop.f32.mrb[0].mxu0
  %v1244 = vpop.f32.mrb[0].mxu0
  %v1245 = vpop.f32.mrb[0].mxu0
  %1246 = vdwg.mxu0
  %v1247 = vpack.c.bf16 %v1131, %v1131
  %1249 = vrot.lane.b32.xlu0 %v1247, 96
  %v1250 = vpop.permute.xlu0 %1249
  %v1252 = vsel %vm151, %v1250, 0
  %1254 = vmatprep.subr.bf16.mxu0 0
  %1255 = vmatpush1.bf16.msra.mxu0 %v310
  %1256 = vmatprep.subr.bf16.mxu0 0
  %1257 = vmatpush1.bf16.msra.mxu0 %v311
  %1258 = vmatprep.subr.bf16.mxu0 0
  %1259 = vmatpush1.bf16.msra.mxu0 0
  %1260 = vmatprep.subr.bf16.mxu0 0
  %1261 = vmatpush1.bf16.msra.mxu0 0
  %1262 = vmatprep.subr.bf16.mxu0 0
  %1263 = vmatpush1.bf16.msra.mxu0 0
  %1264 = vmatprep.subr.bf16.mxu0 0
  %1265 = vmatpush1.bf16.msra.mxu0 0
  %1266 = vmatprep.subr.bf16.mxu0 0
  %1267 = vmatpush1.bf16.msra.mxu0 0
  %1268 = vmatprep.subr.bf16.mxu0 0
  %1269 = vmatpush1.bf16.msra.mxu0 0
  %1270 = vmatprep.subr.bf16.mxu0 0
  %1271 = vmatpush1.bf16.msra.mxu0 0
  %1272 = vmatprep.subr.bf16.mxu0 0
  %1273 = vmatpush1.bf16.msra.mxu0 0
  %1274 = vmatprep.subr.bf16.mxu0 0
  %1275 = vmatpush1.bf16.msra.mxu0 0
  %1276 = vmatprep.subr.bf16.mxu0 0
  %1277 = vmatpush1.bf16.msra.mxu0 0
  %1278 = vmatprep.subr.bf16.mxu0 0
  %1279 = vmatpush1.bf16.msra.mxu0 0
  %1280 = vmatprep.subr.bf16.mxu0 0
  %1281 = vmatpush1.bf16.msra.mxu0 0
  %1282 = vmatprep.subr.bf16.mxu0 0
  %1283 = vmatpush1.bf16.msra.mxu0 0
  %1284 = vmatprep.subr.bf16.mxu0 0
  %1285 = vmatpush1.bf16.msra.mxu0 0
  %1286 = vmatprep.mubr.bf16.mxu0 0
  %1287 = vmatmul.mubr.bf16.gmra.mrb[0].mxu0 %v1252
  %v1288 = vpop.f32.mrb[0].mxu0
  %v1289 = vadd.f32 %v300, %v1288
  %v1290 = vpop.f32.mrb[0].mxu0
  %v1291 = vpop.f32.mrb[0].mxu0
  %v1292 = vpop.f32.mrb[0].mxu0
  %1293 = vdwg.mxu0
  %v1294 = vadd.f32 %v1242, %v1289
  %v1295 = vxor.u32 %v1294, 2147483648
  %v1296 = vmul.f32 %v1295, 1.442695
  %v1297 = vpow.pop %v1296
  %v1298 = vadd.f32 %v1297, 1.0
  %v1299 = vrcp.pop %v1298
  %v1300 = vmul.f32 1.0, %v1299
  %1302 = vrot.lane.b32.xlu0 %v1289, 64
  %v1303 = vpop.permute.xlu0 %1302
  %v1305 = vmul.f32 %v1300, %v1303
  %1307 = vrot.lane.b32.xlu0 %v1305, 64
  %v1308 = vpop.permute.xlu0 %1307
  %v1310 = vadd.f32 %v1242, %v1308
  %v1311 = vtanh.pop %v1310
  %v1312 = vsub.f32 1.0, %v1300
  %1314 = vrot.lane.b32.xlu0 %v1311, 96
  %v1315 = vpop.permute.xlu0 %1314
  %v1317 = vmul.f32 %v1312, %v1315
  %v1318 = vmul.f32 %v1300, %v1131
  %v1319 = vadd.f32 %v1317, %v1318
  %v1320 = vld [vmem:[%s3] sm:$0xff]
  %v1321 = vpack.c.bf16 %v1320, %v1320
  %v1322 = vld [vmem:[%s17] sm:$0xf]
  %v1323 = vld [vmem:[%s17 + $0x4] sm:$0x7]
  %v1324 = vld [vmem:[%s19] sm:$0x1]
  %v1326 = vlaneseq
  %v1327 = vshrl.u32 %v1326, 7
  %v1328 = vsub.s32 0, %v1327
  %v1329 = vrot.slane %v1324, %v1328
  %v1333 = vunpack.c.l.b16 %v1322
  %v1334 = vunpack.c.l.b16 %v1323
  %v1335 = vpack.c.b16 %v1334, %v1333
  %vm1336 = vcmask 113664
  %v1338 = vsel %vm1336, %v1321, 0
  %vm1340 = vcmask 1046528
  %v1342 = vsel %vm1340, %v1335, 0
  %1344 = vmatprep.subr.bf16.mxu0 0
  %1345 = vmatpush1.bf16.msra.mxu0 %v1342
  %1346 = vmatprep.subr.bf16.mxu0 0
  %1347 = vmatpush1.bf16.msra.mxu0 0
  %1348 = vmatprep.subr.bf16.mxu0 0
  %1349 = vmatpush1.bf16.msra.mxu0 0
  %1350 = vmatprep.subr.bf16.mxu0 0
  %1351 = vmatpush1.bf16.msra.mxu0 0
  %1352 = vmatprep.subr.bf16.mxu0 0
  %1353 = vmatpush1.bf16.msra.mxu0 0
  %1354 = vmatprep.subr.bf16.mxu0 0
  %1355 = vmatpush1.bf16.msra.mxu0 0
  %1356 = vmatprep.subr.bf16.mxu0 0
  %1357 = vmatpush1.bf16.msra.mxu0 0
  %1358 = vmatprep.subr.bf16.mxu0 0
  %1359 = vmatpush1.bf16.msra.mxu0 0
  %1360 = vmatprep.subr.bf16.mxu0 0
  %1361 = vmatpush1.bf16.msra.mxu0 0
  %1362 = vmatprep.subr.bf16.mxu0 0
  %1363 = vmatpush1.bf16.msra.mxu0 0
  %1364 = vmatprep.subr.bf16.mxu0 0
  %1365 = vmatpush1.bf16.msra.mxu0 0
  %1366 = vmatprep.subr.bf16.mxu0 0
  %1367 = vmatpush1.bf16.msra.mxu0 0
  %1368 = vmatprep.subr.bf16.mxu0 0
  %1369 = vmatpush1.bf16.msra.mxu0 0
  %1370 = vmatprep.subr.bf16.mxu0 0
  %1371 = vmatpush1.bf16.msra.mxu0 0
  %1372 = vmatprep.subr.bf16.mxu0 0
  %1373 = vmatpush1.bf16.msra.mxu0 0
  %1374 = vmatprep.subr.bf16.mxu0 0
  %1375 = vmatpush1.bf16.msra.mxu0 0
  %1376 = vmatprep.mubr.bf16.mxu0 0
  %1377 = vmatmul.mubr.bf16.gmra.mrb[0].mxu0 %v1338
  %v1378 = vpop.f32.mrb[0].mxu0
  %v1379 = vadd.f32 %v1329, %v1378
  %v1380 = vpop.f32.mrb[0].mxu0
  %v1381 = vpop.f32.mrb[0].mxu0
  %v1382 = vpop.f32.mrb[0].mxu0
  %1383 = vdwg.mxu0
  %v1384 = vpack.c.bf16 %v1319, %v1319
  %v1385 = vld [vmem:[%s23] sm:$0xf]
  %v1386 = vld [vmem:[%s23 + $0x4] sm:$0xf]
  %v1387 = vld [vmem:[%s23 + $0x8] sm:$0xf]
  %v1388 = vld [vmem:[%s23 + $0xc] sm:$0xf]
  %v1389 = vld [vmem:[%s25] sm:$0x1]
  %v1391 = vlaneseq
  %v1392 = vshrl.u32 %v1391, 7
  %v1393 = vsub.s32 0, %v1392
  %v1394 = vrot.slane %v1389, %v1393
  %1397 = vrot.lane.b32.xlu0 %v1384, 96
  %v1398 = vpop.permute.xlu0 %1397
  %v1403 = vunpack.c.l.b16 %v1385
  %v1404 = vunpack.c.l.b16 %v1386
  %v1405 = vunpack.c.l.b16 %v1387
  %v1406 = vunpack.c.l.b16 %v1388
  %v1407 = vpack.c.b16 %v1404, %v1403
  %v1408 = vpack.c.b16 %v1406, %v1405
  %v1412 = vsel %vm151, %v1398, 0
  %1414 = vmatprep.subr.bf16.mxu0 0
  %1415 = vmatpush1.bf16.msra.mxu0 %v1407
  %1416 = vmatprep.subr.bf16.mxu0 0
  %1417 = vmatpush1.bf16.msra.mxu0 %v1408
  %1418 = vmatprep.subr.bf16.mxu0 0
  %1419 = vmatpush1.bf16.msra.mxu0 0
  %1420 = vmatprep.subr.bf16.mxu0 0
  %1421 = vmatpush1.bf16.msra.mxu0 0
  %1422 = vmatprep.subr.bf16.mxu0 0
  %1423 = vmatpush1.bf16.msra.mxu0 0
  %1424 = vmatprep.subr.bf16.mxu0 0
  %1425 = vmatpush1.bf16.msra.mxu0 0
  %1426 = vmatprep.subr.bf16.mxu0 0
  %1427 = vmatpush1.bf16.msra.mxu0 0
  %1428 = vmatprep.subr.bf16.mxu0 0
  %1429 = vmatpush1.bf16.msra.mxu0 0
  %1430 = vmatprep.subr.bf16.mxu0 0
  %1431 = vmatpush1.bf16.msra.mxu0 0
  %1432 = vmatprep.subr.bf16.mxu0 0
  %1433 = vmatpush1.bf16.msra.mxu0 0
  %1434 = vmatprep.subr.bf16.mxu0 0
  %1435 = vmatpush1.bf16.msra.mxu0 0
  %1436 = vmatprep.subr.bf16.mxu0 0
  %1437 = vmatpush1.bf16.msra.mxu0 0
  %1438 = vmatprep.subr.bf16.mxu0 0
  %1439 = vmatpush1.bf16.msra.mxu0 0
  %1440 = vmatprep.subr.bf16.mxu0 0
  %1441 = vmatpush1.bf16.msra.mxu0 0
  %1442 = vmatprep.subr.bf16.mxu0 0
  %1443 = vmatpush1.bf16.msra.mxu0 0
  %1444 = vmatprep.subr.bf16.mxu0 0
  %1445 = vmatpush1.bf16.msra.mxu0 0
  %1446 = vmatprep.mubr.bf16.mxu0 0
  %1447 = vmatmul.mubr.bf16.gmra.mrb[0].mxu0 %v1412
  %v1448 = vpop.f32.mrb[0].mxu0
  %v1449 = vadd.f32 %v1394, %v1448
  %v1450 = vpop.f32.mrb[0].mxu0
  %v1451 = vpop.f32.mrb[0].mxu0
  %v1452 = vpop.f32.mrb[0].mxu0
  %1453 = vdwg.mxu0
  %v1454 = vpack.c.bf16 %v1379, %v1379
  %v1455 = vld [vmem:[%s49] sm:$0xff]
  %v1456 = vld [vmem:[%s49 + $0x8] sm:$0xff]
  %v1457 = vld [vmem:[%s49 + $0x10] sm:$0xff]
  %v1458 = vld [vmem:[%s49 + $0x18] sm:$0xff]
  %v1459 = vld [vmem:[%s49 + $0x20] sm:$0xff]
  %v1460 = vld [vmem:[%s49 + $0x28] sm:$0xff]
  %v1461 = vld [vmem:[%s49 + $0x30] sm:$0xff]
  %v1462 = vld [vmem:[%s49 + $0x38] sm:$0xff]
  %v1463 = vld [vmem:[%s51] sm:$0x3]
  %v1465 = vlaneseq
  %v1466 = vshrl.u32 %v1465, 7
  %v1467 = vsub.s32 0, %v1466
  %v1468 = vrot.slane %v1463, %v1467
  %v1469 = vlaneseq
  %v1470 = vshrl.u32 %v1469, 7
  %v1471 = vsub.s32 1, %v1470
  %v1472 = vrot.slane %v1463, %v1471
  %v1483 = vunpack.c.l.b16 %v1455
  %v1484 = vunpack.c.h.b16 %v1455
  %v1485 = vunpack.c.l.b16 %v1456
  %v1486 = vunpack.c.h.b16 %v1456
  %v1487 = vunpack.c.l.b16 %v1457
  %v1488 = vunpack.c.h.b16 %v1457
  %v1489 = vunpack.c.l.b16 %v1458
  %v1490 = vunpack.c.h.b16 %v1458
  %v1491 = vunpack.c.l.b16 %v1459
  %v1492 = vunpack.c.h.b16 %v1459
  %v1493 = vunpack.c.l.b16 %v1460
  %v1494 = vunpack.c.h.b16 %v1460
  %v1495 = vunpack.c.l.b16 %v1461
  %v1496 = vunpack.c.h.b16 %v1461
  %v1497 = vunpack.c.l.b16 %v1462
  %v1498 = vunpack.c.h.b16 %v1462
  %v1499 = vpack.c.b16 %v1485, %v1483
  %v1500 = vpack.c.b16 %v1486, %v1484
  %v1501 = vpack.c.b16 %v1489, %v1487
  %v1502 = vpack.c.b16 %v1490, %v1488
  %v1503 = vpack.c.b16 %v1493, %v1491
  %v1504 = vpack.c.b16 %v1494, %v1492
  %v1505 = vpack.c.b16 %v1497, %v1495
  %v1506 = vpack.c.b16 %v1498, %v1496
  %vm1515 = vcmask 523264
  %v1517 = vsel %vm1515, %v1454, 0
  %1519 = vmatprep.subr.bf16.mxu0 %v1500
  %1520 = vmatpush1.bf16.msra.mxu0 %v1499
  %1521 = vmatprep.subr.bf16.mxu0 %v1502
  %1522 = vmatpush1.bf16.msra.mxu0 %v1501
  %1523 = vmatprep.subr.bf16.mxu0 %v1504
  %1524 = vmatpush1.bf16.msra.mxu0 %v1503
  %1525 = vmatprep.subr.bf16.mxu0 %v1506
  %1526 = vmatpush1.bf16.msra.mxu0 %v1505
  %1527 = vmatprep.subr.bf16.mxu0 0
  %1528 = vmatpush1.bf16.msra.mxu0 0
  %1529 = vmatprep.subr.bf16.mxu0 0
  %1530 = vmatpush1.bf16.msra.mxu0 0
  %1531 = vmatprep.subr.bf16.mxu0 0
  %1532 = vmatpush1.bf16.msra.mxu0 0
  %1533 = vmatprep.subr.bf16.mxu0 0
  %1534 = vmatpush1.bf16.msra.mxu0 0
  %1535 = vmatprep.subr.bf16.mxu0 0
  %1536 = vmatpush1.bf16.msra.mxu0 0
  %1537 = vmatprep.subr.bf16.mxu0 0
  %1538 = vmatpush1.bf16.msra.mxu0 0
  %1539 = vmatprep.subr.bf16.mxu0 0
  %1540 = vmatpush1.bf16.msra.mxu0 0
  %1541 = vmatprep.subr.bf16.mxu0 0
  %1542 = vmatpush1.bf16.msra.mxu0 0
  %1543 = vmatprep.subr.bf16.mxu0 0
  %1544 = vmatpush1.bf16.msra.mxu0 0
  %1545 = vmatprep.subr.bf16.mxu0 0
  %1546 = vmatpush1.bf16.msra.mxu0 0
  %1547 = vmatprep.subr.bf16.mxu0 0
  %1548 = vmatpush1.bf16.msra.mxu0 0
  %1549 = vmatprep.subr.bf16.mxu0 0
  %1550 = vmatpush1.bf16.msra.mxu0 0
  %1551 = vmatprep.mubr.bf16.mxu0 0
  %1552 = vmatmul.mubr.bf16.gmra.mrb[0].mxu0 %v1517
  %v1553 = vpop.f32.mrb[0].mxu0
  %v1554 = vadd.f32 %v1468, %v1553
  %v1555 = vpop.f32.mrb[0].mxu0
  %v1556 = vadd.f32 %v1472, %v1555
  %v1557 = vpop.f32.mrb[0].mxu0
  %v1558 = vpop.f32.mrb[0].mxu0
  %1559 = vdwg.mxu0
  %v1560 = vld [vmem:[%s53] sm:$0xff]
  %v1561 = vld [vmem:[%s53 + $0x8] sm:$0xff]
  %v1562 = vld [vmem:[%s53 + $0x10] sm:$0xff]
  %v1563 = vld [vmem:[%s53 + $0x18] sm:$0xff]
  %v1564 = vld [vmem:[%s53 + $0x20] sm:$0xff]
  %v1565 = vld [vmem:[%s53 + $0x28] sm:$0xff]
  %v1566 = vld [vmem:[%s53 + $0x30] sm:$0xff]
  %v1567 = vld [vmem:[%s53 + $0x38] sm:$0xff]
  %v1568 = vld [vmem:[%s55] sm:$0x3]
  %v1570 = vlaneseq
  %v1571 = vshrl.u32 %v1570, 7
  %v1572 = vsub.s32 0, %v1571
  %v1573 = vrot.slane %v1568, %v1572
  %v1574 = vlaneseq
  %v1575 = vshrl.u32 %v1574, 7
  %v1576 = vsub.s32 1, %v1575
  %v1577 = vrot.slane %v1568, %v1576
  %v1588 = vunpack.c.l.b16 %v1560
  %v1589 = vunpack.c.h.b16 %v1560
  %v1590 = vunpack.c.l.b16 %v1561
  %v1591 = vunpack.c.h.b16 %v1561
  %v1592 = vunpack.c.l.b16 %v1562
  %v1593 = vunpack.c.h.b16 %v1562
  %v1594 = vunpack.c.l.b16 %v1563
  %v1595 = vunpack.c.h.b16 %v1563
  %v1596 = vunpack.c.l.b16 %v1564
  %v1597 = vunpack.c.h.b16 %v1564
  %v1598 = vunpack.c.l.b16 %v1565
  %v1599 = vunpack.c.h.b16 %v1565
  %v1600 = vunpack.c.l.b16 %v1566
  %v1601 = vunpack.c.h.b16 %v1566
  %v1602 = vunpack.c.l.b16 %v1567
  %v1603 = vunpack.c.h.b16 %v1567
  %v1604 = vpack.c.b16 %v1590, %v1588
  %v1605 = vpack.c.b16 %v1591, %v1589
  %v1606 = vpack.c.b16 %v1594, %v1592
  %v1607 = vpack.c.b16 %v1595, %v1593
  %v1608 = vpack.c.b16 %v1598, %v1596
  %v1609 = vpack.c.b16 %v1599, %v1597
  %v1610 = vpack.c.b16 %v1602, %v1600
  %v1611 = vpack.c.b16 %v1603, %v1601
  %v1620 = vsel %vm1515, 0, 0
  %1622 = vmatprep.subr.bf16.mxu0 %v1605
  %1623 = vmatpush1.bf16.msra.mxu0 %v1604
  %1624 = vmatprep.subr.bf16.mxu0 %v1607
  %1625 = vmatpush1.bf16.msra.mxu0 %v1606
  %1626 = vmatprep.subr.bf16.mxu0 %v1609
  %1627 = vmatpush1.bf16.msra.mxu0 %v1608
  %1628 = vmatprep.subr.bf16.mxu0 %v1611
  %1629 = vmatpush1.bf16.msra.mxu0 %v1610
  %1630 = vmatprep.subr.bf16.mxu0 0
  %1631 = vmatpush1.bf16.msra.mxu0 0
  %1632 = vmatprep.subr.bf16.mxu0 0
  %1633 = vmatpush1.bf16.msra.mxu0 0
  %1634 = vmatprep.subr.bf16.mxu0 0
  %1635 = vmatpush1.bf16.msra.mxu0 0
  %1636 = vmatprep.subr.bf16.mxu0 0
  %1637 = vmatpush1.bf16.msra.mxu0 0
  %1638 = vmatprep.subr.bf16.mxu0 0
  %1639 = vmatpush1.bf16.msra.mxu0 0
  %1640 = vmatprep.subr.bf16.mxu0 0
  %1641 = vmatpush1.bf16.msra.mxu0 0
  %1642 = vmatprep.subr.bf16.mxu0 0
  %1643 = vmatpush1.bf16.msra.mxu0 0
  %1644 = vmatprep.subr.bf16.mxu0 0
  %1645 = vmatpush1.bf16.msra.mxu0 0
  %1646 = vmatprep.subr.bf16.mxu0 0
  %1647 = vmatpush1.bf16.msra.mxu0 0
  %1648 = vmatprep.subr.bf16.mxu0 0
  %1649 = vmatpush1.bf16.msra.mxu0 0
  %1650 = vmatprep.subr.bf16.mxu0 0
  %1651 = vmatpush1.bf16.msra.mxu0 0
  %1652 = vmatprep.subr.bf16.mxu0 0
  %1653 = vmatpush1.bf16.msra.mxu0 0
  %1654 = vmatprep.mubr.bf16.mxu0 0
  %1655 = vmatmul.mubr.bf16.gmra.mrb[0].mxu0 %v1620
  %v1656 = vpop.f32.mrb[0].mxu0
  %v1657 = vadd.f32 %v1573, %v1656
  %v1658 = vpop.f32.mrb[0].mxu0
  %v1659 = vadd.f32 %v1577, %v1658
  %v1660 = vpop.f32.mrb[0].mxu0
  %v1661 = vpop.f32.mrb[0].mxu0
  %1662 = vdwg.mxu0
  %v1663 = vadd.f32 %v1554, %v1657
  %v1664 = vxor.u32 %v1663, 2147483648
  %v1665 = vmul.f32 %v1664, 1.442695
  %v1666 = vpow.pop %v1665
  %v1667 = vadd.f32 %v1666, 1.0
  %v1668 = vrcp.pop %v1667
  %v1669 = vmul.f32 1.0, %v1668
  %v1670 = vmul.f32 %v1669, %v1659
  %v1671 = vadd.f32 %v1556, %v1670
  %v1672 = vtanh.pop %v1671
  %v1673 = vsub.f32 1.0, %v1669
  %1675 = vrot.lane.b32.xlu0 %v1672, 64
  %v1676 = vpop.permute.xlu0 %1675
  %v1678 = vmul.f32 %v1673, %v1676
  %v1679 = vmul.f32 %v1669, 0.0
  %v1680 = vadd.f32 %v1678, %v1679
  %1682 = vrot.lane.b32.xlu0 %v1680, 64
  %v1683 = vpop.permute.xlu0 %1682
  %1685 = vst.msk [vmem:[#allocation2] sm:$0xff] %vm1515, %v1683
  %v1686 = vld [vmem:[%s21] sm:$0xf]
  %v1687 = vld [vmem:[%s21 + $0x4] sm:$0xf]
  %v1688 = vld [vmem:[%s21 + $0x8] sm:$0xf]
  %v1689 = vld [vmem:[%s21 + $0xc] sm:$0xf]
  %v1690 = vld [vmem:[%s21 + $0x10] sm:$0xf]
  %v1691 = vld [vmem:[%s21 + $0x14] sm:$0xf]
  %v1692 = vld [vmem:[%s21 + $0x18] sm:$0xf]
  %v1693 = vld [vmem:[%s21 + $0x1c] sm:$0xf]
  %v1702 = vunpack.c.l.b16 %v1686
  %v1703 = vunpack.c.l.b16 %v1687
  %v1704 = vunpack.c.l.b16 %v1688
  %v1705 = vunpack.c.l.b16 %v1689
  %v1706 = vunpack.c.l.b16 %v1690
  %v1707 = vunpack.c.l.b16 %v1691
  %v1708 = vunpack.c.l.b16 %v1692
  %v1709 = vunpack.c.l.b16 %v1693
  %v1710 = vpack.c.b16 %v1703, %v1702
  %v1711 = vpack.c.b16 %v1705, %v1704
  %v1712 = vpack.c.b16 %v1707, %v1706
  %v1713 = vpack.c.b16 %v1709, %v1708
  %1718 = vmatprep.subr.bf16.mxu0 0
  %1719 = vmatpush1.bf16.msra.mxu0 %v1710
  %1720 = vmatprep.subr.bf16.mxu0 0
  %1721 = vmatpush1.bf16.msra.mxu0 %v1711
  %1722 = vmatprep.subr.bf16.mxu0 0
  %1723 = vmatpush1.bf16.msra.mxu0 %v1712
  %1724 = vmatprep.subr.bf16.mxu0 0
  %1725 = vmatpush1.bf16.msra.mxu0 %v1713
  %1726 = vmatprep.subr.bf16.mxu0 0
  %1727 = vmatpush1.bf16.msra.mxu0 0
  %1728 = vmatprep.subr.bf16.mxu0 0
  %1729 = vmatpush1.bf16.msra.mxu0 0
  %1730 = vmatprep.subr.bf16.mxu0 0
  %1731 = vmatpush1.bf16.msra.mxu0 0
  %1732 = vmatprep.subr.bf16.mxu0 0
  %1733 = vmatpush1.bf16.msra.mxu0 0
  %1734 = vmatprep.subr.bf16.mxu0 0
  %1735 = vmatpush1.bf16.msra.mxu0 0
  %1736 = vmatprep.subr.bf16.mxu0 0
  %1737 = vmatpush1.bf16.msra.mxu0 0
  %1738 = vmatprep.subr.bf16.mxu0 0
  %1739 = vmatpush1.bf16.msra.mxu0 0
  %1740 = vmatprep.subr.bf16.mxu0 0
  %1741 = vmatpush1.bf16.msra.mxu0 0
  %1742 = vmatprep.subr.bf16.mxu0 0
  %1743 = vmatpush1.bf16.msra.mxu0 0
  %1744 = vmatprep.subr.bf16.mxu0 0
  %1745 = vmatpush1.bf16.msra.mxu0 0
  %1746 = vmatprep.subr.bf16.mxu0 0
  %1747 = vmatpush1.bf16.msra.mxu0 0
  %1748 = vmatprep.subr.bf16.mxu0 0
  %1749 = vmatpush1.bf16.msra.mxu0 0
  %1750 = vmatprep.mubr.bf16.mxu0 0
  %1751 = vmatmul.mubr.bf16.gmra.mrb[0].mxu0 %v1517
  %v1752 = vpop.f32.mrb[0].mxu0
  %v1753 = vadd.f32 %v1449, %v1752
  %v1754 = vpop.f32.mrb[0].mxu0
  %v1755 = vpop.f32.mrb[0].mxu0
  %v1756 = vpop.f32.mrb[0].mxu0
  %1757 = vdwg.mxu0
  %v1758 = vmax.f32 %v1753, 0.0
  %v1759 = vpack.c.bf16 %v1758, %v1758
  %v1760 = vld [vmem:[%s27] sm:$0xf]
  %v1761 = vld [vmem:[%s27 + $0x4] sm:$0xf]
  %v1762 = vld [vmem:[%s27 + $0x8] sm:$0xf]
  %v1763 = vld [vmem:[%s27 + $0xc] sm:$0xf]
  %v1764 = vld [vmem:[%s29] sm:$0x1]
  %v1766 = vlaneseq
  %v1767 = vshrl.u32 %v1766, 7
  %v1768 = vsub.s32 0, %v1767
  %v1769 = vrot.slane %v1764, %v1768
  %v1775 = vunpack.c.l.b16 %v1760
  %v1776 = vunpack.c.l.b16 %v1761
  %v1777 = vunpack.c.l.b16 %v1762
  %v1778 = vunpack.c.l.b16 %v1763
  %v1779 = vpack.c.b16 %v1776, %v1775
  %v1780 = vpack.c.b16 %v1778, %v1777
  %v1784 = vsel %vm151, %v1759, 0
  %1786 = vmatprep.subr.bf16.mxu0 0
  %1787 = vmatpush1.bf16.msra.mxu0 %v1779
  %1788 = vmatprep.subr.bf16.mxu0 0
  %1789 = vmatpush1.bf16.msra.mxu0 %v1780
  %1790 = vmatprep.subr.bf16.mxu0 0
  %1791 = vmatpush1.bf16.msra.mxu0 0
  %1792 = vmatprep.subr.bf16.mxu0 0
  %1793 = vmatpush1.bf16.msra.mxu0 0
  %1794 = vmatprep.subr.bf16.mxu0 0
  %1795 = vmatpush1.bf16.msra.mxu0 0
  %1796 = vmatprep.subr.bf16.mxu0 0
  %1797 = vmatpush1.bf16.msra.mxu0 0
  %1798 = vmatprep.subr.bf16.mxu0 0
  %1799 = vmatpush1.bf16.msra.mxu0 0
  %1800 = vmatprep.subr.bf16.mxu0 0
  %1801 = vmatpush1.bf16.msra.mxu0 0
  %1802 = vmatprep.subr.bf16.mxu0 0
  %1803 = vmatpush1.bf16.msra.mxu0 0
  %1804 = vmatprep.subr.bf16.mxu0 0
  %1805 = vmatpush1.bf16.msra.mxu0 0
  %1806 = vmatprep.subr.bf16.mxu0 0
  %1807 = vmatpush1.bf16.msra.mxu0 0
  %1808 = vmatprep.subr.bf16.mxu0 0
  %1809 = vmatpush1.bf16.msra.mxu0 0
  %1810 = vmatprep.subr.bf16.mxu0 0
  %1811 = vmatpush1.bf16.msra.mxu0 0
  %1812 = vmatprep.subr.bf16.mxu0 0
  %1813 = vmatpush1.bf16.msra.mxu0 0
  %1814 = vmatprep.subr.bf16.mxu0 0
  %1815 = vmatpush1.bf16.msra.mxu0 0
  %1816 = vmatprep.subr.bf16.mxu0 0
  %1817 = vmatpush1.bf16.msra.mxu0 0
  %1818 = vmatprep.mubr.bf16.mxu0 0
  %1819 = vmatmul.mubr.bf16.gmra.mrb[0].mxu0 %v1784
  %v1820 = vpop.f32.mrb[0].mxu0
  %v1821 = vadd.f32 %v1769, %v1820
  %v1822 = vpop.f32.mrb[0].mxu0
  %v1823 = vpop.f32.mrb[0].mxu0
  %v1824 = vpop.f32.mrb[0].mxu0
  %1825 = vdwg.mxu0
  %v1826 = vmax.f32 %v1821, 0.0
  %v1827 = vpack.c.bf16 %v1826, %v1826
  %v1828 = vld [vmem:[%s31] sm:$0xf]
  %v1829 = vld [vmem:[%s31 + $0x4] sm:$0xf]
  %v1830 = vld [vmem:[%s31 + $0x8] sm:$0xf]
  %v1831 = vld [vmem:[%s31 + $0xc] sm:$0xf]
  %v1832 = vld [vmem:[%s33] sm:$0x1]
  %v1834 = vlaneseq
  %v1835 = vshrl.u32 %v1834, 7
  %v1836 = vsub.s32 0, %v1835
  %v1837 = vrot.slane %v1832, %v1836
  %v1843 = vunpack.c.l.b16 %v1828
  %v1844 = vunpack.c.l.b16 %v1829
  %v1845 = vunpack.c.l.b16 %v1830
  %v1846 = vunpack.c.l.b16 %v1831
  %v1847 = vpack.c.b16 %v1844, %v1843
  %v1848 = vpack.c.b16 %v1846, %v1845
  %v1852 = vsel %vm151, %v1827, 0
  %1854 = vmatprep.subr.bf16.mxu0 0
  %1855 = vmatpush1.bf16.msra.mxu0 %v1847
  %1856 = vmatprep.subr.bf16.mxu0 0
  %1857 = vmatpush1.bf16.msra.mxu0 %v1848
  %1858 = vmatprep.subr.bf16.mxu0 0
  %1859 = vmatpush1.bf16.msra.mxu0 0
  %1860 = vmatprep.subr.bf16.mxu0 0
  %1861 = vmatpush1.bf16.msra.mxu0 0
  %1862 = vmatprep.subr.bf16.mxu0 0
  %1863 = vmatpush1.bf16.msra.mxu0 0
  %1864 = vmatprep.subr.bf16.mxu0 0
  %1865 = vmatpush1.bf16.msra.mxu0 0
  %1866 = vmatprep.subr.bf16.mxu0 0
  %1867 = vmatpush1.bf16.msra.mxu0 0
  %1868 = vmatprep.subr.bf16.mxu0 0
  %1869 = vmatpush1.bf16.msra.mxu0 0
  %1870 = vmatprep.subr.bf16.mxu0 0
  %1871 = vmatpush1.bf16.msra.mxu0 0
  %1872 = vmatprep.subr.bf16.mxu0 0
  %1873 = vmatpush1.bf16.msra.mxu0 0
  %1874 = vmatprep.subr.bf16.mxu0 0
  %1875 = vmatpush1.bf16.msra.mxu0 0
  %1876 = vmatprep.subr.bf16.mxu0 0
  %1877 = vmatpush1.bf16.msra.mxu0 0
  %1878 = vmatprep.subr.bf16.mxu0 0
  %1879 = vmatpush1.bf16.msra.mxu0 0
  %1880 = vmatprep.subr.bf16.mxu0 0
  %1881 = vmatpush1.bf16.msra.mxu0 0
  %1882 = vmatprep.subr.bf16.mxu0 0
  %1883 = vmatpush1.bf16.msra.mxu0 0
  %1884 = vmatprep.subr.bf16.mxu0 0
  %1885 = vmatpush1.bf16.msra.mxu0 0
  %1886 = vmatprep.mubr.bf16.mxu0 0
  %1887 = vmatmul.mubr.bf16.gmra.mrb[0].mxu0 %v1852
  %v1888 = vpop.f32.mrb[0].mxu0
  %v1889 = vadd.f32 %v1837, %v1888
  %v1890 = vpop.f32.mrb[0].mxu0
  %v1891 = vpop.f32.mrb[0].mxu0
  %v1892 = vpop.f32.mrb[0].mxu0
  %1893 = vdwg.mxu0
  %v1894 = vld [vmem:[%s35] sm:$0xf]
  %v1895 = vld [vmem:[%s35 + $0x4] sm:$0xf]
  %v1896 = vld [vmem:[%s35 + $0x8] sm:$0xf]
  %v1897 = vld [vmem:[%s35 + $0xc] sm:$0xf]
  %v1898 = vld [vmem:[%s37] sm:$0x1]
  %v1900 = vlaneseq
  %v1901 = vshrl.u32 %v1900, 7
  %v1902 = vsub.s32 0, %v1901
  %v1903 = vrot.slane %v1898, %v1902
  %v1909 = vunpack.c.l.b16 %v1894
  %v1910 = vunpack.c.l.b16 %v1895
  %v1911 = vunpack.c.l.b16 %v1896
  %v1912 = vunpack.c.l.b16 %v1897
  %v1913 = vpack.c.b16 %v1910, %v1909
  %v1914 = vpack.c.b16 %v1912, %v1911
  %1917 = vmatprep.subr.bf16.mxu0 0
  %1918 = vmatpush1.bf16.msra.mxu0 %v1913
  %1919 = vmatprep.subr.bf16.mxu0 0
  %1920 = vmatpush1.bf16.msra.mxu0 %v1914
  %1921 = vmatprep.subr.bf16.mxu0 0
  %1922 = vmatpush1.bf16.msra.mxu0 0
  %1923 = vmatprep.subr.bf16.mxu0 0
  %1924 = vmatpush1.bf16.msra.mxu0 0
  %1925 = vmatprep.subr.bf16.mxu0 0
  %1926 = vmatpush1.bf16.msra.mxu0 0
  %1927 = vmatprep.subr.bf16.mxu0 0
  %1928 = vmatpush1.bf16.msra.mxu0 0
  %1929 = vmatprep.subr.bf16.mxu0 0
  %1930 = vmatpush1.bf16.msra.mxu0 0
  %1931 = vmatprep.subr.bf16.mxu0 0
  %1932 = vmatpush1.bf16.msra.mxu0 0
  %1933 = vmatprep.subr.bf16.mxu0 0
  %1934 = vmatpush1.bf16.msra.mxu0 0
  %1935 = vmatprep.subr.bf16.mxu0 0
  %1936 = vmatpush1.bf16.msra.mxu0 0
  %1937 = vmatprep.subr.bf16.mxu0 0
  %1938 = vmatpush1.bf16.msra.mxu0 0
  %1939 = vmatprep.subr.bf16.mxu0 0
  %1940 = vmatpush1.bf16.msra.mxu0 0
  %1941 = vmatprep.subr.bf16.mxu0 0
  %1942 = vmatpush1.bf16.msra.mxu0 0
  %1943 = vmatprep.subr.bf16.mxu0 0
  %1944 = vmatpush1.bf16.msra.mxu0 0
  %1945 = vmatprep.subr.bf16.mxu0 0
  %1946 = vmatpush1.bf16.msra.mxu0 0
  %1947 = vmatprep.subr.bf16.mxu0 0
  %1948 = vmatpush1.bf16.msra.mxu0 0
  %1949 = vmatprep.mubr.bf16.mxu0 0
  %1950 = vmatmul.mubr.bf16.gmra.mrb[0].mxu0 %v153
  %v1951 = vpop.f32.mrb[0].mxu0
  %v1952 = vadd.f32 %v1903, %v1951
  %v1953 = vpop.f32.mrb[0].mxu0
  %v1954 = vpop.f32.mrb[0].mxu0
  %v1955 = vpop.f32.mrb[0].mxu0
  %1956 = vdwg.mxu0
  %v1957 = vadd.f32 %v1889, %v1952
  %v1958 = vxor.u32 %v1957, 2147483648
  %v1959 = vmul.f32 %v1958, 1.442695
  %v1960 = vpow.pop %v1959
  %v1961 = vadd.f32 %v1960, 1.0
  %v1962 = vrcp.pop %v1961
  %v1963 = vmul.f32 1.0, %v1962
  %1965 = vrot.lane.b32.xlu0 %v1952, 64
  %v1966 = vpop.permute.xlu0 %1965
  %v1968 = vmul.f32 %v1963, %v1966
  %1970 = vrot.lane.b32.xlu0 %v1968, 64
  %v1971 = vpop.permute.xlu0 %1970
  %v1973 = vadd.f32 %v1889, %v1971
  %v1974 = vtanh.pop %v1973
  %v1975 = vsub.f32 1.0, %v1963
  %1977 = vrot.lane.b32.xlu0 %v1974, 96
  %v1978 = vpop.permute.xlu0 %1977
  %v1980 = vmul.f32 %v1975, %v1978
  %v1981 = vmul.f32 %v1963, 0.0
  %v1982 = vadd.f32 %v1980, %v1981
  %v1983 = vpack.c.bf16 %v1982, %v1982
  %v1984 = vld [vmem:[%s39] sm:$0xf]
  %v1985 = vld [vmem:[%s39 + $0x4] sm:$0xf]
  %v1986 = vld [vmem:[%s39 + $0x8] sm:$0xf]
  %v1987 = vld [vmem:[%s39 + $0xc] sm:$0xf]
  %v1988 = vld [vmem:[%s41] sm:$0x1]
  %v1990 = vlaneseq
  %v1991 = vshrl.u32 %v1990, 7
  %v1992 = vsub.s32 0, %v1991
  %v1993 = vrot.slane %v1988, %v1992
  %1996 = vrot.lane.b32.xlu0 %v1983, 96
  %v1997 = vpop.permute.xlu0 %1996
  %v2002 = vunpack.c.l.b16 %v1984
  %v2003 = vunpack.c.l.b16 %v1985
  %v2004 = vunpack.c.l.b16 %v1986
  %v2005 = vunpack.c.l.b16 %v1987
  %v2006 = vpack.c.b16 %v2003, %v2002
  %v2007 = vpack.c.b16 %v2005, %v2004
  %v2011 = vsel %vm151, %v1997, 0
  %2013 = vmatprep.subr.bf16.mxu0 0
  %2014 = vmatpush1.bf16.msra.mxu0 %v2006
  %2015 = vmatprep.subr.bf16.mxu0 0
  %2016 = vmatpush1.bf16.msra.mxu0 %v2007
  %2017 = vmatprep.subr.bf16.mxu0 0
  %2018 = vmatpush1.bf16.msra.mxu0 0
  %2019 = vmatprep.subr.bf16.mxu0 0
  %2020 = vmatpush1.bf16.msra.mxu0 0
  %2021 = vmatprep.subr.bf16.mxu0 0
  %2022 = vmatpush1.bf16.msra.mxu0 0
  %2023 = vmatprep.subr.bf16.mxu0 0
  %2024 = vmatpush1.bf16.msra.mxu0 0
  %2025 = vmatprep.subr.bf16.mxu0 0
  %2026 = vmatpush1.bf16.msra.mxu0 0
  %2027 = vmatprep.subr.bf16.mxu0 0
  %2028 = vmatpush1.bf16.msra.mxu0 0
  %2029 = vmatprep.subr.bf16.mxu0 0
  %2030 = vmatpush1.bf16.msra.mxu0 0
  %2031 = vmatprep.subr.bf16.mxu0 0
  %2032 = vmatpush1.bf16.msra.mxu0 0
  %2033 = vmatprep.subr.bf16.mxu0 0
  %2034 = vmatpush1.bf16.msra.mxu0 0
  %2035 = vmatprep.subr.bf16.mxu0 0
  %2036 = vmatpush1.bf16.msra.mxu0 0
  %2037 = vmatprep.subr.bf16.mxu0 0
  %2038 = vmatpush1.bf16.msra.mxu0 0
  %2039 = vmatprep.subr.bf16.mxu0 0
  %2040 = vmatpush1.bf16.msra.mxu0 0
  %2041 = vmatprep.subr.bf16.mxu0 0
  %2042 = vmatpush1.bf16.msra.mxu0 0
  %2043 = vmatprep.subr.bf16.mxu0 0
  %2044 = vmatpush1.bf16.msra.mxu0 0
  %2045 = vmatprep.mubr.bf16.mxu0 0
  %2046 = vmatmul.mubr.bf16.gmra.mrb[0].mxu0 %v2011
  %v2047 = vpop.f32.mrb[0].mxu0
  %v2048 = vadd.f32 %v1993, %v2047
  %v2049 = vpop.f32.mrb[0].mxu0
  %v2050 = vpop.f32.mrb[0].mxu0
  %v2051 = vpop.f32.mrb[0].mxu0
  %2052 = vdwg.mxu0
  %v2053 = vld [vmem:[%s43] sm:$0xf]
  %v2054 = vld [vmem:[%s43 + $0x4] sm:$0xf]
  %v2055 = vld [vmem:[%s43 + $0x8] sm:$0xf]
  %v2056 = vld [vmem:[%s43 + $0xc] sm:$0xf]
  %v2057 = vld [vmem:[%s45] sm:$0x1]
  %v2059 = vlaneseq
  %v2060 = vshrl.u32 %v2059, 7
  %v2061 = vsub.s32 0, %v2060
  %v2062 = vrot.slane %v2057, %v2061
  %v2068 = vunpack.c.l.b16 %v2053
  %v2069 = vunpack.c.l.b16 %v2054
  %v2070 = vunpack.c.l.b16 %v2055
  %v2071 = vunpack.c.l.b16 %v2056
  %v2072 = vpack.c.b16 %v2069, %v2068
  %v2073 = vpack.c.b16 %v2071, %v2070
  %2076 = vmatprep.subr.bf16.mxu0 0
  %2077 = vmatpush1.bf16.msra.mxu0 %v2072
  %2078 = vmatprep.subr.bf16.mxu0 0
  %2079 = vmatpush1.bf16.msra.mxu0 %v2073
  %2080 = vmatprep.subr.bf16.mxu0 0
  %2081 = vmatpush1.bf16.msra.mxu0 0
  %2082 = vmatprep.subr.bf16.mxu0 0
  %2083 = vmatpush1.bf16.msra.mxu0 0
  %2084 = vmatprep.subr.bf16.mxu0 0
  %2085 = vmatpush1.bf16.msra.mxu0 0
  %2086 = vmatprep.subr.bf16.mxu0 0
  %2087 = vmatpush1.bf16.msra.mxu0 0
  %2088 = vmatprep.subr.bf16.mxu0 0
  %2089 = vmatpush1.bf16.msra.mxu0 0
  %2090 = vmatprep.subr.bf16.mxu0 0
  %2091 = vmatpush1.bf16.msra.mxu0 0
  %2092 = vmatprep.subr.bf16.mxu0 0
  %2093 = vmatpush1.bf16.msra.mxu0 0
  %2094 = vmatprep.subr.bf16.mxu0 0
  %2095 = vmatpush1.bf16.msra.mxu0 0
  %2096 = vmatprep.subr.bf16.mxu0 0
  %2097 = vmatpush1.bf16.msra.mxu0 0
  %2098 = vmatprep.subr.bf16.mxu0 0
  %2099 = vmatpush1.bf16.msra.mxu0 0
  %2100 = vmatprep.subr.bf16.mxu0 0
  %2101 = vmatpush1.bf16.msra.mxu0 0
  %2102 = vmatprep.subr.bf16.mxu0 0
  %2103 = vmatpush1.bf16.msra.mxu0 0
  %2104 = vmatprep.subr.bf16.mxu0 0
  %2105 = vmatpush1.bf16.msra.mxu0 0
  %2106 = vmatprep.subr.bf16.mxu0 0
  %2107 = vmatpush1.bf16.msra.mxu0 0
  %2108 = vmatprep.mubr.bf16.mxu0 0
  %2109 = vmatmul.mubr.bf16.gmra.mrb[0].mxu0 %v153
  %v2110 = vpop.f32.mrb[0].mxu0
  %v2111 = vadd.f32 %v2062, %v2110
  %v2112 = vpop.f32.mrb[0].mxu0
  %v2113 = vpop.f32.mrb[0].mxu0
  %v2114 = vpop.f32.mrb[0].mxu0
  %2115 = vdwg.mxu0
  %v2116 = vadd.f32 %v2048, %v2111
  %v2117 = vxor.u32 %v2116, 2147483648
  %v2118 = vmul.f32 %v2117, 1.442695
  %v2119 = vpow.pop %v2118
  %v2120 = vadd.f32 %v2119, 1.0
  %v2121 = vrcp.pop %v2120
  %v2122 = vmul.f32 1.0, %v2121
  %2124 = vrot.lane.b32.xlu0 %v2111, 64
  %v2125 = vpop.permute.xlu0 %2124
  %v2127 = vmul.f32 %v2122, %v2125
  %2129 = vrot.lane.b32.xlu0 %v2127, 64
  %v2130 = vpop.permute.xlu0 %2129
  %v2132 = vadd.f32 %v2048, %v2130
  %v2133 = vtanh.pop %v2132
  %v2134 = vsub.f32 1.0, %v2122
  %2136 = vrot.lane.b32.xlu0 %v2133, 96
  %v2137 = vpop.permute.xlu0 %2136
  %v2139 = vmul.f32 %v2134, %v2137
  %v2140 = vmul.f32 %v2122, 0.0
  %v2141 = vadd.f32 %v2139, %v2140
  %v2142 = vpack.c.bf16 %v2141, %v2141
  %v2143 = vld [vmem:[%s47] sm:$0xf]
  %v2144 = vld [vmem:[%s47 + $0x4] sm:$0xf]
  %v2145 = vld [vmem:[%s47 + $0x8] sm:$0xf]
  %v2146 = vld [vmem:[%s47 + $0xc] sm:$0xf]
  %2148 = vrot.lane.b32.xlu0 %v2142, 96
  %v2149 = vpop.permute.xlu0 %2148
  %v2154 = vunpack.c.l.b16 %v2143
  %v2155 = vunpack.c.l.b16 %v2144
  %v2156 = vunpack.c.l.b16 %v2145
  %v2157 = vunpack.c.l.b16 %v2146
  %v2158 = vpack.c.b16 %v2155, %v2154
  %v2159 = vpack.c.b16 %v2157, %v2156
  %v2163 = vsel %vm151, %v2149, 0
  %2165 = vmatprep.subr.bf16.mxu0 0
  %2166 = vmatpush1.bf16.msra.mxu0 %v2158
  %2167 = vmatprep.subr.bf16.mxu0 0
  %2168 = vmatpush1.bf16.msra.mxu0 %v2159
  %2169 = vmatprep.subr.bf16.mxu0 0
  %2170 = vmatpush1.bf16.msra.mxu0 0
  %2171 = vmatprep.subr.bf16.mxu0 0
  %2172 = vmatpush1.bf16.msra.mxu0 0
  %2173 = vmatprep.subr.bf16.mxu0 0
  %2174 = vmatpush1.bf16.msra.mxu0 0
  %2175 = vmatprep.subr.bf16.mxu0 0
  %2176 = vmatpush1.bf16.msra.mxu0 0
  %2177 = vmatprep.subr.bf16.mxu0 0
  %2178 = vmatpush1.bf16.msra.mxu0 0
  %2179 = vmatprep.subr.bf16.mxu0 0
  %2180 = vmatpush1.bf16.msra.mxu0 0
  %2181 = vmatprep.subr.bf16.mxu0 0
  %2182 = vmatpush1.bf16.msra.mxu0 0
  %2183 = vmatprep.subr.bf16.mxu0 0
  %2184 = vmatpush1.bf16.msra.mxu0 0
  %2185 = vmatprep.subr.bf16.mxu0 0
  %2186 = vmatpush1.bf16.msra.mxu0 0
  %2187 = vmatprep.subr.bf16.mxu0 0
  %2188 = vmatpush1.bf16.msra.mxu0 0
  %2189 = vmatprep.subr.bf16.mxu0 0
  %2190 = vmatpush1.bf16.msra.mxu0 0
  %2191 = vmatprep.subr.bf16.mxu0 0
  %2192 = vmatpush1.bf16.msra.mxu0 0
  %2193 = vmatprep.subr.bf16.mxu0 0
  %2194 = vmatpush1.bf16.msra.mxu0 0
  %2195 = vmatprep.subr.bf16.mxu0 0
  %2196 = vmatpush1.bf16.msra.mxu0 0
  %2197 = vmatprep.mubr.bf16.mxu0 0
  %2198 = vmatmul.mubr.bf16.gmra.mrb[0].mxu0 %v2163
  %v2199 = vpop.f32.mrb[0].mxu0
  %v2200 = vadd.f32 0.0, %v2199
  %v2201 = vpop.f32.mrb[0].mxu0
  %v2202 = vpop.f32.mrb[0].mxu0
  %v2203 = vpop.f32.mrb[0].mxu0
  %2204 = vdwg.mxu0
  %v2205 = vadd.f32 %v1379, %v2200
  %v2206 = vpack.c.bf16 %v2205, %v2205
  %v2207 = vld [vmem:[%s49] sm:$0xff]
  %v2208 = vld [vmem:[%s49 + $0x8] sm:$0xff]
  %v2209 = vld [vmem:[%s49 + $0x10] sm:$0xff]
  %v2210 = vld [vmem:[%s49 + $0x18] sm:$0xff]
  %v2211 = vld [vmem:[%s49 + $0x20] sm:$0xff]
  %v2212 = vld [vmem:[%s49 + $0x28] sm:$0xff]
  %v2213 = vld [vmem:[%s49 + $0x30] sm:$0xff]
  %v2214 = vld [vmem:[%s49 + $0x38] sm:$0xff]
  %v2215 = vld [vmem:[%s51] sm:$0x3]
  %v2217 = vlaneseq
  %v2218 = vshrl.u32 %v2217, 7
  %v2219 = vsub.s32 0, %v2218
  %v2220 = vrot.slane %v2215, %v2219
  %v2221 = vlaneseq
  %v2222 = vshrl.u32 %v2221, 7
  %v2223 = vsub.s32 1, %v2222
  %v2224 = vrot.slane %v2215, %v2223
  %v2235 = vunpack.c.l.b16 %v2207
  %v2236 = vunpack.c.h.b16 %v2207
  %v2237 = vunpack.c.l.b16 %v2208
  %v2238 = vunpack.c.h.b16 %v2208
  %v2239 = vunpack.c.l.b16 %v2209
  %v2240 = vunpack.c.h.b16 %v2209
  %v2241 = vunpack.c.l.b16 %v2210
  %v2242 = vunpack.c.h.b16 %v2210
  %v2243 = vunpack.c.l.b16 %v2211
  %v2244 = vunpack.c.h.b16 %v2211
  %v2245 = vunpack.c.l.b16 %v2212
  %v2246 = vunpack.c.h.b16 %v2212
  %v2247 = vunpack.c.l.b16 %v2213
  %v2248 = vunpack.c.h.b16 %v2213
  %v2249 = vunpack.c.l.b16 %v2214
  %v2250 = vunpack.c.h.b16 %v2214
  %v2251 = vpack.c.b16 %v2237, %v2235
  %v2252 = vpack.c.b16 %v2238, %v2236
  %v2253 = vpack.c.b16 %v2241, %v2239
  %v2254 = vpack.c.b16 %v2242, %v2240
  %v2255 = vpack.c.b16 %v2245, %v2243
  %v2256 = vpack.c.b16 %v2246, %v2244
  %v2257 = vpack.c.b16 %v2249, %v2247
  %v2258 = vpack.c.b16 %v2250, %v2248
  %v2268 = vsel %vm1515, %v2206, 0
  %2270 = vmatprep.subr.bf16.mxu0 %v2252
  %2271 = vmatpush1.bf16.msra.mxu0 %v2251
  %2272 = vmatprep.subr.bf16.mxu0 %v2254
  %2273 = vmatpush1.bf16.msra.mxu0 %v2253
  %2274 = vmatprep.subr.bf16.mxu0 %v2256
  %2275 = vmatpush1.bf16.msra.mxu0 %v2255
  %2276 = vmatprep.subr.bf16.mxu0 %v2258
  %2277 = vmatpush1.bf16.msra.mxu0 %v2257
  %2278 = vmatprep.subr.bf16.mxu0 0
  %2279 = vmatpush1.bf16.msra.mxu0 0
  %2280 = vmatprep.subr.bf16.mxu0 0
  %2281 = vmatpush1.bf16.msra.mxu0 0
  %2282 = vmatprep.subr.bf16.mxu0 0
  %2283 = vmatpush1.bf16.msra.mxu0 0
  %2284 = vmatprep.subr.bf16.mxu0 0
  %2285 = vmatpush1.bf16.msra.mxu0 0
  %2286 = vmatprep.subr.bf16.mxu0 0
  %2287 = vmatpush1.bf16.msra.mxu0 0
  %2288 = vmatprep.subr.bf16.mxu0 0
  %2289 = vmatpush1.bf16.msra.mxu0 0
  %2290 = vmatprep.subr.bf16.mxu0 0
  %2291 = vmatpush1.bf16.msra.mxu0 0
  %2292 = vmatprep.subr.bf16.mxu0 0
  %2293 = vmatpush1.bf16.msra.mxu0 0
  %2294 = vmatprep.subr.bf16.mxu0 0
  %2295 = vmatpush1.bf16.msra.mxu0 0
  %2296 = vmatprep.subr.bf16.mxu0 0
  %2297 = vmatpush1.bf16.msra.mxu0 0
  %2298 = vmatprep.subr.bf16.mxu0 0
  %2299 = vmatpush1.bf16.msra.mxu0 0
  %2300 = vmatprep.subr.bf16.mxu0 0
  %2301 = vmatpush1.bf16.msra.mxu0 0
  %2302 = vmatprep.mubr.bf16.mxu0 0
  %2303 = vmatmul.mubr.bf16.gmra.mrb[0].mxu0 %v2268
  %v2304 = vpop.f32.mrb[0].mxu0
  %v2305 = vadd.f32 %v2220, %v2304
  %v2306 = vpop.f32.mrb[0].mxu0
  %v2307 = vadd.f32 %v2224, %v2306
  %v2308 = vpop.f32.mrb[0].mxu0
  %v2309 = vpop.f32.mrb[0].mxu0
  %2310 = vdwg.mxu0
  %v2311 = vpack.c.bf16 %v1680, %v1680
  %v2312 = vld [vmem:[%s53] sm:$0xff]
  %v2313 = vld [vmem:[%s53 + $0x8] sm:$0xff]
  %v2314 = vld [vmem:[%s53 + $0x10] sm:$0xff]
  %v2315 = vld [vmem:[%s53 + $0x18] sm:$0xff]
  %v2316 = vld [vmem:[%s53 + $0x20] sm:$0xff]
  %v2317 = vld [vmem:[%s53 + $0x28] sm:$0xff]
  %v2318 = vld [vmem:[%s53 + $0x30] sm:$0xff]
  %v2319 = vld [vmem:[%s53 + $0x38] sm:$0xff]
  %v2320 = vld [vmem:[%s55] sm:$0x3]
  %v2322 = vlaneseq
  %v2323 = vshrl.u32 %v2322, 7
  %v2324 = vsub.s32 0, %v2323
  %v2325 = vrot.slane %v2320, %v2324
  %v2326 = vlaneseq
  %v2327 = vshrl.u32 %v2326, 7
  %v2328 = vsub.s32 1, %v2327
  %v2329 = vrot.slane %v2320, %v2328
  %2333 = vrot.lane.b32.xlu0 %v2311, 64
  %v2334 = vpop.permute.xlu0 %2333
  %v2343 = vunpack.c.l.b16 %v2312
  %v2344 = vunpack.c.h.b16 %v2312
  %v2345 = vunpack.c.l.b16 %v2313
  %v2346 = vunpack.c.h.b16 %v2313
  %v2347 = vunpack.c.l.b16 %v2314
  %v2348 = vunpack.c.h.b16 %v2314
  %v2349 = vunpack.c.l.b16 %v2315
  %v2350 = vunpack.c.h.b16 %v2315
  %v2351 = vunpack.c.l.b16 %v2316
  %v2352 = vunpack.c.h.b16 %v2316
  %v2353 = vunpack.c.l.b16 %v2317
  %v2354 = vunpack.c.h.b16 %v2317
  %v2355 = vunpack.c.l.b16 %v2318
  %v2356 = vunpack.c.h.b16 %v2318
  %v2357 = vunpack.c.l.b16 %v2319
  %v2358 = vunpack.c.h.b16 %v2319
  %v2359 = vpack.c.b16 %v2345, %v2343
  %v2360 = vpack.c.b16 %v2346, %v2344
  %v2361 = vpack.c.b16 %v2349, %v2347
  %v2362 = vpack.c.b16 %v2350, %v2348
  %v2363 = vpack.c.b16 %v2353, %v2351
  %v2364 = vpack.c.b16 %v2354, %v2352
  %v2365 = vpack.c.b16 %v2357, %v2355
  %v2366 = vpack.c.b16 %v2358, %v2356
  %v2376 = vsel %vm1515, %v2334, 0
  %2378 = vmatprep.subr.bf16.mxu0 %v2360
  %2379 = vmatpush1.bf16.msra.mxu0 %v2359
  %2380 = vmatprep.subr.bf16.mxu0 %v2362
  %2381 = vmatpush1.bf16.msra.mxu0 %v2361
  %2382 = vmatprep.subr.bf16.mxu0 %v2364
  %2383 = vmatpush1.bf16.msra.mxu0 %v2363
  %2384 = vmatprep.subr.bf16.mxu0 %v2366
  %2385 = vmatpush1.bf16.msra.mxu0 %v2365
  %2386 = vmatprep.subr.bf16.mxu0 0
  %2387 = vmatpush1.bf16.msra.mxu0 0
  %2388 = vmatprep.subr.bf16.mxu0 0
  %2389 = vmatpush1.bf16.msra.mxu0 0
  %2390 = vmatprep.subr.bf16.mxu0 0
  %2391 = vmatpush1.bf16.msra.mxu0 0
  %2392 = vmatprep.subr.bf16.mxu0 0
  %2393 = vmatpush1.bf16.msra.mxu0 0
  %2394 = vmatprep.subr.bf16.mxu0 0
  %2395 = vmatpush1.bf16.msra.mxu0 0
  %2396 = vmatprep.subr.bf16.mxu0 0
  %2397 = vmatpush1.bf16.msra.mxu0 0
  %2398 = vmatprep.subr.bf16.mxu0 0
  %2399 = vmatpush1.bf16.msra.mxu0 0
  %2400 = vmatprep.subr.bf16.mxu0 0
  %2401 = vmatpush1.bf16.msra.mxu0 0
  %2402 = vmatprep.subr.bf16.mxu0 0
  %2403 = vmatpush1.bf16.msra.mxu0 0
  %2404 = vmatprep.subr.bf16.mxu0 0
  %2405 = vmatpush1.bf16.msra.mxu0 0
  %2406 = vmatprep.subr.bf16.mxu0 0
  %2407 = vmatpush1.bf16.msra.mxu0 0
  %2408 = vmatprep.subr.bf16.mxu0 0
  %2409 = vmatpush1.bf16.msra.mxu0 0
  %2410 = vmatprep.mubr.bf16.mxu0 0
  %2411 = vmatmul.mubr.bf16.gmra.mrb[0].mxu0 %v2376
  %v2412 = vpop.f32.mrb[0].mxu0
  %v2413 = vadd.f32 %v2325, %v2412
  %v2414 = vpop.f32.mrb[0].mxu0
  %v2415 = vadd.f32 %v2329, %v2414
  %v2416 = vpop.f32.mrb[0].mxu0
  %v2417 = vpop.f32.mrb[0].mxu0
  %2418 = vdwg.mxu0
  %v2419 = vadd.f32 %v2305, %v2413
  %v2420 = vxor.u32 %v2419, 2147483648
  %v2421 = vmul.f32 %v2420, 1.442695
  %v2422 = vpow.pop %v2421
  %v2423 = vadd.f32 %v2422, 1.0
  %v2424 = vrcp.pop %v2423
  %v2425 = vmul.f32 1.0, %v2424
  %v2426 = vmul.f32 %v2425, %v2415
  %v2427 = vadd.f32 %v2307, %v2426
  %v2428 = vtanh.pop %v2427
  %v2429 = vsub.f32 1.0, %v2425
  %2431 = vrot.lane.b32.xlu0 %v2428, 64
  %v2432 = vpop.permute.xlu0 %2431
  %v2434 = vmul.f32 %v2429, %v2432
  %v2435 = vmul.f32 %v2425, %v1680
  %v2436 = vadd.f32 %v2434, %v2435
  %2438 = vrot.lane.b32.xlu0 %v2436, 64
  %v2439 = vpop.permute.xlu0 %2438
  %s2441 = scalar_lea.vmem [#allocation2], 8
  %2442 = vst.msk [vmem:[%s2441] sm:$0xff] %vm1515, %v2439
  %v2443 = vld [vmem:[%s21] sm:$0xf]
  %v2444 = vld [vmem:[%s21 + $0x4] sm:$0xf]
  %v2445 = vld [vmem:[%s21 + $0x8] sm:$0xf]
  %v2446 = vld [vmem:[%s21 + $0xc] sm:$0xf]
  %v2447 = vld [vmem:[%s21 + $0x10] sm:$0xf]
  %v2448 = vld [vmem:[%s21 + $0x14] sm:$0xf]
  %v2449 = vld [vmem:[%s21 + $0x18] sm:$0xf]
  %v2450 = vld [vmem:[%s21 + $0x1c] sm:$0xf]
  %v2459 = vunpack.c.l.b16 %v2443
  %v2460 = vunpack.c.l.b16 %v2444
  %v2461 = vunpack.c.l.b16 %v2445
  %v2462 = vunpack.c.l.b16 %v2446
  %v2463 = vunpack.c.l.b16 %v2447
  %v2464 = vunpack.c.l.b16 %v2448
  %v2465 = vunpack.c.l.b16 %v2449
  %v2466 = vunpack.c.l.b16 %v2450
  %v2467 = vpack.c.b16 %v2460, %v2459
  %v2468 = vpack.c.b16 %v2462, %v2461
  %v2469 = vpack.c.b16 %v2464, %v2463
  %v2470 = vpack.c.b16 %v2466, %v2465
  %2475 = vmatprep.subr.bf16.mxu0 0
  %2476 = vmatpush1.bf16.msra.mxu0 %v2467
  %2477 = vmatprep.subr.bf16.mxu0 0
  %2478 = vmatpush1.bf16.msra.mxu0 %v2468
  %2479 = vmatprep.subr.bf16.mxu0 0
  %2480 = vmatpush1.bf16.msra.mxu0 %v2469
  %2481 = vmatprep.subr.bf16.mxu0 0
  %2482 = vmatpush1.bf16.msra.mxu0 %v2470
  %2483 = vmatprep.subr.bf16.mxu0 0
  %2484 = vmatpush1.bf16.msra.mxu0 0
  %2485 = vmatprep.subr.bf16.mxu0 0
  %2486 = vmatpush1.bf16.msra.mxu0 0
  %2487 = vmatprep.subr.bf16.mxu0 0
  %2488 = vmatpush1.bf16.msra.mxu0 0
  %2489 = vmatprep.subr.bf16.mxu0 0
  %2490 = vmatpush1.bf16.msra.mxu0 0
  %2491 = vmatprep.subr.bf16.mxu0 0
  %2492 = vmatpush1.bf16.msra.mxu0 0
  %2493 = vmatprep.subr.bf16.mxu0 0
  %2494 = vmatpush1.bf16.msra.mxu0 0
  %2495 = vmatprep.subr.bf16.mxu0 0
  %2496 = vmatpush1.bf16.msra.mxu0 0
  %2497 = vmatprep.subr.bf16.mxu0 0
  %2498 = vmatpush1.bf16.msra.mxu0 0
  %2499 = vmatprep.subr.bf16.mxu0 0
  %2500 = vmatpush1.bf16.msra.mxu0 0
  %2501 = vmatprep.subr.bf16.mxu0 0
  %2502 = vmatpush1.bf16.msra.mxu0 0
  %2503 = vmatprep.subr.bf16.mxu0 0
  %2504 = vmatpush1.bf16.msra.mxu0 0
  %2505 = vmatprep.subr.bf16.mxu0 0
  %2506 = vmatpush1.bf16.msra.mxu0 0
  %2507 = vmatprep.mubr.bf16.mxu0 0
  %2508 = vmatmul.mubr.bf16.gmra.mrb[0].mxu0 %v2268
  %v2509 = vpop.f32.mrb[0].mxu0
  %v2510 = vadd.f32 %v1449, %v2509
  %v2511 = vpop.f32.mrb[0].mxu0
  %v2512 = vpop.f32.mrb[0].mxu0
  %v2513 = vpop.f32.mrb[0].mxu0
  %2514 = vdwg.mxu0
  %v2515 = vmax.f32 %v2510, 0.0
  %v2516 = vpack.c.bf16 %v2515, %v2515
  %v2517 = vld [vmem:[%s27] sm:$0xf]
  %v2518 = vld [vmem:[%s27 + $0x4] sm:$0xf]
  %v2519 = vld [vmem:[%s27 + $0x8] sm:$0xf]
  %v2520 = vld [vmem:[%s27 + $0xc] sm:$0xf]
  %v2521 = vld [vmem:[%s29] sm:$0x1]
  %v2523 = vlaneseq
  %v2524 = vshrl.u32 %v2523, 7
  %v2525 = vsub.s32 0, %v2524
  %v2526 = vrot.slane %v2521, %v2525
  %v2532 = vunpack.c.l.b16 %v2517
  %v2533 = vunpack.c.l.b16 %v2518
  %v2534 = vunpack.c.l.b16 %v2519
  %v2535 = vunpack.c.l.b16 %v2520
  %v2536 = vpack.c.b16 %v2533, %v2532
  %v2537 = vpack.c.b16 %v2535, %v2534
  %v2541 = vsel %vm151, %v2516, 0
  %2543 = vmatprep.subr.bf16.mxu0 0
  %2544 = vmatpush1.bf16.msra.mxu0 %v2536
  %2545 = vmatprep.subr.bf16.mxu0 0
  %2546 = vmatpush1.bf16.msra.mxu0 %v2537
  %2547 = vmatprep.subr.bf16.mxu0 0
  %2548 = vmatpush1.bf16.msra.mxu0 0
  %2549 = vmatprep.subr.bf16.mxu0 0
  %2550 = vmatpush1.bf16.msra.mxu0 0
  %2551 = vmatprep.subr.bf16.mxu0 0
  %2552 = vmatpush1.bf16.msra.mxu0 0
  %2553 = vmatprep.subr.bf16.mxu0 0
  %2554 = vmatpush1.bf16.msra.mxu0 0
  %2555 = vmatprep.subr.bf16.mxu0 0
  %2556 = vmatpush1.bf16.msra.mxu0 0
  %2557 = vmatprep.subr.bf16.mxu0 0
  %2558 = vmatpush1.bf16.msra.mxu0 0
  %2559 = vmatprep.subr.bf16.mxu0 0
  %2560 = vmatpush1.bf16.msra.mxu0 0
  %2561 = vmatprep.subr.bf16.mxu0 0
  %2562 = vmatpush1.bf16.msra.mxu0 0
  %2563 = vmatprep.subr.bf16.mxu0 0
  %2564 = vmatpush1.bf16.msra.mxu0 0
  %2565 = vmatprep.subr.bf16.mxu0 0
  %2566 = vmatpush1.bf16.msra.mxu0 0
  %2567 = vmatprep.subr.bf16.mxu0 0
  %2568 = vmatpush1.bf16.msra.mxu0 0
  %2569 = vmatprep.subr.bf16.mxu0 0
  %2570 = vmatpush1.bf16.msra.mxu0 0
  %2571 = vmatprep.subr.bf16.mxu0 0
  %2572 = vmatpush1.bf16.msra.mxu0 0
  %2573 = vmatprep.subr.bf16.mxu0 0
  %2574 = vmatpush1.bf16.msra.mxu0 0
  %2575 = vmatprep.mubr.bf16.mxu0 0
  %2576 = vmatmul.mubr.bf16.gmra.mrb[0].mxu0 %v2541
  %v2577 = vpop.f32.mrb[0].mxu0
  %v2578 = vadd.f32 %v2526, %v2577
  %v2579 = vpop.f32.mrb[0].mxu0
  %v2580 = vpop.f32.mrb[0].mxu0
  %v2581 = vpop.f32.mrb[0].mxu0
  %2582 = vdwg.mxu0
  %v2583 = vmax.f32 %v2578, 0.0
  %v2584 = vpack.c.bf16 %v2583, %v2583
  %v2585 = vld [vmem:[%s31] sm:$0xf]
  %v2586 = vld [vmem:[%s31 + $0x4] sm:$0xf]
  %v2587 = vld [vmem:[%s31 + $0x8] sm:$0xf]
  %v2588 = vld [vmem:[%s31 + $0xc] sm:$0xf]
  %v2589 = vld [vmem:[%s33] sm:$0x1]
  %v2591 = vlaneseq
  %v2592 = vshrl.u32 %v2591, 7
  %v2593 = vsub.s32 0, %v2592
  %v2594 = vrot.slane %v2589, %v2593
  %v2600 = vunpack.c.l.b16 %v2585
  %v2601 = vunpack.c.l.b16 %v2586
  %v2602 = vunpack.c.l.b16 %v2587
  %v2603 = vunpack.c.l.b16 %v2588
  %v2604 = vpack.c.b16 %v2601, %v2600
  %v2605 = vpack.c.b16 %v2603, %v2602
  %v2609 = vsel %vm151, %v2584, 0
  %2611 = vmatprep.subr.bf16.mxu0 0
  %2612 = vmatpush1.bf16.msra.mxu0 %v2604
  %2613 = vmatprep.subr.bf16.mxu0 0
  %2614 = vmatpush1.bf16.msra.mxu0 %v2605
  %2615 = vmatprep.subr.bf16.mxu0 0
  %2616 = vmatpush1.bf16.msra.mxu0 0
  %2617 = vmatprep.subr.bf16.mxu0 0
  %2618 = vmatpush1.bf16.msra.mxu0 0
  %2619 = vmatprep.subr.bf16.mxu0 0
  %2620 = vmatpush1.bf16.msra.mxu0 0
  %2621 = vmatprep.subr.bf16.mxu0 0
  %2622 = vmatpush1.bf16.msra.mxu0 0
  %2623 = vmatprep.subr.bf16.mxu0 0
  %2624 = vmatpush1.bf16.msra.mxu0 0
  %2625 = vmatprep.subr.bf16.mxu0 0
  %2626 = vmatpush1.bf16.msra.mxu0 0
  %2627 = vmatprep.subr.bf16.mxu0 0
  %2628 = vmatpush1.bf16.msra.mxu0 0
  %2629 = vmatprep.subr.bf16.mxu0 0
  %2630 = vmatpush1.bf16.msra.mxu0 0
  %2631 = vmatprep.subr.bf16.mxu0 0
  %2632 = vmatpush1.bf16.msra.mxu0 0
  %2633 = vmatprep.subr.bf16.mxu0 0
  %2634 = vmatpush1.bf16.msra.mxu0 0
  %2635 = vmatprep.subr.bf16.mxu0 0
  %2636 = vmatpush1.bf16.msra.mxu0 0
  %2637 = vmatprep.subr.bf16.mxu0 0
  %2638 = vmatpush1.bf16.msra.mxu0 0
  %2639 = vmatprep.subr.bf16.mxu0 0
  %2640 = vmatpush1.bf16.msra.mxu0 0
  %2641 = vmatprep.subr.bf16.mxu0 0
  %2642 = vmatpush1.bf16.msra.mxu0 0
  %2643 = vmatprep.mubr.bf16.mxu0 0
  %2644 = vmatmul.mubr.bf16.gmra.mrb[0].mxu0 %v2609
  %v2645 = vpop.f32.mrb[0].mxu0
  %v2646 = vadd.f32 %v2594, %v2645
  %v2647 = vpop.f32.mrb[0].mxu0
  %v2648 = vpop.f32.mrb[0].mxu0
  %v2649 = vpop.f32.mrb[0].mxu0
  %2650 = vdwg.mxu0
  %v2651 = vld [vmem:[%s35] sm:$0xf]
  %v2652 = vld [vmem:[%s35 + $0x4] sm:$0xf]
  %v2653 = vld [vmem:[%s35 + $0x8] sm:$0xf]
  %v2654 = vld [vmem:[%s35 + $0xc] sm:$0xf]
  %v2655 = vld [vmem:[%s37] sm:$0x1]
  %v2657 = vlaneseq
  %v2658 = vshrl.u32 %v2657, 7
  %v2659 = vsub.s32 0, %v2658
  %v2660 = vrot.slane %v2655, %v2659
  %v2666 = vunpack.c.l.b16 %v2651
  %v2667 = vunpack.c.l.b16 %v2652
  %v2668 = vunpack.c.l.b16 %v2653
  %v2669 = vunpack.c.l.b16 %v2654
  %v2670 = vpack.c.b16 %v2667, %v2666
  %v2671 = vpack.c.b16 %v2669, %v2668
  %2674 = vmatprep.subr.bf16.mxu0 0
  %2675 = vmatpush1.bf16.msra.mxu0 %v2670
  %2676 = vmatprep.subr.bf16.mxu0 0
  %2677 = vmatpush1.bf16.msra.mxu0 %v2671
  %2678 = vmatprep.subr.bf16.mxu0 0
  %2679 = vmatpush1.bf16.msra.mxu0 0
  %2680 = vmatprep.subr.bf16.mxu0 0
  %2681 = vmatpush1.bf16.msra.mxu0 0
  %2682 = vmatprep.subr.bf16.mxu0 0
  %2683 = vmatpush1.bf16.msra.mxu0 0
  %2684 = vmatprep.subr.bf16.mxu0 0
  %2685 = vmatpush1.bf16.msra.mxu0 0
  %2686 = vmatprep.subr.bf16.mxu0 0
  %2687 = vmatpush1.bf16.msra.mxu0 0
  %2688 = vmatprep.subr.bf16.mxu0 0
  %2689 = vmatpush1.bf16.msra.mxu0 0
  %2690 = vmatprep.subr.bf16.mxu0 0
  %2691 = vmatpush1.bf16.msra.mxu0 0
  %2692 = vmatprep.subr.bf16.mxu0 0
  %2693 = vmatpush1.bf16.msra.mxu0 0
  %2694 = vmatprep.subr.bf16.mxu0 0
  %2695 = vmatpush1.bf16.msra.mxu0 0
  %2696 = vmatprep.subr.bf16.mxu0 0
  %2697 = vmatpush1.bf16.msra.mxu0 0
  %2698 = vmatprep.subr.bf16.mxu0 0
  %2699 = vmatpush1.bf16.msra.mxu0 0
  %2700 = vmatprep.subr.bf16.mxu0 0
  %2701 = vmatpush1.bf16.msra.mxu0 0
  %2702 = vmatprep.subr.bf16.mxu0 0
  %2703 = vmatpush1.bf16.msra.mxu0 0
  %2704 = vmatprep.subr.bf16.mxu0 0
  %2705 = vmatpush1.bf16.msra.mxu0 0
  %2706 = vmatprep.mubr.bf16.mxu0 0
  %2707 = vmatmul.mubr.bf16.gmra.mrb[0].mxu0 %v2011
  %v2708 = vpop.f32.mrb[0].mxu0
  %v2709 = vadd.f32 %v2660, %v2708
  %v2710 = vpop.f32.mrb[0].mxu0
  %v2711 = vpop.f32.mrb[0].mxu0
  %v2712 = vpop.f32.mrb[0].mxu0
  %2713 = vdwg.mxu0
  %v2714 = vadd.f32 %v2646, %v2709
  %v2715 = vxor.u32 %v2714, 2147483648
  %v2716 = vmul.f32 %v2715, 1.442695
  %v2717 = vpow.pop %v2716
  %v2718 = vadd.f32 %v2717, 1.0
  %v2719 = vrcp.pop %v2718
  %v2720 = vmul.f32 1.0, %v2719
  %2722 = vrot.lane.b32.xlu0 %v2709, 64
  %v2723 = vpop.permute.xlu0 %2722
  %v2725 = vmul.f32 %v2720, %v2723
  %2727 = vrot.lane.b32.xlu0 %v2725, 64
  %v2728 = vpop.permute.xlu0 %2727
  %v2730 = vadd.f32 %v2646, %v2728
  %v2731 = vtanh.pop %v2730
  %v2732 = vsub.f32 1.0, %v2720
  %2734 = vrot.lane.b32.xlu0 %v2731, 96
  %v2735 = vpop.permute.xlu0 %2734
  %v2737 = vmul.f32 %v2732, %v2735
  %v2738 = vmul.f32 %v2720, %v1982
  %v2739 = vadd.f32 %v2737, %v2738
  %v2740 = vpack.c.bf16 %v2739, %v2739
  %v2741 = vld [vmem:[%s39] sm:$0xf]
  %v2742 = vld [vmem:[%s39 + $0x4] sm:$0xf]
  %v2743 = vld [vmem:[%s39 + $0x8] sm:$0xf]
  %v2744 = vld [vmem:[%s39 + $0xc] sm:$0xf]
  %v2745 = vld [vmem:[%s41] sm:$0x1]
  %v2747 = vlaneseq
  %v2748 = vshrl.u32 %v2747, 7
  %v2749 = vsub.s32 0, %v2748
  %v2750 = vrot.slane %v2745, %v2749
  %2753 = vrot.lane.b32.xlu0 %v2740, 96
  %v2754 = vpop.permute.xlu0 %2753
  %v2759 = vunpack.c.l.b16 %v2741
  %v2760 = vunpack.c.l.b16 %v2742
  %v2761 = vunpack.c.l.b16 %v2743
  %v2762 = vunpack.c.l.b16 %v2744
  %v2763 = vpack.c.b16 %v2760, %v2759
  %v2764 = vpack.c.b16 %v2762, %v2761
  %v2768 = vsel %vm151, %v2754, 0
  %2770 = vmatprep.subr.bf16.mxu0 0
  %2771 = vmatpush1.bf16.msra.mxu0 %v2763
  %2772 = vmatprep.subr.bf16.mxu0 0
  %2773 = vmatpush1.bf16.msra.mxu0 %v2764
  %2774 = vmatprep.subr.bf16.mxu0 0
  %2775 = vmatpush1.bf16.msra.mxu0 0
  %2776 = vmatprep.subr.bf16.mxu0 0
  %2777 = vmatpush1.bf16.msra.mxu0 0
  %2778 = vmatprep.subr.bf16.mxu0 0
  %2779 = vmatpush1.bf16.msra.mxu0 0
  %2780 = vmatprep.subr.bf16.mxu0 0
  %2781 = vmatpush1.bf16.msra.mxu0 0
  %2782 = vmatprep.subr.bf16.mxu0 0
  %2783 = vmatpush1.bf16.msra.mxu0 0
  %2784 = vmatprep.subr.bf16.mxu0 0
  %2785 = vmatpush1.bf16.msra.mxu0 0
  %2786 = vmatprep.subr.bf16.mxu0 0
  %2787 = vmatpush1.bf16.msra.mxu0 0
  %2788 = vmatprep.subr.bf16.mxu0 0
  %2789 = vmatpush1.bf16.msra.mxu0 0
  %2790 = vmatprep.subr.bf16.mxu0 0
  %2791 = vmatpush1.bf16.msra.mxu0 0
  %2792 = vmatprep.subr.bf16.mxu0 0
  %2793 = vmatpush1.bf16.msra.mxu0 0
  %2794 = vmatprep.subr.bf16.mxu0 0
  %2795 = vmatpush1.bf16.msra.mxu0 0
  %2796 = vmatprep.subr.bf16.mxu0 0
  %2797 = vmatpush1.bf16.msra.mxu0 0
  %2798 = vmatprep.subr.bf16.mxu0 0
  %2799 = vmatpush1.bf16.msra.mxu0 0
  %2800 = vmatprep.subr.bf16.mxu0 0
  %2801 = vmatpush1.bf16.msra.mxu0 0
  %2802 = vmatprep.mubr.bf16.mxu0 0
  %2803 = vmatmul.mubr.bf16.gmra.mrb[0].mxu0 %v2768
  %v2804 = vpop.f32.mrb[0].mxu0
  %v2805 = vadd.f32 %v2750, %v2804
  %v2806 = vpop.f32.mrb[0].mxu0
  %v2807 = vpop.f32.mrb[0].mxu0
  %v2808 = vpop.f32.mrb[0].mxu0
  %2809 = vdwg.mxu0
  %v2810 = vld [vmem:[%s43] sm:$0xf]
  %v2811 = vld [vmem:[%s43 + $0x4] sm:$0xf]
  %v2812 = vld [vmem:[%s43 + $0x8] sm:$0xf]
  %v2813 = vld [vmem:[%s43 + $0xc] sm:$0xf]
  %v2814 = vld [vmem:[%s45] sm:$0x1]
  %v2816 = vlaneseq
  %v2817 = vshrl.u32 %v2816, 7
  %v2818 = vsub.s32 0, %v2817
  %v2819 = vrot.slane %v2814, %v2818
  %v2825 = vunpack.c.l.b16 %v2810
  %v2826 = vunpack.c.l.b16 %v2811
  %v2827 = vunpack.c.l.b16 %v2812
  %v2828 = vunpack.c.l.b16 %v2813
  %v2829 = vpack.c.b16 %v2826, %v2825
  %v2830 = vpack.c.b16 %v2828, %v2827
  %2833 = vmatprep.subr.bf16.mxu0 0
  %2834 = vmatpush1.bf16.msra.mxu0 %v2829
  %2835 = vmatprep.subr.bf16.mxu0 0
  %2836 = vmatpush1.bf16.msra.mxu0 %v2830
  %2837 = vmatprep.subr.bf16.mxu0 0
  %2838 = vmatpush1.bf16.msra.mxu0 0
  %2839 = vmatprep.subr.bf16.mxu0 0
  %2840 = vmatpush1.bf16.msra.mxu0 0
  %2841 = vmatprep.subr.bf16.mxu0 0
  %2842 = vmatpush1.bf16.msra.mxu0 0
  %2843 = vmatprep.subr.bf16.mxu0 0
  %2844 = vmatpush1.bf16.msra.mxu0 0
  %2845 = vmatprep.subr.bf16.mxu0 0
  %2846 = vmatpush1.bf16.msra.mxu0 0
  %2847 = vmatprep.subr.bf16.mxu0 0
  %2848 = vmatpush1.bf16.msra.mxu0 0
  %2849 = vmatprep.subr.bf16.mxu0 0
  %2850 = vmatpush1.bf16.msra.mxu0 0
  %2851 = vmatprep.subr.bf16.mxu0 0
  %2852 = vmatpush1.bf16.msra.mxu0 0
  %2853 = vmatprep.subr.bf16.mxu0 0
  %2854 = vmatpush1.bf16.msra.mxu0 0
  %2855 = vmatprep.subr.bf16.mxu0 0
  %2856 = vmatpush1.bf16.msra.mxu0 0
  %2857 = vmatprep.subr.bf16.mxu0 0
  %2858 = vmatpush1.bf16.msra.mxu0 0
  %2859 = vmatprep.subr.bf16.mxu0 0
  %2860 = vmatpush1.bf16.msra.mxu0 0
  %2861 = vmatprep.subr.bf16.mxu0 0
  %2862 = vmatpush1.bf16.msra.mxu0 0
  %2863 = vmatprep.subr.bf16.mxu0 0
  %2864 = vmatpush1.bf16.msra.mxu0 0
  %2865 = vmatprep.mubr.bf16.mxu0 0
  %2866 = vmatmul.mubr.bf16.gmra.mrb[0].mxu0 %v2163
  %v2867 = vpop.f32.mrb[0].mxu0
  %v2868 = vadd.f32 %v2819, %v2867
  %v2869 = vpop.f32.mrb[0].mxu0
  %v2870 = vpop.f32.mrb[0].mxu0
  %v2871 = vpop.f32.mrb[0].mxu0
  %2872 = vdwg.mxu0
  %v2873 = vadd.f32 %v2805, %v2868
  %v2874 = vxor.u32 %v2873, 2147483648
  %v2875 = vmul.f32 %v2874, 1.442695
  %v2876 = vpow.pop %v2875
  %v2877 = vadd.f32 %v2876, 1.0
  %v2878 = vrcp.pop %v2877
  %v2879 = vmul.f32 1.0, %v2878
  %2881 = vrot.lane.b32.xlu0 %v2868, 64
  %v2882 = vpop.permute.xlu0 %2881
  %v2884 = vmul.f32 %v2879, %v2882
  %2886 = vrot.lane.b32.xlu0 %v2884, 64
  %v2887 = vpop.permute.xlu0 %2886
  %v2889 = vadd.f32 %v2805, %v2887
  %v2890 = vtanh.pop %v2889
  %v2891 = vsub.f32 1.0, %v2879
  %2893 = vrot.lane.b32.xlu0 %v2890, 96
  %v2894 = vpop.permute.xlu0 %2893
  %v2896 = vmul.f32 %v2891, %v2894
  %v2897 = vmul.f32 %v2879, %v2141
  %v2898 = vadd.f32 %v2896, %v2897
  %v2899 = vpack.c.bf16 %v2898, %v2898
  %v2900 = vld [vmem:[%s47] sm:$0xf]
  %v2901 = vld [vmem:[%s47 + $0x4] sm:$0xf]
  %v2902 = vld [vmem:[%s47 + $0x8] sm:$0xf]
  %v2903 = vld [vmem:[%s47 + $0xc] sm:$0xf]
  %2905 = vrot.lane.b32.xlu0 %v2899, 96
  %v2906 = vpop.permute.xlu0 %2905
  %v2911 = vunpack.c.l.b16 %v2900
  %v2912 = vunpack.c.l.b16 %v2901
  %v2913 = vunpack.c.l.b16 %v2902
  %v2914 = vunpack.c.l.b16 %v2903
  %v2915 = vpack.c.b16 %v2912, %v2911
  %v2916 = vpack.c.b16 %v2914, %v2913
  %v2920 = vsel %vm151, %v2906, 0
  %2922 = vmatprep.subr.bf16.mxu0 0
  %2923 = vmatpush1.bf16.msra.mxu0 %v2915
  %2924 = vmatprep.subr.bf16.mxu0 0
  %2925 = vmatpush1.bf16.msra.mxu0 %v2916
  %2926 = vmatprep.subr.bf16.mxu0 0
  %2927 = vmatpush1.bf16.msra.mxu0 0
  %2928 = vmatprep.subr.bf16.mxu0 0
  %2929 = vmatpush1.bf16.msra.mxu0 0
  %2930 = vmatprep.subr.bf16.mxu0 0
  %2931 = vmatpush1.bf16.msra.mxu0 0
  %2932 = vmatprep.subr.bf16.mxu0 0
  %2933 = vmatpush1.bf16.msra.mxu0 0
  %2934 = vmatprep.subr.bf16.mxu0 0
  %2935 = vmatpush1.bf16.msra.mxu0 0
  %2936 = vmatprep.subr.bf16.mxu0 0
  %2937 = vmatpush1.bf16.msra.mxu0 0
  %2938 = vmatprep.subr.bf16.mxu0 0
  %2939 = vmatpush1.bf16.msra.mxu0 0
  %2940 = vmatprep.subr.bf16.mxu0 0
  %2941 = vmatpush1.bf16.msra.mxu0 0
  %2942 = vmatprep.subr.bf16.mxu0 0
  %2943 = vmatpush1.bf16.msra.mxu0 0
  %2944 = vmatprep.subr.bf16.mxu0 0
  %2945 = vmatpush1.bf16.msra.mxu0 0
  %2946 = vmatprep.subr.bf16.mxu0 0
  %2947 = vmatpush1.bf16.msra.mxu0 0
  %2948 = vmatprep.subr.bf16.mxu0 0
  %2949 = vmatpush1.bf16.msra.mxu0 0
  %2950 = vmatprep.subr.bf16.mxu0 0
  %2951 = vmatpush1.bf16.msra.mxu0 0
  %2952 = vmatprep.subr.bf16.mxu0 0
  %2953 = vmatpush1.bf16.msra.mxu0 0
  %2954 = vmatprep.mubr.bf16.mxu0 0
  %2955 = vmatmul.mubr.bf16.gmra.mrb[0].mxu0 %v2920
  %v2956 = vpop.f32.mrb[0].mxu0
  %v2957 = vadd.f32 0.0, %v2956
  %v2958 = vpop.f32.mrb[0].mxu0
  %v2959 = vpop.f32.mrb[0].mxu0
  %v2960 = vpop.f32.mrb[0].mxu0
  %2961 = vdwg.mxu0
  %v2962 = vadd.f32 %v2205, %v2957
  %v2963 = vpack.c.bf16 %v2962, %v2962
  %v2964 = vld [vmem:[%s49] sm:$0xff]
  %v2965 = vld [vmem:[%s49 + $0x8] sm:$0xff]
  %v2966 = vld [vmem:[%s49 + $0x10] sm:$0xff]
  %v2967 = vld [vmem:[%s49 + $0x18] sm:$0xff]
  %v2968 = vld [vmem:[%s49 + $0x20] sm:$0xff]
  %v2969 = vld [vmem:[%s49 + $0x28] sm:$0xff]
  %v2970 = vld [vmem:[%s49 + $0x30] sm:$0xff]
  %v2971 = vld [vmem:[%s49 + $0x38] sm:$0xff]
  %v2972 = vld [vmem:[%s51] sm:$0x3]
  %v2974 = vlaneseq
  %v2975 = vshrl.u32 %v2974, 7
  %v2976 = vsub.s32 0, %v2975
  %v2977 = vrot.slane %v2972, %v2976
  %v2978 = vlaneseq
  %v2979 = vshrl.u32 %v2978, 7
  %v2980 = vsub.s32 1, %v2979
  %v2981 = vrot.slane %v2972, %v2980
  %v2992 = vunpack.c.l.b16 %v2964
  %v2993 = vunpack.c.h.b16 %v2964
  %v2994 = vunpack.c.l.b16 %v2965
  %v2995 = vunpack.c.h.b16 %v2965
  %v2996 = vunpack.c.l.b16 %v2966
  %v2997 = vunpack.c.h.b16 %v2966
  %v2998 = vunpack.c.l.b16 %v2967
  %v2999 = vunpack.c.h.b16 %v2967
  %v3000 = vunpack.c.l.b16 %v2968
  %v3001 = vunpack.c.h.b16 %v2968
  %v3002 = vunpack.c.l.b16 %v2969
  %v3003 = vunpack.c.h.b16 %v2969
  %v3004 = vunpack.c.l.b16 %v2970
  %v3005 = vunpack.c.h.b16 %v2970
  %v3006 = vunpack.c.l.b16 %v2971
  %v3007 = vunpack.c.h.b16 %v2971
  %v3008 = vpack.c.b16 %v2994, %v2992
  %v3009 = vpack.c.b16 %v2995, %v2993
  %v3010 = vpack.c.b16 %v2998, %v2996
  %v3011 = vpack.c.b16 %v2999, %v2997
  %v3012 = vpack.c.b16 %v3002, %v3000
  %v3013 = vpack.c.b16 %v3003, %v3001
  %v3014 = vpack.c.b16 %v3006, %v3004
  %v3015 = vpack.c.b16 %v3007, %v3005
  %v3025 = vsel %vm1515, %v2963, 0
  %3027 = vmatprep.subr.bf16.mxu0 %v3009
  %3028 = vmatpush1.bf16.msra.mxu0 %v3008
  %3029 = vmatprep.subr.bf16.mxu0 %v3011
  %3030 = vmatpush1.bf16.msra.mxu0 %v3010
  %3031 = vmatprep.subr.bf16.mxu0 %v3013
  %3032 = vmatpush1.bf16.msra.mxu0 %v3012
  %3033 = vmatprep.subr.bf16.mxu0 %v3015
  %3034 = vmatpush1.bf16.msra.mxu0 %v3014
  %3035 = vmatprep.subr.bf16.mxu0 0
  %3036 = vmatpush1.bf16.msra.mxu0 0
  %3037 = vmatprep.subr.bf16.mxu0 0
  %3038 = vmatpush1.bf16.msra.mxu0 0
  %3039 = vmatprep.subr.bf16.mxu0 0
  %3040 = vmatpush1.bf16.msra.mxu0 0
  %3041 = vmatprep.subr.bf16.mxu0 0
  %3042 = vmatpush1.bf16.msra.mxu0 0
  %3043 = vmatprep.subr.bf16.mxu0 0
  %3044 = vmatpush1.bf16.msra.mxu0 0
  %3045 = vmatprep.subr.bf16.mxu0 0
  %3046 = vmatpush1.bf16.msra.mxu0 0
  %3047 = vmatprep.subr.bf16.mxu0 0
  %3048 = vmatpush1.bf16.msra.mxu0 0
  %3049 = vmatprep.subr.bf16.mxu0 0
  %3050 = vmatpush1.bf16.msra.mxu0 0
  %3051 = vmatprep.subr.bf16.mxu0 0
  %3052 = vmatpush1.bf16.msra.mxu0 0
  %3053 = vmatprep.subr.bf16.mxu0 0
  %3054 = vmatpush1.bf16.msra.mxu0 0
  %3055 = vmatprep.subr.bf16.mxu0 0
  %3056 = vmatpush1.bf16.msra.mxu0 0
  %3057 = vmatprep.subr.bf16.mxu0 0
  %3058 = vmatpush1.bf16.msra.mxu0 0
  %3059 = vmatprep.mubr.bf16.mxu0 0
  %3060 = vmatmul.mubr.bf16.gmra.mrb[0].mxu0 %v3025
  %v3061 = vpop.f32.mrb[0].mxu0
  %v3062 = vadd.f32 %v2977, %v3061
  %v3063 = vpop.f32.mrb[0].mxu0
  %v3064 = vadd.f32 %v2981, %v3063
  %v3065 = vpop.f32.mrb[0].mxu0
  %v3066 = vpop.f32.mrb[0].mxu0
  %3067 = vdwg.mxu0
  %v3068 = vpack.c.bf16 %v2436, %v2436
  %v3069 = vld [vmem:[%s53] sm:$0xff]
  %v3070 = vld [vmem:[%s53 + $0x8] sm:$0xff]
  %v3071 = vld [vmem:[%s53 + $0x10] sm:$0xff]
  %v3072 = vld [vmem:[%s53 + $0x18] sm:$0xff]
  %v3073 = vld [vmem:[%s53 + $0x20] sm:$0xff]
  %v3074 = vld [vmem:[%s53 + $0x28] sm:$0xff]
  %v3075 = vld [vmem:[%s53 + $0x30] sm:$0xff]
  %v3076 = vld [vmem:[%s53 + $0x38] sm:$0xff]
  %v3077 = vld [vmem:[%s55] sm:$0x3]
  %v3079 = vlaneseq
  %v3080 = vshrl.u32 %v3079, 7
  %v3081 = vsub.s32 0, %v3080
  %v3082 = vrot.slane %v3077, %v3081
  %v3083 = vlaneseq
  %v3084 = vshrl.u32 %v3083, 7
  %v3085 = vsub.s32 1, %v3084
  %v3086 = vrot.slane %v3077, %v3085
  %3090 = vrot.lane.b32.xlu0 %v3068, 64
  %v3091 = vpop.permute.xlu0 %3090
  %v3100 = vunpack.c.l.b16 %v3069
  %v3101 = vunpack.c.h.b16 %v3069
  %v3102 = vunpack.c.l.b16 %v3070
  %v3103 = vunpack.c.h.b16 %v3070
  %v3104 = vunpack.c.l.b16 %v3071
  %v3105 = vunpack.c.h.b16 %v3071
  %v3106 = vunpack.c.l.b16 %v3072
  %v3107 = vunpack.c.h.b16 %v3072
  %v3108 = vunpack.c.l.b16 %v3073
  %v3109 = vunpack.c.h.b16 %v3073
  %v3110 = vunpack.c.l.b16 %v3074
  %v3111 = vunpack.c.h.b16 %v3074
  %v3112 = vunpack.c.l.b16 %v3075
  %v3113 = vunpack.c.h.b16 %v3075
  %v3114 = vunpack.c.l.b16 %v3076
  %v3115 = vunpack.c.h.b16 %v3076
  %v3116 = vpack.c.b16 %v3102, %v3100
  %v3117 = vpack.c.b16 %v3103, %v3101
  %v3118 = vpack.c.b16 %v3106, %v3104
  %v3119 = vpack.c.b16 %v3107, %v3105
  %v3120 = vpack.c.b16 %v3110, %v3108
  %v3121 = vpack.c.b16 %v3111, %v3109
  %v3122 = vpack.c.b16 %v3114, %v3112
  %v3123 = vpack.c.b16 %v3115, %v3113
  %v3133 = vsel %vm1515, %v3091, 0
  %3135 = vmatprep.subr.bf16.mxu0 %v3117
  %3136 = vmatpush1.bf16.msra.mxu0 %v3116
  %3137 = vmatprep.subr.bf16.mxu0 %v3119
  %3138 = vmatpush1.bf16.msra.mxu0 %v3118
  %3139 = vmatprep.subr.bf16.mxu0 %v3121
  %3140 = vmatpush1.bf16.msra.mxu0 %v3120
  %3141 = vmatprep.subr.bf16.mxu0 %v3123
  %3142 = vmatpush1.bf16.msra.mxu0 %v3122
  %3143 = vmatprep.subr.bf16.mxu0 0
  %3144 = vmatpush1.bf16.msra.mxu0 0
  %3145 = vmatprep.subr.bf16.mxu0 0
  %3146 = vmatpush1.bf16.msra.mxu0 0
  %3147 = vmatprep.subr.bf16.mxu0 0
  %3148 = vmatpush1.bf16.msra.mxu0 0
  %3149 = vmatprep.subr.bf16.mxu0 0
  %3150 = vmatpush1.bf16.msra.mxu0 0
  %3151 = vmatprep.subr.bf16.mxu0 0
  %3152 = vmatpush1.bf16.msra.mxu0 0
  %3153 = vmatprep.subr.bf16.mxu0 0
  %3154 = vmatpush1.bf16.msra.mxu0 0
  %3155 = vmatprep.subr.bf16.mxu0 0
  %3156 = vmatpush1.bf16.msra.mxu0 0
  %3157 = vmatprep.subr.bf16.mxu0 0
  %3158 = vmatpush1.bf16.msra.mxu0 0
  %3159 = vmatprep.subr.bf16.mxu0 0
  %3160 = vmatpush1.bf16.msra.mxu0 0
  %3161 = vmatprep.subr.bf16.mxu0 0
  %3162 = vmatpush1.bf16.msra.mxu0 0
  %3163 = vmatprep.subr.bf16.mxu0 0
  %3164 = vmatpush1.bf16.msra.mxu0 0
  %3165 = vmatprep.subr.bf16.mxu0 0
  %3166 = vmatpush1.bf16.msra.mxu0 0
  %3167 = vmatprep.mubr.bf16.mxu0 0
  %3168 = vmatmul.mubr.bf16.gmra.mrb[0].mxu0 %v3133
  %v3169 = vpop.f32.mrb[0].mxu0
  %v3170 = vadd.f32 %v3082, %v3169
  %v3171 = vpop.f32.mrb[0].mxu0
  %v3172 = vadd.f32 %v3086, %v3171
  %v3173 = vpop.f32.mrb[0].mxu0
  %v3174 = vpop.f32.mrb[0].mxu0
  %3175 = vdwg.mxu0
  %v3176 = vadd.f32 %v3062, %v3170
  %v3177 = vxor.u32 %v3176, 2147483648
  %v3178 = vmul.f32 %v3177, 1.442695
  %v3179 = vpow.pop %v3178
  %v3180 = vadd.f32 %v3179, 1.0
  %v3181 = vrcp.pop %v3180
  %v3182 = vmul.f32 1.0, %v3181
  %v3183 = vmul.f32 %v3182, %v3172
  %v3184 = vadd.f32 %v3064, %v3183
  %v3185 = vtanh.pop %v3184
  %v3186 = vsub.f32 1.0, %v3182
  %3188 = vrot.lane.b32.xlu0 %v3185, 64
  %v3189 = vpop.permute.xlu0 %3188
  %v3191 = vmul.f32 %v3186, %v3189
  %v3192 = vmul.f32 %v3182, %v2436
  %v3193 = vadd.f32 %v3191, %v3192
  %3195 = vrot.lane.b32.xlu0 %v3193, 64
  %v3196 = vpop.permute.xlu0 %3195
  %s3198 = scalar_lea.vmem [#allocation2], 16
  %3199 = vst.msk [vmem:[%s3198] sm:$0xff] %vm1515, %v3196
  %v3200 = vld [vmem:[%s21] sm:$0xf]
  %v3201 = vld [vmem:[%s21 + $0x4] sm:$0xf]
  %v3202 = vld [vmem:[%s21 + $0x8] sm:$0xf]
  %v3203 = vld [vmem:[%s21 + $0xc] sm:$0xf]
  %v3204 = vld [vmem:[%s21 + $0x10] sm:$0xf]
  %v3205 = vld [vmem:[%s21 + $0x14] sm:$0xf]
  %v3206 = vld [vmem:[%s21 + $0x18] sm:$0xf]
  %v3207 = vld [vmem:[%s21 + $0x1c] sm:$0xf]
  %v3216 = vunpack.c.l.b16 %v3200
  %v3217 = vunpack.c.l.b16 %v3201
  %v3218 = vunpack.c.l.b16 %v3202
  %v3219 = vunpack.c.l.b16 %v3203
  %v3220 = vunpack.c.l.b16 %v3204
  %v3221 = vunpack.c.l.b16 %v3205
  %v3222 = vunpack.c.l.b16 %v3206
  %v3223 = vunpack.c.l.b16 %v3207
  %v3224 = vpack.c.b16 %v3217, %v3216
  %v3225 = vpack.c.b16 %v3219, %v3218
  %v3226 = vpack.c.b16 %v3221, %v3220
  %v3227 = vpack.c.b16 %v3223, %v3222
  %3232 = vmatprep.subr.bf16.mxu0 0
  %3233 = vmatpush1.bf16.msra.mxu0 %v3224
  %3234 = vmatprep.subr.bf16.mxu0 0
  %3235 = vmatpush1.bf16.msra.mxu0 %v3225
  %3236 = vmatprep.subr.bf16.mxu0 0
  %3237 = vmatpush1.bf16.msra.mxu0 %v3226
  %3238 = vmatprep.subr.bf16.mxu0 0
  %3239 = vmatpush1.bf16.msra.mxu0 %v3227
  %3240 = vmatprep.subr.bf16.mxu0 0
  %3241 = vmatpush1.bf16.msra.mxu0 0
  %3242 = vmatprep.subr.bf16.mxu0 0
  %3243 = vmatpush1.bf16.msra.mxu0 0
  %3244 = vmatprep.subr.bf16.mxu0 0
  %3245 = vmatpush1.bf16.msra.mxu0 0
  %3246 = vmatprep.subr.bf16.mxu0 0
  %3247 = vmatpush1.bf16.msra.mxu0 0
  %3248 = vmatprep.subr.bf16.mxu0 0
  %3249 = vmatpush1.bf16.msra.mxu0 0
  %3250 = vmatprep.subr.bf16.mxu0 0
  %3251 = vmatpush1.bf16.msra.mxu0 0
  %3252 = vmatprep.subr.bf16.mxu0 0
  %3253 = vmatpush1.bf16.msra.mxu0 0
  %3254 = vmatprep.subr.bf16.mxu0 0
  %3255 = vmatpush1.bf16.msra.mxu0 0
  %3256 = vmatprep.subr.bf16.mxu0 0
  %3257 = vmatpush1.bf16.msra.mxu0 0
  %3258 = vmatprep.subr.bf16.mxu0 0
  %3259 = vmatpush1.bf16.msra.mxu0 0
  %3260 = vmatprep.subr.bf16.mxu0 0
  %3261 = vmatpush1.bf16.msra.mxu0 0
  %3262 = vmatprep.subr.bf16.mxu0 0
  %3263 = vmatpush1.bf16.msra.mxu0 0
  %3264 = vmatprep.mubr.bf16.mxu0 0
  %3265 = vmatmul.mubr.bf16.gmra.mrb[0].mxu0 %v3025
  %v3266 = vpop.f32.mrb[0].mxu0
  %v3267 = vadd.f32 %v1449, %v3266
  %v3268 = vpop.f32.mrb[0].mxu0
  %v3269 = vpop.f32.mrb[0].mxu0
  %v3270 = vpop.f32.mrb[0].mxu0
  %3271 = vdwg.mxu0
  %v3272 = vmax.f32 %v3267, 0.0
  %v3273 = vpack.c.bf16 %v3272, %v3272
  %v3274 = vld [vmem:[%s27] sm:$0xf]
  %v3275 = vld [vmem:[%s27 + $0x4] sm:$0xf]
  %v3276 = vld [vmem:[%s27 + $0x8] sm:$0xf]
  %v3277 = vld [vmem:[%s27 + $0xc] sm:$0xf]
  %v3278 = vld [vmem:[%s29] sm:$0x1]
  %v3280 = vlaneseq
  %v3281 = vshrl.u32 %v3280, 7
  %v3282 = vsub.s32 0, %v3281
  %v3283 = vrot.slane %v3278, %v3282
  %v3289 = vunpack.c.l.b16 %v3274
  %v3290 = vunpack.c.l.b16 %v3275
  %v3291 = vunpack.c.l.b16 %v3276
  %v3292 = vunpack.c.l.b16 %v3277
  %v3293 = vpack.c.b16 %v3290, %v3289
  %v3294 = vpack.c.b16 %v3292, %v3291
  %v3298 = vsel %vm151, %v3273, 0
  %3300 = vmatprep.subr.bf16.mxu0 0
  %3301 = vmatpush1.bf16.msra.mxu0 %v3293
  %3302 = vmatprep.subr.bf16.mxu0 0
  %3303 = vmatpush1.bf16.msra.mxu0 %v3294
  %3304 = vmatprep.subr.bf16.mxu0 0
  %3305 = vmatpush1.bf16.msra.mxu0 0
  %3306 = vmatprep.subr.bf16.mxu0 0
  %3307 = vmatpush1.bf16.msra.mxu0 0
  %3308 = vmatprep.subr.bf16.mxu0 0
  %3309 = vmatpush1.bf16.msra.mxu0 0
  %3310 = vmatprep.subr.bf16.mxu0 0
  %3311 = vmatpush1.bf16.msra.mxu0 0
  %3312 = vmatprep.subr.bf16.mxu0 0
  %3313 = vmatpush1.bf16.msra.mxu0 0
  %3314 = vmatprep.subr.bf16.mxu0 0
  %3315 = vmatpush1.bf16.msra.mxu0 0
  %3316 = vmatprep.subr.bf16.mxu0 0
  %3317 = vmatpush1.bf16.msra.mxu0 0
  %3318 = vmatprep.subr.bf16.mxu0 0
  %3319 = vmatpush1.bf16.msra.mxu0 0
  %3320 = vmatprep.subr.bf16.mxu0 0
  %3321 = vmatpush1.bf16.msra.mxu0 0
  %3322 = vmatprep.subr.bf16.mxu0 0
  %3323 = vmatpush1.bf16.msra.mxu0 0
  %3324 = vmatprep.subr.bf16.mxu0 0
  %3325 = vmatpush1.bf16.msra.mxu0 0
  %3326 = vmatprep.subr.bf16.mxu0 0
  %3327 = vmatpush1.bf16.msra.mxu0 0
  %3328 = vmatprep.subr.bf16.mxu0 0
  %3329 = vmatpush1.bf16.msra.mxu0 0
  %3330 = vmatprep.subr.bf16.mxu0 0
  %3331 = vmatpush1.bf16.msra.mxu0 0
  %3332 = vmatprep.mubr.bf16.mxu0 0
  %3333 = vmatmul.mubr.bf16.gmra.mrb[0].mxu0 %v3298
  %v3334 = vpop.f32.mrb[0].mxu0
  %v3335 = vadd.f32 %v3283, %v3334
  %v3336 = vpop.f32.mrb[0].mxu0
  %v3337 = vpop.f32.mrb[0].mxu0
  %v3338 = vpop.f32.mrb[0].mxu0
  %3339 = vdwg.mxu0
  %v3340 = vmax.f32 %v3335, 0.0
  %v3341 = vpack.c.bf16 %v3340, %v3340
  %v3342 = vld [vmem:[%s31] sm:$0xf]
  %v3343 = vld [vmem:[%s31 + $0x4] sm:$0xf]
  %v3344 = vld [vmem:[%s31 + $0x8] sm:$0xf]
  %v3345 = vld [vmem:[%s31 + $0xc] sm:$0xf]
  %v3346 = vld [vmem:[%s33] sm:$0x1]
  %v3348 = vlaneseq
  %v3349 = vshrl.u32 %v3348, 7
  %v3350 = vsub.s32 0, %v3349
  %v3351 = vrot.slane %v3346, %v3350
  %v3357 = vunpack.c.l.b16 %v3342
  %v3358 = vunpack.c.l.b16 %v3343
  %v3359 = vunpack.c.l.b16 %v3344
  %v3360 = vunpack.c.l.b16 %v3345
  %v3361 = vpack.c.b16 %v3358, %v3357
  %v3362 = vpack.c.b16 %v3360, %v3359
  %v3366 = vsel %vm151, %v3341, 0
  %3368 = vmatprep.subr.bf16.mxu0 0
  %3369 = vmatpush1.bf16.msra.mxu0 %v3361
  %3370 = vmatprep.subr.bf16.mxu0 0
  %3371 = vmatpush1.bf16.msra.mxu0 %v3362
  %3372 = vmatprep.subr.bf16.mxu0 0
  %3373 = vmatpush1.bf16.msra.mxu0 0
  %3374 = vmatprep.subr.bf16.mxu0 0
  %3375 = vmatpush1.bf16.msra.mxu0 0
  %3376 = vmatprep.subr.bf16.mxu0 0
  %3377 = vmatpush1.bf16.msra.mxu0 0
  %3378 = vmatprep.subr.bf16.mxu0 0
  %3379 = vmatpush1.bf16.msra.mxu0 0
  %3380 = vmatprep.subr.bf16.mxu0 0
  %3381 = vmatpush1.bf16.msra.mxu0 0
  %3382 = vmatprep.subr.bf16.mxu0 0
  %3383 = vmatpush1.bf16.msra.mxu0 0
  %3384 = vmatprep.subr.bf16.mxu0 0
  %3385 = vmatpush1.bf16.msra.mxu0 0
  %3386 = vmatprep.subr.bf16.mxu0 0
  %3387 = vmatpush1.bf16.msra.mxu0 0
  %3388 = vmatprep.subr.bf16.mxu0 0
  %3389 = vmatpush1.bf16.msra.mxu0 0
  %3390 = vmatprep.subr.bf16.mxu0 0
  %3391 = vmatpush1.bf16.msra.mxu0 0
  %3392 = vmatprep.subr.bf16.mxu0 0
  %3393 = vmatpush1.bf16.msra.mxu0 0
  %3394 = vmatprep.subr.bf16.mxu0 0
  %3395 = vmatpush1.bf16.msra.mxu0 0
  %3396 = vmatprep.subr.bf16.mxu0 0
  %3397 = vmatpush1.bf16.msra.mxu0 0
  %3398 = vmatprep.subr.bf16.mxu0 0
  %3399 = vmatpush1.bf16.msra.mxu0 0
  %3400 = vmatprep.mubr.bf16.mxu0 0
  %3401 = vmatmul.mubr.bf16.gmra.mrb[0].mxu0 %v3366
  %v3402 = vpop.f32.mrb[0].mxu0
  %v3403 = vadd.f32 %v3351, %v3402
  %v3404 = vpop.f32.mrb[0].mxu0
  %v3405 = vpop.f32.mrb[0].mxu0
  %v3406 = vpop.f32.mrb[0].mxu0
  %3407 = vdwg.mxu0
  %v3408 = vld [vmem:[%s35] sm:$0xf]
  %v3409 = vld [vmem:[%s35 + $0x4] sm:$0xf]
  %v3410 = vld [vmem:[%s35 + $0x8] sm:$0xf]
  %v3411 = vld [vmem:[%s35 + $0xc] sm:$0xf]
  %v3412 = vld [vmem:[%s37] sm:$0x1]
  %v3414 = vlaneseq
  %v3415 = vshrl.u32 %v3414, 7
  %v3416 = vsub.s32 0, %v3415
  %v3417 = vrot.slane %v3412, %v3416
  %v3423 = vunpack.c.l.b16 %v3408
  %v3424 = vunpack.c.l.b16 %v3409
  %v3425 = vunpack.c.l.b16 %v3410
  %v3426 = vunpack.c.l.b16 %v3411
  %v3427 = vpack.c.b16 %v3424, %v3423
  %v3428 = vpack.c.b16 %v3426, %v3425
  %3431 = vmatprep.subr.bf16.mxu0 0
  %3432 = vmatpush1.bf16.msra.mxu0 %v3427
  %3433 = vmatprep.subr.bf16.mxu0 0
  %3434 = vmatpush1.bf16.msra.mxu0 %v3428
  %3435 = vmatprep.subr.bf16.mxu0 0
  %3436 = vmatpush1.bf16.msra.mxu0 0
  %3437 = vmatprep.subr.bf16.mxu0 0
  %3438 = vmatpush1.bf16.msra.mxu0 0
  %3439 = vmatprep.subr.bf16.mxu0 0
  %3440 = vmatpush1.bf16.msra.mxu0 0
  %3441 = vmatprep.subr.bf16.mxu0 0
  %3442 = vmatpush1.bf16.msra.mxu0 0
  %3443 = vmatprep.subr.bf16.mxu0 0
  %3444 = vmatpush1.bf16.msra.mxu0 0
  %3445 = vmatprep.subr.bf16.mxu0 0
  %3446 = vmatpush1.bf16.msra.mxu0 0
  %3447 = vmatprep.subr.bf16.mxu0 0
  %3448 = vmatpush1.bf16.msra.mxu0 0
  %3449 = vmatprep.subr.bf16.mxu0 0
  %3450 = vmatpush1.bf16.msra.mxu0 0
  %3451 = vmatprep.subr.bf16.mxu0 0
  %3452 = vmatpush1.bf16.msra.mxu0 0
  %3453 = vmatprep.subr.bf16.mxu0 0
  %3454 = vmatpush1.bf16.msra.mxu0 0
  %3455 = vmatprep.subr.bf16.mxu0 0
  %3456 = vmatpush1.bf16.msra.mxu0 0
  %3457 = vmatprep.subr.bf16.mxu0 0
  %3458 = vmatpush1.bf16.msra.mxu0 0
  %3459 = vmatprep.subr.bf16.mxu0 0
  %3460 = vmatpush1.bf16.msra.mxu0 0
  %3461 = vmatprep.subr.bf16.mxu0 0
  %3462 = vmatpush1.bf16.msra.mxu0 0
  %3463 = vmatprep.mubr.bf16.mxu0 0
  %3464 = vmatmul.mubr.bf16.gmra.mrb[0].mxu0 %v2768
  %v3465 = vpop.f32.mrb[0].mxu0
  %v3466 = vadd.f32 %v3417, %v3465
  %v3467 = vpop.f32.mrb[0].mxu0
  %v3468 = vpop.f32.mrb[0].mxu0
  %v3469 = vpop.f32.mrb[0].mxu0
  %3470 = vdwg.mxu0
  %v3471 = vadd.f32 %v3403, %v3466
  %v3472 = vxor.u32 %v3471, 2147483648
  %v3473 = vmul.f32 %v3472, 1.442695
  %v3474 = vpow.pop %v3473
  %v3475 = vadd.f32 %v3474, 1.0
  %v3476 = vrcp.pop %v3475
  %v3477 = vmul.f32 1.0, %v3476
  %3479 = vrot.lane.b32.xlu0 %v3466, 64
  %v3480 = vpop.permute.xlu0 %3479
  %v3482 = vmul.f32 %v3477, %v3480
  %3484 = vrot.lane.b32.xlu0 %v3482, 64
  %v3485 = vpop.permute.xlu0 %3484
  %v3487 = vadd.f32 %v3403, %v3485
  %v3488 = vtanh.pop %v3487
  %v3489 = vsub.f32 1.0, %v3477
  %3491 = vrot.lane.b32.xlu0 %v3488, 96
  %v3492 = vpop.permute.xlu0 %3491
  %v3494 = vmul.f32 %v3489, %v3492
  %v3495 = vmul.f32 %v3477, %v2739
  %v3496 = vadd.f32 %v3494, %v3495
  %v3497 = vpack.c.bf16 %v3496, %v3496
  %v3498 = vld [vmem:[%s39] sm:$0xf]
  %v3499 = vld [vmem:[%s39 + $0x4] sm:$0xf]
  %v3500 = vld [vmem:[%s39 + $0x8] sm:$0xf]
  %v3501 = vld [vmem:[%s39 + $0xc] sm:$0xf]
  %v3502 = vld [vmem:[%s41] sm:$0x1]
  %v3504 = vlaneseq
  %v3505 = vshrl.u32 %v3504, 7
  %v3506 = vsub.s32 0, %v3505
  %v3507 = vrot.slane %v3502, %v3506
  %3510 = vrot.lane.b32.xlu0 %v3497, 96
  %v3511 = vpop.permute.xlu0 %3510
  %v3516 = vunpack.c.l.b16 %v3498
  %v3517 = vunpack.c.l.b16 %v3499
  %v3518 = vunpack.c.l.b16 %v3500
  %v3519 = vunpack.c.l.b16 %v3501
  %v3520 = vpack.c.b16 %v3517, %v3516
  %v3521 = vpack.c.b16 %v3519, %v3518
  %v3525 = vsel %vm151, %v3511, 0
  %3527 = vmatprep.subr.bf16.mxu0 0
  %3528 = vmatpush1.bf16.msra.mxu0 %v3520
  %3529 = vmatprep.subr.bf16.mxu0 0
  %3530 = vmatpush1.bf16.msra.mxu0 %v3521
  %3531 = vmatprep.subr.bf16.mxu0 0
  %3532 = vmatpush1.bf16.msra.mxu0 0
  %3533 = vmatprep.subr.bf16.mxu0 0
  %3534 = vmatpush1.bf16.msra.mxu0 0
  %3535 = vmatprep.subr.bf16.mxu0 0
  %3536 = vmatpush1.bf16.msra.mxu0 0
  %3537 = vmatprep.subr.bf16.mxu0 0
  %3538 = vmatpush1.bf16.msra.mxu0 0
  %3539 = vmatprep.subr.bf16.mxu0 0
  %3540 = vmatpush1.bf16.msra.mxu0 0
  %3541 = vmatprep.subr.bf16.mxu0 0
  %3542 = vmatpush1.bf16.msra.mxu0 0
  %3543 = vmatprep.subr.bf16.mxu0 0
  %3544 = vmatpush1.bf16.msra.mxu0 0
  %3545 = vmatprep.subr.bf16.mxu0 0
  %3546 = vmatpush1.bf16.msra.mxu0 0
  %3547 = vmatprep.subr.bf16.mxu0 0
  %3548 = vmatpush1.bf16.msra.mxu0 0
  %3549 = vmatprep.subr.bf16.mxu0 0
  %3550 = vmatpush1.bf16.msra.mxu0 0
  %3551 = vmatprep.subr.bf16.mxu0 0
  %3552 = vmatpush1.bf16.msra.mxu0 0
  %3553 = vmatprep.subr.bf16.mxu0 0
  %3554 = vmatpush1.bf16.msra.mxu0 0
  %3555 = vmatprep.subr.bf16.mxu0 0
  %3556 = vmatpush1.bf16.msra.mxu0 0
  %3557 = vmatprep.subr.bf16.mxu0 0
  %3558 = vmatpush1.bf16.msra.mxu0 0
  %3559 = vmatprep.mubr.bf16.mxu0 0
  %3560 = vmatmul.mubr.bf16.gmra.mrb[0].mxu0 %v3525
  %v3561 = vpop.f32.mrb[0].mxu0
  %v3562 = vadd.f32 %v3507, %v3561
  %v3563 = vpop.f32.mrb[0].mxu0
  %v3564 = vpop.f32.mrb[0].mxu0
  %v3565 = vpop.f32.mrb[0].mxu0
  %3566 = vdwg.mxu0
  %v3567 = vld [vmem:[%s43] sm:$0xf]
  %v3568 = vld [vmem:[%s43 + $0x4] sm:$0xf]
  %v3569 = vld [vmem:[%s43 + $0x8] sm:$0xf]
  %v3570 = vld [vmem:[%s43 + $0xc] sm:$0xf]
  %v3571 = vld [vmem:[%s45] sm:$0x1]
  %v3573 = vlaneseq
  %v3574 = vshrl.u32 %v3573, 7
  %v3575 = vsub.s32 0, %v3574
  %v3576 = vrot.slane %v3571, %v3575
  %v3582 = vunpack.c.l.b16 %v3567
  %v3583 = vunpack.c.l.b16 %v3568
  %v3584 = vunpack.c.l.b16 %v3569
  %v3585 = vunpack.c.l.b16 %v3570
  %v3586 = vpack.c.b16 %v3583, %v3582
  %v3587 = vpack.c.b16 %v3585, %v3584
  %3590 = vmatprep.subr.bf16.mxu0 0
  %3591 = vmatpush1.bf16.msra.mxu0 %v3586
  %3592 = vmatprep.subr.bf16.mxu0 0
  %3593 = vmatpush1.bf16.msra.mxu0 %v3587
  %3594 = vmatprep.subr.bf16.mxu0 0
  %3595 = vmatpush1.bf16.msra.mxu0 0
  %3596 = vmatprep.subr.bf16.mxu0 0
  %3597 = vmatpush1.bf16.msra.mxu0 0
  %3598 = vmatprep.subr.bf16.mxu0 0
  %3599 = vmatpush1.bf16.msra.mxu0 0
  %3600 = vmatprep.subr.bf16.mxu0 0
  %3601 = vmatpush1.bf16.msra.mxu0 0
  %3602 = vmatprep.subr.bf16.mxu0 0
  %3603 = vmatpush1.bf16.msra.mxu0 0
  %3604 = vmatprep.subr.bf16.mxu0 0
  %3605 = vmatpush1.bf16.msra.mxu0 0
  %3606 = vmatprep.subr.bf16.mxu0 0
  %3607 = vmatpush1.bf16.msra.mxu0 0
  %3608 = vmatprep.subr.bf16.mxu0 0
  %3609 = vmatpush1.bf16.msra.mxu0 0
  %3610 = vmatprep.subr.bf16.mxu0 0
  %3611 = vmatpush1.bf16.msra.mxu0 0
  %3612 = vmatprep.subr.bf16.mxu0 0
  %3613 = vmatpush1.bf16.msra.mxu0 0
  %3614 = vmatprep.subr.bf16.mxu0 0
  %3615 = vmatpush1.bf16.msra.mxu0 0
  %3616 = vmatprep.subr.bf16.mxu0 0
  %3617 = vmatpush1.bf16.msra.mxu0 0
  %3618 = vmatprep.subr.bf16.mxu0 0
  %3619 = vmatpush1.bf16.msra.mxu0 0
  %3620 = vmatprep.subr.bf16.mxu0 0
  %3621 = vmatpush1.bf16.msra.mxu0 0
  %3622 = vmatprep.mubr.bf16.mxu0 0
  %3623 = vmatmul.mubr.bf16.gmra.mrb[0].mxu0 %v2920
  %v3624 = vpop.f32.mrb[0].mxu0
  %v3625 = vadd.f32 %v3576, %v3624
  %v3626 = vpop.f32.mrb[0].mxu0
  %v3627 = vpop.f32.mrb[0].mxu0
  %v3628 = vpop.f32.mrb[0].mxu0
  %3629 = vdwg.mxu0
  %v3630 = vadd.f32 %v3562, %v3625
  %v3631 = vxor.u32 %v3630, 2147483648
  %v3632 = vmul.f32 %v3631, 1.442695
  %v3633 = vpow.pop %v3632
  %v3634 = vadd.f32 %v3633, 1.0
  %v3635 = vrcp.pop %v3634
  %v3636 = vmul.f32 1.0, %v3635
  %3638 = vrot.lane.b32.xlu0 %v3625, 64
  %v3639 = vpop.permute.xlu0 %3638
  %v3641 = vmul.f32 %v3636, %v3639
  %3643 = vrot.lane.b32.xlu0 %v3641, 64
  %v3644 = vpop.permute.xlu0 %3643
  %v3646 = vadd.f32 %v3562, %v3644
  %v3647 = vtanh.pop %v3646
  %v3648 = vsub.f32 1.0, %v3636
  %3650 = vrot.lane.b32.xlu0 %v3647, 96
  %v3651 = vpop.permute.xlu0 %3650
  %v3653 = vmul.f32 %v3648, %v3651
  %v3654 = vmul.f32 %v3636, %v2898
  %v3655 = vadd.f32 %v3653, %v3654
  %v3656 = vpack.c.bf16 %v3655, %v3655
  %v3657 = vld [vmem:[%s47] sm:$0xf]
  %v3658 = vld [vmem:[%s47 + $0x4] sm:$0xf]
  %v3659 = vld [vmem:[%s47 + $0x8] sm:$0xf]
  %v3660 = vld [vmem:[%s47 + $0xc] sm:$0xf]
  %3662 = vrot.lane.b32.xlu0 %v3656, 96
  %v3663 = vpop.permute.xlu0 %3662
  %v3668 = vunpack.c.l.b16 %v3657
  %v3669 = vunpack.c.l.b16 %v3658
  %v3670 = vunpack.c.l.b16 %v3659
  %v3671 = vunpack.c.l.b16 %v3660
  %v3672 = vpack.c.b16 %v3669, %v3668
  %v3673 = vpack.c.b16 %v3671, %v3670
  %v3677 = vsel %vm151, %v3663, 0
  %3679 = vmatprep.subr.bf16.mxu0 0
  %3680 = vmatpush1.bf16.msra.mxu0 %v3672
  %3681 = vmatprep.subr.bf16.mxu0 0
  %3682 = vmatpush1.bf16.msra.mxu0 %v3673
  %3683 = vmatprep.subr.bf16.mxu0 0
  %3684 = vmatpush1.bf16.msra.mxu0 0
  %3685 = vmatprep.subr.bf16.mxu0 0
  %3686 = vmatpush1.bf16.msra.mxu0 0
  %3687 = vmatprep.subr.bf16.mxu0 0
  %3688 = vmatpush1.bf16.msra.mxu0 0
  %3689 = vmatprep.subr.bf16.mxu0 0
  %3690 = vmatpush1.bf16.msra.mxu0 0
  %3691 = vmatprep.subr.bf16.mxu0 0
  %3692 = vmatpush1.bf16.msra.mxu0 0
  %3693 = vmatprep.subr.bf16.mxu0 0
  %3694 = vmatpush1.bf16.msra.mxu0 0
  %3695 = vmatprep.subr.bf16.mxu0 0
  %3696 = vmatpush1.bf16.msra.mxu0 0
  %3697 = vmatprep.subr.bf16.mxu0 0
  %3698 = vmatpush1.bf16.msra.mxu0 0
  %3699 = vmatprep.subr.bf16.mxu0 0
  %3700 = vmatpush1.bf16.msra.mxu0 0
  %3701 = vmatprep.subr.bf16.mxu0 0
  %3702 = vmatpush1.bf16.msra.mxu0 0
  %3703 = vmatprep.subr.bf16.mxu0 0
  %3704 = vmatpush1.bf16.msra.mxu0 0
  %3705 = vmatprep.subr.bf16.mxu0 0
  %3706 = vmatpush1.bf16.msra.mxu0 0
  %3707 = vmatprep.subr.bf16.mxu0 0
  %3708 = vmatpush1.bf16.msra.mxu0 0
  %3709 = vmatprep.subr.bf16.mxu0 0
  %3710 = vmatpush1.bf16.msra.mxu0 0
  %3711 = vmatprep.mubr.bf16.mxu0 0
  %3712 = vmatmul.mubr.bf16.gmra.mrb[0].mxu0 %v3677
  %v3713 = vpop.f32.mrb[0].mxu0
  %v3714 = vadd.f32 0.0, %v3713
  %v3715 = vpop.f32.mrb[0].mxu0
  %v3716 = vpop.f32.mrb[0].mxu0
  %v3717 = vpop.f32.mrb[0].mxu0
  %3718 = vdwg.mxu0
  %v3719 = vadd.f32 %v2962, %v3714
  %v3720 = vpack.c.bf16 %v3719, %v3719
  %v3721 = vld [vmem:[%s49] sm:$0xff]
  %v3722 = vld [vmem:[%s49 + $0x8] sm:$0xff]
  %v3723 = vld [vmem:[%s49 + $0x10] sm:$0xff]
  %v3724 = vld [vmem:[%s49 + $0x18] sm:$0xff]
  %v3725 = vld [vmem:[%s49 + $0x20] sm:$0xff]
  %v3726 = vld [vmem:[%s49 + $0x28] sm:$0xff]
  %v3727 = vld [vmem:[%s49 + $0x30] sm:$0xff]
  %v3728 = vld [vmem:[%s49 + $0x38] sm:$0xff]
  %v3729 = vld [vmem:[%s51] sm:$0x3]
  %v3731 = vlaneseq
  %v3732 = vshrl.u32 %v3731, 7
  %v3733 = vsub.s32 0, %v3732
  %v3734 = vrot.slane %v3729, %v3733
  %v3735 = vlaneseq
  %v3736 = vshrl.u32 %v3735, 7
  %v3737 = vsub.s32 1, %v3736
  %v3738 = vrot.slane %v3729, %v3737
  %v3749 = vunpack.c.l.b16 %v3721
  %v3750 = vunpack.c.h.b16 %v3721
  %v3751 = vunpack.c.l.b16 %v3722
  %v3752 = vunpack.c.h.b16 %v3722
  %v3753 = vunpack.c.l.b16 %v3723
  %v3754 = vunpack.c.h.b16 %v3723
  %v3755 = vunpack.c.l.b16 %v3724
  %v3756 = vunpack.c.h.b16 %v3724
  %v3757 = vunpack.c.l.b16 %v3725
  %v3758 = vunpack.c.h.b16 %v3725
  %v3759 = vunpack.c.l.b16 %v3726
  %v3760 = vunpack.c.h.b16 %v3726
  %v3761 = vunpack.c.l.b16 %v3727
  %v3762 = vunpack.c.h.b16 %v3727
  %v3763 = vunpack.c.l.b16 %v3728
  %v3764 = vunpack.c.h.b16 %v3728
  %v3765 = vpack.c.b16 %v3751, %v3749
  %v3766 = vpack.c.b16 %v3752, %v3750
  %v3767 = vpack.c.b16 %v3755, %v3753
  %v3768 = vpack.c.b16 %v3756, %v3754
  %v3769 = vpack.c.b16 %v3759, %v3757
  %v3770 = vpack.c.b16 %v3760, %v3758
  %v3771 = vpack.c.b16 %v3763, %v3761
  %v3772 = vpack.c.b16 %v3764, %v3762
  %v3782 = vsel %vm1515, %v3720, 0
  %3784 = vmatprep.subr.bf16.mxu0 %v3766
  %3785 = vmatpush1.bf16.msra.mxu0 %v3765
  %3786 = vmatprep.subr.bf16.mxu0 %v3768
  %3787 = vmatpush1.bf16.msra.mxu0 %v3767
  %3788 = vmatprep.subr.bf16.mxu0 %v3770
  %3789 = vmatpush1.bf16.msra.mxu0 %v3769
  %3790 = vmatprep.subr.bf16.mxu0 %v3772
  %3791 = vmatpush1.bf16.msra.mxu0 %v3771
  %3792 = vmatprep.subr.bf16.mxu0 0
  %3793 = vmatpush1.bf16.msra.mxu0 0
  %3794 = vmatprep.subr.bf16.mxu0 0
  %3795 = vmatpush1.bf16.msra.mxu0 0
  %3796 = vmatprep.subr.bf16.mxu0 0
  %3797 = vmatpush1.bf16.msra.mxu0 0
  %3798 = vmatprep.subr.bf16.mxu0 0
  %3799 = vmatpush1.bf16.msra.mxu0 0
  %3800 = vmatprep.subr.bf16.mxu0 0
  %3801 = vmatpush1.bf16.msra.mxu0 0
  %3802 = vmatprep.subr.bf16.mxu0 0
  %3803 = vmatpush1.bf16.msra.mxu0 0
  %3804 = vmatprep.subr.bf16.mxu0 0
  %3805 = vmatpush1.bf16.msra.mxu0 0
  %3806 = vmatprep.subr.bf16.mxu0 0
  %3807 = vmatpush1.bf16.msra.mxu0 0
  %3808 = vmatprep.subr.bf16.mxu0 0
  %3809 = vmatpush1.bf16.msra.mxu0 0
  %3810 = vmatprep.subr.bf16.mxu0 0
  %3811 = vmatpush1.bf16.msra.mxu0 0
  %3812 = vmatprep.subr.bf16.mxu0 0
  %3813 = vmatpush1.bf16.msra.mxu0 0
  %3814 = vmatprep.subr.bf16.mxu0 0
  %3815 = vmatpush1.bf16.msra.mxu0 0
  %3816 = vmatprep.mubr.bf16.mxu0 0
  %3817 = vmatmul.mubr.bf16.gmra.mrb[0].mxu0 %v3782
  %v3818 = vpop.f32.mrb[0].mxu0
  %v3819 = vadd.f32 %v3734, %v3818
  %v3820 = vpop.f32.mrb[0].mxu0
  %v3821 = vadd.f32 %v3738, %v3820
  %v3822 = vpop.f32.mrb[0].mxu0
  %v3823 = vpop.f32.mrb[0].mxu0
  %3824 = vdwg.mxu0
  %v3825 = vpack.c.bf16 %v3193, %v3193
  %v3826 = vld [vmem:[%s53] sm:$0xff]
  %v3827 = vld [vmem:[%s53 + $0x8] sm:$0xff]
  %v3828 = vld [vmem:[%s53 + $0x10] sm:$0xff]
  %v3829 = vld [vmem:[%s53 + $0x18] sm:$0xff]
  %v3830 = vld [vmem:[%s53 + $0x20] sm:$0xff]
  %v3831 = vld [vmem:[%s53 + $0x28] sm:$0xff]
  %v3832 = vld [vmem:[%s53 + $0x30] sm:$0xff]
  %v3833 = vld [vmem:[%s53 + $0x38] sm:$0xff]
  %v3834 = vld [vmem:[%s55] sm:$0x3]
  %v3836 = vlaneseq
  %v3837 = vshrl.u32 %v3836, 7
  %v3838 = vsub.s32 0, %v3837
  %v3839 = vrot.slane %v3834, %v3838
  %v3840 = vlaneseq
  %v3841 = vshrl.u32 %v3840, 7
  %v3842 = vsub.s32 1, %v3841
  %v3843 = vrot.slane %v3834, %v3842
  %3847 = vrot.lane.b32.xlu0 %v3825, 64
  %v3848 = vpop.permute.xlu0 %3847
  %v3857 = vunpack.c.l.b16 %v3826
  %v3858 = vunpack.c.h.b16 %v3826
  %v3859 = vunpack.c.l.b16 %v3827
  %v3860 = vunpack.c.h.b16 %v3827
  %v3861 = vunpack.c.l.b16 %v3828
  %v3862 = vunpack.c.h.b16 %v3828
  %v3863 = vunpack.c.l.b16 %v3829
  %v3864 = vunpack.c.h.b16 %v3829
  %v3865 = vunpack.c.l.b16 %v3830
  %v3866 = vunpack.c.h.b16 %v3830
  %v3867 = vunpack.c.l.b16 %v3831
  %v3868 = vunpack.c.h.b16 %v3831
  %v3869 = vunpack.c.l.b16 %v3832
  %v3870 = vunpack.c.h.b16 %v3832
  %v3871 = vunpack.c.l.b16 %v3833
  %v3872 = vunpack.c.h.b16 %v3833
  %v3873 = vpack.c.b16 %v3859, %v3857
  %v3874 = vpack.c.b16 %v3860, %v3858
  %v3875 = vpack.c.b16 %v3863, %v3861
  %v3876 = vpack.c.b16 %v3864, %v3862
  %v3877 = vpack.c.b16 %v3867, %v3865
  %v3878 = vpack.c.b16 %v3868, %v3866
  %v3879 = vpack.c.b16 %v3871, %v3869
  %v3880 = vpack.c.b16 %v3872, %v3870
  %v3890 = vsel %vm1515, %v3848, 0
  %3892 = vmatprep.subr.bf16.mxu0 %v3874
  %3893 = vmatpush1.bf16.msra.mxu0 %v3873
  %3894 = vmatprep.subr.bf16.mxu0 %v3876
  %3895 = vmatpush1.bf16.msra.mxu0 %v3875
  %3896 = vmatprep.subr.bf16.mxu0 %v3878
  %3897 = vmatpush1.bf16.msra.mxu0 %v3877
  %3898 = vmatprep.subr.bf16.mxu0 %v3880
  %3899 = vmatpush1.bf16.msra.mxu0 %v3879
  %3900 = vmatprep.subr.bf16.mxu0 0
  %3901 = vmatpush1.bf16.msra.mxu0 0
  %3902 = vmatprep.subr.bf16.mxu0 0
  %3903 = vmatpush1.bf16.msra.mxu0 0
  %3904 = vmatprep.subr.bf16.mxu0 0
  %3905 = vmatpush1.bf16.msra.mxu0 0
  %3906 = vmatprep.subr.bf16.mxu0 0
  %3907 = vmatpush1.bf16.msra.mxu0 0
  %3908 = vmatprep.subr.bf16.mxu0 0
  %3909 = vmatpush1.bf16.msra.mxu0 0
  %3910 = vmatprep.subr.bf16.mxu0 0
  %3911 = vmatpush1.bf16.msra.mxu0 0
  %3912 = vmatprep.subr.bf16.mxu0 0
  %3913 = vmatpush1.bf16.msra.mxu0 0
  %3914 = vmatprep.subr.bf16.mxu0 0
  %3915 = vmatpush1.bf16.msra.mxu0 0
  %3916 = vmatprep.subr.bf16.mxu0 0
  %3917 = vmatpush1.bf16.msra.mxu0 0
  %3918 = vmatprep.subr.bf16.mxu0 0
  %3919 = vmatpush1.bf16.msra.mxu0 0
  %3920 = vmatprep.subr.bf16.mxu0 0
  %3921 = vmatpush1.bf16.msra.mxu0 0
  %3922 = vmatprep.subr.bf16.mxu0 0
  %3923 = vmatpush1.bf16.msra.mxu0 0
  %3924 = vmatprep.mubr.bf16.mxu0 0
  %3925 = vmatmul.mubr.bf16.gmra.mrb[0].mxu0 %v3890
  %v3926 = vpop.f32.mrb[0].mxu0
  %v3927 = vadd.f32 %v3839, %v3926
  %v3928 = vpop.f32.mrb[0].mxu0
  %v3929 = vadd.f32 %v3843, %v3928
  %v3930 = vpop.f32.mrb[0].mxu0
  %v3931 = vpop.f32.mrb[0].mxu0
  %3932 = vdwg.mxu0
  %v3933 = vadd.f32 %v3819, %v3927
  %v3934 = vxor.u32 %v3933, 2147483648
  %v3935 = vmul.f32 %v3934, 1.442695
  %v3936 = vpow.pop %v3935
  %v3937 = vadd.f32 %v3936, 1.0
  %v3938 = vrcp.pop %v3937
  %v3939 = vmul.f32 1.0, %v3938
  %v3940 = vmul.f32 %v3939, %v3929
  %v3941 = vadd.f32 %v3821, %v3940
  %v3942 = vtanh.pop %v3941
  %v3943 = vsub.f32 1.0, %v3939
  %3945 = vrot.lane.b32.xlu0 %v3942, 64
  %v3946 = vpop.permute.xlu0 %3945
  %v3948 = vmul.f32 %v3943, %v3946
  %v3949 = vmul.f32 %v3939, %v3193
  %v3950 = vadd.f32 %v3948, %v3949
  %3952 = vrot.lane.b32.xlu0 %v3950, 64
  %v3953 = vpop.permute.xlu0 %3952
  %s3955 = scalar_lea.vmem [#allocation2], 24
  %3956 = vst.msk [vmem:[%s3955] sm:$0xff] %vm1515, %v3953
  %v3957 = vld [vmem:[%s21] sm:$0xf]
  %v3958 = vld [vmem:[%s21 + $0x4] sm:$0xf]
  %v3959 = vld [vmem:[%s21 + $0x8] sm:$0xf]
  %v3960 = vld [vmem:[%s21 + $0xc] sm:$0xf]
  %v3961 = vld [vmem:[%s21 + $0x10] sm:$0xf]
  %v3962 = vld [vmem:[%s21 + $0x14] sm:$0xf]
  %v3963 = vld [vmem:[%s21 + $0x18] sm:$0xf]
  %v3964 = vld [vmem:[%s21 + $0x1c] sm:$0xf]
  %v3973 = vunpack.c.l.b16 %v3957
  %v3974 = vunpack.c.l.b16 %v3958
  %v3975 = vunpack.c.l.b16 %v3959
  %v3976 = vunpack.c.l.b16 %v3960
  %v3977 = vunpack.c.l.b16 %v3961
  %v3978 = vunpack.c.l.b16 %v3962
  %v3979 = vunpack.c.l.b16 %v3963
  %v3980 = vunpack.c.l.b16 %v3964
  %v3981 = vpack.c.b16 %v3974, %v3973
  %v3982 = vpack.c.b16 %v3976, %v3975
  %v3983 = vpack.c.b16 %v3978, %v3977
  %v3984 = vpack.c.b16 %v3980, %v3979
  %3989 = vmatprep.subr.bf16.mxu0 0
  %3990 = vmatpush1.bf16.msra.mxu0 %v3981
  %3991 = vmatprep.subr.bf16.mxu0 0
  %3992 = vmatpush1.bf16.msra.mxu0 %v3982
  %3993 = vmatprep.subr.bf16.mxu0 0
  %3994 = vmatpush1.bf16.msra.mxu0 %v3983
  %3995 = vmatprep.subr.bf16.mxu0 0
  %3996 = vmatpush1.bf16.msra.mxu0 %v3984
  %3997 = vmatprep.subr.bf16.mxu0 0
  %3998 = vmatpush1.bf16.msra.mxu0 0
  %3999 = vmatprep.subr.bf16.mxu0 0
  %4000 = vmatpush1.bf16.msra.mxu0 0
  %4001 = vmatprep.subr.bf16.mxu0 0
  %4002 = vmatpush1.bf16.msra.mxu0 0
  %4003 = vmatprep.subr.bf16.mxu0 0
  %4004 = vmatpush1.bf16.msra.mxu0 0
  %4005 = vmatprep.subr.bf16.mxu0 0
  %4006 = vmatpush1.bf16.msra.mxu0 0
  %4007 = vmatprep.subr.bf16.mxu0 0
  %4008 = vmatpush1.bf16.msra.mxu0 0
  %4009 = vmatprep.subr.bf16.mxu0 0
  %4010 = vmatpush1.bf16.msra.mxu0 0
  %4011 = vmatprep.subr.bf16.mxu0 0
  %4012 = vmatpush1.bf16.msra.mxu0 0
  %4013 = vmatprep.subr.bf16.mxu0 0
  %4014 = vmatpush1.bf16.msra.mxu0 0
  %4015 = vmatprep.subr.bf16.mxu0 0
  %4016 = vmatpush1.bf16.msra.mxu0 0
  %4017 = vmatprep.subr.bf16.mxu0 0
  %4018 = vmatpush1.bf16.msra.mxu0 0
  %4019 = vmatprep.subr.bf16.mxu0 0
  %4020 = vmatpush1.bf16.msra.mxu0 0
  %4021 = vmatprep.mubr.bf16.mxu0 0
  %4022 = vmatmul.mubr.bf16.gmra.mrb[0].mxu0 %v3782
  %v4023 = vpop.f32.mrb[0].mxu0
  %v4024 = vadd.f32 %v1449, %v4023
  %v4025 = vpop.f32.mrb[0].mxu0
  %v4026 = vpop.f32.mrb[0].mxu0
  %v4027 = vpop.f32.mrb[0].mxu0
  %4028 = vdwg.mxu0
  %v4029 = vmax.f32 %v4024, 0.0
  %v4030 = vpack.c.bf16 %v4029, %v4029
  %v4031 = vld [vmem:[%s27] sm:$0xf]
  %v4032 = vld [vmem:[%s27 + $0x4] sm:$0xf]
  %v4033 = vld [vmem:[%s27 + $0x8] sm:$0xf]
  %v4034 = vld [vmem:[%s27 + $0xc] sm:$0xf]
  %v4035 = vld [vmem:[%s29] sm:$0x1]
  %v4037 = vlaneseq
  %v4038 = vshrl.u32 %v4037, 7
  %v4039 = vsub.s32 0, %v4038
  %v4040 = vrot.slane %v4035, %v4039
  %v4046 = vunpack.c.l.b16 %v4031
  %v4047 = vunpack.c.l.b16 %v4032
  %v4048 = vunpack.c.l.b16 %v4033
  %v4049 = vunpack.c.l.b16 %v4034
  %v4050 = vpack.c.b16 %v4047, %v4046
  %v4051 = vpack.c.b16 %v4049, %v4048
  %v4055 = vsel %vm151, %v4030, 0
  %4057 = vmatprep.subr.bf16.mxu0 0
  %4058 = vmatpush1.bf16.msra.mxu0 %v4050
  %4059 = vmatprep.subr.bf16.mxu0 0
  %4060 = vmatpush1.bf16.msra.mxu0 %v4051
  %4061 = vmatprep.subr.bf16.mxu0 0
  %4062 = vmatpush1.bf16.msra.mxu0 0
  %4063 = vmatprep.subr.bf16.mxu0 0
  %4064 = vmatpush1.bf16.msra.mxu0 0
  %4065 = vmatprep.subr.bf16.mxu0 0
  %4066 = vmatpush1.bf16.msra.mxu0 0
  %4067 = vmatprep.subr.bf16.mxu0 0
  %4068 = vmatpush1.bf16.msra.mxu0 0
  %4069 = vmatprep.subr.bf16.mxu0 0
  %4070 = vmatpush1.bf16.msra.mxu0 0
  %4071 = vmatprep.subr.bf16.mxu0 0
  %4072 = vmatpush1.bf16.msra.mxu0 0
  %4073 = vmatprep.subr.bf16.mxu0 0
  %4074 = vmatpush1.bf16.msra.mxu0 0
  %4075 = vmatprep.subr.bf16.mxu0 0
  %4076 = vmatpush1.bf16.msra.mxu0 0
  %4077 = vmatprep.subr.bf16.mxu0 0
  %4078 = vmatpush1.bf16.msra.mxu0 0
  %4079 = vmatprep.subr.bf16.mxu0 0
  %4080 = vmatpush1.bf16.msra.mxu0 0
  %4081 = vmatprep.subr.bf16.mxu0 0
  %4082 = vmatpush1.bf16.msra.mxu0 0
  %4083 = vmatprep.subr.bf16.mxu0 0
  %4084 = vmatpush1.bf16.msra.mxu0 0
  %4085 = vmatprep.subr.bf16.mxu0 0
  %4086 = vmatpush1.bf16.msra.mxu0 0
  %4087 = vmatprep.subr.bf16.mxu0 0
  %4088 = vmatpush1.bf16.msra.mxu0 0
  %4089 = vmatprep.mubr.bf16.mxu0 0
  %4090 = vmatmul.mubr.bf16.gmra.mrb[0].mxu0 %v4055
  %v4091 = vpop.f32.mrb[0].mxu0
  %v4092 = vadd.f32 %v4040, %v4091
  %v4093 = vpop.f32.mrb[0].mxu0
  %v4094 = vpop.f32.mrb[0].mxu0
  %v4095 = vpop.f32.mrb[0].mxu0
  %4096 = vdwg.mxu0
  %v4097 = vmax.f32 %v4092, 0.0
  %v4098 = vpack.c.bf16 %v4097, %v4097
  %v4099 = vld [vmem:[%s31] sm:$0xf]
  %v4100 = vld [vmem:[%s31 + $0x4] sm:$0xf]
  %v4101 = vld [vmem:[%s31 + $0x8] sm:$0xf]
  %v4102 = vld [vmem:[%s31 + $0xc] sm:$0xf]
  %v4103 = vld [vmem:[%s33] sm:$0x1]
  %v4105 = vlaneseq
  %v4106 = vshrl.u32 %v4105, 7
  %v4107 = vsub.s32 0, %v4106
  %v4108 = vrot.slane %v4103, %v4107
  %v4114 = vunpack.c.l.b16 %v4099
  %v4115 = vunpack.c.l.b16 %v4100
  %v4116 = vunpack.c.l.b16 %v4101
  %v4117 = vunpack.c.l.b16 %v4102
  %v4118 = vpack.c.b16 %v4115, %v4114
  %v4119 = vpack.c.b16 %v4117, %v4116
  %v4123 = vsel %vm151, %v4098, 0
  %4125 = vmatprep.subr.bf16.mxu0 0
  %4126 = vmatpush1.bf16.msra.mxu0 %v4118
  %4127 = vmatprep.subr.bf16.mxu0 0
  %4128 = vmatpush1.bf16.msra.mxu0 %v4119
  %4129 = vmatprep.subr.bf16.mxu0 0
  %4130 = vmatpush1.bf16.msra.mxu0 0
  %4131 = vmatprep.subr.bf16.mxu0 0
  %4132 = vmatpush1.bf16.msra.mxu0 0
  %4133 = vmatprep.subr.bf16.mxu0 0
  %4134 = vmatpush1.bf16.msra.mxu0 0
  %4135 = vmatprep.subr.bf16.mxu0 0
  %4136 = vmatpush1.bf16.msra.mxu0 0
  %4137 = vmatprep.subr.bf16.mxu0 0
  %4138 = vmatpush1.bf16.msra.mxu0 0
  %4139 = vmatprep.subr.bf16.mxu0 0
  %4140 = vmatpush1.bf16.msra.mxu0 0
  %4141 = vmatprep.subr.bf16.mxu0 0
  %4142 = vmatpush1.bf16.msra.mxu0 0
  %4143 = vmatprep.subr.bf16.mxu0 0
  %4144 = vmatpush1.bf16.msra.mxu0 0
  %4145 = vmatprep.subr.bf16.mxu0 0
  %4146 = vmatpush1.bf16.msra.mxu0 0
  %4147 = vmatprep.subr.bf16.mxu0 0
  %4148 = vmatpush1.bf16.msra.mxu0 0
  %4149 = vmatprep.subr.bf16.mxu0 0
  %4150 = vmatpush1.bf16.msra.mxu0 0
  %4151 = vmatprep.subr.bf16.mxu0 0
  %4152 = vmatpush1.bf16.msra.mxu0 0
  %4153 = vmatprep.subr.bf16.mxu0 0
  %4154 = vmatpush1.bf16.msra.mxu0 0
  %4155 = vmatprep.subr.bf16.mxu0 0
  %4156 = vmatpush1.bf16.msra.mxu0 0
  %4157 = vmatprep.mubr.bf16.mxu0 0
  %4158 = vmatmul.mubr.bf16.gmra.mrb[0].mxu0 %v4123
  %v4159 = vpop.f32.mrb[0].mxu0
  %v4160 = vadd.f32 %v4108, %v4159
  %v4161 = vpop.f32.mrb[0].mxu0
  %v4162 = vpop.f32.mrb[0].mxu0
  %v4163 = vpop.f32.mrb[0].mxu0
  %4164 = vdwg.mxu0
  %v4165 = vld [vmem:[%s35] sm:$0xf]
  %v4166 = vld [vmem:[%s35 + $0x4] sm:$0xf]
  %v4167 = vld [vmem:[%s35 + $0x8] sm:$0xf]
  %v4168 = vld [vmem:[%s35 + $0xc] sm:$0xf]
  %v4169 = vld [vmem:[%s37] sm:$0x1]
  %v4171 = vlaneseq
  %v4172 = vshrl.u32 %v4171, 7
  %v4173 = vsub.s32 0, %v4172
  %v4174 = vrot.slane %v4169, %v4173
  %v4180 = vunpack.c.l.b16 %v4165
  %v4181 = vunpack.c.l.b16 %v4166
  %v4182 = vunpack.c.l.b16 %v4167
  %v4183 = vunpack.c.l.b16 %v4168
  %v4184 = vpack.c.b16 %v4181, %v4180
  %v4185 = vpack.c.b16 %v4183, %v4182
  %4188 = vmatprep.subr.bf16.mxu0 0
  %4189 = vmatpush1.bf16.msra.mxu0 %v4184
  %4190 = vmatprep.subr.bf16.mxu0 0
  %4191 = vmatpush1.bf16.msra.mxu0 %v4185
  %4192 = vmatprep.subr.bf16.mxu0 0
  %4193 = vmatpush1.bf16.msra.mxu0 0
  %4194 = vmatprep.subr.bf16.mxu0 0
  %4195 = vmatpush1.bf16.msra.mxu0 0
  %4196 = vmatprep.subr.bf16.mxu0 0
  %4197 = vmatpush1.bf16.msra.mxu0 0
  %4198 = vmatprep.subr.bf16.mxu0 0
  %4199 = vmatpush1.bf16.msra.mxu0 0
  %4200 = vmatprep.subr.bf16.mxu0 0
  %4201 = vmatpush1.bf16.msra.mxu0 0
  %4202 = vmatprep.subr.bf16.mxu0 0
  %4203 = vmatpush1.bf16.msra.mxu0 0
  %4204 = vmatprep.subr.bf16.mxu0 0
  %4205 = vmatpush1.bf16.msra.mxu0 0
  %4206 = vmatprep.subr.bf16.mxu0 0
  %4207 = vmatpush1.bf16.msra.mxu0 0
  %4208 = vmatprep.subr.bf16.mxu0 0
  %4209 = vmatpush1.bf16.msra.mxu0 0
  %4210 = vmatprep.subr.bf16.mxu0 0
  %4211 = vmatpush1.bf16.msra.mxu0 0
  %4212 = vmatprep.subr.bf16.mxu0 0
  %4213 = vmatpush1.bf16.msra.mxu0 0
  %4214 = vmatprep.subr.bf16.mxu0 0
  %4215 = vmatpush1.bf16.msra.mxu0 0
  %4216 = vmatprep.subr.bf16.mxu0 0
  %4217 = vmatpush1.bf16.msra.mxu0 0
  %4218 = vmatprep.subr.bf16.mxu0 0
  %4219 = vmatpush1.bf16.msra.mxu0 0
  %4220 = vmatprep.mubr.bf16.mxu0 0
  %4221 = vmatmul.mubr.bf16.gmra.mrb[0].mxu0 %v3525
  %v4222 = vpop.f32.mrb[0].mxu0
  %v4223 = vadd.f32 %v4174, %v4222
  %v4224 = vpop.f32.mrb[0].mxu0
  %v4225 = vpop.f32.mrb[0].mxu0
  %v4226 = vpop.f32.mrb[0].mxu0
  %4227 = vdwg.mxu0
  %v4228 = vadd.f32 %v4160, %v4223
  %v4229 = vxor.u32 %v4228, 2147483648
  %v4230 = vmul.f32 %v4229, 1.442695
  %v4231 = vpow.pop %v4230
  %v4232 = vadd.f32 %v4231, 1.0
  %v4233 = vrcp.pop %v4232
  %v4234 = vmul.f32 1.0, %v4233
  %4236 = vrot.lane.b32.xlu0 %v4223, 64
  %v4237 = vpop.permute.xlu0 %4236
  %v4239 = vmul.f32 %v4234, %v4237
  %4241 = vrot.lane.b32.xlu0 %v4239, 64
  %v4242 = vpop.permute.xlu0 %4241
  %v4244 = vadd.f32 %v4160, %v4242
  %v4245 = vtanh.pop %v4244
  %v4246 = vsub.f32 1.0, %v4234
  %4248 = vrot.lane.b32.xlu0 %v4245, 96
  %v4249 = vpop.permute.xlu0 %4248
  %v4251 = vmul.f32 %v4246, %v4249
  %v4252 = vmul.f32 %v4234, %v3496
  %v4253 = vadd.f32 %v4251, %v4252
  %v4254 = vpack.c.bf16 %v4253, %v4253
  %v4255 = vld [vmem:[%s39] sm:$0xf]
  %v4256 = vld [vmem:[%s39 + $0x4] sm:$0xf]
  %v4257 = vld [vmem:[%s39 + $0x8] sm:$0xf]
  %v4258 = vld [vmem:[%s39 + $0xc] sm:$0xf]
  %v4259 = vld [vmem:[%s41] sm:$0x1]
  %v4261 = vlaneseq
  %v4262 = vshrl.u32 %v4261, 7
  %v4263 = vsub.s32 0, %v4262
  %v4264 = vrot.slane %v4259, %v4263
  %4267 = vrot.lane.b32.xlu0 %v4254, 96
  %v4268 = vpop.permute.xlu0 %4267
  %v4273 = vunpack.c.l.b16 %v4255
  %v4274 = vunpack.c.l.b16 %v4256
  %v4275 = vunpack.c.l.b16 %v4257
  %v4276 = vunpack.c.l.b16 %v4258
  %v4277 = vpack.c.b16 %v4274, %v4273
  %v4278 = vpack.c.b16 %v4276, %v4275
  %v4282 = vsel %vm151, %v4268, 0
  %4284 = vmatprep.subr.bf16.mxu0 0
  %4285 = vmatpush1.bf16.msra.mxu0 %v4277
  %4286 = vmatprep.subr.bf16.mxu0 0
  %4287 = vmatpush1.bf16.msra.mxu0 %v4278
  %4288 = vmatprep.subr.bf16.mxu0 0
  %4289 = vmatpush1.bf16.msra.mxu0 0
  %4290 = vmatprep.subr.bf16.mxu0 0
  %4291 = vmatpush1.bf16.msra.mxu0 0
  %4292 = vmatprep.subr.bf16.mxu0 0
  %4293 = vmatpush1.bf16.msra.mxu0 0
  %4294 = vmatprep.subr.bf16.mxu0 0
  %4295 = vmatpush1.bf16.msra.mxu0 0
  %4296 = vmatprep.subr.bf16.mxu0 0
  %4297 = vmatpush1.bf16.msra.mxu0 0
  %4298 = vmatprep.subr.bf16.mxu0 0
  %4299 = vmatpush1.bf16.msra.mxu0 0
  %4300 = vmatprep.subr.bf16.mxu0 0
  %4301 = vmatpush1.bf16.msra.mxu0 0
  %4302 = vmatprep.subr.bf16.mxu0 0
  %4303 = vmatpush1.bf16.msra.mxu0 0
  %4304 = vmatprep.subr.bf16.mxu0 0
  %4305 = vmatpush1.bf16.msra.mxu0 0
  %4306 = vmatprep.subr.bf16.mxu0 0
  %4307 = vmatpush1.bf16.msra.mxu0 0
  %4308 = vmatprep.subr.bf16.mxu0 0
  %4309 = vmatpush1.bf16.msra.mxu0 0
  %4310 = vmatprep.subr.bf16.mxu0 0
  %4311 = vmatpush1.bf16.msra.mxu0 0
  %4312 = vmatprep.subr.bf16.mxu0 0
  %4313 = vmatpush1.bf16.msra.mxu0 0
  %4314 = vmatprep.subr.bf16.mxu0 0
  %4315 = vmatpush1.bf16.msra.mxu0 0
  %4316 = vmatprep.mubr.bf16.mxu0 0
  %4317 = vmatmul.mubr.bf16.gmra.mrb[0].mxu0 %v4282
  %v4318 = vpop.f32.mrb[0].mxu0
  %v4319 = vadd.f32 %v4264, %v4318
  %v4320 = vpop.f32.mrb[0].mxu0
  %v4321 = vpop.f32.mrb[0].mxu0
  %v4322 = vpop.f32.mrb[0].mxu0
  %4323 = vdwg.mxu0
  %v4324 = vld [vmem:[%s43] sm:$0xf]
  %v4325 = vld [vmem:[%s43 + $0x4] sm:$0xf]
  %v4326 = vld [vmem:[%s43 + $0x8] sm:$0xf]
  %v4327 = vld [vmem:[%s43 + $0xc] sm:$0xf]
  %v4328 = vld [vmem:[%s45] sm:$0x1]
  %v4330 = vlaneseq
  %v4331 = vshrl.u32 %v4330, 7
  %v4332 = vsub.s32 0, %v4331
  %v4333 = vrot.slane %v4328, %v4332
  %v4339 = vunpack.c.l.b16 %v4324
  %v4340 = vunpack.c.l.b16 %v4325
  %v4341 = vunpack.c.l.b16 %v4326
  %v4342 = vunpack.c.l.b16 %v4327
  %v4343 = vpack.c.b16 %v4340, %v4339
  %v4344 = vpack.c.b16 %v4342, %v4341
  %4347 = vmatprep.subr.bf16.mxu0 0
  %4348 = vmatpush1.bf16.msra.mxu0 %v4343
  %4349 = vmatprep.subr.bf16.mxu0 0
  %4350 = vmatpush1.bf16.msra.mxu0 %v4344
  %4351 = vmatprep.subr.bf16.mxu0 0
  %4352 = vmatpush1.bf16.msra.mxu0 0
  %4353 = vmatprep.subr.bf16.mxu0 0
  %4354 = vmatpush1.bf16.msra.mxu0 0
  %4355 = vmatprep.subr.bf16.mxu0 0
  %4356 = vmatpush1.bf16.msra.mxu0 0
  %4357 = vmatprep.subr.bf16.mxu0 0
  %4358 = vmatpush1.bf16.msra.mxu0 0
  %4359 = vmatprep.subr.bf16.mxu0 0
  %4360 = vmatpush1.bf16.msra.mxu0 0
  %4361 = vmatprep.subr.bf16.mxu0 0
  %4362 = vmatpush1.bf16.msra.mxu0 0
  %4363 = vmatprep.subr.bf16.mxu0 0
  %4364 = vmatpush1.bf16.msra.mxu0 0
  %4365 = vmatprep.subr.bf16.mxu0 0
  %4366 = vmatpush1.bf16.msra.mxu0 0
  %4367 = vmatprep.subr.bf16.mxu0 0
  %4368 = vmatpush1.bf16.msra.mxu0 0
  %4369 = vmatprep.subr.bf16.mxu0 0
  %4370 = vmatpush1.bf16.msra.mxu0 0
  %4371 = vmatprep.subr.bf16.mxu0 0
  %4372 = vmatpush1.bf16.msra.mxu0 0
  %4373 = vmatprep.subr.bf16.mxu0 0
  %4374 = vmatpush1.bf16.msra.mxu0 0
  %4375 = vmatprep.subr.bf16.mxu0 0
  %4376 = vmatpush1.bf16.msra.mxu0 0
  %4377 = vmatprep.subr.bf16.mxu0 0
  %4378 = vmatpush1.bf16.msra.mxu0 0
  %4379 = vmatprep.mubr.bf16.mxu0 0
  %4380 = vmatmul.mubr.bf16.gmra.mrb[0].mxu0 %v3677
  %v4381 = vpop.f32.mrb[0].mxu0
  %v4382 = vadd.f32 %v4333, %v4381
  %v4383 = vpop.f32.mrb[0].mxu0
  %v4384 = vpop.f32.mrb[0].mxu0
  %v4385 = vpop.f32.mrb[0].mxu0
  %4386 = vdwg.mxu0
  %v4387 = vadd.f32 %v4319, %v4382
  %v4388 = vxor.u32 %v4387, 2147483648
  %v4389 = vmul.f32 %v4388, 1.442695
  %v4390 = vpow.pop %v4389
  %v4391 = vadd.f32 %v4390, 1.0
  %v4392 = vrcp.pop %v4391
  %v4393 = vmul.f32 1.0, %v4392
  %4395 = vrot.lane.b32.xlu0 %v4382, 64
  %v4396 = vpop.permute.xlu0 %4395
  %v4398 = vmul.f32 %v4393, %v4396
  %4400 = vrot.lane.b32.xlu0 %v4398, 64
  %v4401 = vpop.permute.xlu0 %4400
  %v4403 = vadd.f32 %v4319, %v4401
  %v4404 = vtanh.pop %v4403
  %v4405 = vsub.f32 1.0, %v4393
  %4407 = vrot.lane.b32.xlu0 %v4404, 96
  %v4408 = vpop.permute.xlu0 %4407
  %v4410 = vmul.f32 %v4405, %v4408
  %v4411 = vmul.f32 %v4393, %v3655
  %v4412 = vadd.f32 %v4410, %v4411
  %v4413 = vpack.c.bf16 %v4412, %v4412
  %v4414 = vld [vmem:[%s47] sm:$0xf]
  %v4415 = vld [vmem:[%s47 + $0x4] sm:$0xf]
  %v4416 = vld [vmem:[%s47 + $0x8] sm:$0xf]
  %v4417 = vld [vmem:[%s47 + $0xc] sm:$0xf]
  %4419 = vrot.lane.b32.xlu0 %v4413, 96
  %v4420 = vpop.permute.xlu0 %4419
  %v4425 = vunpack.c.l.b16 %v4414
  %v4426 = vunpack.c.l.b16 %v4415
  %v4427 = vunpack.c.l.b16 %v4416
  %v4428 = vunpack.c.l.b16 %v4417
  %v4429 = vpack.c.b16 %v4426, %v4425
  %v4430 = vpack.c.b16 %v4428, %v4427
  %v4434 = vsel %vm151, %v4420, 0
  %4436 = vmatprep.subr.bf16.mxu0 0
  %4437 = vmatpush1.bf16.msra.mxu0 %v4429
  %4438 = vmatprep.subr.bf16.mxu0 0
  %4439 = vmatpush1.bf16.msra.mxu0 %v4430
  %4440 = vmatprep.subr.bf16.mxu0 0
  %4441 = vmatpush1.bf16.msra.mxu0 0
  %4442 = vmatprep.subr.bf16.mxu0 0
  %4443 = vmatpush1.bf16.msra.mxu0 0
  %4444 = vmatprep.subr.bf16.mxu0 0
  %4445 = vmatpush1.bf16.msra.mxu0 0
  %4446 = vmatprep.subr.bf16.mxu0 0
  %4447 = vmatpush1.bf16.msra.mxu0 0
  %4448 = vmatprep.subr.bf16.mxu0 0
  %4449 = vmatpush1.bf16.msra.mxu0 0
  %4450 = vmatprep.subr.bf16.mxu0 0
  %4451 = vmatpush1.bf16.msra.mxu0 0
  %4452 = vmatprep.subr.bf16.mxu0 0
  %4453 = vmatpush1.bf16.msra.mxu0 0
  %4454 = vmatprep.subr.bf16.mxu0 0
  %4455 = vmatpush1.bf16.msra.mxu0 0
  %4456 = vmatprep.subr.bf16.mxu0 0
  %4457 = vmatpush1.bf16.msra.mxu0 0
  %4458 = vmatprep.subr.bf16.mxu0 0
  %4459 = vmatpush1.bf16.msra.mxu0 0
  %4460 = vmatprep.subr.bf16.mxu0 0
  %4461 = vmatpush1.bf16.msra.mxu0 0
  %4462 = vmatprep.subr.bf16.mxu0 0
  %4463 = vmatpush1.bf16.msra.mxu0 0
  %4464 = vmatprep.subr.bf16.mxu0 0
  %4465 = vmatpush1.bf16.msra.mxu0 0
  %4466 = vmatprep.subr.bf16.mxu0 0
  %4467 = vmatpush1.bf16.msra.mxu0 0
  %4468 = vmatprep.mubr.bf16.mxu0 0
  %4469 = vmatmul.mubr.bf16.gmra.mrb[0].mxu0 %v4434
  %v4470 = vpop.f32.mrb[0].mxu0
  %v4471 = vadd.f32 0.0, %v4470
  %v4472 = vpop.f32.mrb[0].mxu0
  %v4473 = vpop.f32.mrb[0].mxu0
  %v4474 = vpop.f32.mrb[0].mxu0
  %4475 = vdwg.mxu0
  %v4476 = vadd.f32 %v3719, %v4471
  %v4477 = vpack.c.bf16 %v4476, %v4476
  %v4478 = vld [vmem:[%s49] sm:$0xff]
  %v4479 = vld [vmem:[%s49 + $0x8] sm:$0xff]
  %v4480 = vld [vmem:[%s49 + $0x10] sm:$0xff]
  %v4481 = vld [vmem:[%s49 + $0x18] sm:$0xff]
  %v4482 = vld [vmem:[%s49 + $0x20] sm:$0xff]
  %v4483 = vld [vmem:[%s49 + $0x28] sm:$0xff]
  %v4484 = vld [vmem:[%s49 + $0x30] sm:$0xff]
  %v4485 = vld [vmem:[%s49 + $0x38] sm:$0xff]
  %v4486 = vld [vmem:[%s51] sm:$0x3]
  %v4488 = vlaneseq
  %v4489 = vshrl.u32 %v4488, 7
  %v4490 = vsub.s32 0, %v4489
  %v4491 = vrot.slane %v4486, %v4490
  %v4492 = vlaneseq
  %v4493 = vshrl.u32 %v4492, 7
  %v4494 = vsub.s32 1, %v4493
  %v4495 = vrot.slane %v4486, %v4494
  %v4506 = vunpack.c.l.b16 %v4478
  %v4507 = vunpack.c.h.b16 %v4478
  %v4508 = vunpack.c.l.b16 %v4479
  %v4509 = vunpack.c.h.b16 %v4479
  %v4510 = vunpack.c.l.b16 %v4480
  %v4511 = vunpack.c.h.b16 %v4480
  %v4512 = vunpack.c.l.b16 %v4481
  %v4513 = vunpack.c.h.b16 %v4481
  %v4514 = vunpack.c.l.b16 %v4482
  %v4515 = vunpack.c.h.b16 %v4482
  %v4516 = vunpack.c.l.b16 %v4483
  %v4517 = vunpack.c.h.b16 %v4483
  %v4518 = vunpack.c.l.b16 %v4484
  %v4519 = vunpack.c.h.b16 %v4484
  %v4520 = vunpack.c.l.b16 %v4485
  %v4521 = vunpack.c.h.b16 %v4485
  %v4522 = vpack.c.b16 %v4508, %v4506
  %v4523 = vpack.c.b16 %v4509, %v4507
  %v4524 = vpack.c.b16 %v4512, %v4510
  %v4525 = vpack.c.b16 %v4513, %v4511
  %v4526 = vpack.c.b16 %v4516, %v4514
  %v4527 = vpack.c.b16 %v4517, %v4515
  %v4528 = vpack.c.b16 %v4520, %v4518
  %v4529 = vpack.c.b16 %v4521, %v4519
  %v4539 = vsel %vm1515, %v4477, 0
  %4541 = vmatprep.subr.bf16.mxu0 %v4523
  %4542 = vmatpush1.bf16.msra.mxu0 %v4522
  %4543 = vmatprep.subr.bf16.mxu0 %v4525
  %4544 = vmatpush1.bf16.msra.mxu0 %v4524
  %4545 = vmatprep.subr.bf16.mxu0 %v4527
  %4546 = vmatpush1.bf16.msra.mxu0 %v4526
  %4547 = vmatprep.subr.bf16.mxu0 %v4529
  %4548 = vmatpush1.bf16.msra.mxu0 %v4528
  %4549 = vmatprep.subr.bf16.mxu0 0
  %4550 = vmatpush1.bf16.msra.mxu0 0
  %4551 = vmatprep.subr.bf16.mxu0 0
  %4552 = vmatpush1.bf16.msra.mxu0 0
  %4553 = vmatprep.subr.bf16.mxu0 0
  %4554 = vmatpush1.bf16.msra.mxu0 0
  %4555 = vmatprep.subr.bf16.mxu0 0
  %4556 = vmatpush1.bf16.msra.mxu0 0
  %4557 = vmatprep.subr.bf16.mxu0 0
  %4558 = vmatpush1.bf16.msra.mxu0 0
  %4559 = vmatprep.subr.bf16.mxu0 0
  %4560 = vmatpush1.bf16.msra.mxu0 0
  %4561 = vmatprep.subr.bf16.mxu0 0
  %4562 = vmatpush1.bf16.msra.mxu0 0
  %4563 = vmatprep.subr.bf16.mxu0 0
  %4564 = vmatpush1.bf16.msra.mxu0 0
  %4565 = vmatprep.subr.bf16.mxu0 0
  %4566 = vmatpush1.bf16.msra.mxu0 0
  %4567 = vmatprep.subr.bf16.mxu0 0
  %4568 = vmatpush1.bf16.msra.mxu0 0
  %4569 = vmatprep.subr.bf16.mxu0 0
  %4570 = vmatpush1.bf16.msra.mxu0 0
  %4571 = vmatprep.subr.bf16.mxu0 0
  %4572 = vmatpush1.bf16.msra.mxu0 0
  %4573 = vmatprep.mubr.bf16.mxu0 0
  %4574 = vmatmul.mubr.bf16.gmra.mrb[0].mxu0 %v4539
  %v4575 = vpop.f32.mrb[0].mxu0
  %v4576 = vadd.f32 %v4491, %v4575
  %v4577 = vpop.f32.mrb[0].mxu0
  %v4578 = vadd.f32 %v4495, %v4577
  %v4579 = vpop.f32.mrb[0].mxu0
  %v4580 = vpop.f32.mrb[0].mxu0
  %4581 = vdwg.mxu0
  %v4582 = vpack.c.bf16 %v3950, %v3950
  %v4583 = vld [vmem:[%s53] sm:$0xff]
  %v4584 = vld [vmem:[%s53 + $0x8] sm:$0xff]
  %v4585 = vld [vmem:[%s53 + $0x10] sm:$0xff]
  %v4586 = vld [vmem:[%s53 + $0x18] sm:$0xff]
  %v4587 = vld [vmem:[%s53 + $0x20] sm:$0xff]
  %v4588 = vld [vmem:[%s53 + $0x28] sm:$0xff]
  %v4589 = vld [vmem:[%s53 + $0x30] sm:$0xff]
  %v4590 = vld [vmem:[%s53 + $0x38] sm:$0xff]
  %v4591 = vld [vmem:[%s55] sm:$0x3]
  %v4593 = vlaneseq
  %v4594 = vshrl.u32 %v4593, 7
  %v4595 = vsub.s32 0, %v4594
  %v4596 = vrot.slane %v4591, %v4595
  %v4597 = vlaneseq
  %v4598 = vshrl.u32 %v4597, 7
  %v4599 = vsub.s32 1, %v4598
  %v4600 = vrot.slane %v4591, %v4599
  %4604 = vrot.lane.b32.xlu0 %v4582, 64
  %v4605 = vpop.permute.xlu0 %4604
  %v4614 = vunpack.c.l.b16 %v4583
  %v4615 = vunpack.c.h.b16 %v4583
  %v4616 = vunpack.c.l.b16 %v4584
  %v4617 = vunpack.c.h.b16 %v4584
  %v4618 = vunpack.c.l.b16 %v4585
  %v4619 = vunpack.c.h.b16 %v4585
  %v4620 = vunpack.c.l.b16 %v4586
  %v4621 = vunpack.c.h.b16 %v4586
  %v4622 = vunpack.c.l.b16 %v4587
  %v4623 = vunpack.c.h.b16 %v4587
  %v4624 = vunpack.c.l.b16 %v4588
  %v4625 = vunpack.c.h.b16 %v4588
  %v4626 = vunpack.c.l.b16 %v4589
  %v4627 = vunpack.c.h.b16 %v4589
  %v4628 = vunpack.c.l.b16 %v4590
  %v4629 = vunpack.c.h.b16 %v4590
  %v4630 = vpack.c.b16 %v4616, %v4614
  %v4631 = vpack.c.b16 %v4617, %v4615
  %v4632 = vpack.c.b16 %v4620, %v4618
  %v4633 = vpack.c.b16 %v4621, %v4619
  %v4634 = vpack.c.b16 %v4624, %v4622
  %v4635 = vpack.c.b16 %v4625, %v4623
  %v4636 = vpack.c.b16 %v4628, %v4626
  %v4637 = vpack.c.b16 %v4629, %v4627
  %v4647 = vsel %vm1515, %v4605, 0
  %4649 = vmatprep.subr.bf16.mxu0 %v4631
  %4650 = vmatpush1.bf16.msra.mxu0 %v4630
  %4651 = vmatprep.subr.bf16.mxu0 %v4633
  %4652 = vmatpush1.bf16.msra.mxu0 %v4632
  %4653 = vmatprep.subr.bf16.mxu0 %v4635
  %4654 = vmatpush1.bf16.msra.mxu0 %v4634
  %4655 = vmatprep.subr.bf16.mxu0 %v4637
  %4656 = vmatpush1.bf16.msra.mxu0 %v4636
  %4657 = vmatprep.subr.bf16.mxu0 0
  %4658 = vmatpush1.bf16.msra.mxu0 0
  %4659 = vmatprep.subr.bf16.mxu0 0
  %4660 = vmatpush1.bf16.msra.mxu0 0
  %4661 = vmatprep.subr.bf16.mxu0 0
  %4662 = vmatpush1.bf16.msra.mxu0 0
  %4663 = vmatprep.subr.bf16.mxu0 0
  %4664 = vmatpush1.bf16.msra.mxu0 0
  %4665 = vmatprep.subr.bf16.mxu0 0
  %4666 = vmatpush1.bf16.msra.mxu0 0
  %4667 = vmatprep.subr.bf16.mxu0 0
  %4668 = vmatpush1.bf16.msra.mxu0 0
  %4669 = vmatprep.subr.bf16.mxu0 0
  %4670 = vmatpush1.bf16.msra.mxu0 0
  %4671 = vmatprep.subr.bf16.mxu0 0
  %4672 = vmatpush1.bf16.msra.mxu0 0
  %4673 = vmatprep.subr.bf16.mxu0 0
  %4674 = vmatpush1.bf16.msra.mxu0 0
  %4675 = vmatprep.subr.bf16.mxu0 0
  %4676 = vmatpush1.bf16.msra.mxu0 0
  %4677 = vmatprep.subr.bf16.mxu0 0
  %4678 = vmatpush1.bf16.msra.mxu0 0
  %4679 = vmatprep.subr.bf16.mxu0 0
  %4680 = vmatpush1.bf16.msra.mxu0 0
  %4681 = vmatprep.mubr.bf16.mxu0 0
  %4682 = vmatmul.mubr.bf16.gmra.mrb[0].mxu0 %v4647
  %v4683 = vpop.f32.mrb[0].mxu0
  %v4684 = vadd.f32 %v4596, %v4683
  %v4685 = vpop.f32.mrb[0].mxu0
  %v4686 = vadd.f32 %v4600, %v4685
  %v4687 = vpop.f32.mrb[0].mxu0
  %v4688 = vpop.f32.mrb[0].mxu0
  %4689 = vdwg.mxu0
  %v4690 = vadd.f32 %v4576, %v4684
  %v4691 = vxor.u32 %v4690, 2147483648
  %v4692 = vmul.f32 %v4691, 1.442695
  %v4693 = vpow.pop %v4692
  %v4694 = vadd.f32 %v4693, 1.0
  %v4695 = vrcp.pop %v4694
  %v4696 = vmul.f32 1.0, %v4695
  %v4697 = vmul.f32 %v4696, %v4686
  %v4698 = vadd.f32 %v4578, %v4697
  %v4699 = vtanh.pop %v4698
  %v4700 = vsub.f32 1.0, %v4696
  %4702 = vrot.lane.b32.xlu0 %v4699, 64
  %v4703 = vpop.permute.xlu0 %4702
  %v4705 = vmul.f32 %v4700, %v4703
  %v4706 = vmul.f32 %v4696, %v3950
  %v4707 = vadd.f32 %v4705, %v4706
  %4709 = vrot.lane.b32.xlu0 %v4707, 64
  %v4710 = vpop.permute.xlu0 %4709
  %s4712 = scalar_lea.vmem [#allocation2], 32
  %4713 = vst.msk [vmem:[%s4712] sm:$0xff] %vm1515, %v4710
  %v4714 = vld [vmem:[%s21] sm:$0xf]
  %v4715 = vld [vmem:[%s21 + $0x4] sm:$0xf]
  %v4716 = vld [vmem:[%s21 + $0x8] sm:$0xf]
  %v4717 = vld [vmem:[%s21 + $0xc] sm:$0xf]
  %v4718 = vld [vmem:[%s21 + $0x10] sm:$0xf]
  %v4719 = vld [vmem:[%s21 + $0x14] sm:$0xf]
  %v4720 = vld [vmem:[%s21 + $0x18] sm:$0xf]
  %v4721 = vld [vmem:[%s21 + $0x1c] sm:$0xf]
  %v4730 = vunpack.c.l.b16 %v4714
  %v4731 = vunpack.c.l.b16 %v4715
  %v4732 = vunpack.c.l.b16 %v4716
  %v4733 = vunpack.c.l.b16 %v4717
  %v4734 = vunpack.c.l.b16 %v4718
  %v4735 = vunpack.c.l.b16 %v4719
  %v4736 = vunpack.c.l.b16 %v4720
  %v4737 = vunpack.c.l.b16 %v4721
  %v4738 = vpack.c.b16 %v4731, %v4730
  %v4739 = vpack.c.b16 %v4733, %v4732
  %v4740 = vpack.c.b16 %v4735, %v4734
  %v4741 = vpack.c.b16 %v4737, %v4736
  %4746 = vmatprep.subr.bf16.mxu0 0
  %4747 = vmatpush1.bf16.msra.mxu0 %v4738
  %4748 = vmatprep.subr.bf16.mxu0 0
  %4749 = vmatpush1.bf16.msra.mxu0 %v4739
  %4750 = vmatprep.subr.bf16.mxu0 0
  %4751 = vmatpush1.bf16.msra.mxu0 %v4740
  %4752 = vmatprep.subr.bf16.mxu0 0
  %4753 = vmatpush1.bf16.msra.mxu0 %v4741
  %4754 = vmatprep.subr.bf16.mxu0 0
  %4755 = vmatpush1.bf16.msra.mxu0 0
  %4756 = vmatprep.subr.bf16.mxu0 0
  %4757 = vmatpush1.bf16.msra.mxu0 0
  %4758 = vmatprep.subr.bf16.mxu0 0
  %4759 = vmatpush1.bf16.msra.mxu0 0
  %4760 = vmatprep.subr.bf16.mxu0 0
  %4761 = vmatpush1.bf16.msra.mxu0 0
  %4762 = vmatprep.subr.bf16.mxu0 0
  %4763 = vmatpush1.bf16.msra.mxu0 0
  %4764 = vmatprep.subr.bf16.mxu0 0
  %4765 = vmatpush1.bf16.msra.mxu0 0
  %4766 = vmatprep.subr.bf16.mxu0 0
  %4767 = vmatpush1.bf16.msra.mxu0 0
  %4768 = vmatprep.subr.bf16.mxu0 0
  %4769 = vmatpush1.bf16.msra.mxu0 0
  %4770 = vmatprep.subr.bf16.mxu0 0
  %4771 = vmatpush1.bf16.msra.mxu0 0
  %4772 = vmatprep.subr.bf16.mxu0 0
  %4773 = vmatpush1.bf16.msra.mxu0 0
  %4774 = vmatprep.subr.bf16.mxu0 0
  %4775 = vmatpush1.bf16.msra.mxu0 0
  %4776 = vmatprep.subr.bf16.mxu0 0
  %4777 = vmatpush1.bf16.msra.mxu0 0
  %4778 = vmatprep.mubr.bf16.mxu0 0
  %4779 = vmatmul.mubr.bf16.gmra.mrb[0].mxu0 %v4539
  %v4780 = vpop.f32.mrb[0].mxu0
  %v4781 = vadd.f32 %v1449, %v4780
  %v4782 = vpop.f32.mrb[0].mxu0
  %v4783 = vpop.f32.mrb[0].mxu0
  %v4784 = vpop.f32.mrb[0].mxu0
  %4785 = vdwg.mxu0
  %v4786 = vmax.f32 %v4781, 0.0
  %v4787 = vpack.c.bf16 %v4786, %v4786
  %v4788 = vld [vmem:[%s27] sm:$0xf]
  %v4789 = vld [vmem:[%s27 + $0x4] sm:$0xf]
  %v4790 = vld [vmem:[%s27 + $0x8] sm:$0xf]
  %v4791 = vld [vmem:[%s27 + $0xc] sm:$0xf]
  %v4792 = vld [vmem:[%s29] sm:$0x1]
  %v4794 = vlaneseq
  %v4795 = vshrl.u32 %v4794, 7
  %v4796 = vsub.s32 0, %v4795
  %v4797 = vrot.slane %v4792, %v4796
  %v4803 = vunpack.c.l.b16 %v4788
  %v4804 = vunpack.c.l.b16 %v4789
  %v4805 = vunpack.c.l.b16 %v4790
  %v4806 = vunpack.c.l.b16 %v4791
  %v4807 = vpack.c.b16 %v4804, %v4803
  %v4808 = vpack.c.b16 %v4806, %v4805
  %v4812 = vsel %vm151, %v4787, 0
  %4814 = vmatprep.subr.bf16.mxu0 0
  %4815 = vmatpush1.bf16.msra.mxu0 %v4807
  %4816 = vmatprep.subr.bf16.mxu0 0
  %4817 = vmatpush1.bf16.msra.mxu0 %v4808
  %4818 = vmatprep.subr.bf16.mxu0 0
  %4819 = vmatpush1.bf16.msra.mxu0 0
  %4820 = vmatprep.subr.bf16.mxu0 0
  %4821 = vmatpush1.bf16.msra.mxu0 0
  %4822 = vmatprep.subr.bf16.mxu0 0
  %4823 = vmatpush1.bf16.msra.mxu0 0
  %4824 = vmatprep.subr.bf16.mxu0 0
  %4825 = vmatpush1.bf16.msra.mxu0 0
  %4826 = vmatprep.subr.bf16.mxu0 0
  %4827 = vmatpush1.bf16.msra.mxu0 0
  %4828 = vmatprep.subr.bf16.mxu0 0
  %4829 = vmatpush1.bf16.msra.mxu0 0
  %4830 = vmatprep.subr.bf16.mxu0 0
  %4831 = vmatpush1.bf16.msra.mxu0 0
  %4832 = vmatprep.subr.bf16.mxu0 0
  %4833 = vmatpush1.bf16.msra.mxu0 0
  %4834 = vmatprep.subr.bf16.mxu0 0
  %4835 = vmatpush1.bf16.msra.mxu0 0
  %4836 = vmatprep.subr.bf16.mxu0 0
  %4837 = vmatpush1.bf16.msra.mxu0 0
  %4838 = vmatprep.subr.bf16.mxu0 0
  %4839 = vmatpush1.bf16.msra.mxu0 0
  %4840 = vmatprep.subr.bf16.mxu0 0
  %4841 = vmatpush1.bf16.msra.mxu0 0
  %4842 = vmatprep.subr.bf16.mxu0 0
  %4843 = vmatpush1.bf16.msra.mxu0 0
  %4844 = vmatprep.subr.bf16.mxu0 0
  %4845 = vmatpush1.bf16.msra.mxu0 0
  %4846 = vmatprep.mubr.bf16.mxu0 0
  %4847 = vmatmul.mubr.bf16.gmra.mrb[0].mxu0 %v4812
  %v4848 = vpop.f32.mrb[0].mxu0
  %v4849 = vadd.f32 %v4797, %v4848
  %v4850 = vpop.f32.mrb[0].mxu0
  %v4851 = vpop.f32.mrb[0].mxu0
  %v4852 = vpop.f32.mrb[0].mxu0
  %4853 = vdwg.mxu0
  %v4854 = vmax.f32 %v4849, 0.0
  %v4855 = vpack.c.bf16 %v4854, %v4854
  %v4856 = vld [vmem:[%s31] sm:$0xf]
  %v4857 = vld [vmem:[%s31 + $0x4] sm:$0xf]
  %v4858 = vld [vmem:[%s31 + $0x8] sm:$0xf]
  %v4859 = vld [vmem:[%s31 + $0xc] sm:$0xf]
  %v4860 = vld [vmem:[%s33] sm:$0x1]
  %v4862 = vlaneseq
  %v4863 = vshrl.u32 %v4862, 7
  %v4864 = vsub.s32 0, %v4863
  %v4865 = vrot.slane %v4860, %v4864
  %v4871 = vunpack.c.l.b16 %v4856
  %v4872 = vunpack.c.l.b16 %v4857
  %v4873 = vunpack.c.l.b16 %v4858
  %v4874 = vunpack.c.l.b16 %v4859
  %v4875 = vpack.c.b16 %v4872, %v4871
  %v4876 = vpack.c.b16 %v4874, %v4873
  %v4880 = vsel %vm151, %v4855, 0
  %4882 = vmatprep.subr.bf16.mxu0 0
  %4883 = vmatpush1.bf16.msra.mxu0 %v4875
  %4884 = vmatprep.subr.bf16.mxu0 0
  %4885 = vmatpush1.bf16.msra.mxu0 %v4876
  %4886 = vmatprep.subr.bf16.mxu0 0
  %4887 = vmatpush1.bf16.msra.mxu0 0
  %4888 = vmatprep.subr.bf16.mxu0 0
  %4889 = vmatpush1.bf16.msra.mxu0 0
  %4890 = vmatprep.subr.bf16.mxu0 0
  %4891 = vmatpush1.bf16.msra.mxu0 0
  %4892 = vmatprep.subr.bf16.mxu0 0
  %4893 = vmatpush1.bf16.msra.mxu0 0
  %4894 = vmatprep.subr.bf16.mxu0 0
  %4895 = vmatpush1.bf16.msra.mxu0 0
  %4896 = vmatprep.subr.bf16.mxu0 0
  %4897 = vmatpush1.bf16.msra.mxu0 0
  %4898 = vmatprep.subr.bf16.mxu0 0
  %4899 = vmatpush1.bf16.msra.mxu0 0
  %4900 = vmatprep.subr.bf16.mxu0 0
  %4901 = vmatpush1.bf16.msra.mxu0 0
  %4902 = vmatprep.subr.bf16.mxu0 0
  %4903 = vmatpush1.bf16.msra.mxu0 0
  %4904 = vmatprep.subr.bf16.mxu0 0
  %4905 = vmatpush1.bf16.msra.mxu0 0
  %4906 = vmatprep.subr.bf16.mxu0 0
  %4907 = vmatpush1.bf16.msra.mxu0 0
  %4908 = vmatprep.subr.bf16.mxu0 0
  %4909 = vmatpush1.bf16.msra.mxu0 0
  %4910 = vmatprep.subr.bf16.mxu0 0
  %4911 = vmatpush1.bf16.msra.mxu0 0
  %4912 = vmatprep.subr.bf16.mxu0 0
  %4913 = vmatpush1.bf16.msra.mxu0 0
  %4914 = vmatprep.mubr.bf16.mxu0 0
  %4915 = vmatmul.mubr.bf16.gmra.mrb[0].mxu0 %v4880
  %v4916 = vpop.f32.mrb[0].mxu0
  %v4917 = vadd.f32 %v4865, %v4916
  %v4918 = vpop.f32.mrb[0].mxu0
  %v4919 = vpop.f32.mrb[0].mxu0
  %v4920 = vpop.f32.mrb[0].mxu0
  %4921 = vdwg.mxu0
  %v4922 = vld [vmem:[%s35] sm:$0xf]
  %v4923 = vld [vmem:[%s35 + $0x4] sm:$0xf]
  %v4924 = vld [vmem:[%s35 + $0x8] sm:$0xf]
  %v4925 = vld [vmem:[%s35 + $0xc] sm:$0xf]
  %v4926 = vld [vmem:[%s37] sm:$0x1]
  %v4928 = vlaneseq
  %v4929 = vshrl.u32 %v4928, 7
  %v4930 = vsub.s32 0, %v4929
  %v4931 = vrot.slane %v4926, %v4930
  %v4937 = vunpack.c.l.b16 %v4922
  %v4938 = vunpack.c.l.b16 %v4923
  %v4939 = vunpack.c.l.b16 %v4924
  %v4940 = vunpack.c.l.b16 %v4925
  %v4941 = vpack.c.b16 %v4938, %v4937
  %v4942 = vpack.c.b16 %v4940, %v4939
  %4945 = vmatprep.subr.bf16.mxu0 0
  %4946 = vmatpush1.bf16.msra.mxu0 %v4941
  %4947 = vmatprep.subr.bf16.mxu0 0
  %4948 = vmatpush1.bf16.msra.mxu0 %v4942
  %4949 = vmatprep.subr.bf16.mxu0 0
  %4950 = vmatpush1.bf16.msra.mxu0 0
  %4951 = vmatprep.subr.bf16.mxu0 0
  %4952 = vmatpush1.bf16.msra.mxu0 0
  %4953 = vmatprep.subr.bf16.mxu0 0
  %4954 = vmatpush1.bf16.msra.mxu0 0
  %4955 = vmatprep.subr.bf16.mxu0 0
  %4956 = vmatpush1.bf16.msra.mxu0 0
  %4957 = vmatprep.subr.bf16.mxu0 0
  %4958 = vmatpush1.bf16.msra.mxu0 0
  %4959 = vmatprep.subr.bf16.mxu0 0
  %4960 = vmatpush1.bf16.msra.mxu0 0
  %4961 = vmatprep.subr.bf16.mxu0 0
  %4962 = vmatpush1.bf16.msra.mxu0 0
  %4963 = vmatprep.subr.bf16.mxu0 0
  %4964 = vmatpush1.bf16.msra.mxu0 0
  %4965 = vmatprep.subr.bf16.mxu0 0
  %4966 = vmatpush1.bf16.msra.mxu0 0
  %4967 = vmatprep.subr.bf16.mxu0 0
  %4968 = vmatpush1.bf16.msra.mxu0 0
  %4969 = vmatprep.subr.bf16.mxu0 0
  %4970 = vmatpush1.bf16.msra.mxu0 0
  %4971 = vmatprep.subr.bf16.mxu0 0
  %4972 = vmatpush1.bf16.msra.mxu0 0
  %4973 = vmatprep.subr.bf16.mxu0 0
  %4974 = vmatpush1.bf16.msra.mxu0 0
  %4975 = vmatprep.subr.bf16.mxu0 0
  %4976 = vmatpush1.bf16.msra.mxu0 0
  %4977 = vmatprep.mubr.bf16.mxu0 0
  %4978 = vmatmul.mubr.bf16.gmra.mrb[0].mxu0 %v4282
  %v4979 = vpop.f32.mrb[0].mxu0
  %v4980 = vadd.f32 %v4931, %v4979
  %v4981 = vpop.f32.mrb[0].mxu0
  %v4982 = vpop.f32.mrb[0].mxu0
  %v4983 = vpop.f32.mrb[0].mxu0
  %4984 = vdwg.mxu0
  %v4985 = vadd.f32 %v4917, %v4980
  %v4986 = vxor.u32 %v4985, 2147483648
  %v4987 = vmul.f32 %v4986, 1.442695
  %v4988 = vpow.pop %v4987
  %v4989 = vadd.f32 %v4988, 1.0
  %v4990 = vrcp.pop %v4989
  %v4991 = vmul.f32 1.0, %v4990
  %4993 = vrot.lane.b32.xlu0 %v4980, 64
  %v4994 = vpop.permute.xlu0 %4993
  %v4996 = vmul.f32 %v4991, %v4994
  %4998 = vrot.lane.b32.xlu0 %v4996, 64
  %v4999 = vpop.permute.xlu0 %4998
  %v5001 = vadd.f32 %v4917, %v4999
  %v5002 = vtanh.pop %v5001
  %v5003 = vsub.f32 1.0, %v4991
  %5005 = vrot.lane.b32.xlu0 %v5002, 96
  %v5006 = vpop.permute.xlu0 %5005
  %v5008 = vmul.f32 %v5003, %v5006
  %v5009 = vmul.f32 %v4991, %v4253
  %v5010 = vadd.f32 %v5008, %v5009
  %v5011 = vpack.c.bf16 %v5010, %v5010
  %v5012 = vld [vmem:[%s39] sm:$0xf]
  %v5013 = vld [vmem:[%s39 + $0x4] sm:$0xf]
  %v5014 = vld [vmem:[%s39 + $0x8] sm:$0xf]
  %v5015 = vld [vmem:[%s39 + $0xc] sm:$0xf]
  %v5016 = vld [vmem:[%s41] sm:$0x1]
  %v5018 = vlaneseq
  %v5019 = vshrl.u32 %v5018, 7
  %v5020 = vsub.s32 0, %v5019
  %v5021 = vrot.slane %v5016, %v5020
  %5024 = vrot.lane.b32.xlu0 %v5011, 96
  %v5025 = vpop.permute.xlu0 %5024
  %v5030 = vunpack.c.l.b16 %v5012
  %v5031 = vunpack.c.l.b16 %v5013
  %v5032 = vunpack.c.l.b16 %v5014
  %v5033 = vunpack.c.l.b16 %v5015
  %v5034 = vpack.c.b16 %v5031, %v5030
  %v5035 = vpack.c.b16 %v5033, %v5032
  %v5039 = vsel %vm151, %v5025, 0
  %5041 = vmatprep.subr.bf16.mxu0 0
  %5042 = vmatpush1.bf16.msra.mxu0 %v5034
  %5043 = vmatprep.subr.bf16.mxu0 0
  %5044 = vmatpush1.bf16.msra.mxu0 %v5035
  %5045 = vmatprep.subr.bf16.mxu0 0
  %5046 = vmatpush1.bf16.msra.mxu0 0
  %5047 = vmatprep.subr.bf16.mxu0 0
  %5048 = vmatpush1.bf16.msra.mxu0 0
  %5049 = vmatprep.subr.bf16.mxu0 0
  %5050 = vmatpush1.bf16.msra.mxu0 0
  %5051 = vmatprep.subr.bf16.mxu0 0
  %5052 = vmatpush1.bf16.msra.mxu0 0
  %5053 = vmatprep.subr.bf16.mxu0 0
  %5054 = vmatpush1.bf16.msra.mxu0 0
  %5055 = vmatprep.subr.bf16.mxu0 0
  %5056 = vmatpush1.bf16.msra.mxu0 0
  %5057 = vmatprep.subr.bf16.mxu0 0
  %5058 = vmatpush1.bf16.msra.mxu0 0
  %5059 = vmatprep.subr.bf16.mxu0 0
  %5060 = vmatpush1.bf16.msra.mxu0 0
  %5061 = vmatprep.subr.bf16.mxu0 0
  %5062 = vmatpush1.bf16.msra.mxu0 0
  %5063 = vmatprep.subr.bf16.mxu0 0
  %5064 = vmatpush1.bf16.msra.mxu0 0
  %5065 = vmatprep.subr.bf16.mxu0 0
  %5066 = vmatpush1.bf16.msra.mxu0 0
  %5067 = vmatprep.subr.bf16.mxu0 0
  %5068 = vmatpush1.bf16.msra.mxu0 0
  %5069 = vmatprep.subr.bf16.mxu0 0
  %5070 = vmatpush1.bf16.msra.mxu0 0
  %5071 = vmatprep.subr.bf16.mxu0 0
  %5072 = vmatpush1.bf16.msra.mxu0 0
  %5073 = vmatprep.mubr.bf16.mxu0 0
  %5074 = vmatmul.mubr.bf16.gmra.mrb[0].mxu0 %v5039
  %v5075 = vpop.f32.mrb[0].mxu0
  %v5076 = vadd.f32 %v5021, %v5075
  %v5077 = vpop.f32.mrb[0].mxu0
  %v5078 = vpop.f32.mrb[0].mxu0
  %v5079 = vpop.f32.mrb[0].mxu0
  %5080 = vdwg.mxu0
  %v5081 = vld [vmem:[%s43] sm:$0xf]
  %v5082 = vld [vmem:[%s43 + $0x4] sm:$0xf]
  %v5083 = vld [vmem:[%s43 + $0x8] sm:$0xf]
  %v5084 = vld [vmem:[%s43 + $0xc] sm:$0xf]
  %v5085 = vld [vmem:[%s45] sm:$0x1]
  %v5087 = vlaneseq
  %v5088 = vshrl.u32 %v5087, 7
  %v5089 = vsub.s32 0, %v5088
  %v5090 = vrot.slane %v5085, %v5089
  %v5096 = vunpack.c.l.b16 %v5081
  %v5097 = vunpack.c.l.b16 %v5082
  %v5098 = vunpack.c.l.b16 %v5083
  %v5099 = vunpack.c.l.b16 %v5084
  %v5100 = vpack.c.b16 %v5097, %v5096
  %v5101 = vpack.c.b16 %v5099, %v5098
  %5104 = vmatprep.subr.bf16.mxu0 0
  %5105 = vmatpush1.bf16.msra.mxu0 %v5100
  %5106 = vmatprep.subr.bf16.mxu0 0
  %5107 = vmatpush1.bf16.msra.mxu0 %v5101
  %5108 = vmatprep.subr.bf16.mxu0 0
  %5109 = vmatpush1.bf16.msra.mxu0 0
  %5110 = vmatprep.subr.bf16.mxu0 0
  %5111 = vmatpush1.bf16.msra.mxu0 0
  %5112 = vmatprep.subr.bf16.mxu0 0
  %5113 = vmatpush1.bf16.msra.mxu0 0
  %5114 = vmatprep.subr.bf16.mxu0 0
  %5115 = vmatpush1.bf16.msra.mxu0 0
  %5116 = vmatprep.subr.bf16.mxu0 0
  %5117 = vmatpush1.bf16.msra.mxu0 0
  %5118 = vmatprep.subr.bf16.mxu0 0
  %5119 = vmatpush1.bf16.msra.mxu0 0
  %5120 = vmatprep.subr.bf16.mxu0 0
  %5121 = vmatpush1.bf16.msra.mxu0 0
  %5122 = vmatprep.subr.bf16.mxu0 0
  %5123 = vmatpush1.bf16.msra.mxu0 0
  %5124 = vmatprep.subr.bf16.mxu0 0
  %5125 = vmatpush1.bf16.msra.mxu0 0
  %5126 = vmatprep.subr.bf16.mxu0 0
  %5127 = vmatpush1.bf16.msra.mxu0 0
  %5128 = vmatprep.subr.bf16.mxu0 0
  %5129 = vmatpush1.bf16.msra.mxu0 0
  %5130 = vmatprep.subr.bf16.mxu0 0
  %5131 = vmatpush1.bf16.msra.mxu0 0
  %5132 = vmatprep.subr.bf16.mxu0 0
  %5133 = vmatpush1.bf16.msra.mxu0 0
  %5134 = vmatprep.subr.bf16.mxu0 0
  %5135 = vmatpush1.bf16.msra.mxu0 0
  %5136 = vmatprep.mubr.bf16.mxu0 0
  %5137 = vmatmul.mubr.bf16.gmra.mrb[0].mxu0 %v4434
  %v5138 = vpop.f32.mrb[0].mxu0
  %v5139 = vadd.f32 %v5090, %v5138
  %v5140 = vpop.f32.mrb[0].mxu0
  %v5141 = vpop.f32.mrb[0].mxu0
  %v5142 = vpop.f32.mrb[0].mxu0
  %5143 = vdwg.mxu0
  %v5144 = vadd.f32 %v5076, %v5139
  %v5145 = vxor.u32 %v5144, 2147483648
  %v5146 = vmul.f32 %v5145, 1.442695
  %v5147 = vpow.pop %v5146
  %v5148 = vadd.f32 %v5147, 1.0
  %v5149 = vrcp.pop %v5148
  %v5150 = vmul.f32 1.0, %v5149
  %5152 = vrot.lane.b32.xlu0 %v5139, 64
  %v5153 = vpop.permute.xlu0 %5152
  %v5155 = vmul.f32 %v5150, %v5153
  %5157 = vrot.lane.b32.xlu0 %v5155, 64
  %v5158 = vpop.permute.xlu0 %5157
  %v5160 = vadd.f32 %v5076, %v5158
  %v5161 = vtanh.pop %v5160
  %v5162 = vsub.f32 1.0, %v5150
  %5164 = vrot.lane.b32.xlu0 %v5161, 96
  %v5165 = vpop.permute.xlu0 %5164
  %v5167 = vmul.f32 %v5162, %v5165
  %v5168 = vmul.f32 %v5150, %v4412
  %v5169 = vadd.f32 %v5167, %v5168
  %v5170 = vpack.c.bf16 %v5169, %v5169
  %v5171 = vld [vmem:[%s47] sm:$0xf]
  %v5172 = vld [vmem:[%s47 + $0x4] sm:$0xf]
  %v5173 = vld [vmem:[%s47 + $0x8] sm:$0xf]
  %v5174 = vld [vmem:[%s47 + $0xc] sm:$0xf]
  %5176 = vrot.lane.b32.xlu0 %v5170, 96
  %v5177 = vpop.permute.xlu0 %5176
  %v5182 = vunpack.c.l.b16 %v5171
  %v5183 = vunpack.c.l.b16 %v5172
  %v5184 = vunpack.c.l.b16 %v5173
  %v5185 = vunpack.c.l.b16 %v5174
  %v5186 = vpack.c.b16 %v5183, %v5182
  %v5187 = vpack.c.b16 %v5185, %v5184
  %v5191 = vsel %vm151, %v5177, 0
  %5193 = vmatprep.subr.bf16.mxu0 0
  %5194 = vmatpush1.bf16.msra.mxu0 %v5186
  %5195 = vmatprep.subr.bf16.mxu0 0
  %5196 = vmatpush1.bf16.msra.mxu0 %v5187
  %5197 = vmatprep.subr.bf16.mxu0 0
  %5198 = vmatpush1.bf16.msra.mxu0 0
  %5199 = vmatprep.subr.bf16.mxu0 0
  %5200 = vmatpush1.bf16.msra.mxu0 0
  %5201 = vmatprep.subr.bf16.mxu0 0
  %5202 = vmatpush1.bf16.msra.mxu0 0
  %5203 = vmatprep.subr.bf16.mxu0 0
  %5204 = vmatpush1.bf16.msra.mxu0 0
  %5205 = vmatprep.subr.bf16.mxu0 0
  %5206 = vmatpush1.bf16.msra.mxu0 0
  %5207 = vmatprep.subr.bf16.mxu0 0
  %5208 = vmatpush1.bf16.msra.mxu0 0
  %5209 = vmatprep.subr.bf16.mxu0 0
  %5210 = vmatpush1.bf16.msra.mxu0 0
  %5211 = vmatprep.subr.bf16.mxu0 0
  %5212 = vmatpush1.bf16.msra.mxu0 0
  %5213 = vmatprep.subr.bf16.mxu0 0
  %5214 = vmatpush1.bf16.msra.mxu0 0
  %5215 = vmatprep.subr.bf16.mxu0 0
  %5216 = vmatpush1.bf16.msra.mxu0 0
  %5217 = vmatprep.subr.bf16.mxu0 0
  %5218 = vmatpush1.bf16.msra.mxu0 0
  %5219 = vmatprep.subr.bf16.mxu0 0
  %5220 = vmatpush1.bf16.msra.mxu0 0
  %5221 = vmatprep.subr.bf16.mxu0 0
  %5222 = vmatpush1.bf16.msra.mxu0 0
  %5223 = vmatprep.subr.bf16.mxu0 0
  %5224 = vmatpush1.bf16.msra.mxu0 0
  %5225 = vmatprep.mubr.bf16.mxu0 0
  %5226 = vmatmul.mubr.bf16.gmra.mrb[0].mxu0 %v5191
  %v5227 = vpop.f32.mrb[0].mxu0
  %v5228 = vadd.f32 0.0, %v5227
  %v5229 = vpop.f32.mrb[0].mxu0
  %v5230 = vpop.f32.mrb[0].mxu0
  %v5231 = vpop.f32.mrb[0].mxu0
  %5232 = vdwg.mxu0
  %v5233 = vadd.f32 %v4476, %v5228
  %v5234 = vpack.c.bf16 %v5233, %v5233
  %v5235 = vld [vmem:[%s49] sm:$0xff]
  %v5236 = vld [vmem:[%s49 + $0x8] sm:$0xff]
  %v5237 = vld [vmem:[%s49 + $0x10] sm:$0xff]
  %v5238 = vld [vmem:[%s49 + $0x18] sm:$0xff]
  %v5239 = vld [vmem:[%s49 + $0x20] sm:$0xff]
  %v5240 = vld [vmem:[%s49 + $0x28] sm:$0xff]
  %v5241 = vld [vmem:[%s49 + $0x30] sm:$0xff]
  %v5242 = vld [vmem:[%s49 + $0x38] sm:$0xff]
  %v5243 = vld [vmem:[%s51] sm:$0x3]
  %v5245 = vlaneseq
  %v5246 = vshrl.u32 %v5245, 7
  %v5247 = vsub.s32 0, %v5246
  %v5248 = vrot.slane %v5243, %v5247
  %v5249 = vlaneseq
  %v5250 = vshrl.u32 %v5249, 7
  %v5251 = vsub.s32 1, %v5250
  %v5252 = vrot.slane %v5243, %v5251
  %v5263 = vunpack.c.l.b16 %v5235
  %v5264 = vunpack.c.h.b16 %v5235
  %v5265 = vunpack.c.l.b16 %v5236
  %v5266 = vunpack.c.h.b16 %v5236
  %v5267 = vunpack.c.l.b16 %v5237
  %v5268 = vunpack.c.h.b16 %v5237
  %v5269 = vunpack.c.l.b16 %v5238
  %v5270 = vunpack.c.h.b16 %v5238
  %v5271 = vunpack.c.l.b16 %v5239
  %v5272 = vunpack.c.h.b16 %v5239
  %v5273 = vunpack.c.l.b16 %v5240
  %v5274 = vunpack.c.h.b16 %v5240
  %v5275 = vunpack.c.l.b16 %v5241
  %v5276 = vunpack.c.h.b16 %v5241
  %v5277 = vunpack.c.l.b16 %v5242
  %v5278 = vunpack.c.h.b16 %v5242
  %v5279 = vpack.c.b16 %v5265, %v5263
  %v5280 = vpack.c.b16 %v5266, %v5264
  %v5281 = vpack.c.b16 %v5269, %v5267
  %v5282 = vpack.c.b16 %v5270, %v5268
  %v5283 = vpack.c.b16 %v5273, %v5271
  %v5284 = vpack.c.b16 %v5274, %v5272
  %v5285 = vpack.c.b16 %v5277, %v5275
  %v5286 = vpack.c.b16 %v5278, %v5276
  %v5296 = vsel %vm1515, %v5234, 0
  %5298 = vmatprep.subr.bf16.mxu0 %v5280
  %5299 = vmatpush1.bf16.msra.mxu0 %v5279
  %5300 = vmatprep.subr.bf16.mxu0 %v5282
  %5301 = vmatpush1.bf16.msra.mxu0 %v5281
  %5302 = vmatprep.subr.bf16.mxu0 %v5284
  %5303 = vmatpush1.bf16.msra.mxu0 %v5283
  %5304 = vmatprep.subr.bf16.mxu0 %v5286
  %5305 = vmatpush1.bf16.msra.mxu0 %v5285
  %5306 = vmatprep.subr.bf16.mxu0 0
  %5307 = vmatpush1.bf16.msra.mxu0 0
  %5308 = vmatprep.subr.bf16.mxu0 0
  %5309 = vmatpush1.bf16.msra.mxu0 0
  %5310 = vmatprep.subr.bf16.mxu0 0
  %5311 = vmatpush1.bf16.msra.mxu0 0
  %5312 = vmatprep.subr.bf16.mxu0 0
  %5313 = vmatpush1.bf16.msra.mxu0 0
  %5314 = vmatprep.subr.bf16.mxu0 0
  %5315 = vmatpush1.bf16.msra.mxu0 0
  %5316 = vmatprep.subr.bf16.mxu0 0
  %5317 = vmatpush1.bf16.msra.mxu0 0
  %5318 = vmatprep.subr.bf16.mxu0 0
  %5319 = vmatpush1.bf16.msra.mxu0 0
  %5320 = vmatprep.subr.bf16.mxu0 0
  %5321 = vmatpush1.bf16.msra.mxu0 0
  %5322 = vmatprep.subr.bf16.mxu0 0
  %5323 = vmatpush1.bf16.msra.mxu0 0
  %5324 = vmatprep.subr.bf16.mxu0 0
  %5325 = vmatpush1.bf16.msra.mxu0 0
  %5326 = vmatprep.subr.bf16.mxu0 0
  %5327 = vmatpush1.bf16.msra.mxu0 0
  %5328 = vmatprep.subr.bf16.mxu0 0
  %5329 = vmatpush1.bf16.msra.mxu0 0
  %5330 = vmatprep.mubr.bf16.mxu0 0
  %5331 = vmatmul.mubr.bf16.gmra.mrb[0].mxu0 %v5296
  %v5332 = vpop.f32.mrb[0].mxu0
  %v5333 = vadd.f32 %v5248, %v5332
  %v5334 = vpop.f32.mrb[0].mxu0
  %v5335 = vadd.f32 %v5252, %v5334
  %v5336 = vpop.f32.mrb[0].mxu0
  %v5337 = vpop.f32.mrb[0].mxu0
  %5338 = vdwg.mxu0
  %v5339 = vpack.c.bf16 %v4707, %v4707
  %v5340 = vld [vmem:[%s53] sm:$0xff]
  %v5341 = vld [vmem:[%s53 + $0x8] sm:$0xff]
  %v5342 = vld [vmem:[%s53 + $0x10] sm:$0xff]
  %v5343 = vld [vmem:[%s53 + $0x18] sm:$0xff]
  %v5344 = vld [vmem:[%s53 + $0x20] sm:$0xff]
  %v5345 = vld [vmem:[%s53 + $0x28] sm:$0xff]
  %v5346 = vld [vmem:[%s53 + $0x30] sm:$0xff]
  %v5347 = vld [vmem:[%s53 + $0x38] sm:$0xff]
  %v5348 = vld [vmem:[%s55] sm:$0x3]
  %v5350 = vlaneseq
  %v5351 = vshrl.u32 %v5350, 7
  %v5352 = vsub.s32 0, %v5351
  %v5353 = vrot.slane %v5348, %v5352
  %v5354 = vlaneseq
  %v5355 = vshrl.u32 %v5354, 7
  %v5356 = vsub.s32 1, %v5355
  %v5357 = vrot.slane %v5348, %v5356
  %5361 = vrot.lane.b32.xlu0 %v5339, 64
  %v5362 = vpop.permute.xlu0 %5361
  %v5371 = vunpack.c.l.b16 %v5340
  %v5372 = vunpack.c.h.b16 %v5340
  %v5373 = vunpack.c.l.b16 %v5341
  %v5374 = vunpack.c.h.b16 %v5341
  %v5375 = vunpack.c.l.b16 %v5342
  %v5376 = vunpack.c.h.b16 %v5342
  %v5377 = vunpack.c.l.b16 %v5343
  %v5378 = vunpack.c.h.b16 %v5343
  %v5379 = vunpack.c.l.b16 %v5344
  %v5380 = vunpack.c.h.b16 %v5344
  %v5381 = vunpack.c.l.b16 %v5345
  %v5382 = vunpack.c.h.b16 %v5345
  %v5383 = vunpack.c.l.b16 %v5346
  %v5384 = vunpack.c.h.b16 %v5346
  %v5385 = vunpack.c.l.b16 %v5347
  %v5386 = vunpack.c.h.b16 %v5347
  %v5387 = vpack.c.b16 %v5373, %v5371
  %v5388 = vpack.c.b16 %v5374, %v5372
  %v5389 = vpack.c.b16 %v5377, %v5375
  %v5390 = vpack.c.b16 %v5378, %v5376
  %v5391 = vpack.c.b16 %v5381, %v5379
  %v5392 = vpack.c.b16 %v5382, %v5380
  %v5393 = vpack.c.b16 %v5385, %v5383
  %v5394 = vpack.c.b16 %v5386, %v5384
  %v5404 = vsel %vm1515, %v5362, 0
  %5406 = vmatprep.subr.bf16.mxu0 %v5388
  %5407 = vmatpush1.bf16.msra.mxu0 %v5387
  %5408 = vmatprep.subr.bf16.mxu0 %v5390
  %5409 = vmatpush1.bf16.msra.mxu0 %v5389
  %5410 = vmatprep.subr.bf16.mxu0 %v5392
  %5411 = vmatpush1.bf16.msra.mxu0 %v5391
  %5412 = vmatprep.subr.bf16.mxu0 %v5394
  %5413 = vmatpush1.bf16.msra.mxu0 %v5393
  %5414 = vmatprep.subr.bf16.mxu0 0
  %5415 = vmatpush1.bf16.msra.mxu0 0
  %5416 = vmatprep.subr.bf16.mxu0 0
  %5417 = vmatpush1.bf16.msra.mxu0 0
  %5418 = vmatprep.subr.bf16.mxu0 0
  %5419 = vmatpush1.bf16.msra.mxu0 0
  %5420 = vmatprep.subr.bf16.mxu0 0
  %5421 = vmatpush1.bf16.msra.mxu0 0
  %5422 = vmatprep.subr.bf16.mxu0 0
  %5423 = vmatpush1.bf16.msra.mxu0 0
  %5424 = vmatprep.subr.bf16.mxu0 0
  %5425 = vmatpush1.bf16.msra.mxu0 0
  %5426 = vmatprep.subr.bf16.mxu0 0
  %5427 = vmatpush1.bf16.msra.mxu0 0
  %5428 = vmatprep.subr.bf16.mxu0 0
  %5429 = vmatpush1.bf16.msra.mxu0 0
  %5430 = vmatprep.subr.bf16.mxu0 0
  %5431 = vmatpush1.bf16.msra.mxu0 0
  %5432 = vmatprep.subr.bf16.mxu0 0
  %5433 = vmatpush1.bf16.msra.mxu0 0
  %5434 = vmatprep.subr.bf16.mxu0 0
  %5435 = vmatpush1.bf16.msra.mxu0 0
  %5436 = vmatprep.subr.bf16.mxu0 0
  %5437 = vmatpush1.bf16.msra.mxu0 0
  %5438 = vmatprep.mubr.bf16.mxu0 0
  %5439 = vmatmul.mubr.bf16.gmra.mrb[0].mxu0 %v5404
  %v5440 = vpop.f32.mrb[0].mxu0
  %v5441 = vadd.f32 %v5353, %v5440
  %v5442 = vpop.f32.mrb[0].mxu0
  %v5443 = vadd.f32 %v5357, %v5442
  %v5444 = vpop.f32.mrb[0].mxu0
  %v5445 = vpop.f32.mrb[0].mxu0
  %5446 = vdwg.mxu0
  %v5447 = vadd.f32 %v5333, %v5441
  %v5448 = vxor.u32 %v5447, 2147483648
  %v5449 = vmul.f32 %v5448, 1.442695
  %v5450 = vpow.pop %v5449
  %v5451 = vadd.f32 %v5450, 1.0
  %v5452 = vrcp.pop %v5451
  %v5453 = vmul.f32 1.0, %v5452
  %v5454 = vmul.f32 %v5453, %v5443
  %v5455 = vadd.f32 %v5335, %v5454
  %v5456 = vtanh.pop %v5455
  %v5457 = vsub.f32 1.0, %v5453
  %5459 = vrot.lane.b32.xlu0 %v5456, 64
  %v5460 = vpop.permute.xlu0 %5459
  %v5462 = vmul.f32 %v5457, %v5460
  %v5463 = vmul.f32 %v5453, %v4707
  %v5464 = vadd.f32 %v5462, %v5463
  %5466 = vrot.lane.b32.xlu0 %v5464, 64
  %v5467 = vpop.permute.xlu0 %5466
  %s5469 = scalar_lea.vmem [#allocation2], 40
  %5470 = vst.msk [vmem:[%s5469] sm:$0xff] %vm1515, %v5467
  %v5471 = vld [vmem:[%s21] sm:$0xf]
  %v5472 = vld [vmem:[%s21 + $0x4] sm:$0xf]
  %v5473 = vld [vmem:[%s21 + $0x8] sm:$0xf]
  %v5474 = vld [vmem:[%s21 + $0xc] sm:$0xf]
  %v5475 = vld [vmem:[%s21 + $0x10] sm:$0xf]
  %v5476 = vld [vmem:[%s21 + $0x14] sm:$0xf]
  %v5477 = vld [vmem:[%s21 + $0x18] sm:$0xf]
  %v5478 = vld [vmem:[%s21 + $0x1c] sm:$0xf]
  %v5487 = vunpack.c.l.b16 %v5471
  %v5488 = vunpack.c.l.b16 %v5472
  %v5489 = vunpack.c.l.b16 %v5473
  %v5490 = vunpack.c.l.b16 %v5474
  %v5491 = vunpack.c.l.b16 %v5475
  %v5492 = vunpack.c.l.b16 %v5476
  %v5493 = vunpack.c.l.b16 %v5477
  %v5494 = vunpack.c.l.b16 %v5478
  %v5495 = vpack.c.b16 %v5488, %v5487
  %v5496 = vpack.c.b16 %v5490, %v5489
  %v5497 = vpack.c.b16 %v5492, %v5491
  %v5498 = vpack.c.b16 %v5494, %v5493
  %5503 = vmatprep.subr.bf16.mxu0 0
  %5504 = vmatpush1.bf16.msra.mxu0 %v5495
  %5505 = vmatprep.subr.bf16.mxu0 0
  %5506 = vmatpush1.bf16.msra.mxu0 %v5496
  %5507 = vmatprep.subr.bf16.mxu0 0
  %5508 = vmatpush1.bf16.msra.mxu0 %v5497
  %5509 = vmatprep.subr.bf16.mxu0 0
  %5510 = vmatpush1.bf16.msra.mxu0 %v5498
  %5511 = vmatprep.subr.bf16.mxu0 0
  %5512 = vmatpush1.bf16.msra.mxu0 0
  %5513 = vmatprep.subr.bf16.mxu0 0
  %5514 = vmatpush1.bf16.msra.mxu0 0
  %5515 = vmatprep.subr.bf16.mxu0 0
  %5516 = vmatpush1.bf16.msra.mxu0 0
  %5517 = vmatprep.subr.bf16.mxu0 0
  %5518 = vmatpush1.bf16.msra.mxu0 0
  %5519 = vmatprep.subr.bf16.mxu0 0
  %5520 = vmatpush1.bf16.msra.mxu0 0
  %5521 = vmatprep.subr.bf16.mxu0 0
  %5522 = vmatpush1.bf16.msra.mxu0 0
  %5523 = vmatprep.subr.bf16.mxu0 0
  %5524 = vmatpush1.bf16.msra.mxu0 0
  %5525 = vmatprep.subr.bf16.mxu0 0
  %5526 = vmatpush1.bf16.msra.mxu0 0
  %5527 = vmatprep.subr.bf16.mxu0 0
  %5528 = vmatpush1.bf16.msra.mxu0 0
  %5529 = vmatprep.subr.bf16.mxu0 0
  %5530 = vmatpush1.bf16.msra.mxu0 0
  %5531 = vmatprep.subr.bf16.mxu0 0
  %5532 = vmatpush1.bf16.msra.mxu0 0
  %5533 = vmatprep.subr.bf16.mxu0 0
  %5534 = vmatpush1.bf16.msra.mxu0 0
  %5535 = vmatprep.mubr.bf16.mxu0 0
  %5536 = vmatmul.mubr.bf16.gmra.mrb[0].mxu0 %v5296
  %v5537 = vpop.f32.mrb[0].mxu0
  %v5538 = vadd.f32 %v1449, %v5537
  %v5539 = vpop.f32.mrb[0].mxu0
  %v5540 = vpop.f32.mrb[0].mxu0
  %v5541 = vpop.f32.mrb[0].mxu0
  %5542 = vdwg.mxu0
  %v5543 = vmax.f32 %v5538, 0.0
  %v5544 = vpack.c.bf16 %v5543, %v5543
  %v5545 = vld [vmem:[%s27] sm:$0xf]
  %v5546 = vld [vmem:[%s27 + $0x4] sm:$0xf]
  %v5547 = vld [vmem:[%s27 + $0x8] sm:$0xf]
  %v5548 = vld [vmem:[%s27 + $0xc] sm:$0xf]
  %v5549 = vld [vmem:[%s29] sm:$0x1]
  %v5551 = vlaneseq
  %v5552 = vshrl.u32 %v5551, 7
  %v5553 = vsub.s32 0, %v5552
  %v5554 = vrot.slane %v5549, %v5553
  %v5560 = vunpack.c.l.b16 %v5545
  %v5561 = vunpack.c.l.b16 %v5546
  %v5562 = vunpack.c.l.b16 %v5547
  %v5563 = vunpack.c.l.b16 %v5548
  %v5564 = vpack.c.b16 %v5561, %v5560
  %v5565 = vpack.c.b16 %v5563, %v5562
  %v5569 = vsel %vm151, %v5544, 0
  %5571 = vmatprep.subr.bf16.mxu0 0
  %5572 = vmatpush1.bf16.msra.mxu0 %v5564
  %5573 = vmatprep.subr.bf16.mxu0 0
  %5574 = vmatpush1.bf16.msra.mxu0 %v5565
  %5575 = vmatprep.subr.bf16.mxu0 0
  %5576 = vmatpush1.bf16.msra.mxu0 0
  %5577 = vmatprep.subr.bf16.mxu0 0
  %5578 = vmatpush1.bf16.msra.mxu0 0
  %5579 = vmatprep.subr.bf16.mxu0 0
  %5580 = vmatpush1.bf16.msra.mxu0 0
  %5581 = vmatprep.subr.bf16.mxu0 0
  %5582 = vmatpush1.bf16.msra.mxu0 0
  %5583 = vmatprep.subr.bf16.mxu0 0
  %5584 = vmatpush1.bf16.msra.mxu0 0
  %5585 = vmatprep.subr.bf16.mxu0 0
  %5586 = vmatpush1.bf16.msra.mxu0 0
  %5587 = vmatprep.subr.bf16.mxu0 0
  %5588 = vmatpush1.bf16.msra.mxu0 0
  %5589 = vmatprep.subr.bf16.mxu0 0
  %5590 = vmatpush1.bf16.msra.mxu0 0
  %5591 = vmatprep.subr.bf16.mxu0 0
  %5592 = vmatpush1.bf16.msra.mxu0 0
  %5593 = vmatprep.subr.bf16.mxu0 0
  %5594 = vmatpush1.bf16.msra.mxu0 0
  %5595 = vmatprep.subr.bf16.mxu0 0
  %5596 = vmatpush1.bf16.msra.mxu0 0
  %5597 = vmatprep.subr.bf16.mxu0 0
  %5598 = vmatpush1.bf16.msra.mxu0 0
  %5599 = vmatprep.subr.bf16.mxu0 0
  %5600 = vmatpush1.bf16.msra.mxu0 0
  %5601 = vmatprep.subr.bf16.mxu0 0
  %5602 = vmatpush1.bf16.msra.mxu0 0
  %5603 = vmatprep.mubr.bf16.mxu0 0
  %5604 = vmatmul.mubr.bf16.gmra.mrb[0].mxu0 %v5569
  %v5605 = vpop.f32.mrb[0].mxu0
  %v5606 = vadd.f32 %v5554, %v5605
  %v5607 = vpop.f32.mrb[0].mxu0
  %v5608 = vpop.f32.mrb[0].mxu0
  %v5609 = vpop.f32.mrb[0].mxu0
  %5610 = vdwg.mxu0
  %v5611 = vmax.f32 %v5606, 0.0
  %v5612 = vpack.c.bf16 %v5611, %v5611
  %v5613 = vld [vmem:[%s31] sm:$0xf]
  %v5614 = vld [vmem:[%s31 + $0x4] sm:$0xf]
  %v5615 = vld [vmem:[%s31 + $0x8] sm:$0xf]
  %v5616 = vld [vmem:[%s31 + $0xc] sm:$0xf]
  %v5617 = vld [vmem:[%s33] sm:$0x1]
  %v5619 = vlaneseq
  %v5620 = vshrl.u32 %v5619, 7
  %v5621 = vsub.s32 0, %v5620
  %v5622 = vrot.slane %v5617, %v5621
  %v5628 = vunpack.c.l.b16 %v5613
  %v5629 = vunpack.c.l.b16 %v5614
  %v5630 = vunpack.c.l.b16 %v5615
  %v5631 = vunpack.c.l.b16 %v5616
  %v5632 = vpack.c.b16 %v5629, %v5628
  %v5633 = vpack.c.b16 %v5631, %v5630
  %v5637 = vsel %vm151, %v5612, 0
  %5639 = vmatprep.subr.bf16.mxu0 0
  %5640 = vmatpush1.bf16.msra.mxu0 %v5632
  %5641 = vmatprep.subr.bf16.mxu0 0
  %5642 = vmatpush1.bf16.msra.mxu0 %v5633
  %5643 = vmatprep.subr.bf16.mxu0 0
  %5644 = vmatpush1.bf16.msra.mxu0 0
  %5645 = vmatprep.subr.bf16.mxu0 0
  %5646 = vmatpush1.bf16.msra.mxu0 0
  %5647 = vmatprep.subr.bf16.mxu0 0
  %5648 = vmatpush1.bf16.msra.mxu0 0
  %5649 = vmatprep.subr.bf16.mxu0 0
  %5650 = vmatpush1.bf16.msra.mxu0 0
  %5651 = vmatprep.subr.bf16.mxu0 0
  %5652 = vmatpush1.bf16.msra.mxu0 0
  %5653 = vmatprep.subr.bf16.mxu0 0
  %5654 = vmatpush1.bf16.msra.mxu0 0
  %5655 = vmatprep.subr.bf16.mxu0 0
  %5656 = vmatpush1.bf16.msra.mxu0 0
  %5657 = vmatprep.subr.bf16.mxu0 0
  %5658 = vmatpush1.bf16.msra.mxu0 0
  %5659 = vmatprep.subr.bf16.mxu0 0
  %5660 = vmatpush1.bf16.msra.mxu0 0
  %5661 = vmatprep.subr.bf16.mxu0 0
  %5662 = vmatpush1.bf16.msra.mxu0 0
  %5663 = vmatprep.subr.bf16.mxu0 0
  %5664 = vmatpush1.bf16.msra.mxu0 0
  %5665 = vmatprep.subr.bf16.mxu0 0
  %5666 = vmatpush1.bf16.msra.mxu0 0
  %5667 = vmatprep.subr.bf16.mxu0 0
  %5668 = vmatpush1.bf16.msra.mxu0 0
  %5669 = vmatprep.subr.bf16.mxu0 0
  %5670 = vmatpush1.bf16.msra.mxu0 0
  %5671 = vmatprep.mubr.bf16.mxu0 0
  %5672 = vmatmul.mubr.bf16.gmra.mrb[0].mxu0 %v5637
  %v5673 = vpop.f32.mrb[0].mxu0
  %v5674 = vadd.f32 %v5622, %v5673
  %v5675 = vpop.f32.mrb[0].mxu0
  %v5676 = vpop.f32.mrb[0].mxu0
  %v5677 = vpop.f32.mrb[0].mxu0
  %5678 = vdwg.mxu0
  %v5679 = vld [vmem:[%s35] sm:$0xf]
  %v5680 = vld [vmem:[%s35 + $0x4] sm:$0xf]
  %v5681 = vld [vmem:[%s35 + $0x8] sm:$0xf]
  %v5682 = vld [vmem:[%s35 + $0xc] sm:$0xf]
  %v5683 = vld [vmem:[%s37] sm:$0x1]
  %v5685 = vlaneseq
  %v5686 = vshrl.u32 %v5685, 7
  %v5687 = vsub.s32 0, %v5686
  %v5688 = vrot.slane %v5683, %v5687
  %v5694 = vunpack.c.l.b16 %v5679
  %v5695 = vunpack.c.l.b16 %v5680
  %v5696 = vunpack.c.l.b16 %v5681
  %v5697 = vunpack.c.l.b16 %v5682
  %v5698 = vpack.c.b16 %v5695, %v5694
  %v5699 = vpack.c.b16 %v5697, %v5696
  %5702 = vmatprep.subr.bf16.mxu0 0
  %5703 = vmatpush1.bf16.msra.mxu0 %v5698
  %5704 = vmatprep.subr.bf16.mxu0 0
  %5705 = vmatpush1.bf16.msra.mxu0 %v5699
  %5706 = vmatprep.subr.bf16.mxu0 0
  %5707 = vmatpush1.bf16.msra.mxu0 0
  %5708 = vmatprep.subr.bf16.mxu0 0
  %5709 = vmatpush1.bf16.msra.mxu0 0
  %5710 = vmatprep.subr.bf16.mxu0 0
  %5711 = vmatpush1.bf16.msra.mxu0 0
  %5712 = vmatprep.subr.bf16.mxu0 0
  %5713 = vmatpush1.bf16.msra.mxu0 0
  %5714 = vmatprep.subr.bf16.mxu0 0
  %5715 = vmatpush1.bf16.msra.mxu0 0
  %5716 = vmatprep.subr.bf16.mxu0 0
  %5717 = vmatpush1.bf16.msra.mxu0 0
  %5718 = vmatprep.subr.bf16.mxu0 0
  %5719 = vmatpush1.bf16.msra.mxu0 0
  %5720 = vmatprep.subr.bf16.mxu0 0
  %5721 = vmatpush1.bf16.msra.mxu0 0
  %5722 = vmatprep.subr.bf16.mxu0 0
  %5723 = vmatpush1.bf16.msra.mxu0 0
  %5724 = vmatprep.subr.bf16.mxu0 0
  %5725 = vmatpush1.bf16.msra.mxu0 0
  %5726 = vmatprep.subr.bf16.mxu0 0
  %5727 = vmatpush1.bf16.msra.mxu0 0
  %5728 = vmatprep.subr.bf16.mxu0 0
  %5729 = vmatpush1.bf16.msra.mxu0 0
  %5730 = vmatprep.subr.bf16.mxu0 0
  %5731 = vmatpush1.bf16.msra.mxu0 0
  %5732 = vmatprep.subr.bf16.mxu0 0
  %5733 = vmatpush1.bf16.msra.mxu0 0
  %5734 = vmatprep.mubr.bf16.mxu0 0
  %5735 = vmatmul.mubr.bf16.gmra.mrb[0].mxu0 %v5039
  %v5736 = vpop.f32.mrb[0].mxu0
  %v5737 = vadd.f32 %v5688, %v5736
  %v5738 = vpop.f32.mrb[0].mxu0
  %v5739 = vpop.f32.mrb[0].mxu0
  %v5740 = vpop.f32.mrb[0].mxu0
  %5741 = vdwg.mxu0
  %v5742 = vadd.f32 %v5674, %v5737
  %v5743 = vxor.u32 %v5742, 2147483648
  %v5744 = vmul.f32 %v5743, 1.442695
  %v5745 = vpow.pop %v5744
  %v5746 = vadd.f32 %v5745, 1.0
  %v5747 = vrcp.pop %v5746
  %v5748 = vmul.f32 1.0, %v5747
  %5750 = vrot.lane.b32.xlu0 %v5737, 64
  %v5751 = vpop.permute.xlu0 %5750
  %v5753 = vmul.f32 %v5748, %v5751
  %5755 = vrot.lane.b32.xlu0 %v5753, 64
  %v5756 = vpop.permute.xlu0 %5755
  %v5758 = vadd.f32 %v5674, %v5756
  %v5759 = vtanh.pop %v5758
  %v5760 = vsub.f32 1.0, %v5748
  %5762 = vrot.lane.b32.xlu0 %v5759, 96
  %v5763 = vpop.permute.xlu0 %5762
  %v5765 = vmul.f32 %v5760, %v5763
  %v5766 = vmul.f32 %v5748, %v5010
  %v5767 = vadd.f32 %v5765, %v5766
  %v5768 = vpack.c.bf16 %v5767, %v5767
  %v5769 = vld [vmem:[%s39] sm:$0xf]
  %v5770 = vld [vmem:[%s39 + $0x4] sm:$0xf]
  %v5771 = vld [vmem:[%s39 + $0x8] sm:$0xf]
  %v5772 = vld [vmem:[%s39 + $0xc] sm:$0xf]
  %v5773 = vld [vmem:[%s41] sm:$0x1]
  %v5775 = vlaneseq
  %v5776 = vshrl.u32 %v5775, 7
  %v5777 = vsub.s32 0, %v5776
  %v5778 = vrot.slane %v5773, %v5777
  %5781 = vrot.lane.b32.xlu0 %v5768, 96
  %v5782 = vpop.permute.xlu0 %5781
  %v5787 = vunpack.c.l.b16 %v5769
  %v5788 = vunpack.c.l.b16 %v5770
  %v5789 = vunpack.c.l.b16 %v5771
  %v5790 = vunpack.c.l.b16 %v5772
  %v5791 = vpack.c.b16 %v5788, %v5787
  %v5792 = vpack.c.b16 %v5790, %v5789
  %v5796 = vsel %vm151, %v5782, 0
  %5798 = vmatprep.subr.bf16.mxu0 0
  %5799 = vmatpush1.bf16.msra.mxu0 %v5791
  %5800 = vmatprep.subr.bf16.mxu0 0
  %5801 = vmatpush1.bf16.msra.mxu0 %v5792
  %5802 = vmatprep.subr.bf16.mxu0 0
  %5803 = vmatpush1.bf16.msra.mxu0 0
  %5804 = vmatprep.subr.bf16.mxu0 0
  %5805 = vmatpush1.bf16.msra.mxu0 0
  %5806 = vmatprep.subr.bf16.mxu0 0
  %5807 = vmatpush1.bf16.msra.mxu0 0
  %5808 = vmatprep.subr.bf16.mxu0 0
  %5809 = vmatpush1.bf16.msra.mxu0 0
  %5810 = vmatprep.subr.bf16.mxu0 0
  %5811 = vmatpush1.bf16.msra.mxu0 0
  %5812 = vmatprep.subr.bf16.mxu0 0
  %5813 = vmatpush1.bf16.msra.mxu0 0
  %5814 = vmatprep.subr.bf16.mxu0 0
  %5815 = vmatpush1.bf16.msra.mxu0 0
  %5816 = vmatprep.subr.bf16.mxu0 0
  %5817 = vmatpush1.bf16.msra.mxu0 0
  %5818 = vmatprep.subr.bf16.mxu0 0
  %5819 = vmatpush1.bf16.msra.mxu0 0
  %5820 = vmatprep.subr.bf16.mxu0 0
  %5821 = vmatpush1.bf16.msra.mxu0 0
  %5822 = vmatprep.subr.bf16.mxu0 0
  %5823 = vmatpush1.bf16.msra.mxu0 0
  %5824 = vmatprep.subr.bf16.mxu0 0
  %5825 = vmatpush1.bf16.msra.mxu0 0
  %5826 = vmatprep.subr.bf16.mxu0 0
  %5827 = vmatpush1.bf16.msra.mxu0 0
  %5828 = vmatprep.subr.bf16.mxu0 0
  %5829 = vmatpush1.bf16.msra.mxu0 0
  %5830 = vmatprep.mubr.bf16.mxu0 0
  %5831 = vmatmul.mubr.bf16.gmra.mrb[0].mxu0 %v5796
  %v5832 = vpop.f32.mrb[0].mxu0
  %v5833 = vadd.f32 %v5778, %v5832
  %v5834 = vpop.f32.mrb[0].mxu0
  %v5835 = vpop.f32.mrb[0].mxu0
  %v5836 = vpop.f32.mrb[0].mxu0
  %5837 = vdwg.mxu0
  %v5838 = vld [vmem:[%s43] sm:$0xf]
  %v5839 = vld [vmem:[%s43 + $0x4] sm:$0xf]
  %v5840 = vld [vmem:[%s43 + $0x8] sm:$0xf]
  %v5841 = vld [vmem:[%s43 + $0xc] sm:$0xf]
  %v5842 = vld [vmem:[%s45] sm:$0x1]
  %v5844 = vlaneseq
  %v5845 = vshrl.u32 %v5844, 7
  %v5846 = vsub.s32 0, %v5845
  %v5847 = vrot.slane %v5842, %v5846
  %v5853 = vunpack.c.l.b16 %v5838
  %v5854 = vunpack.c.l.b16 %v5839
  %v5855 = vunpack.c.l.b16 %v5840
  %v5856 = vunpack.c.l.b16 %v5841
  %v5857 = vpack.c.b16 %v5854, %v5853
  %v5858 = vpack.c.b16 %v5856, %v5855
  %5861 = vmatprep.subr.bf16.mxu0 0
  %5862 = vmatpush1.bf16.msra.mxu0 %v5857
  %5863 = vmatprep.subr.bf16.mxu0 0
  %5864 = vmatpush1.bf16.msra.mxu0 %v5858
  %5865 = vmatprep.subr.bf16.mxu0 0
  %5866 = vmatpush1.bf16.msra.mxu0 0
  %5867 = vmatprep.subr.bf16.mxu0 0
  %5868 = vmatpush1.bf16.msra.mxu0 0
  %5869 = vmatprep.subr.bf16.mxu0 0
  %5870 = vmatpush1.bf16.msra.mxu0 0
  %5871 = vmatprep.subr.bf16.mxu0 0
  %5872 = vmatpush1.bf16.msra.mxu0 0
  %5873 = vmatprep.subr.bf16.mxu0 0
  %5874 = vmatpush1.bf16.msra.mxu0 0
  %5875 = vmatprep.subr.bf16.mxu0 0
  %5876 = vmatpush1.bf16.msra.mxu0 0
  %5877 = vmatprep.subr.bf16.mxu0 0
  %5878 = vmatpush1.bf16.msra.mxu0 0
  %5879 = vmatprep.subr.bf16.mxu0 0
  %5880 = vmatpush1.bf16.msra.mxu0 0
  %5881 = vmatprep.subr.bf16.mxu0 0
  %5882 = vmatpush1.bf16.msra.mxu0 0
  %5883 = vmatprep.subr.bf16.mxu0 0
  %5884 = vmatpush1.bf16.msra.mxu0 0
  %5885 = vmatprep.subr.bf16.mxu0 0
  %5886 = vmatpush1.bf16.msra.mxu0 0
  %5887 = vmatprep.subr.bf16.mxu0 0
  %5888 = vmatpush1.bf16.msra.mxu0 0
  %5889 = vmatprep.subr.bf16.mxu0 0
  %5890 = vmatpush1.bf16.msra.mxu0 0
  %5891 = vmatprep.subr.bf16.mxu0 0
  %5892 = vmatpush1.bf16.msra.mxu0 0
  %5893 = vmatprep.mubr.bf16.mxu0 0
  %5894 = vmatmul.mubr.bf16.gmra.mrb[0].mxu0 %v5191
  %v5895 = vpop.f32.mrb[0].mxu0
  %v5896 = vadd.f32 %v5847, %v5895
  %v5897 = vpop.f32.mrb[0].mxu0
  %v5898 = vpop.f32.mrb[0].mxu0
  %v5899 = vpop.f32.mrb[0].mxu0
  %5900 = vdwg.mxu0
  %v5901 = vadd.f32 %v5833, %v5896
  %v5902 = vxor.u32 %v5901, 2147483648
  %v5903 = vmul.f32 %v5902, 1.442695
  %v5904 = vpow.pop %v5903
  %v5905 = vadd.f32 %v5904, 1.0
  %v5906 = vrcp.pop %v5905
  %v5907 = vmul.f32 1.0, %v5906
  %5909 = vrot.lane.b32.xlu0 %v5896, 64
  %v5910 = vpop.permute.xlu0 %5909
  %v5912 = vmul.f32 %v5907, %v5910
  %5914 = vrot.lane.b32.xlu0 %v5912, 64
  %v5915 = vpop.permute.xlu0 %5914
  %v5917 = vadd.f32 %v5833, %v5915
  %v5918 = vtanh.pop %v5917
  %v5919 = vsub.f32 1.0, %v5907
  %5921 = vrot.lane.b32.xlu0 %v5918, 96
  %v5922 = vpop.permute.xlu0 %5921
  %v5924 = vmul.f32 %v5919, %v5922
  %v5925 = vmul.f32 %v5907, %v5169
  %v5926 = vadd.f32 %v5924, %v5925
  %v5927 = vpack.c.bf16 %v5926, %v5926
  %v5928 = vld [vmem:[%s47] sm:$0xf]
  %v5929 = vld [vmem:[%s47 + $0x4] sm:$0xf]
  %v5930 = vld [vmem:[%s47 + $0x8] sm:$0xf]
  %v5931 = vld [vmem:[%s47 + $0xc] sm:$0xf]
  %5933 = vrot.lane.b32.xlu0 %v5927, 96
  %v5934 = vpop.permute.xlu0 %5933
  %v5939 = vunpack.c.l.b16 %v5928
  %v5940 = vunpack.c.l.b16 %v5929
  %v5941 = vunpack.c.l.b16 %v5930
  %v5942 = vunpack.c.l.b16 %v5931
  %v5943 = vpack.c.b16 %v5940, %v5939
  %v5944 = vpack.c.b16 %v5942, %v5941
  %v5948 = vsel %vm151, %v5934, 0
  %5950 = vmatprep.subr.bf16.mxu0 0
  %5951 = vmatpush1.bf16.msra.mxu0 %v5943
  %5952 = vmatprep.subr.bf16.mxu0 0
  %5953 = vmatpush1.bf16.msra.mxu0 %v5944
  %5954 = vmatprep.subr.bf16.mxu0 0
  %5955 = vmatpush1.bf16.msra.mxu0 0
  %5956 = vmatprep.subr.bf16.mxu0 0
  %5957 = vmatpush1.bf16.msra.mxu0 0
  %5958 = vmatprep.subr.bf16.mxu0 0
  %5959 = vmatpush1.bf16.msra.mxu0 0
  %5960 = vmatprep.subr.bf16.mxu0 0
  %5961 = vmatpush1.bf16.msra.mxu0 0
  %5962 = vmatprep.subr.bf16.mxu0 0
  %5963 = vmatpush1.bf16.msra.mxu0 0
  %5964 = vmatprep.subr.bf16.mxu0 0
  %5965 = vmatpush1.bf16.msra.mxu0 0
  %5966 = vmatprep.subr.bf16.mxu0 0
  %5967 = vmatpush1.bf16.msra.mxu0 0
  %5968 = vmatprep.subr.bf16.mxu0 0
  %5969 = vmatpush1.bf16.msra.mxu0 0
  %5970 = vmatprep.subr.bf16.mxu0 0
  %5971 = vmatpush1.bf16.msra.mxu0 0
  %5972 = vmatprep.subr.bf16.mxu0 0
  %5973 = vmatpush1.bf16.msra.mxu0 0
  %5974 = vmatprep.subr.bf16.mxu0 0
  %5975 = vmatpush1.bf16.msra.mxu0 0
  %5976 = vmatprep.subr.bf16.mxu0 0
  %5977 = vmatpush1.bf16.msra.mxu0 0
  %5978 = vmatprep.subr.bf16.mxu0 0
  %5979 = vmatpush1.bf16.msra.mxu0 0
  %5980 = vmatprep.subr.bf16.mxu0 0
  %5981 = vmatpush1.bf16.msra.mxu0 0
  %5982 = vmatprep.mubr.bf16.mxu0 0
  %5983 = vmatmul.mubr.bf16.gmra.mrb[0].mxu0 %v5948
  %v5984 = vpop.f32.mrb[0].mxu0
  %v5985 = vadd.f32 0.0, %v5984
  %v5986 = vpop.f32.mrb[0].mxu0
  %v5987 = vpop.f32.mrb[0].mxu0
  %v5988 = vpop.f32.mrb[0].mxu0
  %5989 = vdwg.mxu0
  %v5990 = vadd.f32 %v5233, %v5985
  %v5991 = vpack.c.bf16 %v5990, %v5990
  %v5992 = vld [vmem:[%s49] sm:$0xff]
  %v5993 = vld [vmem:[%s49 + $0x8] sm:$0xff]
  %v5994 = vld [vmem:[%s49 + $0x10] sm:$0xff]
  %v5995 = vld [vmem:[%s49 + $0x18] sm:$0xff]
  %v5996 = vld [vmem:[%s49 + $0x20] sm:$0xff]
  %v5997 = vld [vmem:[%s49 + $0x28] sm:$0xff]
  %v5998 = vld [vmem:[%s49 + $0x30] sm:$0xff]
  %v5999 = vld [vmem:[%s49 + $0x38] sm:$0xff]
  %v6000 = vld [vmem:[%s51] sm:$0x3]
  %v6002 = vlaneseq
  %v6003 = vshrl.u32 %v6002, 7
  %v6004 = vsub.s32 0, %v6003
  %v6005 = vrot.slane %v6000, %v6004
  %v6006 = vlaneseq
  %v6007 = vshrl.u32 %v6006, 7
  %v6008 = vsub.s32 1, %v6007
  %v6009 = vrot.slane %v6000, %v6008
  %v6020 = vunpack.c.l.b16 %v5992
  %v6021 = vunpack.c.h.b16 %v5992
  %v6022 = vunpack.c.l.b16 %v5993
  %v6023 = vunpack.c.h.b16 %v5993
  %v6024 = vunpack.c.l.b16 %v5994
  %v6025 = vunpack.c.h.b16 %v5994
  %v6026 = vunpack.c.l.b16 %v5995
  %v6027 = vunpack.c.h.b16 %v5995
  %v6028 = vunpack.c.l.b16 %v5996
  %v6029 = vunpack.c.h.b16 %v5996
  %v6030 = vunpack.c.l.b16 %v5997
  %v6031 = vunpack.c.h.b16 %v5997
  %v6032 = vunpack.c.l.b16 %v5998
  %v6033 = vunpack.c.h.b16 %v5998
  %v6034 = vunpack.c.l.b16 %v5999
  %v6035 = vunpack.c.h.b16 %v5999
  %v6036 = vpack.c.b16 %v6022, %v6020
  %v6037 = vpack.c.b16 %v6023, %v6021
  %v6038 = vpack.c.b16 %v6026, %v6024
  %v6039 = vpack.c.b16 %v6027, %v6025
  %v6040 = vpack.c.b16 %v6030, %v6028
  %v6041 = vpack.c.b16 %v6031, %v6029
  %v6042 = vpack.c.b16 %v6034, %v6032
  %v6043 = vpack.c.b16 %v6035, %v6033
  %v6053 = vsel %vm1515, %v5991, 0
  %6055 = vmatprep.subr.bf16.mxu0 %v6037
  %6056 = vmatpush1.bf16.msra.mxu0 %v6036
  %6057 = vmatprep.subr.bf16.mxu0 %v6039
  %6058 = vmatpush1.bf16.msra.mxu0 %v6038
  %6059 = vmatprep.subr.bf16.mxu0 %v6041
  %6060 = vmatpush1.bf16.msra.mxu0 %v6040
  %6061 = vmatprep.subr.bf16.mxu0 %v6043
  %6062 = vmatpush1.bf16.msra.mxu0 %v6042
  %6063 = vmatprep.subr.bf16.mxu0 0
  %6064 = vmatpush1.bf16.msra.mxu0 0
  %6065 = vmatprep.subr.bf16.mxu0 0
  %6066 = vmatpush1.bf16.msra.mxu0 0
  %6067 = vmatprep.subr.bf16.mxu0 0
  %6068 = vmatpush1.bf16.msra.mxu0 0
  %6069 = vmatprep.subr.bf16.mxu0 0
  %6070 = vmatpush1.bf16.msra.mxu0 0
  %6071 = vmatprep.subr.bf16.mxu0 0
  %6072 = vmatpush1.bf16.msra.mxu0 0
  %6073 = vmatprep.subr.bf16.mxu0 0
  %6074 = vmatpush1.bf16.msra.mxu0 0
  %6075 = vmatprep.subr.bf16.mxu0 0
  %6076 = vmatpush1.bf16.msra.mxu0 0
  %6077 = vmatprep.subr.bf16.mxu0 0
  %6078 = vmatpush1.bf16.msra.mxu0 0
  %6079 = vmatprep.subr.bf16.mxu0 0
  %6080 = vmatpush1.bf16.msra.mxu0 0
  %6081 = vmatprep.subr.bf16.mxu0 0
  %6082 = vmatpush1.bf16.msra.mxu0 0
  %6083 = vmatprep.subr.bf16.mxu0 0
  %6084 = vmatpush1.bf16.msra.mxu0 0
  %6085 = vmatprep.subr.bf16.mxu0 0
  %6086 = vmatpush1.bf16.msra.mxu0 0
  %6087 = vmatprep.mubr.bf16.mxu0 0
  %6088 = vmatmul.mubr.bf16.gmra.mrb[0].mxu0 %v6053
  %v6089 = vpop.f32.mrb[0].mxu0
  %v6090 = vadd.f32 %v6005, %v6089
  %v6091 = vpop.f32.mrb[0].mxu0
  %v6092 = vadd.f32 %v6009, %v6091
  %v6093 = vpop.f32.mrb[0].mxu0
  %v6094 = vpop.f32.mrb[0].mxu0
  %6095 = vdwg.mxu0
  %v6096 = vpack.c.bf16 %v5464, %v5464
  %v6097 = vld [vmem:[%s53] sm:$0xff]
  %v6098 = vld [vmem:[%s53 + $0x8] sm:$0xff]
  %v6099 = vld [vmem:[%s53 + $0x10] sm:$0xff]
  %v6100 = vld [vmem:[%s53 + $0x18] sm:$0xff]
  %v6101 = vld [vmem:[%s53 + $0x20] sm:$0xff]
  %v6102 = vld [vmem:[%s53 + $0x28] sm:$0xff]
  %v6103 = vld [vmem:[%s53 + $0x30] sm:$0xff]
  %v6104 = vld [vmem:[%s53 + $0x38] sm:$0xff]
  %v6105 = vld [vmem:[%s55] sm:$0x3]
  %v6107 = vlaneseq
  %v6108 = vshrl.u32 %v6107, 7
  %v6109 = vsub.s32 0, %v6108
  %v6110 = vrot.slane %v6105, %v6109
  %v6111 = vlaneseq
  %v6112 = vshrl.u32 %v6111, 7
  %v6113 = vsub.s32 1, %v6112
  %v6114 = vrot.slane %v6105, %v6113
  %6118 = vrot.lane.b32.xlu0 %v6096, 64
  %v6119 = vpop.permute.xlu0 %6118
  %v6128 = vunpack.c.l.b16 %v6097
  %v6129 = vunpack.c.h.b16 %v6097
  %v6130 = vunpack.c.l.b16 %v6098
  %v6131 = vunpack.c.h.b16 %v6098
  %v6132 = vunpack.c.l.b16 %v6099
  %v6133 = vunpack.c.h.b16 %v6099
  %v6134 = vunpack.c.l.b16 %v6100
  %v6135 = vunpack.c.h.b16 %v6100
  %v6136 = vunpack.c.l.b16 %v6101
  %v6137 = vunpack.c.h.b16 %v6101
  %v6138 = vunpack.c.l.b16 %v6102
  %v6139 = vunpack.c.h.b16 %v6102
  %v6140 = vunpack.c.l.b16 %v6103
  %v6141 = vunpack.c.h.b16 %v6103
  %v6142 = vunpack.c.l.b16 %v6104
  %v6143 = vunpack.c.h.b16 %v6104
  %v6144 = vpack.c.b16 %v6130, %v6128
  %v6145 = vpack.c.b16 %v6131, %v6129
  %v6146 = vpack.c.b16 %v6134, %v6132
  %v6147 = vpack.c.b16 %v6135, %v6133
  %v6148 = vpack.c.b16 %v6138, %v6136
  %v6149 = vpack.c.b16 %v6139, %v6137
  %v6150 = vpack.c.b16 %v6142, %v6140
  %v6151 = vpack.c.b16 %v6143, %v6141
  %v6161 = vsel %vm1515, %v6119, 0
  %6163 = vmatprep.subr.bf16.mxu0 %v6145
  %6164 = vmatpush1.bf16.msra.mxu0 %v6144
  %6165 = vmatprep.subr.bf16.mxu0 %v6147
  %6166 = vmatpush1.bf16.msra.mxu0 %v6146
  %6167 = vmatprep.subr.bf16.mxu0 %v6149
  %6168 = vmatpush1.bf16.msra.mxu0 %v6148
  %6169 = vmatprep.subr.bf16.mxu0 %v6151
  %6170 = vmatpush1.bf16.msra.mxu0 %v6150
  %6171 = vmatprep.subr.bf16.mxu0 0
  %6172 = vmatpush1.bf16.msra.mxu0 0
  %6173 = vmatprep.subr.bf16.mxu0 0
  %6174 = vmatpush1.bf16.msra.mxu0 0
  %6175 = vmatprep.subr.bf16.mxu0 0
  %6176 = vmatpush1.bf16.msra.mxu0 0
  %6177 = vmatprep.subr.bf16.mxu0 0
  %6178 = vmatpush1.bf16.msra.mxu0 0
  %6179 = vmatprep.subr.bf16.mxu0 0
  %6180 = vmatpush1.bf16.msra.mxu0 0
  %6181 = vmatprep.subr.bf16.mxu0 0
  %6182 = vmatpush1.bf16.msra.mxu0 0
  %6183 = vmatprep.subr.bf16.mxu0 0
  %6184 = vmatpush1.bf16.msra.mxu0 0
  %6185 = vmatprep.subr.bf16.mxu0 0
  %6186 = vmatpush1.bf16.msra.mxu0 0
  %6187 = vmatprep.subr.bf16.mxu0 0
  %6188 = vmatpush1.bf16.msra.mxu0 0
  %6189 = vmatprep.subr.bf16.mxu0 0
  %6190 = vmatpush1.bf16.msra.mxu0 0
  %6191 = vmatprep.subr.bf16.mxu0 0
  %6192 = vmatpush1.bf16.msra.mxu0 0
  %6193 = vmatprep.subr.bf16.mxu0 0
  %6194 = vmatpush1.bf16.msra.mxu0 0
  %6195 = vmatprep.mubr.bf16.mxu0 0
  %6196 = vmatmul.mubr.bf16.gmra.mrb[0].mxu0 %v6161
  %v6197 = vpop.f32.mrb[0].mxu0
  %v6198 = vadd.f32 %v6110, %v6197
  %v6199 = vpop.f32.mrb[0].mxu0
  %v6200 = vadd.f32 %v6114, %v6199
  %v6201 = vpop.f32.mrb[0].mxu0
  %v6202 = vpop.f32.mrb[0].mxu0
  %6203 = vdwg.mxu0
  %v6204 = vadd.f32 %v6090, %v6198
  %v6205 = vxor.u32 %v6204, 2147483648
  %v6206 = vmul.f32 %v6205, 1.442695
  %v6207 = vpow.pop %v6206
  %v6208 = vadd.f32 %v6207, 1.0
  %v6209 = vrcp.pop %v6208
  %v6210 = vmul.f32 1.0, %v6209
  %v6211 = vmul.f32 %v6210, %v6200
  %v6212 = vadd.f32 %v6092, %v6211
  %v6213 = vtanh.pop %v6212
  %v6214 = vsub.f32 1.0, %v6210
  %6216 = vrot.lane.b32.xlu0 %v6213, 64
  %v6217 = vpop.permute.xlu0 %6216
  %v6219 = vmul.f32 %v6214, %v6217
  %v6220 = vmul.f32 %v6210, %v5464
  %v6221 = vadd.f32 %v6219, %v6220
  %6223 = vrot.lane.b32.xlu0 %v6221, 64
  %v6224 = vpop.permute.xlu0 %6223
  %s6226 = scalar_lea.vmem [#allocation2], 48
  %6227 = vst.msk [vmem:[%s6226] sm:$0xff] %vm1515, %v6224
  %v6228 = vld [vmem:[%s21] sm:$0xf]
  %v6229 = vld [vmem:[%s21 + $0x4] sm:$0xf]
  %v6230 = vld [vmem:[%s21 + $0x8] sm:$0xf]
  %v6231 = vld [vmem:[%s21 + $0xc] sm:$0xf]
  %v6232 = vld [vmem:[%s21 + $0x10] sm:$0xf]
  %v6233 = vld [vmem:[%s21 + $0x14] sm:$0xf]
  %v6234 = vld [vmem:[%s21 + $0x18] sm:$0xf]
  %v6235 = vld [vmem:[%s21 + $0x1c] sm:$0xf]
  %v6244 = vunpack.c.l.b16 %v6228
  %v6245 = vunpack.c.l.b16 %v6229
  %v6246 = vunpack.c.l.b16 %v6230
  %v6247 = vunpack.c.l.b16 %v6231
  %v6248 = vunpack.c.l.b16 %v6232
  %v6249 = vunpack.c.l.b16 %v6233
  %v6250 = vunpack.c.l.b16 %v6234
  %v6251 = vunpack.c.l.b16 %v6235
  %v6252 = vpack.c.b16 %v6245, %v6244
  %v6253 = vpack.c.b16 %v6247, %v6246
  %v6254 = vpack.c.b16 %v6249, %v6248
  %v6255 = vpack.c.b16 %v6251, %v6250
  %6260 = vmatprep.subr.bf16.mxu0 0
  %6261 = vmatpush1.bf16.msra.mxu0 %v6252
  %6262 = vmatprep.subr.bf16.mxu0 0
  %6263 = vmatpush1.bf16.msra.mxu0 %v6253
  %6264 = vmatprep.subr.bf16.mxu0 0
  %6265 = vmatpush1.bf16.msra.mxu0 %v6254
  %6266 = vmatprep.subr.bf16.mxu0 0
  %6267 = vmatpush1.bf16.msra.mxu0 %v6255
  %6268 = vmatprep.subr.bf16.mxu0 0
  %6269 = vmatpush1.bf16.msra.mxu0 0
  %6270 = vmatprep.subr.bf16.mxu0 0
  %6271 = vmatpush1.bf16.msra.mxu0 0
  %6272 = vmatprep.subr.bf16.mxu0 0
  %6273 = vmatpush1.bf16.msra.mxu0 0
  %6274 = vmatprep.subr.bf16.mxu0 0
  %6275 = vmatpush1.bf16.msra.mxu0 0
  %6276 = vmatprep.subr.bf16.mxu0 0
  %6277 = vmatpush1.bf16.msra.mxu0 0
  %6278 = vmatprep.subr.bf16.mxu0 0
  %6279 = vmatpush1.bf16.msra.mxu0 0
  %6280 = vmatprep.subr.bf16.mxu0 0
  %6281 = vmatpush1.bf16.msra.mxu0 0
  %6282 = vmatprep.subr.bf16.mxu0 0
  %6283 = vmatpush1.bf16.msra.mxu0 0
  %6284 = vmatprep.subr.bf16.mxu0 0
  %6285 = vmatpush1.bf16.msra.mxu0 0
  %6286 = vmatprep.subr.bf16.mxu0 0
  %6287 = vmatpush1.bf16.msra.mxu0 0
  %6288 = vmatprep.subr.bf16.mxu0 0
  %6289 = vmatpush1.bf16.msra.mxu0 0
  %6290 = vmatprep.subr.bf16.mxu0 0
  %6291 = vmatpush1.bf16.msra.mxu0 0
  %6292 = vmatprep.mubr.bf16.mxu0 0
  %6293 = vmatmul.mubr.bf16.gmra.mrb[0].mxu0 %v6053
  %v6294 = vpop.f32.mrb[0].mxu0
  %v6295 = vadd.f32 %v1449, %v6294
  %v6296 = vpop.f32.mrb[0].mxu0
  %v6297 = vpop.f32.mrb[0].mxu0
  %v6298 = vpop.f32.mrb[0].mxu0
  %6299 = vdwg.mxu0
  %v6300 = vmax.f32 %v6295, 0.0
  %v6301 = vpack.c.bf16 %v6300, %v6300
  %v6302 = vld [vmem:[%s27] sm:$0xf]
  %v6303 = vld [vmem:[%s27 + $0x4] sm:$0xf]
  %v6304 = vld [vmem:[%s27 + $0x8] sm:$0xf]
  %v6305 = vld [vmem:[%s27 + $0xc] sm:$0xf]
  %v6306 = vld [vmem:[%s29] sm:$0x1]
  %v6308 = vlaneseq
  %v6309 = vshrl.u32 %v6308, 7
  %v6310 = vsub.s32 0, %v6309
  %v6311 = vrot.slane %v6306, %v6310
  %v6317 = vunpack.c.l.b16 %v6302
  %v6318 = vunpack.c.l.b16 %v6303
  %v6319 = vunpack.c.l.b16 %v6304
  %v6320 = vunpack.c.l.b16 %v6305
  %v6321 = vpack.c.b16 %v6318, %v6317
  %v6322 = vpack.c.b16 %v6320, %v6319
  %v6326 = vsel %vm151, %v6301, 0
  %6328 = vmatprep.subr.bf16.mxu0 0
  %6329 = vmatpush1.bf16.msra.mxu0 %v6321
  %6330 = vmatprep.subr.bf16.mxu0 0
  %6331 = vmatpush1.bf16.msra.mxu0 %v6322
  %6332 = vmatprep.subr.bf16.mxu0 0
  %6333 = vmatpush1.bf16.msra.mxu0 0
  %6334 = vmatprep.subr.bf16.mxu0 0
  %6335 = vmatpush1.bf16.msra.mxu0 0
  %6336 = vmatprep.subr.bf16.mxu0 0
  %6337 = vmatpush1.bf16.msra.mxu0 0
  %6338 = vmatprep.subr.bf16.mxu0 0
  %6339 = vmatpush1.bf16.msra.mxu0 0
  %6340 = vmatprep.subr.bf16.mxu0 0
  %6341 = vmatpush1.bf16.msra.mxu0 0
  %6342 = vmatprep.subr.bf16.mxu0 0
  %6343 = vmatpush1.bf16.msra.mxu0 0
  %6344 = vmatprep.subr.bf16.mxu0 0
  %6345 = vmatpush1.bf16.msra.mxu0 0
  %6346 = vmatprep.subr.bf16.mxu0 0
  %6347 = vmatpush1.bf16.msra.mxu0 0
  %6348 = vmatprep.subr.bf16.mxu0 0
  %6349 = vmatpush1.bf16.msra.mxu0 0
  %6350 = vmatprep.subr.bf16.mxu0 0
  %6351 = vmatpush1.bf16.msra.mxu0 0
  %6352 = vmatprep.subr.bf16.mxu0 0
  %6353 = vmatpush1.bf16.msra.mxu0 0
  %6354 = vmatprep.subr.bf16.mxu0 0
  %6355 = vmatpush1.bf16.msra.mxu0 0
  %6356 = vmatprep.subr.bf16.mxu0 0
  %6357 = vmatpush1.bf16.msra.mxu0 0
  %6358 = vmatprep.subr.bf16.mxu0 0
  %6359 = vmatpush1.bf16.msra.mxu0 0
  %6360 = vmatprep.mubr.bf16.mxu0 0
  %6361 = vmatmul.mubr.bf16.gmra.mrb[0].mxu0 %v6326
  %v6362 = vpop.f32.mrb[0].mxu0
  %v6363 = vadd.f32 %v6311, %v6362
  %v6364 = vpop.f32.mrb[0].mxu0
  %v6365 = vpop.f32.mrb[0].mxu0
  %v6366 = vpop.f32.mrb[0].mxu0
  %6367 = vdwg.mxu0
  %v6368 = vmax.f32 %v6363, 0.0
  %v6369 = vpack.c.bf16 %v6368, %v6368
  %v6370 = vld [vmem:[%s31] sm:$0xf]
  %v6371 = vld [vmem:[%s31 + $0x4] sm:$0xf]
  %v6372 = vld [vmem:[%s31 + $0x8] sm:$0xf]
  %v6373 = vld [vmem:[%s31 + $0xc] sm:$0xf]
  %v6374 = vld [vmem:[%s33] sm:$0x1]
  %v6376 = vlaneseq
  %v6377 = vshrl.u32 %v6376, 7
  %v6378 = vsub.s32 0, %v6377
  %v6379 = vrot.slane %v6374, %v6378
  %v6385 = vunpack.c.l.b16 %v6370
  %v6386 = vunpack.c.l.b16 %v6371
  %v6387 = vunpack.c.l.b16 %v6372
  %v6388 = vunpack.c.l.b16 %v6373
  %v6389 = vpack.c.b16 %v6386, %v6385
  %v6390 = vpack.c.b16 %v6388, %v6387
  %v6394 = vsel %vm151, %v6369, 0
  %6396 = vmatprep.subr.bf16.mxu0 0
  %6397 = vmatpush1.bf16.msra.mxu0 %v6389
  %6398 = vmatprep.subr.bf16.mxu0 0
  %6399 = vmatpush1.bf16.msra.mxu0 %v6390
  %6400 = vmatprep.subr.bf16.mxu0 0
  %6401 = vmatpush1.bf16.msra.mxu0 0
  %6402 = vmatprep.subr.bf16.mxu0 0
  %6403 = vmatpush1.bf16.msra.mxu0 0
  %6404 = vmatprep.subr.bf16.mxu0 0
  %6405 = vmatpush1.bf16.msra.mxu0 0
  %6406 = vmatprep.subr.bf16.mxu0 0
  %6407 = vmatpush1.bf16.msra.mxu0 0
  %6408 = vmatprep.subr.bf16.mxu0 0
  %6409 = vmatpush1.bf16.msra.mxu0 0
  %6410 = vmatprep.subr.bf16.mxu0 0
  %6411 = vmatpush1.bf16.msra.mxu0 0
  %6412 = vmatprep.subr.bf16.mxu0 0
  %6413 = vmatpush1.bf16.msra.mxu0 0
  %6414 = vmatprep.subr.bf16.mxu0 0
  %6415 = vmatpush1.bf16.msra.mxu0 0
  %6416 = vmatprep.subr.bf16.mxu0 0
  %6417 = vmatpush1.bf16.msra.mxu0 0
  %6418 = vmatprep.subr.bf16.mxu0 0
  %6419 = vmatpush1.bf16.msra.mxu0 0
  %6420 = vmatprep.subr.bf16.mxu0 0
  %6421 = vmatpush1.bf16.msra.mxu0 0
  %6422 = vmatprep.subr.bf16.mxu0 0
  %6423 = vmatpush1.bf16.msra.mxu0 0
  %6424 = vmatprep.subr.bf16.mxu0 0
  %6425 = vmatpush1.bf16.msra.mxu0 0
  %6426 = vmatprep.subr.bf16.mxu0 0
  %6427 = vmatpush1.bf16.msra.mxu0 0
  %6428 = vmatprep.mubr.bf16.mxu0 0
  %6429 = vmatmul.mubr.bf16.gmra.mrb[0].mxu0 %v6394
  %v6430 = vpop.f32.mrb[0].mxu0
  %v6431 = vadd.f32 %v6379, %v6430
  %v6432 = vpop.f32.mrb[0].mxu0
  %v6433 = vpop.f32.mrb[0].mxu0
  %v6434 = vpop.f32.mrb[0].mxu0
  %6435 = vdwg.mxu0
  %v6436 = vld [vmem:[%s35] sm:$0xf]
  %v6437 = vld [vmem:[%s35 + $0x4] sm:$0xf]
  %v6438 = vld [vmem:[%s35 + $0x8] sm:$0xf]
  %v6439 = vld [vmem:[%s35 + $0xc] sm:$0xf]
  %v6440 = vld [vmem:[%s37] sm:$0x1]
  %v6442 = vlaneseq
  %v6443 = vshrl.u32 %v6442, 7
  %v6444 = vsub.s32 0, %v6443
  %v6445 = vrot.slane %v6440, %v6444
  %v6451 = vunpack.c.l.b16 %v6436
  %v6452 = vunpack.c.l.b16 %v6437
  %v6453 = vunpack.c.l.b16 %v6438
  %v6454 = vunpack.c.l.b16 %v6439
  %v6455 = vpack.c.b16 %v6452, %v6451
  %v6456 = vpack.c.b16 %v6454, %v6453
  %6459 = vmatprep.subr.bf16.mxu0 0
  %6460 = vmatpush1.bf16.msra.mxu0 %v6455
  %6461 = vmatprep.subr.bf16.mxu0 0
  %6462 = vmatpush1.bf16.msra.mxu0 %v6456
  %6463 = vmatprep.subr.bf16.mxu0 0
  %6464 = vmatpush1.bf16.msra.mxu0 0
  %6465 = vmatprep.subr.bf16.mxu0 0
  %6466 = vmatpush1.bf16.msra.mxu0 0
  %6467 = vmatprep.subr.bf16.mxu0 0
  %6468 = vmatpush1.bf16.msra.mxu0 0
  %6469 = vmatprep.subr.bf16.mxu0 0
  %6470 = vmatpush1.bf16.msra.mxu0 0
  %6471 = vmatprep.subr.bf16.mxu0 0
  %6472 = vmatpush1.bf16.msra.mxu0 0
  %6473 = vmatprep.subr.bf16.mxu0 0
  %6474 = vmatpush1.bf16.msra.mxu0 0
  %6475 = vmatprep.subr.bf16.mxu0 0
  %6476 = vmatpush1.bf16.msra.mxu0 0
  %6477 = vmatprep.subr.bf16.mxu0 0
  %6478 = vmatpush1.bf16.msra.mxu0 0
  %6479 = vmatprep.subr.bf16.mxu0 0
  %6480 = vmatpush1.bf16.msra.mxu0 0
  %6481 = vmatprep.subr.bf16.mxu0 0
  %6482 = vmatpush1.bf16.msra.mxu0 0
  %6483 = vmatprep.subr.bf16.mxu0 0
  %6484 = vmatpush1.bf16.msra.mxu0 0
  %6485 = vmatprep.subr.bf16.mxu0 0
  %6486 = vmatpush1.bf16.msra.mxu0 0
  %6487 = vmatprep.subr.bf16.mxu0 0
  %6488 = vmatpush1.bf16.msra.mxu0 0
  %6489 = vmatprep.subr.bf16.mxu0 0
  %6490 = vmatpush1.bf16.msra.mxu0 0
  %6491 = vmatprep.mubr.bf16.mxu0 0
  %6492 = vmatmul.mubr.bf16.gmra.mrb[0].mxu0 %v5796
  %v6493 = vpop.f32.mrb[0].mxu0
  %v6494 = vadd.f32 %v6445, %v6493
  %v6495 = vpop.f32.mrb[0].mxu0
  %v6496 = vpop.f32.mrb[0].mxu0
  %v6497 = vpop.f32.mrb[0].mxu0
  %6498 = vdwg.mxu0
  %v6499 = vadd.f32 %v6431, %v6494
  %v6500 = vxor.u32 %v6499, 2147483648
  %v6501 = vmul.f32 %v6500, 1.442695
  %v6502 = vpow.pop %v6501
  %v6503 = vadd.f32 %v6502, 1.0
  %v6504 = vrcp.pop %v6503
  %v6505 = vmul.f32 1.0, %v6504
  %6507 = vrot.lane.b32.xlu0 %v6494, 64
  %v6508 = vpop.permute.xlu0 %6507
  %v6510 = vmul.f32 %v6505, %v6508
  %6512 = vrot.lane.b32.xlu0 %v6510, 64
  %v6513 = vpop.permute.xlu0 %6512
  %v6515 = vadd.f32 %v6431, %v6513
  %v6516 = vtanh.pop %v6515
  %v6517 = vsub.f32 1.0, %v6505
  %6519 = vrot.lane.b32.xlu0 %v6516, 96
  %v6520 = vpop.permute.xlu0 %6519
  %v6522 = vmul.f32 %v6517, %v6520
  %v6523 = vmul.f32 %v6505, %v5767
  %v6524 = vadd.f32 %v6522, %v6523
  %v6525 = vpack.c.bf16 %v6524, %v6524
  %v6526 = vld [vmem:[%s39] sm:$0xf]
  %v6527 = vld [vmem:[%s39 + $0x4] sm:$0xf]
  %v6528 = vld [vmem:[%s39 + $0x8] sm:$0xf]
  %v6529 = vld [vmem:[%s39 + $0xc] sm:$0xf]
  %v6530 = vld [vmem:[%s41] sm:$0x1]
  %v6532 = vlaneseq
  %v6533 = vshrl.u32 %v6532, 7
  %v6534 = vsub.s32 0, %v6533
  %v6535 = vrot.slane %v6530, %v6534
  %6538 = vrot.lane.b32.xlu0 %v6525, 96
  %v6539 = vpop.permute.xlu0 %6538
  %v6544 = vunpack.c.l.b16 %v6526
  %v6545 = vunpack.c.l.b16 %v6527
  %v6546 = vunpack.c.l.b16 %v6528
  %v6547 = vunpack.c.l.b16 %v6529
  %v6548 = vpack.c.b16 %v6545, %v6544
  %v6549 = vpack.c.b16 %v6547, %v6546
  %v6553 = vsel %vm151, %v6539, 0
  %6555 = vmatprep.subr.bf16.mxu0 0
  %6556 = vmatpush1.bf16.msra.mxu0 %v6548
  %6557 = vmatprep.subr.bf16.mxu0 0
  %6558 = vmatpush1.bf16.msra.mxu0 %v6549
  %6559 = vmatprep.subr.bf16.mxu0 0
  %6560 = vmatpush1.bf16.msra.mxu0 0
  %6561 = vmatprep.subr.bf16.mxu0 0
  %6562 = vmatpush1.bf16.msra.mxu0 0
  %6563 = vmatprep.subr.bf16.mxu0 0
  %6564 = vmatpush1.bf16.msra.mxu0 0
  %6565 = vmatprep.subr.bf16.mxu0 0
  %6566 = vmatpush1.bf16.msra.mxu0 0
  %6567 = vmatprep.subr.bf16.mxu0 0
  %6568 = vmatpush1.bf16.msra.mxu0 0
  %6569 = vmatprep.subr.bf16.mxu0 0
  %6570 = vmatpush1.bf16.msra.mxu0 0
  %6571 = vmatprep.subr.bf16.mxu0 0
  %6572 = vmatpush1.bf16.msra.mxu0 0
  %6573 = vmatprep.subr.bf16.mxu0 0
  %6574 = vmatpush1.bf16.msra.mxu0 0
  %6575 = vmatprep.subr.bf16.mxu0 0
  %6576 = vmatpush1.bf16.msra.mxu0 0
  %6577 = vmatprep.subr.bf16.mxu0 0
  %6578 = vmatpush1.bf16.msra.mxu0 0
  %6579 = vmatprep.subr.bf16.mxu0 0
  %6580 = vmatpush1.bf16.msra.mxu0 0
  %6581 = vmatprep.subr.bf16.mxu0 0
  %6582 = vmatpush1.bf16.msra.mxu0 0
  %6583 = vmatprep.subr.bf16.mxu0 0
  %6584 = vmatpush1.bf16.msra.mxu0 0
  %6585 = vmatprep.subr.bf16.mxu0 0
  %6586 = vmatpush1.bf16.msra.mxu0 0
  %6587 = vmatprep.mubr.bf16.mxu0 0
  %6588 = vmatmul.mubr.bf16.gmra.mrb[0].mxu0 %v6553
  %v6589 = vpop.f32.mrb[0].mxu0
  %v6590 = vadd.f32 %v6535, %v6589
  %v6591 = vpop.f32.mrb[0].mxu0
  %v6592 = vpop.f32.mrb[0].mxu0
  %v6593 = vpop.f32.mrb[0].mxu0
  %6594 = vdwg.mxu0
  %v6595 = vld [vmem:[%s43] sm:$0xf]
  %v6596 = vld [vmem:[%s43 + $0x4] sm:$0xf]
  %v6597 = vld [vmem:[%s43 + $0x8] sm:$0xf]
  %v6598 = vld [vmem:[%s43 + $0xc] sm:$0xf]
  %v6599 = vld [vmem:[%s45] sm:$0x1]
  %v6601 = vlaneseq
  %v6602 = vshrl.u32 %v6601, 7
  %v6603 = vsub.s32 0, %v6602
  %v6604 = vrot.slane %v6599, %v6603
  %v6610 = vunpack.c.l.b16 %v6595
  %v6611 = vunpack.c.l.b16 %v6596
  %v6612 = vunpack.c.l.b16 %v6597
  %v6613 = vunpack.c.l.b16 %v6598
  %v6614 = vpack.c.b16 %v6611, %v6610
  %v6615 = vpack.c.b16 %v6613, %v6612
  %6618 = vmatprep.subr.bf16.mxu0 0
  %6619 = vmatpush1.bf16.msra.mxu0 %v6614
  %6620 = vmatprep.subr.bf16.mxu0 0
  %6621 = vmatpush1.bf16.msra.mxu0 %v6615
  %6622 = vmatprep.subr.bf16.mxu0 0
  %6623 = vmatpush1.bf16.msra.mxu0 0
  %6624 = vmatprep.subr.bf16.mxu0 0
  %6625 = vmatpush1.bf16.msra.mxu0 0
  %6626 = vmatprep.subr.bf16.mxu0 0
  %6627 = vmatpush1.bf16.msra.mxu0 0
  %6628 = vmatprep.subr.bf16.mxu0 0
  %6629 = vmatpush1.bf16.msra.mxu0 0
  %6630 = vmatprep.subr.bf16.mxu0 0
  %6631 = vmatpush1.bf16.msra.mxu0 0
  %6632 = vmatprep.subr.bf16.mxu0 0
  %6633 = vmatpush1.bf16.msra.mxu0 0
  %6634 = vmatprep.subr.bf16.mxu0 0
  %6635 = vmatpush1.bf16.msra.mxu0 0
  %6636 = vmatprep.subr.bf16.mxu0 0
  %6637 = vmatpush1.bf16.msra.mxu0 0
  %6638 = vmatprep.subr.bf16.mxu0 0
  %6639 = vmatpush1.bf16.msra.mxu0 0
  %6640 = vmatprep.subr.bf16.mxu0 0
  %6641 = vmatpush1.bf16.msra.mxu0 0
  %6642 = vmatprep.subr.bf16.mxu0 0
  %6643 = vmatpush1.bf16.msra.mxu0 0
  %6644 = vmatprep.subr.bf16.mxu0 0
  %6645 = vmatpush1.bf16.msra.mxu0 0
  %6646 = vmatprep.subr.bf16.mxu0 0
  %6647 = vmatpush1.bf16.msra.mxu0 0
  %6648 = vmatprep.subr.bf16.mxu0 0
  %6649 = vmatpush1.bf16.msra.mxu0 0
  %6650 = vmatprep.mubr.bf16.mxu0 0
  %6651 = vmatmul.mubr.bf16.gmra.mrb[0].mxu0 %v5948
  %v6652 = vpop.f32.mrb[0].mxu0
  %v6653 = vadd.f32 %v6604, %v6652
  %v6654 = vpop.f32.mrb[0].mxu0
  %v6655 = vpop.f32.mrb[0].mxu0
  %v6656 = vpop.f32.mrb[0].mxu0
  %6657 = vdwg.mxu0
  %v6658 = vadd.f32 %v6590, %v6653
  %v6659 = vxor.u32 %v6658, 2147483648
  %v6660 = vmul.f32 %v6659, 1.442695
  %v6661 = vpow.pop %v6660
  %v6662 = vadd.f32 %v6661, 1.0
  %v6663 = vrcp.pop %v6662
  %v6664 = vmul.f32 1.0, %v6663
  %6666 = vrot.lane.b32.xlu0 %v6653, 64
  %v6667 = vpop.permute.xlu0 %6666
  %v6669 = vmul.f32 %v6664, %v6667
  %6671 = vrot.lane.b32.xlu0 %v6669, 64
  %v6672 = vpop.permute.xlu0 %6671
  %v6674 = vadd.f32 %v6590, %v6672
  %v6675 = vtanh.pop %v6674
  %v6676 = vsub.f32 1.0, %v6664
  %6678 = vrot.lane.b32.xlu0 %v6675, 96
  %v6679 = vpop.permute.xlu0 %6678
  %v6681 = vmul.f32 %v6676, %v6679
  %v6682 = vmul.f32 %v6664, %v5926
  %v6683 = vadd.f32 %v6681, %v6682
  %v6684 = vpack.c.bf16 %v6683, %v6683
  %v6685 = vld [vmem:[%s47] sm:$0xf]
  %v6686 = vld [vmem:[%s47 + $0x4] sm:$0xf]
  %v6687 = vld [vmem:[%s47 + $0x8] sm:$0xf]
  %v6688 = vld [vmem:[%s47 + $0xc] sm:$0xf]
  %6690 = vrot.lane.b32.xlu0 %v6684, 96
  %v6691 = vpop.permute.xlu0 %6690
  %v6696 = vunpack.c.l.b16 %v6685
  %v6697 = vunpack.c.l.b16 %v6686
  %v6698 = vunpack.c.l.b16 %v6687
  %v6699 = vunpack.c.l.b16 %v6688
  %v6700 = vpack.c.b16 %v6697, %v6696
  %v6701 = vpack.c.b16 %v6699, %v6698
  %v6705 = vsel %vm151, %v6691, 0
  %6707 = vmatprep.subr.bf16.mxu0 0
  %6708 = vmatpush1.bf16.msra.mxu0 %v6700
  %6709 = vmatprep.subr.bf16.mxu0 0
  %6710 = vmatpush1.bf16.msra.mxu0 %v6701
  %6711 = vmatprep.subr.bf16.mxu0 0
  %6712 = vmatpush1.bf16.msra.mxu0 0
  %6713 = vmatprep.subr.bf16.mxu0 0
  %6714 = vmatpush1.bf16.msra.mxu0 0
  %6715 = vmatprep.subr.bf16.mxu0 0
  %6716 = vmatpush1.bf16.msra.mxu0 0
  %6717 = vmatprep.subr.bf16.mxu0 0
  %6718 = vmatpush1.bf16.msra.mxu0 0
  %6719 = vmatprep.subr.bf16.mxu0 0
  %6720 = vmatpush1.bf16.msra.mxu0 0
  %6721 = vmatprep.subr.bf16.mxu0 0
  %6722 = vmatpush1.bf16.msra.mxu0 0
  %6723 = vmatprep.subr.bf16.mxu0 0
  %6724 = vmatpush1.bf16.msra.mxu0 0
  %6725 = vmatprep.subr.bf16.mxu0 0
  %6726 = vmatpush1.bf16.msra.mxu0 0
  %6727 = vmatprep.subr.bf16.mxu0 0
  %6728 = vmatpush1.bf16.msra.mxu0 0
  %6729 = vmatprep.subr.bf16.mxu0 0
  %6730 = vmatpush1.bf16.msra.mxu0 0
  %6731 = vmatprep.subr.bf16.mxu0 0
  %6732 = vmatpush1.bf16.msra.mxu0 0
  %6733 = vmatprep.subr.bf16.mxu0 0
  %6734 = vmatpush1.bf16.msra.mxu0 0
  %6735 = vmatprep.subr.bf16.mxu0 0
  %6736 = vmatpush1.bf16.msra.mxu0 0
  %6737 = vmatprep.subr.bf16.mxu0 0
  %6738 = vmatpush1.bf16.msra.mxu0 0
  %6739 = vmatprep.mubr.bf16.mxu0 0
  %6740 = vmatmul.mubr.bf16.gmra.mrb[0].mxu0 %v6705
  %v6741 = vpop.f32.mrb[0].mxu0
  %v6742 = vadd.f32 0.0, %v6741
  %v6743 = vpop.f32.mrb[0].mxu0
  %v6744 = vpop.f32.mrb[0].mxu0
  %v6745 = vpop.f32.mrb[0].mxu0
  %6746 = vdwg.mxu0
  %v6747 = vadd.f32 %v5990, %v6742
  %v6748 = vpack.c.bf16 %v6747, %v6747
  %v6749 = vld [vmem:[%s49] sm:$0xff]
  %v6750 = vld [vmem:[%s49 + $0x8] sm:$0xff]
  %v6751 = vld [vmem:[%s49 + $0x10] sm:$0xff]
  %v6752 = vld [vmem:[%s49 + $0x18] sm:$0xff]
  %v6753 = vld [vmem:[%s49 + $0x20] sm:$0xff]
  %v6754 = vld [vmem:[%s49 + $0x28] sm:$0xff]
  %v6755 = vld [vmem:[%s49 + $0x30] sm:$0xff]
  %v6756 = vld [vmem:[%s49 + $0x38] sm:$0xff]
  %v6757 = vld [vmem:[%s51] sm:$0x3]
  %v6759 = vlaneseq
  %v6760 = vshrl.u32 %v6759, 7
  %v6761 = vsub.s32 0, %v6760
  %v6762 = vrot.slane %v6757, %v6761
  %v6763 = vlaneseq
  %v6764 = vshrl.u32 %v6763, 7
  %v6765 = vsub.s32 1, %v6764
  %v6766 = vrot.slane %v6757, %v6765
  %v6777 = vunpack.c.l.b16 %v6749
  %v6778 = vunpack.c.h.b16 %v6749
  %v6779 = vunpack.c.l.b16 %v6750
  %v6780 = vunpack.c.h.b16 %v6750
  %v6781 = vunpack.c.l.b16 %v6751
  %v6782 = vunpack.c.h.b16 %v6751
  %v6783 = vunpack.c.l.b16 %v6752
  %v6784 = vunpack.c.h.b16 %v6752
  %v6785 = vunpack.c.l.b16 %v6753
  %v6786 = vunpack.c.h.b16 %v6753
  %v6787 = vunpack.c.l.b16 %v6754
  %v6788 = vunpack.c.h.b16 %v6754
  %v6789 = vunpack.c.l.b16 %v6755
  %v6790 = vunpack.c.h.b16 %v6755
  %v6791 = vunpack.c.l.b16 %v6756
  %v6792 = vunpack.c.h.b16 %v6756
  %v6793 = vpack.c.b16 %v6779, %v6777
  %v6794 = vpack.c.b16 %v6780, %v6778
  %v6795 = vpack.c.b16 %v6783, %v6781
  %v6796 = vpack.c.b16 %v6784, %v6782
  %v6797 = vpack.c.b16 %v6787, %v6785
  %v6798 = vpack.c.b16 %v6788, %v6786
  %v6799 = vpack.c.b16 %v6791, %v6789
  %v6800 = vpack.c.b16 %v6792, %v6790
  %v6810 = vsel %vm1515, %v6748, 0
  %6812 = vmatprep.subr.bf16.mxu0 %v6794
  %6813 = vmatpush1.bf16.msra.mxu0 %v6793
  %6814 = vmatprep.subr.bf16.mxu0 %v6796
  %6815 = vmatpush1.bf16.msra.mxu0 %v6795
  %6816 = vmatprep.subr.bf16.mxu0 %v6798
  %6817 = vmatpush1.bf16.msra.mxu0 %v6797
  %6818 = vmatprep.subr.bf16.mxu0 %v6800
  %6819 = vmatpush1.bf16.msra.mxu0 %v6799
  %6820 = vmatprep.subr.bf16.mxu0 0
  %6821 = vmatpush1.bf16.msra.mxu0 0
  %6822 = vmatprep.subr.bf16.mxu0 0
  %6823 = vmatpush1.bf16.msra.mxu0 0
  %6824 = vmatprep.subr.bf16.mxu0 0
  %6825 = vmatpush1.bf16.msra.mxu0 0
  %6826 = vmatprep.subr.bf16.mxu0 0
  %6827 = vmatpush1.bf16.msra.mxu0 0
  %6828 = vmatprep.subr.bf16.mxu0 0
  %6829 = vmatpush1.bf16.msra.mxu0 0
  %6830 = vmatprep.subr.bf16.mxu0 0
  %6831 = vmatpush1.bf16.msra.mxu0 0
  %6832 = vmatprep.subr.bf16.mxu0 0
  %6833 = vmatpush1.bf16.msra.mxu0 0
  %6834 = vmatprep.subr.bf16.mxu0 0
  %6835 = vmatpush1.bf16.msra.mxu0 0
  %6836 = vmatprep.subr.bf16.mxu0 0
  %6837 = vmatpush1.bf16.msra.mxu0 0
  %6838 = vmatprep.subr.bf16.mxu0 0
  %6839 = vmatpush1.bf16.msra.mxu0 0
  %6840 = vmatprep.subr.bf16.mxu0 0
  %6841 = vmatpush1.bf16.msra.mxu0 0
  %6842 = vmatprep.subr.bf16.mxu0 0
  %6843 = vmatpush1.bf16.msra.mxu0 0
  %6844 = vmatprep.mubr.bf16.mxu0 0
  %6845 = vmatmul.mubr.bf16.gmra.mrb[0].mxu0 %v6810
  %v6846 = vpop.f32.mrb[0].mxu0
  %v6847 = vadd.f32 %v6762, %v6846
  %v6848 = vpop.f32.mrb[0].mxu0
  %v6849 = vadd.f32 %v6766, %v6848
  %v6850 = vpop.f32.mrb[0].mxu0
  %v6851 = vpop.f32.mrb[0].mxu0
  %6852 = vdwg.mxu0
  %v6853 = vpack.c.bf16 %v6221, %v6221
  %v6854 = vld [vmem:[%s53] sm:$0xff]
  %v6855 = vld [vmem:[%s53 + $0x8] sm:$0xff]
  %v6856 = vld [vmem:[%s53 + $0x10] sm:$0xff]
  %v6857 = vld [vmem:[%s53 + $0x18] sm:$0xff]
  %v6858 = vld [vmem:[%s53 + $0x20] sm:$0xff]
  %v6859 = vld [vmem:[%s53 + $0x28] sm:$0xff]
  %v6860 = vld [vmem:[%s53 + $0x30] sm:$0xff]
  %v6861 = vld [vmem:[%s53 + $0x38] sm:$0xff]
  %v6862 = vld [vmem:[%s55] sm:$0x3]
  %v6864 = vlaneseq
  %v6865 = vshrl.u32 %v6864, 7
  %v6866 = vsub.s32 0, %v6865
  %v6867 = vrot.slane %v6862, %v6866
  %v6868 = vlaneseq
  %v6869 = vshrl.u32 %v6868, 7
  %v6870 = vsub.s32 1, %v6869
  %v6871 = vrot.slane %v6862, %v6870
  %6875 = vrot.lane.b32.xlu0 %v6853, 64
  %v6876 = vpop.permute.xlu0 %6875
  %v6885 = vunpack.c.l.b16 %v6854
  %v6886 = vunpack.c.h.b16 %v6854
  %v6887 = vunpack.c.l.b16 %v6855
  %v6888 = vunpack.c.h.b16 %v6855
  %v6889 = vunpack.c.l.b16 %v6856
  %v6890 = vunpack.c.h.b16 %v6856
  %v6891 = vunpack.c.l.b16 %v6857
  %v6892 = vunpack.c.h.b16 %v6857
  %v6893 = vunpack.c.l.b16 %v6858
  %v6894 = vunpack.c.h.b16 %v6858
  %v6895 = vunpack.c.l.b16 %v6859
  %v6896 = vunpack.c.h.b16 %v6859
  %v6897 = vunpack.c.l.b16 %v6860
  %v6898 = vunpack.c.h.b16 %v6860
  %v6899 = vunpack.c.l.b16 %v6861
  %v6900 = vunpack.c.h.b16 %v6861
  %v6901 = vpack.c.b16 %v6887, %v6885
  %v6902 = vpack.c.b16 %v6888, %v6886
  %v6903 = vpack.c.b16 %v6891, %v6889
  %v6904 = vpack.c.b16 %v6892, %v6890
  %v6905 = vpack.c.b16 %v6895, %v6893
  %v6906 = vpack.c.b16 %v6896, %v6894
  %v6907 = vpack.c.b16 %v6899, %v6897
  %v6908 = vpack.c.b16 %v6900, %v6898
  %v6918 = vsel %vm1515, %v6876, 0
  %6920 = vmatprep.subr.bf16.mxu0 %v6902
  %6921 = vmatpush1.bf16.msra.mxu0 %v6901
  %6922 = vmatprep.subr.bf16.mxu0 %v6904
  %6923 = vmatpush1.bf16.msra.mxu0 %v6903
  %6924 = vmatprep.subr.bf16.mxu0 %v6906
  %6925 = vmatpush1.bf16.msra.mxu0 %v6905
  %6926 = vmatprep.subr.bf16.mxu0 %v6908
  %6927 = vmatpush1.bf16.msra.mxu0 %v6907
  %6928 = vmatprep.subr.bf16.mxu0 0
  %6929 = vmatpush1.bf16.msra.mxu0 0
  %6930 = vmatprep.subr.bf16.mxu0 0
  %6931 = vmatpush1.bf16.msra.mxu0 0
  %6932 = vmatprep.subr.bf16.mxu0 0
  %6933 = vmatpush1.bf16.msra.mxu0 0
  %6934 = vmatprep.subr.bf16.mxu0 0
  %6935 = vmatpush1.bf16.msra.mxu0 0
  %6936 = vmatprep.subr.bf16.mxu0 0
  %6937 = vmatpush1.bf16.msra.mxu0 0
  %6938 = vmatprep.subr.bf16.mxu0 0
  %6939 = vmatpush1.bf16.msra.mxu0 0
  %6940 = vmatprep.subr.bf16.mxu0 0
  %6941 = vmatpush1.bf16.msra.mxu0 0
  %6942 = vmatprep.subr.bf16.mxu0 0
  %6943 = vmatpush1.bf16.msra.mxu0 0
  %6944 = vmatprep.subr.bf16.mxu0 0
  %6945 = vmatpush1.bf16.msra.mxu0 0
  %6946 = vmatprep.subr.bf16.mxu0 0
  %6947 = vmatpush1.bf16.msra.mxu0 0
  %6948 = vmatprep.subr.bf16.mxu0 0
  %6949 = vmatpush1.bf16.msra.mxu0 0
  %6950 = vmatprep.subr.bf16.mxu0 0
  %6951 = vmatpush1.bf16.msra.mxu0 0
  %6952 = vmatprep.mubr.bf16.mxu0 0
  %6953 = vmatmul.mubr.bf16.gmra.mrb[0].mxu0 %v6918
  %v6954 = vpop.f32.mrb[0].mxu0
  %v6955 = vadd.f32 %v6867, %v6954
  %v6956 = vpop.f32.mrb[0].mxu0
  %v6957 = vadd.f32 %v6871, %v6956
  %v6958 = vpop.f32.mrb[0].mxu0
  %v6959 = vpop.f32.mrb[0].mxu0
  %6960 = vdwg.mxu0
  %v6961 = vadd.f32 %v6847, %v6955
  %v6962 = vxor.u32 %v6961, 2147483648
  %v6963 = vmul.f32 %v6962, 1.442695
  %v6964 = vpow.pop %v6963
  %v6965 = vadd.f32 %v6964, 1.0
  %v6966 = vrcp.pop %v6965
  %v6967 = vmul.f32 1.0, %v6966
  %v6968 = vmul.f32 %v6967, %v6957
  %v6969 = vadd.f32 %v6849, %v6968
  %v6970 = vtanh.pop %v6969
  %v6971 = vsub.f32 1.0, %v6967
  %6973 = vrot.lane.b32.xlu0 %v6970, 64
  %v6974 = vpop.permute.xlu0 %6973
  %v6976 = vmul.f32 %v6971, %v6974
  %v6977 = vmul.f32 %v6967, %v6221
  %v6978 = vadd.f32 %v6976, %v6977
  %6980 = vrot.lane.b32.xlu0 %v6978, 64
  %v6981 = vpop.permute.xlu0 %6980
  %s6983 = scalar_lea.vmem [#allocation2], 56
  %6984 = vst.msk [vmem:[%s6983] sm:$0xff] %vm1515, %v6981
  %v6985 = vld [vmem:[%s21] sm:$0xf]
  %v6986 = vld [vmem:[%s21 + $0x4] sm:$0xf]
  %v6987 = vld [vmem:[%s21 + $0x8] sm:$0xf]
  %v6988 = vld [vmem:[%s21 + $0xc] sm:$0xf]
  %v6989 = vld [vmem:[%s21 + $0x10] sm:$0xf]
  %v6990 = vld [vmem:[%s21 + $0x14] sm:$0xf]
  %v6991 = vld [vmem:[%s21 + $0x18] sm:$0xf]
  %v6992 = vld [vmem:[%s21 + $0x1c] sm:$0xf]
  %v7001 = vunpack.c.l.b16 %v6985
  %v7002 = vunpack.c.l.b16 %v6986
  %v7003 = vunpack.c.l.b16 %v6987
  %v7004 = vunpack.c.l.b16 %v6988
  %v7005 = vunpack.c.l.b16 %v6989
  %v7006 = vunpack.c.l.b16 %v6990
  %v7007 = vunpack.c.l.b16 %v6991
  %v7008 = vunpack.c.l.b16 %v6992
  %v7009 = vpack.c.b16 %v7002, %v7001
  %v7010 = vpack.c.b16 %v7004, %v7003
  %v7011 = vpack.c.b16 %v7006, %v7005
  %v7012 = vpack.c.b16 %v7008, %v7007
  %7017 = vmatprep.subr.bf16.mxu0 0
  %7018 = vmatpush1.bf16.msra.mxu0 %v7009
  %7019 = vmatprep.subr.bf16.mxu0 0
  %7020 = vmatpush1.bf16.msra.mxu0 %v7010
  %7021 = vmatprep.subr.bf16.mxu0 0
  %7022 = vmatpush1.bf16.msra.mxu0 %v7011
  %7023 = vmatprep.subr.bf16.mxu0 0
  %7024 = vmatpush1.bf16.msra.mxu0 %v7012
  %7025 = vmatprep.subr.bf16.mxu0 0
  %7026 = vmatpush1.bf16.msra.mxu0 0
  %7027 = vmatprep.subr.bf16.mxu0 0
  %7028 = vmatpush1.bf16.msra.mxu0 0
  %7029 = vmatprep.subr.bf16.mxu0 0
  %7030 = vmatpush1.bf16.msra.mxu0 0
  %7031 = vmatprep.subr.bf16.mxu0 0
  %7032 = vmatpush1.bf16.msra.mxu0 0
  %7033 = vmatprep.subr.bf16.mxu0 0
  %7034 = vmatpush1.bf16.msra.mxu0 0
  %7035 = vmatprep.subr.bf16.mxu0 0
  %7036 = vmatpush1.bf16.msra.mxu0 0
  %7037 = vmatprep.subr.bf16.mxu0 0
  %7038 = vmatpush1.bf16.msra.mxu0 0
  %7039 = vmatprep.subr.bf16.mxu0 0
  %7040 = vmatpush1.bf16.msra.mxu0 0
  %7041 = vmatprep.subr.bf16.mxu0 0
  %7042 = vmatpush1.bf16.msra.mxu0 0
  %7043 = vmatprep.subr.bf16.mxu0 0
  %7044 = vmatpush1.bf16.msra.mxu0 0
  %7045 = vmatprep.subr.bf16.mxu0 0
  %7046 = vmatpush1.bf16.msra.mxu0 0
  %7047 = vmatprep.subr.bf16.mxu0 0
  %7048 = vmatpush1.bf16.msra.mxu0 0
  %7049 = vmatprep.mubr.bf16.mxu0 0
  %7050 = vmatmul.mubr.bf16.gmra.mrb[0].mxu0 %v6810
  %v7051 = vpop.f32.mrb[0].mxu0
  %v7052 = vadd.f32 %v1449, %v7051
  %v7053 = vpop.f32.mrb[0].mxu0
  %v7054 = vpop.f32.mrb[0].mxu0
  %v7055 = vpop.f32.mrb[0].mxu0
  %7056 = vdwg.mxu0
  %v7057 = vmax.f32 %v7052, 0.0
  %v7058 = vpack.c.bf16 %v7057, %v7057
  %v7059 = vld [vmem:[%s27] sm:$0xf]
  %v7060 = vld [vmem:[%s27 + $0x4] sm:$0xf]
  %v7061 = vld [vmem:[%s27 + $0x8] sm:$0xf]
  %v7062 = vld [vmem:[%s27 + $0xc] sm:$0xf]
  %v7063 = vld [vmem:[%s29] sm:$0x1]
  %v7065 = vlaneseq
  %v7066 = vshrl.u32 %v7065, 7
  %v7067 = vsub.s32 0, %v7066
  %v7068 = vrot.slane %v7063, %v7067
  %v7074 = vunpack.c.l.b16 %v7059
  %v7075 = vunpack.c.l.b16 %v7060
  %v7076 = vunpack.c.l.b16 %v7061
  %v7077 = vunpack.c.l.b16 %v7062
  %v7078 = vpack.c.b16 %v7075, %v7074
  %v7079 = vpack.c.b16 %v7077, %v7076
  %v7083 = vsel %vm151, %v7058, 0
  %7085 = vmatprep.subr.bf16.mxu0 0
  %7086 = vmatpush1.bf16.msra.mxu0 %v7078
  %7087 = vmatprep.subr.bf16.mxu0 0
  %7088 = vmatpush1.bf16.msra.mxu0 %v7079
  %7089 = vmatprep.subr.bf16.mxu0 0
  %7090 = vmatpush1.bf16.msra.mxu0 0
  %7091 = vmatprep.subr.bf16.mxu0 0
  %7092 = vmatpush1.bf16.msra.mxu0 0
  %7093 = vmatprep.subr.bf16.mxu0 0
  %7094 = vmatpush1.bf16.msra.mxu0 0
  %7095 = vmatprep.subr.bf16.mxu0 0
  %7096 = vmatpush1.bf16.msra.mxu0 0
  %7097 = vmatprep.subr.bf16.mxu0 0
  %7098 = vmatpush1.bf16.msra.mxu0 0
  %7099 = vmatprep.subr.bf16.mxu0 0
  %7100 = vmatpush1.bf16.msra.mxu0 0
  %7101 = vmatprep.subr.bf16.mxu0 0
  %7102 = vmatpush1.bf16.msra.mxu0 0
  %7103 = vmatprep.subr.bf16.mxu0 0
  %7104 = vmatpush1.bf16.msra.mxu0 0
  %7105 = vmatprep.subr.bf16.mxu0 0
  %7106 = vmatpush1.bf16.msra.mxu0 0
  %7107 = vmatprep.subr.bf16.mxu0 0
  %7108 = vmatpush1.bf16.msra.mxu0 0
  %7109 = vmatprep.subr.bf16.mxu0 0
  %7110 = vmatpush1.bf16.msra.mxu0 0
  %7111 = vmatprep.subr.bf16.mxu0 0
  %7112 = vmatpush1.bf16.msra.mxu0 0
  %7113 = vmatprep.subr.bf16.mxu0 0
  %7114 = vmatpush1.bf16.msra.mxu0 0
  %7115 = vmatprep.subr.bf16.mxu0 0
  %7116 = vmatpush1.bf16.msra.mxu0 0
  %7117 = vmatprep.mubr.bf16.mxu0 0
  %7118 = vmatmul.mubr.bf16.gmra.mrb[0].mxu0 %v7083
  %v7119 = vpop.f32.mrb[0].mxu0
  %v7120 = vadd.f32 %v7068, %v7119
  %v7121 = vpop.f32.mrb[0].mxu0
  %v7122 = vpop.f32.mrb[0].mxu0
  %v7123 = vpop.f32.mrb[0].mxu0
  %7124 = vdwg.mxu0
  %v7125 = vmax.f32 %v7120, 0.0
  %v7126 = vpack.c.bf16 %v7125, %v7125
  %v7127 = vld [vmem:[%s31] sm:$0xf]
  %v7128 = vld [vmem:[%s31 + $0x4] sm:$0xf]
  %v7129 = vld [vmem:[%s31 + $0x8] sm:$0xf]
  %v7130 = vld [vmem:[%s31 + $0xc] sm:$0xf]
  %v7131 = vld [vmem:[%s33] sm:$0x1]
  %v7133 = vlaneseq
  %v7134 = vshrl.u32 %v7133, 7
  %v7135 = vsub.s32 0, %v7134
  %v7136 = vrot.slane %v7131, %v7135
  %v7142 = vunpack.c.l.b16 %v7127
  %v7143 = vunpack.c.l.b16 %v7128
  %v7144 = vunpack.c.l.b16 %v7129
  %v7145 = vunpack.c.l.b16 %v7130
  %v7146 = vpack.c.b16 %v7143, %v7142
  %v7147 = vpack.c.b16 %v7145, %v7144
  %v7151 = vsel %vm151, %v7126, 0
  %7153 = vmatprep.subr.bf16.mxu0 0
  %7154 = vmatpush1.bf16.msra.mxu0 %v7146
  %7155 = vmatprep.subr.bf16.mxu0 0
  %7156 = vmatpush1.bf16.msra.mxu0 %v7147
  %7157 = vmatprep.subr.bf16.mxu0 0
  %7158 = vmatpush1.bf16.msra.mxu0 0
  %7159 = vmatprep.subr.bf16.mxu0 0
  %7160 = vmatpush1.bf16.msra.mxu0 0
  %7161 = vmatprep.subr.bf16.mxu0 0
  %7162 = vmatpush1.bf16.msra.mxu0 0
  %7163 = vmatprep.subr.bf16.mxu0 0
  %7164 = vmatpush1.bf16.msra.mxu0 0
  %7165 = vmatprep.subr.bf16.mxu0 0
  %7166 = vmatpush1.bf16.msra.mxu0 0
  %7167 = vmatprep.subr.bf16.mxu0 0
  %7168 = vmatpush1.bf16.msra.mxu0 0
  %7169 = vmatprep.subr.bf16.mxu0 0
  %7170 = vmatpush1.bf16.msra.mxu0 0
  %7171 = vmatprep.subr.bf16.mxu0 0
  %7172 = vmatpush1.bf16.msra.mxu0 0
  %7173 = vmatprep.subr.bf16.mxu0 0
  %7174 = vmatpush1.bf16.msra.mxu0 0
  %7175 = vmatprep.subr.bf16.mxu0 0
  %7176 = vmatpush1.bf16.msra.mxu0 0
  %7177 = vmatprep.subr.bf16.mxu0 0
  %7178 = vmatpush1.bf16.msra.mxu0 0
  %7179 = vmatprep.subr.bf16.mxu0 0
  %7180 = vmatpush1.bf16.msra.mxu0 0
  %7181 = vmatprep.subr.bf16.mxu0 0
  %7182 = vmatpush1.bf16.msra.mxu0 0
  %7183 = vmatprep.subr.bf16.mxu0 0
  %7184 = vmatpush1.bf16.msra.mxu0 0
  %7185 = vmatprep.mubr.bf16.mxu0 0
  %7186 = vmatmul.mubr.bf16.gmra.mrb[0].mxu0 %v7151
  %v7187 = vpop.f32.mrb[0].mxu0
  %v7188 = vadd.f32 %v7136, %v7187
  %v7189 = vpop.f32.mrb[0].mxu0
  %v7190 = vpop.f32.mrb[0].mxu0
  %v7191 = vpop.f32.mrb[0].mxu0
  %7192 = vdwg.mxu0
  %v7193 = vld [vmem:[%s35] sm:$0xf]
  %v7194 = vld [vmem:[%s35 + $0x4] sm:$0xf]
  %v7195 = vld [vmem:[%s35 + $0x8] sm:$0xf]
  %v7196 = vld [vmem:[%s35 + $0xc] sm:$0xf]
  %v7197 = vld [vmem:[%s37] sm:$0x1]
  %v7199 = vlaneseq
  %v7200 = vshrl.u32 %v7199, 7
  %v7201 = vsub.s32 0, %v7200
  %v7202 = vrot.slane %v7197, %v7201
  %v7208 = vunpack.c.l.b16 %v7193
  %v7209 = vunpack.c.l.b16 %v7194
  %v7210 = vunpack.c.l.b16 %v7195
  %v7211 = vunpack.c.l.b16 %v7196
  %v7212 = vpack.c.b16 %v7209, %v7208
  %v7213 = vpack.c.b16 %v7211, %v7210
  %7216 = vmatprep.subr.bf16.mxu0 0
  %7217 = vmatpush1.bf16.msra.mxu0 %v7212
  %7218 = vmatprep.subr.bf16.mxu0 0
  %7219 = vmatpush1.bf16.msra.mxu0 %v7213
  %7220 = vmatprep.subr.bf16.mxu0 0
  %7221 = vmatpush1.bf16.msra.mxu0 0
  %7222 = vmatprep.subr.bf16.mxu0 0
  %7223 = vmatpush1.bf16.msra.mxu0 0
  %7224 = vmatprep.subr.bf16.mxu0 0
  %7225 = vmatpush1.bf16.msra.mxu0 0
  %7226 = vmatprep.subr.bf16.mxu0 0
  %7227 = vmatpush1.bf16.msra.mxu0 0
  %7228 = vmatprep.subr.bf16.mxu0 0
  %7229 = vmatpush1.bf16.msra.mxu0 0
  %7230 = vmatprep.subr.bf16.mxu0 0
  %7231 = vmatpush1.bf16.msra.mxu0 0
  %7232 = vmatprep.subr.bf16.mxu0 0
  %7233 = vmatpush1.bf16.msra.mxu0 0
  %7234 = vmatprep.subr.bf16.mxu0 0
  %7235 = vmatpush1.bf16.msra.mxu0 0
  %7236 = vmatprep.subr.bf16.mxu0 0
  %7237 = vmatpush1.bf16.msra.mxu0 0
  %7238 = vmatprep.subr.bf16.mxu0 0
  %7239 = vmatpush1.bf16.msra.mxu0 0
  %7240 = vmatprep.subr.bf16.mxu0 0
  %7241 = vmatpush1.bf16.msra.mxu0 0
  %7242 = vmatprep.subr.bf16.mxu0 0
  %7243 = vmatpush1.bf16.msra.mxu0 0
  %7244 = vmatprep.subr.bf16.mxu0 0
  %7245 = vmatpush1.bf16.msra.mxu0 0
  %7246 = vmatprep.subr.bf16.mxu0 0
  %7247 = vmatpush1.bf16.msra.mxu0 0
  %7248 = vmatprep.mubr.bf16.mxu0 0
  %7249 = vmatmul.mubr.bf16.gmra.mrb[0].mxu0 %v6553
  %v7250 = vpop.f32.mrb[0].mxu0
  %v7251 = vadd.f32 %v7202, %v7250
  %v7252 = vpop.f32.mrb[0].mxu0
  %v7253 = vpop.f32.mrb[0].mxu0
  %v7254 = vpop.f32.mrb[0].mxu0
  %7255 = vdwg.mxu0
  %v7256 = vadd.f32 %v7188, %v7251
  %v7257 = vxor.u32 %v7256, 2147483648
  %v7258 = vmul.f32 %v7257, 1.442695
  %v7259 = vpow.pop %v7258
  %v7260 = vadd.f32 %v7259, 1.0
  %v7261 = vrcp.pop %v7260
  %v7262 = vmul.f32 1.0, %v7261
  %7264 = vrot.lane.b32.xlu0 %v7251, 64
  %v7265 = vpop.permute.xlu0 %7264
  %v7267 = vmul.f32 %v7262, %v7265
  %7269 = vrot.lane.b32.xlu0 %v7267, 64
  %v7270 = vpop.permute.xlu0 %7269
  %v7272 = vadd.f32 %v7188, %v7270
  %v7273 = vtanh.pop %v7272
  %v7274 = vsub.f32 1.0, %v7262
  %7276 = vrot.lane.b32.xlu0 %v7273, 96
  %v7277 = vpop.permute.xlu0 %7276
  %v7279 = vmul.f32 %v7274, %v7277
  %v7280 = vmul.f32 %v7262, %v6524
  %v7281 = vadd.f32 %v7279, %v7280
  %v7282 = vpack.c.bf16 %v7281, %v7281
  %v7283 = vld [vmem:[%s39] sm:$0xf]
  %v7284 = vld [vmem:[%s39 + $0x4] sm:$0xf]
  %v7285 = vld [vmem:[%s39 + $0x8] sm:$0xf]
  %v7286 = vld [vmem:[%s39 + $0xc] sm:$0xf]
  %v7287 = vld [vmem:[%s41] sm:$0x1]
  %v7289 = vlaneseq
  %v7290 = vshrl.u32 %v7289, 7
  %v7291 = vsub.s32 0, %v7290
  %v7292 = vrot.slane %v7287, %v7291
  %7295 = vrot.lane.b32.xlu0 %v7282, 96
  %v7296 = vpop.permute.xlu0 %7295
  %v7301 = vunpack.c.l.b16 %v7283
  %v7302 = vunpack.c.l.b16 %v7284
  %v7303 = vunpack.c.l.b16 %v7285
  %v7304 = vunpack.c.l.b16 %v7286
  %v7305 = vpack.c.b16 %v7302, %v7301
  %v7306 = vpack.c.b16 %v7304, %v7303
  %v7310 = vsel %vm151, %v7296, 0
  %7312 = vmatprep.subr.bf16.mxu0 0
  %7313 = vmatpush1.bf16.msra.mxu0 %v7305
  %7314 = vmatprep.subr.bf16.mxu0 0
  %7315 = vmatpush1.bf16.msra.mxu0 %v7306
  %7316 = vmatprep.subr.bf16.mxu0 0
  %7317 = vmatpush1.bf16.msra.mxu0 0
  %7318 = vmatprep.subr.bf16.mxu0 0
  %7319 = vmatpush1.bf16.msra.mxu0 0
  %7320 = vmatprep.subr.bf16.mxu0 0
  %7321 = vmatpush1.bf16.msra.mxu0 0
  %7322 = vmatprep.subr.bf16.mxu0 0
  %7323 = vmatpush1.bf16.msra.mxu0 0
  %7324 = vmatprep.subr.bf16.mxu0 0
  %7325 = vmatpush1.bf16.msra.mxu0 0
  %7326 = vmatprep.subr.bf16.mxu0 0
  %7327 = vmatpush1.bf16.msra.mxu0 0
  %7328 = vmatprep.subr.bf16.mxu0 0
  %7329 = vmatpush1.bf16.msra.mxu0 0
  %7330 = vmatprep.subr.bf16.mxu0 0
  %7331 = vmatpush1.bf16.msra.mxu0 0
  %7332 = vmatprep.subr.bf16.mxu0 0
  %7333 = vmatpush1.bf16.msra.mxu0 0
  %7334 = vmatprep.subr.bf16.mxu0 0
  %7335 = vmatpush1.bf16.msra.mxu0 0
  %7336 = vmatprep.subr.bf16.mxu0 0
  %7337 = vmatpush1.bf16.msra.mxu0 0
  %7338 = vmatprep.subr.bf16.mxu0 0
  %7339 = vmatpush1.bf16.msra.mxu0 0
  %7340 = vmatprep.subr.bf16.mxu0 0
  %7341 = vmatpush1.bf16.msra.mxu0 0
  %7342 = vmatprep.subr.bf16.mxu0 0
  %7343 = vmatpush1.bf16.msra.mxu0 0
  %7344 = vmatprep.mubr.bf16.mxu0 0
  %7345 = vmatmul.mubr.bf16.gmra.mrb[0].mxu0 %v7310
  %v7346 = vpop.f32.mrb[0].mxu0
  %v7347 = vadd.f32 %v7292, %v7346
  %v7348 = vpop.f32.mrb[0].mxu0
  %v7349 = vpop.f32.mrb[0].mxu0
  %v7350 = vpop.f32.mrb[0].mxu0
  %7351 = vdwg.mxu0
  %v7352 = vld [vmem:[%s43] sm:$0xf]
  %v7353 = vld [vmem:[%s43 + $0x4] sm:$0xf]
  %v7354 = vld [vmem:[%s43 + $0x8] sm:$0xf]
  %v7355 = vld [vmem:[%s43 + $0xc] sm:$0xf]
  %v7356 = vld [vmem:[%s45] sm:$0x1]
  %v7358 = vlaneseq
  %v7359 = vshrl.u32 %v7358, 7
  %v7360 = vsub.s32 0, %v7359
  %v7361 = vrot.slane %v7356, %v7360
  %v7367 = vunpack.c.l.b16 %v7352
  %v7368 = vunpack.c.l.b16 %v7353
  %v7369 = vunpack.c.l.b16 %v7354
  %v7370 = vunpack.c.l.b16 %v7355
  %v7371 = vpack.c.b16 %v7368, %v7367
  %v7372 = vpack.c.b16 %v7370, %v7369
  %7375 = vmatprep.subr.bf16.mxu0 0
  %7376 = vmatpush1.bf16.msra.mxu0 %v7371
  %7377 = vmatprep.subr.bf16.mxu0 0
  %7378 = vmatpush1.bf16.msra.mxu0 %v7372
  %7379 = vmatprep.subr.bf16.mxu0 0
  %7380 = vmatpush1.bf16.msra.mxu0 0
  %7381 = vmatprep.subr.bf16.mxu0 0
  %7382 = vmatpush1.bf16.msra.mxu0 0
  %7383 = vmatprep.subr.bf16.mxu0 0
  %7384 = vmatpush1.bf16.msra.mxu0 0
  %7385 = vmatprep.subr.bf16.mxu0 0
  %7386 = vmatpush1.bf16.msra.mxu0 0
  %7387 = vmatprep.subr.bf16.mxu0 0
  %7388 = vmatpush1.bf16.msra.mxu0 0
  %7389 = vmatprep.subr.bf16.mxu0 0
  %7390 = vmatpush1.bf16.msra.mxu0 0
  %7391 = vmatprep.subr.bf16.mxu0 0
  %7392 = vmatpush1.bf16.msra.mxu0 0
  %7393 = vmatprep.subr.bf16.mxu0 0
  %7394 = vmatpush1.bf16.msra.mxu0 0
  %7395 = vmatprep.subr.bf16.mxu0 0
  %7396 = vmatpush1.bf16.msra.mxu0 0
  %7397 = vmatprep.subr.bf16.mxu0 0
  %7398 = vmatpush1.bf16.msra.mxu0 0
  %7399 = vmatprep.subr.bf16.mxu0 0
  %7400 = vmatpush1.bf16.msra.mxu0 0
  %7401 = vmatprep.subr.bf16.mxu0 0
  %7402 = vmatpush1.bf16.msra.mxu0 0
  %7403 = vmatprep.subr.bf16.mxu0 0
  %7404 = vmatpush1.bf16.msra.mxu0 0
  %7405 = vmatprep.subr.bf16.mxu0 0
  %7406 = vmatpush1.bf16.msra.mxu0 0
  %7407 = vmatprep.mubr.bf16.mxu0 0
  %7408 = vmatmul.mubr.bf16.gmra.mrb[0].mxu0 %v6705
  %v7409 = vpop.f32.mrb[0].mxu0
  %v7410 = vadd.f32 %v7361, %v7409
  %v7411 = vpop.f32.mrb[0].mxu0
  %v7412 = vpop.f32.mrb[0].mxu0
  %v7413 = vpop.f32.mrb[0].mxu0
  %7414 = vdwg.mxu0
  %v7415 = vadd.f32 %v7347, %v7410
  %v7416 = vxor.u32 %v7415, 2147483648
  %v7417 = vmul.f32 %v7416, 1.442695
  %v7418 = vpow.pop %v7417
  %v7419 = vadd.f32 %v7418, 1.0
  %v7420 = vrcp.pop %v7419
  %v7421 = vmul.f32 1.0, %v7420
  %7423 = vrot.lane.b32.xlu0 %v7410, 64
  %v7424 = vpop.permute.xlu0 %7423
  %v7426 = vmul.f32 %v7421, %v7424
  %7428 = vrot.lane.b32.xlu0 %v7426, 64
  %v7429 = vpop.permute.xlu0 %7428
  %v7431 = vadd.f32 %v7347, %v7429
  %v7432 = vtanh.pop %v7431
  %v7433 = vsub.f32 1.0, %v7421
  %7435 = vrot.lane.b32.xlu0 %v7432, 96
  %v7436 = vpop.permute.xlu0 %7435
  %v7438 = vmul.f32 %v7433, %v7436
  %v7439 = vmul.f32 %v7421, %v6683
  %v7440 = vadd.f32 %v7438, %v7439
  %v7441 = vpack.c.bf16 %v7440, %v7440
  %v7442 = vld [vmem:[%s47] sm:$0xf]
  %v7443 = vld [vmem:[%s47 + $0x4] sm:$0xf]
  %v7444 = vld [vmem:[%s47 + $0x8] sm:$0xf]
  %v7445 = vld [vmem:[%s47 + $0xc] sm:$0xf]
  %7447 = vrot.lane.b32.xlu0 %v7441, 96
  %v7448 = vpop.permute.xlu0 %7447
  %v7453 = vunpack.c.l.b16 %v7442
  %v7454 = vunpack.c.l.b16 %v7443
  %v7455 = vunpack.c.l.b16 %v7444
  %v7456 = vunpack.c.l.b16 %v7445
  %v7457 = vpack.c.b16 %v7454, %v7453
  %v7458 = vpack.c.b16 %v7456, %v7455
  %v7462 = vsel %vm151, %v7448, 0
  %7464 = vmatprep.subr.bf16.mxu0 0
  %7465 = vmatpush1.bf16.msra.mxu0 %v7457
  %7466 = vmatprep.subr.bf16.mxu0 0
  %7467 = vmatpush1.bf16.msra.mxu0 %v7458
  %7468 = vmatprep.subr.bf16.mxu0 0
  %7469 = vmatpush1.bf16.msra.mxu0 0
  %7470 = vmatprep.subr.bf16.mxu0 0
  %7471 = vmatpush1.bf16.msra.mxu0 0
  %7472 = vmatprep.subr.bf16.mxu0 0
  %7473 = vmatpush1.bf16.msra.mxu0 0
  %7474 = vmatprep.subr.bf16.mxu0 0
  %7475 = vmatpush1.bf16.msra.mxu0 0
  %7476 = vmatprep.subr.bf16.mxu0 0
  %7477 = vmatpush1.bf16.msra.mxu0 0
  %7478 = vmatprep.subr.bf16.mxu0 0
  %7479 = vmatpush1.bf16.msra.mxu0 0
  %7480 = vmatprep.subr.bf16.mxu0 0
  %7481 = vmatpush1.bf16.msra.mxu0 0
  %7482 = vmatprep.subr.bf16.mxu0 0
  %7483 = vmatpush1.bf16.msra.mxu0 0
  %7484 = vmatprep.subr.bf16.mxu0 0
  %7485 = vmatpush1.bf16.msra.mxu0 0
  %7486 = vmatprep.subr.bf16.mxu0 0
  %7487 = vmatpush1.bf16.msra.mxu0 0
  %7488 = vmatprep.subr.bf16.mxu0 0
  %7489 = vmatpush1.bf16.msra.mxu0 0
  %7490 = vmatprep.subr.bf16.mxu0 0
  %7491 = vmatpush1.bf16.msra.mxu0 0
  %7492 = vmatprep.subr.bf16.mxu0 0
  %7493 = vmatpush1.bf16.msra.mxu0 0
  %7494 = vmatprep.subr.bf16.mxu0 0
  %7495 = vmatpush1.bf16.msra.mxu0 0
  %7496 = vmatprep.mubr.bf16.mxu0 0
  %7497 = vmatmul.mubr.bf16.gmra.mrb[0].mxu0 %v7462
  %v7498 = vpop.f32.mrb[0].mxu0
  %v7499 = vadd.f32 0.0, %v7498
  %v7500 = vpop.f32.mrb[0].mxu0
  %v7501 = vpop.f32.mrb[0].mxu0
  %v7502 = vpop.f32.mrb[0].mxu0
  %7503 = vdwg.mxu0
  %v7504 = vadd.f32 %v6747, %v7499
  %v7505 = vpack.c.bf16 %v7504, %v7504
  %v7506 = vld [vmem:[%s49] sm:$0xff]
  %v7507 = vld [vmem:[%s49 + $0x8] sm:$0xff]
  %v7508 = vld [vmem:[%s49 + $0x10] sm:$0xff]
  %v7509 = vld [vmem:[%s49 + $0x18] sm:$0xff]
  %v7510 = vld [vmem:[%s49 + $0x20] sm:$0xff]
  %v7511 = vld [vmem:[%s49 + $0x28] sm:$0xff]
  %v7512 = vld [vmem:[%s49 + $0x30] sm:$0xff]
  %v7513 = vld [vmem:[%s49 + $0x38] sm:$0xff]
  %v7514 = vld [vmem:[%s51] sm:$0x3]
  %v7516 = vlaneseq
  %v7517 = vshrl.u32 %v7516, 7
  %v7518 = vsub.s32 0, %v7517
  %v7519 = vrot.slane %v7514, %v7518
  %v7520 = vlaneseq
  %v7521 = vshrl.u32 %v7520, 7
  %v7522 = vsub.s32 1, %v7521
  %v7523 = vrot.slane %v7514, %v7522
  %v7534 = vunpack.c.l.b16 %v7506
  %v7535 = vunpack.c.h.b16 %v7506
  %v7536 = vunpack.c.l.b16 %v7507
  %v7537 = vunpack.c.h.b16 %v7507
  %v7538 = vunpack.c.l.b16 %v7508
  %v7539 = vunpack.c.h.b16 %v7508
  %v7540 = vunpack.c.l.b16 %v7509
  %v7541 = vunpack.c.h.b16 %v7509
  %v7542 = vunpack.c.l.b16 %v7510
  %v7543 = vunpack.c.h.b16 %v7510
  %v7544 = vunpack.c.l.b16 %v7511
  %v7545 = vunpack.c.h.b16 %v7511
  %v7546 = vunpack.c.l.b16 %v7512
  %v7547 = vunpack.c.h.b16 %v7512
  %v7548 = vunpack.c.l.b16 %v7513
  %v7549 = vunpack.c.h.b16 %v7513
  %v7550 = vpack.c.b16 %v7536, %v7534
  %v7551 = vpack.c.b16 %v7537, %v7535
  %v7552 = vpack.c.b16 %v7540, %v7538
  %v7553 = vpack.c.b16 %v7541, %v7539
  %v7554 = vpack.c.b16 %v7544, %v7542
  %v7555 = vpack.c.b16 %v7545, %v7543
  %v7556 = vpack.c.b16 %v7548, %v7546
  %v7557 = vpack.c.b16 %v7549, %v7547
  %v7567 = vsel %vm1515, %v7505, 0
  %7569 = vmatprep.subr.bf16.mxu0 %v7551
  %7570 = vmatpush1.bf16.msra.mxu0 %v7550
  %7571 = vmatprep.subr.bf16.mxu0 %v7553
  %7572 = vmatpush1.bf16.msra.mxu0 %v7552
  %7573 = vmatprep.subr.bf16.mxu0 %v7555
  %7574 = vmatpush1.bf16.msra.mxu0 %v7554
  %7575 = vmatprep.subr.bf16.mxu0 %v7557
  %7576 = vmatpush1.bf16.msra.mxu0 %v7556
  %7577 = vmatprep.subr.bf16.mxu0 0
  %7578 = vmatpush1.bf16.msra.mxu0 0
  %7579 = vmatprep.subr.bf16.mxu0 0
  %7580 = vmatpush1.bf16.msra.mxu0 0
  %7581 = vmatprep.subr.bf16.mxu0 0
  %7582 = vmatpush1.bf16.msra.mxu0 0
  %7583 = vmatprep.subr.bf16.mxu0 0
  %7584 = vmatpush1.bf16.msra.mxu0 0
  %7585 = vmatprep.subr.bf16.mxu0 0
  %7586 = vmatpush1.bf16.msra.mxu0 0
  %7587 = vmatprep.subr.bf16.mxu0 0
  %7588 = vmatpush1.bf16.msra.mxu0 0
  %7589 = vmatprep.subr.bf16.mxu0 0
  %7590 = vmatpush1.bf16.msra.mxu0 0
  %7591 = vmatprep.subr.bf16.mxu0 0
  %7592 = vmatpush1.bf16.msra.mxu0 0
  %7593 = vmatprep.subr.bf16.mxu0 0
  %7594 = vmatpush1.bf16.msra.mxu0 0
  %7595 = vmatprep.subr.bf16.mxu0 0
  %7596 = vmatpush1.bf16.msra.mxu0 0
  %7597 = vmatprep.subr.bf16.mxu0 0
  %7598 = vmatpush1.bf16.msra.mxu0 0
  %7599 = vmatprep.subr.bf16.mxu0 0
  %7600 = vmatpush1.bf16.msra.mxu0 0
  %7601 = vmatprep.mubr.bf16.mxu0 0
  %7602 = vmatmul.mubr.bf16.gmra.mrb[0].mxu0 %v7567
  %v7603 = vpop.f32.mrb[0].mxu0
  %v7604 = vadd.f32 %v7519, %v7603
  %v7605 = vpop.f32.mrb[0].mxu0
  %v7606 = vadd.f32 %v7523, %v7605
  %v7607 = vpop.f32.mrb[0].mxu0
  %v7608 = vpop.f32.mrb[0].mxu0
  %7609 = vdwg.mxu0
  %v7610 = vpack.c.bf16 %v6978, %v6978
  %v7611 = vld [vmem:[%s53] sm:$0xff]
  %v7612 = vld [vmem:[%s53 + $0x8] sm:$0xff]
  %v7613 = vld [vmem:[%s53 + $0x10] sm:$0xff]
  %v7614 = vld [vmem:[%s53 + $0x18] sm:$0xff]
  %v7615 = vld [vmem:[%s53 + $0x20] sm:$0xff]
  %v7616 = vld [vmem:[%s53 + $0x28] sm:$0xff]
  %v7617 = vld [vmem:[%s53 + $0x30] sm:$0xff]
  %v7618 = vld [vmem:[%s53 + $0x38] sm:$0xff]
  %v7619 = vld [vmem:[%s55] sm:$0x3]
  %v7621 = vlaneseq
  %v7622 = vshrl.u32 %v7621, 7
  %v7623 = vsub.s32 0, %v7622
  %v7624 = vrot.slane %v7619, %v7623
  %v7625 = vlaneseq
  %v7626 = vshrl.u32 %v7625, 7
  %v7627 = vsub.s32 1, %v7626
  %v7628 = vrot.slane %v7619, %v7627
  %7632 = vrot.lane.b32.xlu0 %v7610, 64
  %v7633 = vpop.permute.xlu0 %7632
  %v7642 = vunpack.c.l.b16 %v7611
  %v7643 = vunpack.c.h.b16 %v7611
  %v7644 = vunpack.c.l.b16 %v7612
  %v7645 = vunpack.c.h.b16 %v7612
  %v7646 = vunpack.c.l.b16 %v7613
  %v7647 = vunpack.c.h.b16 %v7613
  %v7648 = vunpack.c.l.b16 %v7614
  %v7649 = vunpack.c.h.b16 %v7614
  %v7650 = vunpack.c.l.b16 %v7615
  %v7651 = vunpack.c.h.b16 %v7615
  %v7652 = vunpack.c.l.b16 %v7616
  %v7653 = vunpack.c.h.b16 %v7616
  %v7654 = vunpack.c.l.b16 %v7617
  %v7655 = vunpack.c.h.b16 %v7617
  %v7656 = vunpack.c.l.b16 %v7618
  %v7657 = vunpack.c.h.b16 %v7618
  %v7658 = vpack.c.b16 %v7644, %v7642
  %v7659 = vpack.c.b16 %v7645, %v7643
  %v7660 = vpack.c.b16 %v7648, %v7646
  %v7661 = vpack.c.b16 %v7649, %v7647
  %v7662 = vpack.c.b16 %v7652, %v7650
  %v7663 = vpack.c.b16 %v7653, %v7651
  %v7664 = vpack.c.b16 %v7656, %v7654
  %v7665 = vpack.c.b16 %v7657, %v7655
  %v7675 = vsel %vm1515, %v7633, 0
  %7677 = vmatprep.subr.bf16.mxu0 %v7659
  %7678 = vmatpush1.bf16.msra.mxu0 %v7658
  %7679 = vmatprep.subr.bf16.mxu0 %v7661
  %7680 = vmatpush1.bf16.msra.mxu0 %v7660
  %7681 = vmatprep.subr.bf16.mxu0 %v7663
  %7682 = vmatpush1.bf16.msra.mxu0 %v7662
  %7683 = vmatprep.subr.bf16.mxu0 %v7665
  %7684 = vmatpush1.bf16.msra.mxu0 %v7664
  %7685 = vmatprep.subr.bf16.mxu0 0
  %7686 = vmatpush1.bf16.msra.mxu0 0
  %7687 = vmatprep.subr.bf16.mxu0 0
  %7688 = vmatpush1.bf16.msra.mxu0 0
  %7689 = vmatprep.subr.bf16.mxu0 0
  %7690 = vmatpush1.bf16.msra.mxu0 0
  %7691 = vmatprep.subr.bf16.mxu0 0
  %7692 = vmatpush1.bf16.msra.mxu0 0
  %7693 = vmatprep.subr.bf16.mxu0 0
  %7694 = vmatpush1.bf16.msra.mxu0 0
  %7695 = vmatprep.subr.bf16.mxu0 0
  %7696 = vmatpush1.bf16.msra.mxu0 0
  %7697 = vmatprep.subr.bf16.mxu0 0
  %7698 = vmatpush1.bf16.msra.mxu0 0
  %7699 = vmatprep.subr.bf16.mxu0 0
  %7700 = vmatpush1.bf16.msra.mxu0 0
  %7701 = vmatprep.subr.bf16.mxu0 0
  %7702 = vmatpush1.bf16.msra.mxu0 0
  %7703 = vmatprep.subr.bf16.mxu0 0
  %7704 = vmatpush1.bf16.msra.mxu0 0
  %7705 = vmatprep.subr.bf16.mxu0 0
  %7706 = vmatpush1.bf16.msra.mxu0 0
  %7707 = vmatprep.subr.bf16.mxu0 0
  %7708 = vmatpush1.bf16.msra.mxu0 0
  %7709 = vmatprep.mubr.bf16.mxu0 0
  %7710 = vmatmul.mubr.bf16.gmra.mrb[0].mxu0 %v7675
  %v7711 = vpop.f32.mrb[0].mxu0
  %v7712 = vadd.f32 %v7624, %v7711
  %v7713 = vpop.f32.mrb[0].mxu0
  %v7714 = vadd.f32 %v7628, %v7713
  %v7715 = vpop.f32.mrb[0].mxu0
  %v7716 = vpop.f32.mrb[0].mxu0
  %7717 = vdwg.mxu0
  %v7718 = vadd.f32 %v7604, %v7712
  %v7719 = vxor.u32 %v7718, 2147483648
  %v7720 = vmul.f32 %v7719, 1.442695
  %v7721 = vpow.pop %v7720
  %v7722 = vadd.f32 %v7721, 1.0
  %v7723 = vrcp.pop %v7722
  %v7724 = vmul.f32 1.0, %v7723
  %v7725 = vmul.f32 %v7724, %v7714
  %v7726 = vadd.f32 %v7606, %v7725
  %v7727 = vtanh.pop %v7726
  %v7728 = vsub.f32 1.0, %v7724
  %7730 = vrot.lane.b32.xlu0 %v7727, 64
  %v7731 = vpop.permute.xlu0 %7730
  %v7733 = vmul.f32 %v7728, %v7731
  %v7734 = vmul.f32 %v7724, %v6978
  %v7735 = vadd.f32 %v7733, %v7734
  %7737 = vrot.lane.b32.xlu0 %v7735, 64
  %v7738 = vpop.permute.xlu0 %7737
  %s7740 = scalar_lea.vmem [#allocation2], 64
  %7741 = vst.msk [vmem:[%s7740] sm:$0xff] %vm1515, %v7738
  %v7742 = vld [vmem:[#allocation2] sm:$0xff]
  %v7743 = vld [vmem:[#allocation2 + $0x8] sm:$0xff]
  %v7744 = vld [vmem:[#allocation2 + $0x10] sm:$0xff]
  %v7745 = vld [vmem:[#allocation2 + $0x18] sm:$0xff]
  %v7746 = vld [vmem:[#allocation2 + $0x20] sm:$0xff]
  %v7747 = vld [vmem:[#allocation2 + $0x28] sm:$0xff]
  %v7748 = vld [vmem:[#allocation2 + $0x30] sm:$0xff]
  %v7749 = vld [vmem:[#allocation2 + $0x38] sm:$0xff]
  %v7750 = vld [vmem:[#allocation2 + $0x40] sm:$0xff]
  %v7751 = vpack.c.bf16 %v7743, %v7742
  %v7752 = vpack.c.bf16 %v7745, %v7744
  %v7753 = vpack.c.bf16 %v7747, %v7746
  %v7754 = vpack.c.bf16 %v7749, %v7748
  %v7755 = vpack.c.bf16 %v7750, %v7750
  %v7756 = vld [vmem:[%s57] sm:$0xf]
  %v7757 = vld [vmem:[%s57 + $0x4] sm:$0xf]
  %v7758 = vld [vmem:[%s57 + $0x8] sm:$0xf]
  %v7759 = vld [vmem:[%s57 + $0xc] sm:$0xf]
  %v7760 = vld [vmem:[%s57 + $0x10] sm:$0xf]
  %v7761 = vld [vmem:[%s57 + $0x14] sm:$0xf]
  %v7762 = vld [vmem:[%s57 + $0x18] sm:$0xf]
  %v7763 = vld [vmem:[%s57 + $0x1c] sm:$0xf]
  %v7764 = vld [vmem:[%s59] sm:$0x1]
  %v7766 = vlaneseq
  %v7767 = vshrl.u32 %v7766, 7
  %v7768 = vsub.s32 0, %v7767
  %v7769 = vrot.slane %v7764, %v7768
  %v7779 = vunpack.c.l.b16 %v7756
  %v7780 = vunpack.c.l.b16 %v7757
  %v7781 = vunpack.c.l.b16 %v7758
  %v7782 = vunpack.c.l.b16 %v7759
  %v7783 = vunpack.c.l.b16 %v7760
  %v7784 = vunpack.c.l.b16 %v7761
  %v7785 = vunpack.c.l.b16 %v7762
  %v7786 = vunpack.c.l.b16 %v7763
  %v7787 = vpack.c.b16 %v7780, %v7779
  %v7788 = vpack.c.b16 %v7782, %v7781
  %v7789 = vpack.c.b16 %v7784, %v7783
  %v7790 = vpack.c.b16 %v7786, %v7785
  %v7796 = vsel %vm1515, %v7751, 0
  %v7799 = vsel %vm1515, %v7752, 0
  %v7802 = vsel %vm1515, %v7753, 0
  %v7805 = vsel %vm1515, %v7754, 0
  %v7808 = vsel %vm1515, %v7755, 0
  %7810 = vmatprep.subr.bf16.mxu0 0
  %7811 = vmatpush1.bf16.msra.mxu0 %v7787
  %7812 = vmatprep.subr.bf16.mxu0 0
  %7813 = vmatpush1.bf16.msra.mxu0 %v7788
  %7814 = vmatprep.subr.bf16.mxu0 0
  %7815 = vmatpush1.bf16.msra.mxu0 %v7789
  %7816 = vmatprep.subr.bf16.mxu0 0
  %7817 = vmatpush1.bf16.msra.mxu0 %v7790
  %7818 = vmatprep.subr.bf16.mxu0 0
  %7819 = vmatpush1.bf16.msra.mxu0 0
  %7820 = vmatprep.subr.bf16.mxu0 0
  %7821 = vmatpush1.bf16.msra.mxu0 0
  %7822 = vmatprep.subr.bf16.mxu0 0
  %7823 = vmatpush1.bf16.msra.mxu0 0
  %7824 = vmatprep.subr.bf16.mxu0 0
  %7825 = vmatpush1.bf16.msra.mxu0 0
  %7826 = vmatprep.subr.bf16.mxu0 0
  %7827 = vmatpush1.bf16.msra.mxu0 0
  %7828 = vmatprep.subr.bf16.mxu0 0
  %7829 = vmatpush1.bf16.msra.mxu0 0
  %7830 = vmatprep.subr.bf16.mxu0 0
  %7831 = vmatpush1.bf16.msra.mxu0 0
  %7832 = vmatprep.subr.bf16.mxu0 0
  %7833 = vmatpush1.bf16.msra.mxu0 0
  %7834 = vmatprep.subr.bf16.mxu0 0
  %7835 = vmatpush1.bf16.msra.mxu0 0
  %7836 = vmatprep.subr.bf16.mxu0 0
  %7837 = vmatpush1.bf16.msra.mxu0 0
  %7838 = vmatprep.subr.bf16.mxu0 0
  %7839 = vmatpush1.bf16.msra.mxu0 0
  %7840 = vmatprep.subr.bf16.mxu0 0
  %7841 = vmatpush1.bf16.msra.mxu0 0
  %7842 = vmatprep.mubr.bf16.mxu0 0
  %7843 = vmatmul.mubr.bf16.gmra.mrb[0].mxu0 %v7796
  %v7844 = vpop.f32.mrb[0].mxu0
  %v7845 = vadd.f32 %v7769, %v7844
  %v7846 = vpop.f32.mrb[0].mxu0
  %v7847 = vpop.f32.mrb[0].mxu0
  %v7848 = vadd.f32 %v7769, %v7847
  %v7849 = vpop.f32.mrb[0].mxu0
  %7850 = vmatprep.mubr.bf16.mxu0 0
  %7851 = vmatmul.mubr.bf16.gmra.mrb[0].mxu0 %v7799
  %v7852 = vpop.f32.mrb[0].mxu0
  %v7853 = vadd.f32 %v7769, %v7852
  %v7854 = vpop.f32.mrb[0].mxu0
  %v7855 = vpop.f32.mrb[0].mxu0
  %v7856 = vadd.f32 %v7769, %v7855
  %v7857 = vpop.f32.mrb[0].mxu0
  %7858 = vmatprep.mubr.bf16.mxu0 0
  %7859 = vmatmul.mubr.bf16.gmra.mrb[0].mxu0 %v7802
  %v7860 = vpop.f32.mrb[0].mxu0
  %v7861 = vadd.f32 %v7769, %v7860
  %v7862 = vpop.f32.mrb[0].mxu0
  %v7863 = vpop.f32.mrb[0].mxu0
  %v7864 = vadd.f32 %v7769, %v7863
  %v7865 = vpop.f32.mrb[0].mxu0
  %7866 = vmatprep.mubr.bf16.mxu0 0
  %7867 = vmatmul.mubr.bf16.gmra.mrb[0].mxu0 %v7805
  %v7868 = vpop.f32.mrb[0].mxu0
  %v7869 = vadd.f32 %v7769, %v7868
  %v7870 = vpop.f32.mrb[0].mxu0
  %v7871 = vpop.f32.mrb[0].mxu0
  %v7872 = vadd.f32 %v7769, %v7871
  %v7873 = vpop.f32.mrb[0].mxu0
  %7874 = vmatprep.mubr.bf16.mxu0 0
  %7875 = vmatmul.mubr.bf16.gmra.mrb[0].mxu0 %v7808
  %v7876 = vpop.f32.mrb[0].mxu0
  %v7877 = vadd.f32 %v7769, %v7876
  %v7878 = vpop.f32.mrb[0].mxu0
  %v7879 = vpop.f32.mrb[0].mxu0
  %v7880 = vpop.f32.mrb[0].mxu0
  %7881 = vdwg.mxu0
  %7882 = vst.msk [vmem:[%s61] sm:$0xff] %vm1336, %v7845
  %7883 = vst.msk [vmem:[%s61 + $0x8] sm:$0xff] %vm1336, %v7848
  %7884 = vst.msk [vmem:[%s61 + $0x10] sm:$0xff] %vm1336, %v7853
  %7885 = vst.msk [vmem:[%s61 + $0x18] sm:$0xff] %vm1336, %v7856
  %7886 = vst.msk [vmem:[%s61 + $0x20] sm:$0xff] %vm1336, %v7861
  %7887 = vst.msk [vmem:[%s61 + $0x28] sm:$0xff] %vm1336, %v7864
  %7888 = vst.msk [vmem:[%s61 + $0x30] sm:$0xff] %vm1336, %v7869
  %7889 = vst.msk [vmem:[%s61 + $0x38] sm:$0xff] %vm1336, %v7872
  %7890 = vst.msk [vmem:[%s61 + $0x40] sm:$0xff] %vm1336, %v7877
  // Predicated region
  $region122: #{cody_forward.3} parent=0 // pred_check
    _
  $region123: #{cody_forward.3} parent=0 // pred_check_branch
    %7892 = sbr.rel (0) target = $region125
  $region124: #{cody_forward.3} parent=0 // pred_region
    _
  $region125: #{cody_forward.3} parent=0 // pred_fallthru
    _
  // Predicated region
  $region126: #{cody_forward.3} parent=0 // pred_check
    _
  $region127: #{cody_forward.3} parent=0 // pred_check_branch
    %7894 = sbr.rel (0) target = $region129
  $region128: #{cody_forward.3} parent=0 // pred_region
    _
  $region129: #{cody_forward.3} parent=0 // pred_fallthru
    _

</llo_original>
